<compile_context>
chip_gen: v7x
topology: tpu7x:2x2x1
jax: 0.10.0
libtpu: 0.0.40
codegen_flags: <defaults>
</compile_context>

<pallas_src>
import math

import numpy as np
import jax
import jax.numpy as jnp
from jax.experimental import pallas as pl
from jax.experimental.pallas import tpu as pltpu


# ----------------------------------------------------------------------------
# Host-side: reproduce CLOPLayer._index_permute exactly (sequential swap walk).
# This is parameter setup, not the hot path.
# TODO(synk): the sequential data-dependent swap loop has no clean Pallas
#             equivalent; it is generated on host (deterministic numpy seed).
# ----------------------------------------------------------------------------
def index_permute(n_element: int, p: float, seed: int = 0) -> np.ndarray:
    rng = np.random.RandomState(seed)
    dim = int(math.sqrt(n_element))
    permuted_indexes = np.arange(0, n_element, dtype=np.int64)
    probs = (1 - p / 2, p / 8, p / 8, p / 8, p / 8)
    for i in range(-n_element + 1, n_element):
        i = abs(i)
        r = rng.choice([0, 1, 2, 3, 4], p=probs)
        if r != 0:
            if r == 1:
                idx = i + 1
            if r == 2:
                idx = i - 1
            if r == 3:
                idx = i + dim
            if r == 4:
                idx = i - dim
            if (idx > 0) & (idx < n_element):
                tmp = int(permuted_indexes[i])
                permuted_indexes[i] = int(permuted_indexes[idx])
                permuted_indexes[idx] = tmp
    return permuted_indexes


# ----------------------------------------------------------------------------
# Tiling helpers.
# ----------------------------------------------------------------------------
def _choose_group(n: int) -> int:
    """Rows gathered per grid step; prefer a multiple of 8 that divides N."""
    for g in (32, 16, 8):
        if n % g == 0:
            return g
    if n <= 512:
        return n            # single full block (block dims equal array dims)
    for g in range(31, 1, -1):
        if n % g == 0:
            return g
    return 1


def _padded_tile_bytes(rows: int, cols: int, dtype) -> int:
    """Padded (sublane, lane)-tile footprint, dtype-packing aware."""
    itemsize = np.dtype(dtype).itemsize
    sub = 8 * max(1, 4 // itemsize)          # sub-32-bit dtypes pack along sublanes
    r = ((rows + sub - 1) // sub) * sub
    c = ((cols + 127) // 128) * 128
    return r * c * itemsize


# ----------------------------------------------------------------------------
# Pallas kernel: grouped, double-buffered DMA row gather.
#   x_hbm : (N, M) raw HBM ref        (memory_space=pl.ANY)
#   o_ref : (G, M) output block       (rows [group*G, group*G + G))
#   rows  : (2*G, M) VMEM scratch     (two G-row slots)
#   sems  : (2*G,)   DMA semaphores   (one per in-flight row DMA)
# ----------------------------------------------------------------------------
def _make_gather_kernel(g_rows: int, n_steps: int):

    def kernel(perm_ref, x_hbm, o_ref, rows, sems):
        j = pl.program_id(1)
        group = pl.program_id(0) * n_steps + j

        def issue(grp, slot):
            base = grp * g_rows
            for r in range(g_rows):            # static unroll: keep all G in flight
                idx = slot * g_rows + r
                pltpu.make_async_copy(
                    x_hbm.at[pl.ds(perm_ref[base + r], 1)],
                    rows.at[pl.ds(idx, 1)],
                    sems.at[idx],
                ).start()

        # Prime the pipeline at the start of every sequential chunk.
        @pl.when(j == 0)
        def _prime():
            issue(group, 0)

        # Prefetch the next group into the other slot while this one lands.
        @pl.when(j + 1 < n_steps)
        def _prefetch():
            issue(group + 1, (j + 1) & 1)

        # Wait for this step's G row DMAs, then one dense multi-row store.
        slot = j & 1
        for r in range(g_rows):
            idx = slot * g_rows + r
            pltpu.make_async_copy(
                x_hbm.at[pl.ds(0, 1)],
                rows.at[pl.ds(idx, 1)],
                sems.at[idx],
            ).wait()

        start = slot * g_rows
        if g_rows % 8 == 0:
            start = pl.multiple_of(start, 8)
        o_ref[...] = rows[pl.ds(start, g_rows), :]

    return kernel


def _build_gather_call(n: int, m: int, dtype):
    g_rows = _choose_group(n)
    n_groups = n // g_rows
    n_chunks = 2 if (n_groups >= 2 and n_groups % 2 == 0) else 1  # outer parallel axis
    n_steps = n_groups // n_chunks

    # VMEM budget: double-buffered (G, M) output blocks + (2G, M) scratch,
    # with 2x slack; capped well under v7x's 64 MiB physical / 32 MiB scoped.
    out_tile = _padded_tile_bytes(g_rows, m, dtype)
    scratch_tile = _padded_tile_bytes(2 * g_rows, m, dtype)
    vmem_limit = int(min(24 << 20, max(4 << 20, 2 * (2 * out_tile + scratch_tile))))

    grid_spec = pltpu.PrefetchScalarGridSpec(
        num_scalar_prefetch=1,                       # perm (int32, (N,)) lands in SMEM
        grid=(n_chunks, n_steps),
        in_specs=[pl.BlockSpec(memory_space=pl.ANY)],  # raw HBM ref, manual DMA gather
        # NOTE: when M = B*C < 128 (toy sizes) this store is lane-masked; real
        # CNN workloads have B*C >= 128 and are lane-dense. Folding rows into
        # lanes was considered but the row DMAs dominate at small M anyway.
        out_specs=pl.BlockSpec((g_rows, m),
                               lambda ci, j, perm_ref: (ci * n_steps + j, 0)),
        scratch_shapes=[
            pltpu.VMEM((2 * g_rows, m), dtype),      # double-buffered gathered rows
            pltpu.SemaphoreType.DMA((2 * g_rows,)),  # one sem per in-flight row DMA
        ],
    )
    return pl.pallas_call(
        _make_gather_kernel(g_rows, n_steps),
        out_shape=jax.ShapeDtypeStruct((n, m), dtype),
        grid_spec=grid_spec,
        compiler_params=pltpu.CompilerParams(
            dimension_semantics=("parallel", "arbitrary"),
            vmem_limit_bytes=vmem_limit,
        ),
    )


@jax.jit
def _clop_apply(x: jax.Array, perm: jax.Array) -> jax.Array:
    B, C, H, W = x.shape
    N, M = H * W, B * C
    perm_i32 = perm.astype(jnp.int32)
    flat = x.reshape(M, N)
    # Row-gather DMAs need the permuted axis major; this transpose (and the
    # one on the way back) each cost one extra HBM read+write.
    # TODO(synk): gather along lanes of the natural (M, N) layout in-VMEM to
    #             remove both transposes once lane-axis dynamic gather is solid.
    xt = flat.T                                     # (N, M)
    out_t = _build_gather_call(N, M, x.dtype)(perm_i32, xt)
    return out_t.T.reshape(B, C, H, W)


def clop_forward(x: jax.Array, perm: jax.Array, training: bool = True) -> jax.Array:
    """CLOPLayer.forward. x is NCHW; perm is an int32 device array of shape (H*W,)."""
    if not training:
        return x
    return _clop_apply(x, perm)


if __name__ == "__main__":
    key = jax.random.PRNGKey(0)
    B, C, H, W = 2, 4, 16, 16  # input shape (NCHW)
    x = jax.random.normal(key, (B, C, H, W), dtype=jnp.float32)

    perm_np = index_permute(H * W, p=0.9, seed=0)
    perm_dev = jnp.asarray(perm_np, dtype=jnp.int32)   # convert once, keep on device

    y = clop_forward(x, perm_dev, training=True)
    y = jax.block_until_ready(y)

    # Reference: same gather in plain JAX. Kernel is pure data movement -> exact.
    ref = x.reshape(B * C, H * W)[:, jnp.asarray(perm_np, dtype=jnp.int32)]
    ref = ref.reshape(B, C, H, W)
    assert y.shape == x.shape and y.dtype == x.dtype
    np.testing.assert_allclose(np.asarray(y), np.asarray(ref), rtol=0, atol=0)

    # Eval mode is identity.
    y_eval = clop_forward(x, perm_dev, training=False)
    np.testing.assert_allclose(np.asarray(y_eval), np.asarray(x))

    print("KERNEL_OK")
</pallas_src>

<mosaic_0001>
module attributes {stable_mosaic.version = 11 : i64} {
  func.func @kernel(%arg0: i32, %arg1: i32, %arg2: memref<256xi32, #tpu.memory_space<smem>>, %arg3: memref<256x8xf32, #tpu.memory_space<any>>, %arg4: memref<32x8xf32, #tpu.memory_space<vmem>>, %arg5: memref<64x8xf32, #tpu.memory_space<vmem>>, %arg6: memref<64x!tpu.dma_semaphore, #tpu.memory_space<semaphore_mem>>) attributes {dimension_semantics = [#tpu.dimension_semantics<parallel>, #tpu.dimension_semantics<arbitrary>], iteration_bounds = array<i64: 2, 4>, scalar_prefetch = 1 : i64, scratch_operands = 2 : i64, tpu.core_type = #tpu.core_type<tc>, window_params = [{}, {transform_indices = @transform_1, window_bounds = array<i64: 32, 8>}]} {
    %c4_i32 = arith.constant 4 : i32
    %0 = arith.muli %arg0, %c4_i32 : i32
    %1 = arith.addi %0, %arg1 : i32
    %c0_i32 = arith.constant 0 : i32
    %2 = arith.cmpi eq, %arg1, %c0_i32 : i32
    %3 = arith.extui %2 : i1 to i32
    %c0_i32_0 = arith.constant 0 : i32
    %4 = arith.cmpi ne, %3, %c0_i32_0 : i32
    scf.if %4 {
      %c32_i32_137 = arith.constant 32 : i32
      %207 = arith.muli %1, %c32_i32_137 : i32
      %c0_i32_138 = arith.constant 0 : i32
      %208 = arith.addi %207, %c0_i32_138 : i32
      %209 = arith.index_cast %208 : i32 to index
      %210 = memref.load %arg2[%209] : memref<256xi32, #tpu.memory_space<smem>>
      %c0_i32_139 = arith.constant 0 : i32
      %c0_i32_140 = arith.constant 0 : i32
      %211 = tpu.memref_slice %arg3[%210, %c0_i32_140] : memref<256x8xf32, #tpu.memory_space<any>> -> memref<1x8xf32, #tpu.memory_space<any>>
      %c0_i32_141 = arith.constant 0 : i32
      %c0_i32_142 = arith.constant 0 : i32
      %212 = tpu.memref_slice %arg5[%c0_i32_141, %c0_i32_142] : memref<64x8xf32, #tpu.memory_space<vmem>> -> memref<1x8xf32, #tpu.memory_space<vmem>>
      %213 = tpu.memref_slice %arg6[%c0_i32_139] : memref<64x!tpu.dma_semaphore, #tpu.memory_space<semaphore_mem>> -> memref<1x!tpu.dma_semaphore, #tpu.memory_space<semaphore_mem>>
      %214 = tpu.memref_squeeze %213 : memref<1x!tpu.dma_semaphore, #tpu.memory_space<semaphore_mem>> -> memref<!tpu.dma_semaphore, #tpu.memory_space<semaphore_mem>>
      tpu.enqueue_dma source(%211 : memref<1x8xf32, #tpu.memory_space<any>>) target(%212 : memref<1x8xf32, #tpu.memory_space<vmem>>) target_semaphore(%214 : memref<!tpu.dma_semaphore, #tpu.memory_space<semaphore_mem>>)
      %c1_i32_143 = arith.constant 1 : i32
      %215 = arith.addi %207, %c1_i32_143 : i32
      %216 = arith.index_cast %215 : i32 to index
      %217 = memref.load %arg2[%216] : memref<256xi32, #tpu.memory_space<smem>>
      %c1_i32_144 = arith.constant 1 : i32
      %c0_i32_145 = arith.constant 0 : i32
      %218 = tpu.memref_slice %arg3[%217, %c0_i32_145] : memref<256x8xf32, #tpu.memory_space<any>> -> memref<1x8xf32, #tpu.memory_space<any>>
      %c1_i32_146 = arith.constant 1 : i32
      %c0_i32_147 = arith.constant 0 : i32
      %219 = tpu.memref_slice %arg5[%c1_i32_146, %c0_i32_147] : memref<64x8xf32, #tpu.memory_space<vmem>> -> memref<1x8xf32, #tpu.memory_space<vmem>>
      %220 = tpu.memref_slice %arg6[%c1_i32_144] : memref<64x!tpu.dma_semaphore, #tpu.memory_space<semaphore_mem>> -> memref<1x!tpu.dma_semaphore, #tpu.memory_space<semaphore_mem>>
      %221 = tpu.memref_squeeze %220 : memref<1x!tpu.dma_semaphore, #tpu.memory_space<semaphore_mem>> -> memref<!tpu.dma_semaphore, #tpu.memory_space<semaphore_mem>>
      tpu.enqueue_dma source(%218 : memref<1x8xf32, #tpu.memory_space<any>>) target(%219 : memref<1x8xf32, #tpu.memory_space<vmem>>) target_semaphore(%221 : memref<!tpu.dma_semaphore, #tpu.memory_space<semaphore_mem>>)
      %c2_i32_148 = arith.constant 2 : i32
      %222 = arith.addi %207, %c2_i32_148 : i32
      %223 = arith.index_cast %222 : i32 to index
      %224 = memref.load %arg2[%223] : memref<256xi32, #tpu.memory_space<smem>>
      %c2_i32_149 = arith.constant 2 : i32
      %c0_i32_150 = arith.constant 0 : i32
      %225 = tpu.memref_slice %arg3[%224, %c0_i32_150] : memref<256x8xf32, #tpu.memory_space<any>> -> memref<1x8xf32, #tpu.memory_space<any>>
      %c2_i32_151 = arith.constant 2 : i32
      %c0_i32_152 = arith.constant 0 : i32
      %226 = tpu.memref_slice %arg5[%c2_i32_151, %c0_i32_152] : memref<64x8xf32, #tpu.memory_space<vmem>> -> memref<1x8xf32, #tpu.memory_space<vmem>>
      %227 = tpu.memref_slice %arg6[%c2_i32_149] : memref<64x!tpu.dma_semaphore, #tpu.memory_space<semaphore_mem>> -> memref<1x!tpu.dma_semaphore, #tpu.memory_space<semaphore_mem>>
      %228 = tpu.memref_squeeze %227 : memref<1x!tpu.dma_semaphore, #tpu.memory_space<semaphore_mem>> -> memref<!tpu.dma_semaphore, #tpu.memory_space<semaphore_mem>>
      tpu.enqueue_dma source(%225 : memref<1x8xf32, #tpu.memory_space<any>>) target(%226 : memref<1x8xf32, #tpu.memory_space<vmem>>) target_semaphore(%228 : memref<!tpu.dma_semaphore, #tpu.memory_space<semaphore_mem>>)
      %c3_i32_153 = arith.constant 3 : i32
      %229 = arith.addi %207, %c3_i32_153 : i32
      %230 = arith.index_cast %229 : i32 to index
      %231 = memref.load %arg2[%230] : memref<256xi32, #tpu.memory_space<smem>>
      %c3_i32_154 = arith.constant 3 : i32
      %c0_i32_155 = arith.constant 0 : i32
      %232 = tpu.memref_slice %arg3[%231, %c0_i32_155] : memref<256x8xf32, #tpu.memory_space<any>> -> memref<1x8xf32, #tpu.memory_space<any>>
      %c3_i32_156 = arith.constant 3 : i32
      %c0_i32_157 = arith.constant 0 : i32
      %233 = tpu.memref_slice %arg5[%c3_i32_156, %c0_i32_157] : memref<64x8xf32, #tpu.memory_space<vmem>> -> memref<1x8xf32, #tpu.memory_space<vmem>>
      %234 = tpu.memref_slice %arg6[%c3_i32_154] : memref<64x!tpu.dma_semaphore, #tpu.memory_space<semaphore_mem>> -> memref<1x!tpu.dma_semaphore, #tpu.memory_space<semaphore_mem>>
      %235 = tpu.memref_squeeze %234 : memref<1x!tpu.dma_semaphore, #tpu.memory_space<semaphore_mem>> -> memref<!tpu.dma_semaphore, #tpu.memory_space<semaphore_mem>>
      tpu.enqueue_dma source(%232 : memref<1x8xf32, #tpu.memory_space<any>>) target(%233 : memref<1x8xf32, #tpu.memory_space<vmem>>) target_semaphore(%235 : memref<!tpu.dma_semaphore, #tpu.memory_space<semaphore_mem>>)
      %c4_i32_158 = arith.constant 4 : i32
      %236 = arith.addi %207, %c4_i32_158 : i32
      %237 = arith.index_cast %236 : i32 to index
      %238 = memref.load %arg2[%237] : memref<256xi32, #tpu.memory_space<smem>>
      %c4_i32_159 = arith.constant 4 : i32
      %c0_i32_160 = arith.constant 0 : i32
      %239 = tpu.memref_slice %arg3[%238, %c0_i32_160] : memref<256x8xf32, #tpu.memory_space<any>> -> memref<1x8xf32, #tpu.memory_space<any>>
      %c4_i32_161 = arith.constant 4 : i32
      %c0_i32_162 = arith.constant 0 : i32
      %240 = tpu.memref_slice %arg5[%c4_i32_161, %c0_i32_162] : memref<64x8xf32, #tpu.memory_space<vmem>> -> memref<1x8xf32, #tpu.memory_space<vmem>>
      %241 = tpu.memref_slice %arg6[%c4_i32_159] : memref<64x!tpu.dma_semaphore, #tpu.memory_space<semaphore_mem>> -> memref<1x!tpu.dma_semaphore, #tpu.memory_space<semaphore_mem>>
      %242 = tpu.memref_squeeze %241 : memref<1x!tpu.dma_semaphore, #tpu.memory_space<semaphore_mem>> -> memref<!tpu.dma_semaphore, #tpu.memory_space<semaphore_mem>>
      tpu.enqueue_dma source(%239 : memref<1x8xf32, #tpu.memory_space<any>>) target(%240 : memref<1x8xf32, #tpu.memory_space<vmem>>) target_semaphore(%242 : memref<!tpu.dma_semaphore, #tpu.memory_space<semaphore_mem>>)
      %c5_i32_163 = arith.constant 5 : i32
      %243 = arith.addi %207, %c5_i32_163 : i32
      %244 = arith.index_cast %243 : i32 to index
      %245 = memref.load %arg2[%244] : memref<256xi32, #tpu.memory_space<smem>>
      %c5_i32_164 = arith.constant 5 : i32
      %c0_i32_165 = arith.constant 0 : i32
      %246 = tpu.memref_slice %arg3[%245, %c0_i32_165] : memref<256x8xf32, #tpu.memory_space<any>> -> memref<1x8xf32, #tpu.memory_space<any>>
      %c5_i32_166 = arith.constant 5 : i32
      %c0_i32_167 = arith.constant 0 : i32
      %247 = tpu.memref_slice %arg5[%c5_i32_166, %c0_i32_167] : memref<64x8xf32, #tpu.memory_space<vmem>> -> memref<1x8xf32, #tpu.memory_space<vmem>>
      %248 = tpu.memref_slice %arg6[%c5_i32_164] : memref<64x!tpu.dma_semaphore, #tpu.memory_space<semaphore_mem>> -> memref<1x!tpu.dma_semaphore, #tpu.memory_space<semaphore_mem>>
      %249 = tpu.memref_squeeze %248 : memref<1x!tpu.dma_semaphore, #tpu.memory_space<semaphore_mem>> -> memref<!tpu.dma_semaphore, #tpu.memory_space<semaphore_mem>>
      tpu.enqueue_dma source(%246 : memref<1x8xf32, #tpu.memory_space<any>>) target(%247 : memref<1x8xf32, #tpu.memory_space<vmem>>) target_semaphore(%249 : memref<!tpu.dma_semaphore, #tpu.memory_space<semaphore_mem>>)
      %c6_i32_168 = arith.constant 6 : i32
      %250 = arith.addi %207, %c6_i32_168 : i32
      %251 = arith.index_cast %250 : i32 to index
      %252 = memref.load %arg2[%251] : memref<256xi32, #tpu.memory_space<smem>>
      %c6_i32_169 = arith.constant 6 : i32
      %c0_i32_170 = arith.constant 0 : i32
      %253 = tpu.memref_slice %arg3[%252, %c0_i32_170] : memref<256x8xf32, #tpu.memory_space<any>> -> memref<1x8xf32, #tpu.memory_space<any>>
      %c6_i32_171 = arith.constant 6 : i32
      %c0_i32_172 = arith.constant 0 : i32
      %254 = tpu.memref_slice %arg5[%c6_i32_171, %c0_i32_172] : memref<64x8xf32, #tpu.memory_space<vmem>> -> memref<1x8xf32, #tpu.memory_space<vmem>>
      %255 = tpu.memref_slice %arg6[%c6_i32_169] : memref<64x!tpu.dma_semaphore, #tpu.memory_space<semaphore_mem>> -> memref<1x!tpu.dma_semaphore, #tpu.memory_space<semaphore_mem>>
      %256 = tpu.memref_squeeze %255 : memref<1x!tpu.dma_semaphore, #tpu.memory_space<semaphore_mem>> -> memref<!tpu.dma_semaphore, #tpu.memory_space<semaphore_mem>>
      tpu.enqueue_dma source(%253 : memref<1x8xf32, #tpu.memory_space<any>>) target(%254 : memref<1x8xf32, #tpu.memory_space<vmem>>) target_semaphore(%256 : memref<!tpu.dma_semaphore, #tpu.memory_space<semaphore_mem>>)
      %c7_i32_173 = arith.constant 7 : i32
      %257 = arith.addi %207, %c7_i32_173 : i32
      %258 = arith.index_cast %257 : i32 to index
      %259 = memref.load %arg2[%258] : memref<256xi32, #tpu.memory_space<smem>>
      %c7_i32_174 = arith.constant 7 : i32
      %c0_i32_175 = arith.constant 0 : i32
      %260 = tpu.memref_slice %arg3[%259, %c0_i32_175] : memref<256x8xf32, #tpu.memory_space<any>> -> memref<1x8xf32, #tpu.memory_space<any>>
      %c7_i32_176 = arith.constant 7 : i32
      %c0_i32_177 = arith.constant 0 : i32
      %261 = tpu.memref_slice %arg5[%c7_i32_176, %c0_i32_177] : memref<64x8xf32, #tpu.memory_space<vmem>> -> memref<1x8xf32, #tpu.memory_space<vmem>>
      %262 = tpu.memref_slice %arg6[%c7_i32_174] : memref<64x!tpu.dma_semaphore, #tpu.memory_space<semaphore_mem>> -> memref<1x!tpu.dma_semaphore, #tpu.memory_space<semaphore_mem>>
      %263 = tpu.memref_squeeze %262 : memref<1x!tpu.dma_semaphore, #tpu.memory_space<semaphore_mem>> -> memref<!tpu.dma_semaphore, #tpu.memory_space<semaphore_mem>>
      tpu.enqueue_dma source(%260 : memref<1x8xf32, #tpu.memory_space<any>>) target(%261 : memref<1x8xf32, #tpu.memory_space<vmem>>) target_semaphore(%263 : memref<!tpu.dma_semaphore, #tpu.memory_space<semaphore_mem>>)
      %c8_i32_178 = arith.constant 8 : i32
      %264 = arith.addi %207, %c8_i32_178 : i32
      %265 = arith.index_cast %264 : i32 to index
      %266 = memref.load %arg2[%265] : memref<256xi32, #tpu.memory_space<smem>>
      %c8_i32_179 = arith.constant 8 : i32
      %c0_i32_180 = arith.constant 0 : i32
      %267 = tpu.memref_slice %arg3[%266, %c0_i32_180] : memref<256x8xf32, #tpu.memory_space<any>> -> memref<1x8xf32, #tpu.memory_space<any>>
      %c8_i32_181 = arith.constant 8 : i32
      %c0_i32_182 = arith.constant 0 : i32
      %268 = tpu.memref_slice %arg5[%c8_i32_181, %c0_i32_182] : memref<64x8xf32, #tpu.memory_space<vmem>> -> memref<1x8xf32, #tpu.memory_space<vmem>>
      %269 = tpu.memref_slice %arg6[%c8_i32_179] : memref<64x!tpu.dma_semaphore, #tpu.memory_space<semaphore_mem>> -> memref<1x!tpu.dma_semaphore, #tpu.memory_space<semaphore_mem>>
      %270 = tpu.memref_squeeze %269 : memref<1x!tpu.dma_semaphore, #tpu.memory_space<semaphore_mem>> -> memref<!tpu.dma_semaphore, #tpu.memory_space<semaphore_mem>>
      tpu.enqueue_dma source(%267 : memref<1x8xf32, #tpu.memory_space<any>>) target(%268 : memref<1x8xf32, #tpu.memory_space<vmem>>) target_semaphore(%270 : memref<!tpu.dma_semaphore, #tpu.memory_space<semaphore_mem>>)
      %c9_i32_183 = arith.constant 9 : i32
      %271 = arith.addi %207, %c9_i32_183 : i32
      %272 = arith.index_cast %271 : i32 to index
      %273 = memref.load %arg2[%272] : memref<256xi32, #tpu.memory_space<smem>>
      %c9_i32_184 = arith.constant 9 : i32
      %c0_i32_185 = arith.constant 0 : i32
      %274 = tpu.memref_slice %arg3[%273, %c0_i32_185] : memref<256x8xf32, #tpu.memory_space<any>> -> memref<1x8xf32, #tpu.memory_space<any>>
      %c9_i32_186 = arith.constant 9 : i32
      %c0_i32_187 = arith.constant 0 : i32
      %275 = tpu.memref_slice %arg5[%c9_i32_186, %c0_i32_187] : memref<64x8xf32, #tpu.memory_space<vmem>> -> memref<1x8xf32, #tpu.memory_space<vmem>>
      %276 = tpu.memref_slice %arg6[%c9_i32_184] : memref<64x!tpu.dma_semaphore, #tpu.memory_space<semaphore_mem>> -> memref<1x!tpu.dma_semaphore, #tpu.memory_space<semaphore_mem>>
      %277 = tpu.memref_squeeze %276 : memref<1x!tpu.dma_semaphore, #tpu.memory_space<semaphore_mem>> -> memref<!tpu.dma_semaphore, #tpu.memory_space<semaphore_mem>>
      tpu.enqueue_dma source(%274 : memref<1x8xf32, #tpu.memory_space<any>>) target(%275 : memref<1x8xf32, #tpu.memory_space<vmem>>) target_semaphore(%277 : memref<!tpu.dma_semaphore, #tpu.memory_space<semaphore_mem>>)
      %c10_i32_188 = arith.constant 10 : i32
      %278 = arith.addi %207, %c10_i32_188 : i32
      %279 = arith.index_cast %278 : i32 to index
      %280 = memref.load %arg2[%279] : memref<256xi32, #tpu.memory_space<smem>>
      %c10_i32_189 = arith.constant 10 : i32
      %c0_i32_190 = arith.constant 0 : i32
      %281 = tpu.memref_slice %arg3[%280, %c0_i32_190] : memref<256x8xf32, #tpu.memory_space<any>> -> memref<1x8xf32, #tpu.memory_space<any>>
      %c10_i32_191 = arith.constant 10 : i32
      %c0_i32_192 = arith.constant 0 : i32
      %282 = tpu.memref_slice %arg5[%c10_i32_191, %c0_i32_192] : memref<64x8xf32, #tpu.memory_space<vmem>> -> memref<1x8xf32, #tpu.memory_space<vmem>>
      %283 = tpu.memref_slice %arg6[%c10_i32_189] : memref<64x!tpu.dma_semaphore, #tpu.memory_space<semaphore_mem>> -> memref<1x!tpu.dma_semaphore, #tpu.memory_space<semaphore_mem>>
      %284 = tpu.memref_squeeze %283 : memref<1x!tpu.dma_semaphore, #tpu.memory_space<semaphore_mem>> -> memref<!tpu.dma_semaphore, #tpu.memory_space<semaphore_mem>>
      tpu.enqueue_dma source(%281 : memref<1x8xf32, #tpu.memory_space<any>>) target(%282 : memref<1x8xf32, #tpu.memory_space<vmem>>) target_semaphore(%284 : memref<!tpu.dma_semaphore, #tpu.memory_space<semaphore_mem>>)
      %c11_i32_193 = arith.constant 11 : i32
      %285 = arith.addi %207, %c11_i32_193 : i32
      %286 = arith.index_cast %285 : i32 to index
      %287 = memref.load %arg2[%286] : memref<256xi32, #tpu.memory_space<smem>>
      %c11_i32_194 = arith.constant 11 : i32
      %c0_i32_195 = arith.constant 0 : i32
      %288 = tpu.memref_slice %arg3[%287, %c0_i32_195] : memref<256x8xf32, #tpu.memory_space<any>> -> memref<1x8xf32, #tpu.memory_space<any>>
      %c11_i32_196 = arith.constant 11 : i32
      %c0_i32_197 = arith.constant 0 : i32
      %289 = tpu.memref_slice %arg5[%c11_i32_196, %c0_i32_197] : memref<64x8xf32, #tpu.memory_space<vmem>> -> memref<1x8xf32, #tpu.memory_space<vmem>>
      %290 = tpu.memref_slice %arg6[%c11_i32_194] : memref<64x!tpu.dma_semaphore, #tpu.memory_space<semaphore_mem>> -> memref<1x!tpu.dma_semaphore, #tpu.memory_space<semaphore_mem>>
      %291 = tpu.memref_squeeze %290 : memref<1x!tpu.dma_semaphore, #tpu.memory_space<semaphore_mem>> -> memref<!tpu.dma_semaphore, #tpu.memory_space<semaphore_mem>>
      tpu.enqueue_dma source(%288 : memref<1x8xf32, #tpu.memory_space<any>>) target(%289 : memref<1x8xf32, #tpu.memory_space<vmem>>) target_semaphore(%291 : memref<!tpu.dma_semaphore, #tpu.memory_space<semaphore_mem>>)
      %c12_i32_198 = arith.constant 12 : i32
      %292 = arith.addi %207, %c12_i32_198 : i32
      %293 = arith.index_cast %292 : i32 to index
      %294 = memref.load %arg2[%293] : memref<256xi32, #tpu.memory_space<smem>>
      %c12_i32_199 = arith.constant 12 : i32
      %c0_i32_200 = arith.constant 0 : i32
      %295 = tpu.memref_slice %arg3[%294, %c0_i32_200] : memref<256x8xf32, #tpu.memory_space<any>> -> memref<1x8xf32, #tpu.memory_space<any>>
      %c12_i32_201 = arith.constant 12 : i32
      %c0_i32_202 = arith.constant 0 : i32
      %296 = tpu.memref_slice %arg5[%c12_i32_201, %c0_i32_202] : memref<64x8xf32, #tpu.memory_space<vmem>> -> memref<1x8xf32, #tpu.memory_space<vmem>>
      %297 = tpu.memref_slice %arg6[%c12_i32_199] : memref<64x!tpu.dma_semaphore, #tpu.memory_space<semaphore_mem>> -> memref<1x!tpu.dma_semaphore, #tpu.memory_space<semaphore_mem>>
      %298 = tpu.memref_squeeze %297 : memref<1x!tpu.dma_semaphore, #tpu.memory_space<semaphore_mem>> -> memref<!tpu.dma_semaphore, #tpu.memory_space<semaphore_mem>>
      tpu.enqueue_dma source(%295 : memref<1x8xf32, #tpu.memory_space<any>>) target(%296 : memref<1x8xf32, #tpu.memory_space<vmem>>) target_semaphore(%298 : memref<!tpu.dma_semaphore, #tpu.memory_space<semaphore_mem>>)
      %c13_i32_203 = arith.constant 13 : i32
      %299 = arith.addi %207, %c13_i32_203 : i32
      %300 = arith.index_cast %299 : i32 to index
      %301 = memref.load %arg2[%300] : memref<256xi32, #tpu.memory_space<smem>>
      %c13_i32_204 = arith.constant 13 : i32
      %c0_i32_205 = arith.constant 0 : i32
      %302 = tpu.memref_slice %arg3[%301, %c0_i32_205] : memref<256x8xf32, #tpu.memory_space<any>> -> memref<1x8xf32, #tpu.memory_space<any>>
      %c13_i32_206 = arith.constant 13 : i32
      %c0_i32_207 = arith.constant 0 : i32
      %303 = tpu.memref_slice %arg5[%c13_i32_206, %c0_i32_207] : memref<64x8xf32, #tpu.memory_space<vmem>> -> memref<1x8xf32, #tpu.memory_space<vmem>>
      %304 = tpu.memref_slice %arg6[%c13_i32_204] : memref<64x!tpu.dma_semaphore, #tpu.memory_space<semaphore_mem>> -> memref<1x!tpu.dma_semaphore, #tpu.memory_space<semaphore_mem>>
      %305 = tpu.memref_squeeze %304 : memref<1x!tpu.dma_semaphore, #tpu.memory_space<semaphore_mem>> -> memref<!tpu.dma_semaphore, #tpu.memory_space<semaphore_mem>>
      tpu.enqueue_dma source(%302 : memref<1x8xf32, #tpu.memory_space<any>>) target(%303 : memref<1x8xf32, #tpu.memory_space<vmem>>) target_semaphore(%305 : memref<!tpu.dma_semaphore, #tpu.memory_space<semaphore_mem>>)
      %c14_i32_208 = arith.constant 14 : i32
      %306 = arith.addi %207, %c14_i32_208 : i32
      %307 = arith.index_cast %306 : i32 to index
      %308 = memref.load %arg2[%307] : memref<256xi32, #tpu.memory_space<smem>>
      %c14_i32_209 = arith.constant 14 : i32
      %c0_i32_210 = arith.constant 0 : i32
      %309 = tpu.memref_slice %arg3[%308, %c0_i32_210] : memref<256x8xf32, #tpu.memory_space<any>> -> memref<1x8xf32, #tpu.memory_space<any>>
      %c14_i32_211 = arith.constant 14 : i32
      %c0_i32_212 = arith.constant 0 : i32
      %310 = tpu.memref_slice %arg5[%c14_i32_211, %c0_i32_212] : memref<64x8xf32, #tpu.memory_space<vmem>> -> memref<1x8xf32, #tpu.memory_space<vmem>>
      %311 = tpu.memref_slice %arg6[%c14_i32_209] : memref<64x!tpu.dma_semaphore, #tpu.memory_space<semaphore_mem>> -> memref<1x!tpu.dma_semaphore, #tpu.memory_space<semaphore_mem>>
      %312 = tpu.memref_squeeze %311 : memref<1x!tpu.dma_semaphore, #tpu.memory_space<semaphore_mem>> -> memref<!tpu.dma_semaphore, #tpu.memory_space<semaphore_mem>>
      tpu.enqueue_dma source(%309 : memref<1x8xf32, #tpu.memory_space<any>>) target(%310 : memref<1x8xf32, #tpu.memory_space<vmem>>) target_semaphore(%312 : memref<!tpu.dma_semaphore, #tpu.memory_space<semaphore_mem>>)
      %c15_i32_213 = arith.constant 15 : i32
      %313 = arith.addi %207, %c15_i32_213 : i32
      %314 = arith.index_cast %313 : i32 to index
      %315 = memref.load %arg2[%314] : memref<256xi32, #tpu.memory_space<smem>>
      %c15_i32_214 = arith.constant 15 : i32
      %c0_i32_215 = arith.constant 0 : i32
      %316 = tpu.memref_slice %arg3[%315, %c0_i32_215] : memref<256x8xf32, #tpu.memory_space<any>> -> memref<1x8xf32, #tpu.memory_space<any>>
      %c15_i32_216 = arith.constant 15 : i32
      %c0_i32_217 = arith.constant 0 : i32
      %317 = tpu.memref_slice %arg5[%c15_i32_216, %c0_i32_217] : memref<64x8xf32, #tpu.memory_space<vmem>> -> memref<1x8xf32, #tpu.memory_space<vmem>>
      %318 = tpu.memref_slice %arg6[%c15_i32_214] : memref<64x!tpu.dma_semaphore, #tpu.memory_space<semaphore_mem>> -> memref<1x!tpu.dma_semaphore, #tpu.memory_space<semaphore_mem>>
      %319 = tpu.memref_squeeze %318 : memref<1x!tpu.dma_semaphore, #tpu.memory_space<semaphore_mem>> -> memref<!tpu.dma_semaphore, #tpu.memory_space<semaphore_mem>>
      tpu.enqueue_dma source(%316 : memref<1x8xf32, #tpu.memory_space<any>>) target(%317 : memref<1x8xf32, #tpu.memory_space<vmem>>) target_semaphore(%319 : memref<!tpu.dma_semaphore, #tpu.memory_space<semaphore_mem>>)
      %c16_i32_218 = arith.constant 16 : i32
      %320 = arith.addi %207, %c16_i32_218 : i32
      %321 = arith.index_cast %320 : i32 to index
      %322 = memref.load %arg2[%321] : memref<256xi32, #tpu.memory_space<smem>>
      %c16_i32_219 = arith.constant 16 : i32
      %c0_i32_220 = arith.constant 0 : i32
      %323 = tpu.memref_slice %arg3[%322, %c0_i32_220] : memref<256x8xf32, #tpu.memory_space<any>> -> memref<1x8xf32, #tpu.memory_space<any>>
      %c16_i32_221 = arith.constant 16 : i32
      %c0_i32_222 = arith.constant 0 : i32
      %324 = tpu.memref_slice %arg5[%c16_i32_221, %c0_i32_222] : memref<64x8xf32, #tpu.memory_space<vmem>> -> memref<1x8xf32, #tpu.memory_space<vmem>>
      %325 = tpu.memref_slice %arg6[%c16_i32_219] : memref<64x!tpu.dma_semaphore, #tpu.memory_space<semaphore_mem>> -> memref<1x!tpu.dma_semaphore, #tpu.memory_space<semaphore_mem>>
      %326 = tpu.memref_squeeze %325 : memref<1x!tpu.dma_semaphore, #tpu.memory_space<semaphore_mem>> -> memref<!tpu.dma_semaphore, #tpu.memory_space<semaphore_mem>>
      tpu.enqueue_dma source(%323 : memref<1x8xf32, #tpu.memory_space<any>>) target(%324 : memref<1x8xf32, #tpu.memory_space<vmem>>) target_semaphore(%326 : memref<!tpu.dma_semaphore, #tpu.memory_space<semaphore_mem>>)
      %c17_i32_223 = arith.constant 17 : i32
      %327 = arith.addi %207, %c17_i32_223 : i32
      %328 = arith.index_cast %327 : i32 to index
      %329 = memref.load %arg2[%328] : memref<256xi32, #tpu.memory_space<smem>>
      %c17_i32_224 = arith.constant 17 : i32
      %c0_i32_225 = arith.constant 0 : i32
      %330 = tpu.memref_slice %arg3[%329, %c0_i32_225] : memref<256x8xf32, #tpu.memory_space<any>> -> memref<1x8xf32, #tpu.memory_space<any>>
      %c17_i32_226 = arith.constant 17 : i32
      %c0_i32_227 = arith.constant 0 : i32
      %331 = tpu.memref_slice %arg5[%c17_i32_226, %c0_i32_227] : memref<64x8xf32, #tpu.memory_space<vmem>> -> memref<1x8xf32, #tpu.memory_space<vmem>>
      %332 = tpu.memref_slice %arg6[%c17_i32_224] : memref<64x!tpu.dma_semaphore, #tpu.memory_space<semaphore_mem>> -> memref<1x!tpu.dma_semaphore, #tpu.memory_space<semaphore_mem>>
      %333 = tpu.memref_squeeze %332 : memref<1x!tpu.dma_semaphore, #tpu.memory_space<semaphore_mem>> -> memref<!tpu.dma_semaphore, #tpu.memory_space<semaphore_mem>>
      tpu.enqueue_dma source(%330 : memref<1x8xf32, #tpu.memory_space<any>>) target(%331 : memref<1x8xf32, #tpu.memory_space<vmem>>) target_semaphore(%333 : memref<!tpu.dma_semaphore, #tpu.memory_space<semaphore_mem>>)
      %c18_i32_228 = arith.constant 18 : i32
      %334 = arith.addi %207, %c18_i32_228 : i32
      %335 = arith.index_cast %334 : i32 to index
      %336 = memref.load %arg2[%335] : memref<256xi32, #tpu.memory_space<smem>>
      %c18_i32_229 = arith.constant 18 : i32
      %c0_i32_230 = arith.constant 0 : i32
      %337 = tpu.memref_slice %arg3[%336, %c0_i32_230] : memref<256x8xf32, #tpu.memory_space<any>> -> memref<1x8xf32, #tpu.memory_space<any>>
      %c18_i32_231 = arith.constant 18 : i32
      %c0_i32_232 = arith.constant 0 : i32
      %338 = tpu.memref_slice %arg5[%c18_i32_231, %c0_i32_232] : memref<64x8xf32, #tpu.memory_space<vmem>> -> memref<1x8xf32, #tpu.memory_space<vmem>>
      %339 = tpu.memref_slice %arg6[%c18_i32_229] : memref<64x!tpu.dma_semaphore, #tpu.memory_space<semaphore_mem>> -> memref<1x!tpu.dma_semaphore, #tpu.memory_space<semaphore_mem>>
      %340 = tpu.memref_squeeze %339 : memref<1x!tpu.dma_semaphore, #tpu.memory_space<semaphore_mem>> -> memref<!tpu.dma_semaphore, #tpu.memory_space<semaphore_mem>>
      tpu.enqueue_dma source(%337 : memref<1x8xf32, #tpu.memory_space<any>>) target(%338 : memref<1x8xf32, #tpu.memory_space<vmem>>) target_semaphore(%340 : memref<!tpu.dma_semaphore, #tpu.memory_space<semaphore_mem>>)
      %c19_i32_233 = arith.constant 19 : i32
      %341 = arith.addi %207, %c19_i32_233 : i32
      %342 = arith.index_cast %341 : i32 to index
      %343 = memref.load %arg2[%342] : memref<256xi32, #tpu.memory_space<smem>>
      %c19_i32_234 = arith.constant 19 : i32
      %c0_i32_235 = arith.constant 0 : i32
      %344 = tpu.memref_slice %arg3[%343, %c0_i32_235] : memref<256x8xf32, #tpu.memory_space<any>> -> memref<1x8xf32, #tpu.memory_space<any>>
      %c19_i32_236 = arith.constant 19 : i32
      %c0_i32_237 = arith.constant 0 : i32
      %345 = tpu.memref_slice %arg5[%c19_i32_236, %c0_i32_237] : memref<64x8xf32, #tpu.memory_space<vmem>> -> memref<1x8xf32, #tpu.memory_space<vmem>>
      %346 = tpu.memref_slice %arg6[%c19_i32_234] : memref<64x!tpu.dma_semaphore, #tpu.memory_space<semaphore_mem>> -> memref<1x!tpu.dma_semaphore, #tpu.memory_space<semaphore_mem>>
      %347 = tpu.memref_squeeze %346 : memref<1x!tpu.dma_semaphore, #tpu.memory_space<semaphore_mem>> -> memref<!tpu.dma_semaphore, #tpu.memory_space<semaphore_mem>>
      tpu.enqueue_dma source(%344 : memref<1x8xf32, #tpu.memory_space<any>>) target(%345 : memref<1x8xf32, #tpu.memory_space<vmem>>) target_semaphore(%347 : memref<!tpu.dma_semaphore, #tpu.memory_space<semaphore_mem>>)
      %c20_i32_238 = arith.constant 20 : i32
      %348 = arith.addi %207, %c20_i32_238 : i32
      %349 = arith.index_cast %348 : i32 to index
      %350 = memref.load %arg2[%349] : memref<256xi32, #tpu.memory_space<smem>>
      %c20_i32_239 = arith.constant 20 : i32
      %c0_i32_240 = arith.constant 0 : i32
      %351 = tpu.memref_slice %arg3[%350, %c0_i32_240] : memref<256x8xf32, #tpu.memory_space<any>> -> memref<1x8xf32, #tpu.memory_space<any>>
      %c20_i32_241 = arith.constant 20 : i32
      %c0_i32_242 = arith.constant 0 : i32
      %352 = tpu.memref_slice %arg5[%c20_i32_241, %c0_i32_242] : memref<64x8xf32, #tpu.memory_space<vmem>> -> memref<1x8xf32, #tpu.memory_space<vmem>>
      %353 = tpu.memref_slice %arg6[%c20_i32_239] : memref<64x!tpu.dma_semaphore, #tpu.memory_space<semaphore_mem>> -> memref<1x!tpu.dma_semaphore, #tpu.memory_space<semaphore_mem>>
      %354 = tpu.memref_squeeze %353 : memref<1x!tpu.dma_semaphore, #tpu.memory_space<semaphore_mem>> -> memref<!tpu.dma_semaphore, #tpu.memory_space<semaphore_mem>>
      tpu.enqueue_dma source(%351 : memref<1x8xf32, #tpu.memory_space<any>>) target(%352 : memref<1x8xf32, #tpu.memory_space<vmem>>) target_semaphore(%354 : memref<!tpu.dma_semaphore, #tpu.memory_space<semaphore_mem>>)
      %c21_i32_243 = arith.constant 21 : i32
      %355 = arith.addi %207, %c21_i32_243 : i32
      %356 = arith.index_cast %355 : i32 to index
      %357 = memref.load %arg2[%356] : memref<256xi32, #tpu.memory_space<smem>>
      %c21_i32_244 = arith.constant 21 : i32
      %c0_i32_245 = arith.constant 0 : i32
      %358 = tpu.memref_slice %arg3[%357, %c0_i32_245] : memref<256x8xf32, #tpu.memory_space<any>> -> memref<1x8xf32, #tpu.memory_space<any>>
      %c21_i32_246 = arith.constant 21 : i32
      %c0_i32_247 = arith.constant 0 : i32
      %359 = tpu.memref_slice %arg5[%c21_i32_246, %c0_i32_247] : memref<64x8xf32, #tpu.memory_space<vmem>> -> memref<1x8xf32, #tpu.memory_space<vmem>>
      %360 = tpu.memref_slice %arg6[%c21_i32_244] : memref<64x!tpu.dma_semaphore, #tpu.memory_space<semaphore_mem>> -> memref<1x!tpu.dma_semaphore, #tpu.memory_space<semaphore_mem>>
      %361 = tpu.memref_squeeze %360 : memref<1x!tpu.dma_semaphore, #tpu.memory_space<semaphore_mem>> -> memref<!tpu.dma_semaphore, #tpu.memory_space<semaphore_mem>>
      tpu.enqueue_dma source(%358 : memref<1x8xf32, #tpu.memory_space<any>>) target(%359 : memref<1x8xf32, #tpu.memory_space<vmem>>) target_semaphore(%361 : memref<!tpu.dma_semaphore, #tpu.memory_space<semaphore_mem>>)
      %c22_i32_248 = arith.constant 22 : i32
      %362 = arith.addi %207, %c22_i32_248 : i32
      %363 = arith.index_cast %362 : i32 to index
      %364 = memref.load %arg2[%363] : memref<256xi32, #tpu.memory_space<smem>>
      %c22_i32_249 = arith.constant 22 : i32
      %c0_i32_250 = arith.constant 0 : i32
      %365 = tpu.memref_slice %arg3[%364, %c0_i32_250] : memref<256x8xf32, #tpu.memory_space<any>> -> memref<1x8xf32, #tpu.memory_space<any>>
      %c22_i32_251 = arith.constant 22 : i32
      %c0_i32_252 = arith.constant 0 : i32
      %366 = tpu.memref_slice %arg5[%c22_i32_251, %c0_i32_252] : memref<64x8xf32, #tpu.memory_space<vmem>> -> memref<1x8xf32, #tpu.memory_space<vmem>>
      %367 = tpu.memref_slice %arg6[%c22_i32_249] : memref<64x!tpu.dma_semaphore, #tpu.memory_space<semaphore_mem>> -> memref<1x!tpu.dma_semaphore, #tpu.memory_space<semaphore_mem>>
      %368 = tpu.memref_squeeze %367 : memref<1x!tpu.dma_semaphore, #tpu.memory_space<semaphore_mem>> -> memref<!tpu.dma_semaphore, #tpu.memory_space<semaphore_mem>>
      tpu.enqueue_dma source(%365 : memref<1x8xf32, #tpu.memory_space<any>>) target(%366 : memref<1x8xf32, #tpu.memory_space<vmem>>) target_semaphore(%368 : memref<!tpu.dma_semaphore, #tpu.memory_space<semaphore_mem>>)
      %c23_i32_253 = arith.constant 23 : i32
      %369 = arith.addi %207, %c23_i32_253 : i32
      %370 = arith.index_cast %369 : i32 to index
      %371 = memref.load %arg2[%370] : memref<256xi32, #tpu.memory_space<smem>>
      %c23_i32_254 = arith.constant 23 : i32
      %c0_i32_255 = arith.constant 0 : i32
      %372 = tpu.memref_slice %arg3[%371, %c0_i32_255] : memref<256x8xf32, #tpu.memory_space<any>> -> memref<1x8xf32, #tpu.memory_space<any>>
      %c23_i32_256 = arith.constant 23 : i32
      %c0_i32_257 = arith.constant 0 : i32
      %373 = tpu.memref_slice %arg5[%c23_i32_256, %c0_i32_257] : memref<64x8xf32, #tpu.memory_space<vmem>> -> memref<1x8xf32, #tpu.memory_space<vmem>>
      %374 = tpu.memref_slice %arg6[%c23_i32_254] : memref<64x!tpu.dma_semaphore, #tpu.memory_space<semaphore_mem>> -> memref<1x!tpu.dma_semaphore, #tpu.memory_space<semaphore_mem>>
      %375 = tpu.memref_squeeze %374 : memref<1x!tpu.dma_semaphore, #tpu.memory_space<semaphore_mem>> -> memref<!tpu.dma_semaphore, #tpu.memory_space<semaphore_mem>>
      tpu.enqueue_dma source(%372 : memref<1x8xf32, #tpu.memory_space<any>>) target(%373 : memref<1x8xf32, #tpu.memory_space<vmem>>) target_semaphore(%375 : memref<!tpu.dma_semaphore, #tpu.memory_space<semaphore_mem>>)
      %c24_i32_258 = arith.constant 24 : i32
      %376 = arith.addi %207, %c24_i32_258 : i32
      %377 = arith.index_cast %376 : i32 to index
      %378 = memref.load %arg2[%377] : memref<256xi32, #tpu.memory_space<smem>>
      %c24_i32_259 = arith.constant 24 : i32
      %c0_i32_260 = arith.constant 0 : i32
      %379 = tpu.memref_slice %arg3[%378, %c0_i32_260] : memref<256x8xf32, #tpu.memory_space<any>> -> memref<1x8xf32, #tpu.memory_space<any>>
      %c24_i32_261 = arith.constant 24 : i32
      %c0_i32_262 = arith.constant 0 : i32
      %380 = tpu.memref_slice %arg5[%c24_i32_261, %c0_i32_262] : memref<64x8xf32, #tpu.memory_space<vmem>> -> memref<1x8xf32, #tpu.memory_space<vmem>>
      %381 = tpu.memref_slice %arg6[%c24_i32_259] : memref<64x!tpu.dma_semaphore, #tpu.memory_space<semaphore_mem>> -> memref<1x!tpu.dma_semaphore, #tpu.memory_space<semaphore_mem>>
      %382 = tpu.memref_squeeze %381 : memref<1x!tpu.dma_semaphore, #tpu.memory_space<semaphore_mem>> -> memref<!tpu.dma_semaphore, #tpu.memory_space<semaphore_mem>>
      tpu.enqueue_dma source(%379 : memref<1x8xf32, #tpu.memory_space<any>>) target(%380 : memref<1x8xf32, #tpu.memory_space<vmem>>) target_semaphore(%382 : memref<!tpu.dma_semaphore, #tpu.memory_space<semaphore_mem>>)
      %c25_i32_263 = arith.constant 25 : i32
      %383 = arith.addi %207, %c25_i32_263 : i32
      %384 = arith.index_cast %383 : i32 to index
      %385 = memref.load %arg2[%384] : memref<256xi32, #tpu.memory_space<smem>>
      %c25_i32_264 = arith.constant 25 : i32
      %c0_i32_265 = arith.constant 0 : i32
      %386 = tpu.memref_slice %arg3[%385, %c0_i32_265] : memref<256x8xf32, #tpu.memory_space<any>> -> memref<1x8xf32, #tpu.memory_space<any>>
      %c25_i32_266 = arith.constant 25 : i32
      %c0_i32_267 = arith.constant 0 : i32
      %387 = tpu.memref_slice %arg5[%c25_i32_266, %c0_i32_267] : memref<64x8xf32, #tpu.memory_space<vmem>> -> memref<1x8xf32, #tpu.memory_space<vmem>>
      %388 = tpu.memref_slice %arg6[%c25_i32_264] : memref<64x!tpu.dma_semaphore, #tpu.memory_space<semaphore_mem>> -> memref<1x!tpu.dma_semaphore, #tpu.memory_space<semaphore_mem>>
      %389 = tpu.memref_squeeze %388 : memref<1x!tpu.dma_semaphore, #tpu.memory_space<semaphore_mem>> -> memref<!tpu.dma_semaphore, #tpu.memory_space<semaphore_mem>>
      tpu.enqueue_dma source(%386 : memref<1x8xf32, #tpu.memory_space<any>>) target(%387 : memref<1x8xf32, #tpu.memory_space<vmem>>) target_semaphore(%389 : memref<!tpu.dma_semaphore, #tpu.memory_space<semaphore_mem>>)
      %c26_i32_268 = arith.constant 26 : i32
      %390 = arith.addi %207, %c26_i32_268 : i32
      %391 = arith.index_cast %390 : i32 to index
      %392 = memref.load %arg2[%391] : memref<256xi32, #tpu.memory_space<smem>>
      %c26_i32_269 = arith.constant 26 : i32
      %c0_i32_270 = arith.constant 0 : i32
      %393 = tpu.memref_slice %arg3[%392, %c0_i32_270] : memref<256x8xf32, #tpu.memory_space<any>> -> memref<1x8xf32, #tpu.memory_space<any>>
      %c26_i32_271 = arith.constant 26 : i32
      %c0_i32_272 = arith.constant 0 : i32
      %394 = tpu.memref_slice %arg5[%c26_i32_271, %c0_i32_272] : memref<64x8xf32, #tpu.memory_space<vmem>> -> memref<1x8xf32, #tpu.memory_space<vmem>>
      %395 = tpu.memref_slice %arg6[%c26_i32_269] : memref<64x!tpu.dma_semaphore, #tpu.memory_space<semaphore_mem>> -> memref<1x!tpu.dma_semaphore, #tpu.memory_space<semaphore_mem>>
      %396 = tpu.memref_squeeze %395 : memref<1x!tpu.dma_semaphore, #tpu.memory_space<semaphore_mem>> -> memref<!tpu.dma_semaphore, #tpu.memory_space<semaphore_mem>>
      tpu.enqueue_dma source(%393 : memref<1x8xf32, #tpu.memory_space<any>>) target(%394 : memref<1x8xf32, #tpu.memory_space<vmem>>) target_semaphore(%396 : memref<!tpu.dma_semaphore, #tpu.memory_space<semaphore_mem>>)
      %c27_i32_273 = arith.constant 27 : i32
      %397 = arith.addi %207, %c27_i32_273 : i32
      %398 = arith.index_cast %397 : i32 to index
      %399 = memref.load %arg2[%398] : memref<256xi32, #tpu.memory_space<smem>>
      %c27_i32_274 = arith.constant 27 : i32
      %c0_i32_275 = arith.constant 0 : i32
      %400 = tpu.memref_slice %arg3[%399, %c0_i32_275] : memref<256x8xf32, #tpu.memory_space<any>> -> memref<1x8xf32, #tpu.memory_space<any>>
      %c27_i32_276 = arith.constant 27 : i32
      %c0_i32_277 = arith.constant 0 : i32
      %401 = tpu.memref_slice %arg5[%c27_i32_276, %c0_i32_277] : memref<64x8xf32, #tpu.memory_space<vmem>> -> memref<1x8xf32, #tpu.memory_space<vmem>>
      %402 = tpu.memref_slice %arg6[%c27_i32_274] : memref<64x!tpu.dma_semaphore, #tpu.memory_space<semaphore_mem>> -> memref<1x!tpu.dma_semaphore, #tpu.memory_space<semaphore_mem>>
      %403 = tpu.memref_squeeze %402 : memref<1x!tpu.dma_semaphore, #tpu.memory_space<semaphore_mem>> -> memref<!tpu.dma_semaphore, #tpu.memory_space<semaphore_mem>>
      tpu.enqueue_dma source(%400 : memref<1x8xf32, #tpu.memory_space<any>>) target(%401 : memref<1x8xf32, #tpu.memory_space<vmem>>) target_semaphore(%403 : memref<!tpu.dma_semaphore, #tpu.memory_space<semaphore_mem>>)
      %c28_i32_278 = arith.constant 28 : i32
      %404 = arith.addi %207, %c28_i32_278 : i32
      %405 = arith.index_cast %404 : i32 to index
      %406 = memref.load %arg2[%405] : memref<256xi32, #tpu.memory_space<smem>>
      %c28_i32_279 = arith.constant 28 : i32
      %c0_i32_280 = arith.constant 0 : i32
      %407 = tpu.memref_slice %arg3[%406, %c0_i32_280] : memref<256x8xf32, #tpu.memory_space<any>> -> memref<1x8xf32, #tpu.memory_space<any>>
      %c28_i32_281 = arith.constant 28 : i32
      %c0_i32_282 = arith.constant 0 : i32
      %408 = tpu.memref_slice %arg5[%c28_i32_281, %c0_i32_282] : memref<64x8xf32, #tpu.memory_space<vmem>> -> memref<1x8xf32, #tpu.memory_space<vmem>>
      %409 = tpu.memref_slice %arg6[%c28_i32_279] : memref<64x!tpu.dma_semaphore, #tpu.memory_space<semaphore_mem>> -> memref<1x!tpu.dma_semaphore, #tpu.memory_space<semaphore_mem>>
      %410 = tpu.memref_squeeze %409 : memref<1x!tpu.dma_semaphore, #tpu.memory_space<semaphore_mem>> -> memref<!tpu.dma_semaphore, #tpu.memory_space<semaphore_mem>>
      tpu.enqueue_dma source(%407 : memref<1x8xf32, #tpu.memory_space<any>>) target(%408 : memref<1x8xf32, #tpu.memory_space<vmem>>) target_semaphore(%410 : memref<!tpu.dma_semaphore, #tpu.memory_space<semaphore_mem>>)
      %c29_i32_283 = arith.constant 29 : i32
      %411 = arith.addi %207, %c29_i32_283 : i32
      %412 = arith.index_cast %411 : i32 to index
      %413 = memref.load %arg2[%412] : memref<256xi32, #tpu.memory_space<smem>>
      %c29_i32_284 = arith.constant 29 : i32
      %c0_i32_285 = arith.constant 0 : i32
      %414 = tpu.memref_slice %arg3[%413, %c0_i32_285] : memref<256x8xf32, #tpu.memory_space<any>> -> memref<1x8xf32, #tpu.memory_space<any>>
      %c29_i32_286 = arith.constant 29 : i32
      %c0_i32_287 = arith.constant 0 : i32
      %415 = tpu.memref_slice %arg5[%c29_i32_286, %c0_i32_287] : memref<64x8xf32, #tpu.memory_space<vmem>> -> memref<1x8xf32, #tpu.memory_space<vmem>>
      %416 = tpu.memref_slice %arg6[%c29_i32_284] : memref<64x!tpu.dma_semaphore, #tpu.memory_space<semaphore_mem>> -> memref<1x!tpu.dma_semaphore, #tpu.memory_space<semaphore_mem>>
      %417 = tpu.memref_squeeze %416 : memref<1x!tpu.dma_semaphore, #tpu.memory_space<semaphore_mem>> -> memref<!tpu.dma_semaphore, #tpu.memory_space<semaphore_mem>>
      tpu.enqueue_dma source(%414 : memref<1x8xf32, #tpu.memory_space<any>>) target(%415 : memref<1x8xf32, #tpu.memory_space<vmem>>) target_semaphore(%417 : memref<!tpu.dma_semaphore, #tpu.memory_space<semaphore_mem>>)
      %c30_i32_288 = arith.constant 30 : i32
      %418 = arith.addi %207, %c30_i32_288 : i32
      %419 = arith.index_cast %418 : i32 to index
      %420 = memref.load %arg2[%419] : memref<256xi32, #tpu.memory_space<smem>>
      %c30_i32_289 = arith.constant 30 : i32
      %c0_i32_290 = arith.constant 0 : i32
      %421 = tpu.memref_slice %arg3[%420, %c0_i32_290] : memref<256x8xf32, #tpu.memory_space<any>> -> memref<1x8xf32, #tpu.memory_space<any>>
      %c30_i32_291 = arith.constant 30 : i32
      %c0_i32_292 = arith.constant 0 : i32
      %422 = tpu.memref_slice %arg5[%c30_i32_291, %c0_i32_292] : memref<64x8xf32, #tpu.memory_space<vmem>> -> memref<1x8xf32, #tpu.memory_space<vmem>>
      %423 = tpu.memref_slice %arg6[%c30_i32_289] : memref<64x!tpu.dma_semaphore, #tpu.memory_space<semaphore_mem>> -> memref<1x!tpu.dma_semaphore, #tpu.memory_space<semaphore_mem>>
      %424 = tpu.memref_squeeze %423 : memref<1x!tpu.dma_semaphore, #tpu.memory_space<semaphore_mem>> -> memref<!tpu.dma_semaphore, #tpu.memory_space<semaphore_mem>>
      tpu.enqueue_dma source(%421 : memref<1x8xf32, #tpu.memory_space<any>>) target(%422 : memref<1x8xf32, #tpu.memory_space<vmem>>) target_semaphore(%424 : memref<!tpu.dma_semaphore, #tpu.memory_space<semaphore_mem>>)
      %c31_i32_293 = arith.constant 31 : i32
      %425 = arith.addi %207, %c31_i32_293 : i32
      %426 = arith.index_cast %425 : i32 to index
      %427 = memref.load %arg2[%426] : memref<256xi32, #tpu.memory_space<smem>>
      %c31_i32_294 = arith.constant 31 : i32
      %c0_i32_295 = arith.constant 0 : i32
      %428 = tpu.memref_slice %arg3[%427, %c0_i32_295] : memref<256x8xf32, #tpu.memory_space<any>> -> memref<1x8xf32, #tpu.memory_space<any>>
      %c31_i32_296 = arith.constant 31 : i32
      %c0_i32_297 = arith.constant 0 : i32
      %429 = tpu.memref_slice %arg5[%c31_i32_296, %c0_i32_297] : memref<64x8xf32, #tpu.memory_space<vmem>> -> memref<1x8xf32, #tpu.memory_space<vmem>>
      %430 = tpu.memref_slice %arg6[%c31_i32_294] : memref<64x!tpu.dma_semaphore, #tpu.memory_space<semaphore_mem>> -> memref<1x!tpu.dma_semaphore, #tpu.memory_space<semaphore_mem>>
      %431 = tpu.memref_squeeze %430 : memref<1x!tpu.dma_semaphore, #tpu.memory_space<semaphore_mem>> -> memref<!tpu.dma_semaphore, #tpu.memory_space<semaphore_mem>>
      tpu.enqueue_dma source(%428 : memref<1x8xf32, #tpu.memory_space<any>>) target(%429 : memref<1x8xf32, #tpu.memory_space<vmem>>) target_semaphore(%431 : memref<!tpu.dma_semaphore, #tpu.memory_space<semaphore_mem>>)
    } else {
    }
    %c1_i32 = arith.constant 1 : i32
    %5 = arith.addi %arg1, %c1_i32 : i32
    %c4_i32_1 = arith.constant 4 : i32
    %6 = arith.cmpi slt, %5, %c4_i32_1 : i32
    %7 = arith.extui %6 : i1 to i32
    %c0_i32_2 = arith.constant 0 : i32
    %8 = arith.cmpi ne, %7, %c0_i32_2 : i32
    scf.if %8 {
      %c1_i32_137 = arith.constant 1 : i32
      %207 = arith.addi %1, %c1_i32_137 : i32
      %c1_i32_138 = arith.constant 1 : i32
      %208 = arith.addi %arg1, %c1_i32_138 : i32
      %c1_i32_139 = arith.constant 1 : i32
      %209 = arith.andi %208, %c1_i32_139 : i32
      %c32_i32_140 = arith.constant 32 : i32
      %210 = arith.muli %207, %c32_i32_140 : i32
      %c32_i32_141 = arith.constant 32 : i32
      %211 = arith.muli %209, %c32_i32_141 : i32
      %c0_i32_142 = arith.constant 0 : i32
      %212 = arith.addi %211, %c0_i32_142 : i32
      %c0_i32_143 = arith.constant 0 : i32
      %213 = arith.addi %210, %c0_i32_143 : i32
      %214 = arith.index_cast %213 : i32 to index
      %215 = memref.load %arg2[%214] : memref<256xi32, #tpu.memory_space<smem>>
      %c0_i32_144 = arith.constant 0 : i32
      %216 = tpu.memref_slice %arg3[%215, %c0_i32_144] : memref<256x8xf32, #tpu.memory_space<any>> -> memref<1x8xf32, #tpu.memory_space<any>>
      %c0_i32_145 = arith.constant 0 : i32
      %217 = tpu.memref_slice %arg5[%212, %c0_i32_145] : memref<64x8xf32, #tpu.memory_space<vmem>> -> memref<1x8xf32, #tpu.memory_space<vmem>>
      %218 = tpu.memref_slice %arg6[%212] : memref<64x!tpu.dma_semaphore, #tpu.memory_space<semaphore_mem>> -> memref<1x!tpu.dma_semaphore, #tpu.memory_space<semaphore_mem>>
      %219 = tpu.memref_squeeze %218 : memref<1x!tpu.dma_semaphore, #tpu.memory_space<semaphore_mem>> -> memref<!tpu.dma_semaphore, #tpu.memory_space<semaphore_mem>>
      tpu.enqueue_dma source(%216 : memref<1x8xf32, #tpu.memory_space<any>>) target(%217 : memref<1x8xf32, #tpu.memory_space<vmem>>) target_semaphore(%219 : memref<!tpu.dma_semaphore, #tpu.memory_space<semaphore_mem>>)
      %c32_i32_146 = arith.constant 32 : i32
      %220 = arith.muli %209, %c32_i32_146 : i32
      %c1_i32_147 = arith.constant 1 : i32
      %221 = arith.addi %220, %c1_i32_147 : i32
      %c1_i32_148 = arith.constant 1 : i32
      %222 = arith.addi %210, %c1_i32_148 : i32
      %223 = arith.index_cast %222 : i32 to index
      %224 = memref.load %arg2[%223] : memref<256xi32, #tpu.memory_space<smem>>
      %c0_i32_149 = arith.constant 0 : i32
      %225 = tpu.memref_slice %arg3[%224, %c0_i32_149] : memref<256x8xf32, #tpu.memory_space<any>> -> memref<1x8xf32, #tpu.memory_space<any>>
      %c0_i32_150 = arith.constant 0 : i32
      %226 = tpu.memref_slice %arg5[%221, %c0_i32_150] : memref<64x8xf32, #tpu.memory_space<vmem>> -> memref<1x8xf32, #tpu.memory_space<vmem>>
      %227 = tpu.memref_slice %arg6[%221] : memref<64x!tpu.dma_semaphore, #tpu.memory_space<semaphore_mem>> -> memref<1x!tpu.dma_semaphore, #tpu.memory_space<semaphore_mem>>
      %228 = tpu.memref_squeeze %227 : memref<1x!tpu.dma_semaphore, #tpu.memory_space<semaphore_mem>> -> memref<!tpu.dma_semaphore, #tpu.memory_space<semaphore_mem>>
      tpu.enqueue_dma source(%225 : memref<1x8xf32, #tpu.memory_space<any>>) target(%226 : memref<1x8xf32, #tpu.memory_space<vmem>>) target_semaphore(%228 : memref<!tpu.dma_semaphore, #tpu.memory_space<semaphore_mem>>)
      %c32_i32_151 = arith.constant 32 : i32
      %229 = arith.muli %209, %c32_i32_151 : i32
      %c2_i32_152 = arith.constant 2 : i32
      %230 = arith.addi %229, %c2_i32_152 : i32
      %c2_i32_153 = arith.constant 2 : i32
      %231 = arith.addi %210, %c2_i32_153 : i32
      %232 = arith.index_cast %231 : i32 to index
      %233 = memref.load %arg2[%232] : memref<256xi32, #tpu.memory_space<smem>>
      %c0_i32_154 = arith.constant 0 : i32
      %234 = tpu.memref_slice %arg3[%233, %c0_i32_154] : memref<256x8xf32, #tpu.memory_space<any>> -> memref<1x8xf32, #tpu.memory_space<any>>
      %c0_i32_155 = arith.constant 0 : i32
      %235 = tpu.memref_slice %arg5[%230, %c0_i32_155] : memref<64x8xf32, #tpu.memory_space<vmem>> -> memref<1x8xf32, #tpu.memory_space<vmem>>
      %236 = tpu.memref_slice %arg6[%230] : memref<64x!tpu.dma_semaphore, #tpu.memory_space<semaphore_mem>> -> memref<1x!tpu.dma_semaphore, #tpu.memory_space<semaphore_mem>>
      %237 = tpu.memref_squeeze %236 : memref<1x!tpu.dma_semaphore, #tpu.memory_space<semaphore_mem>> -> memref<!tpu.dma_semaphore, #tpu.memory_space<semaphore_mem>>
      tpu.enqueue_dma source(%234 : memref<1x8xf32, #tpu.memory_space<any>>) target(%235 : memref<1x8xf32, #tpu.memory_space<vmem>>) target_semaphore(%237 : memref<!tpu.dma_semaphore, #tpu.memory_space<semaphore_mem>>)
      %c32_i32_156 = arith.constant 32 : i32
      %238 = arith.muli %209, %c32_i32_156 : i32
      %c3_i32_157 = arith.constant 3 : i32
      %239 = arith.addi %238, %c3_i32_157 : i32
      %c3_i32_158 = arith.constant 3 : i32
      %240 = arith.addi %210, %c3_i32_158 : i32
      %241 = arith.index_cast %240 : i32 to index
      %242 = memref.load %arg2[%241] : memref<256xi32, #tpu.memory_space<smem>>
      %c0_i32_159 = arith.constant 0 : i32
      %243 = tpu.memref_slice %arg3[%242, %c0_i32_159] : memref<256x8xf32, #tpu.memory_space<any>> -> memref<1x8xf32, #tpu.memory_space<any>>
      %c0_i32_160 = arith.constant 0 : i32
      %244 = tpu.memref_slice %arg5[%239, %c0_i32_160] : memref<64x8xf32, #tpu.memory_space<vmem>> -> memref<1x8xf32, #tpu.memory_space<vmem>>
      %245 = tpu.memref_slice %arg6[%239] : memref<64x!tpu.dma_semaphore, #tpu.memory_space<semaphore_mem>> -> memref<1x!tpu.dma_semaphore, #tpu.memory_space<semaphore_mem>>
      %246 = tpu.memref_squeeze %245 : memref<1x!tpu.dma_semaphore, #tpu.memory_space<semaphore_mem>> -> memref<!tpu.dma_semaphore, #tpu.memory_space<semaphore_mem>>
      tpu.enqueue_dma source(%243 : memref<1x8xf32, #tpu.memory_space<any>>) target(%244 : memref<1x8xf32, #tpu.memory_space<vmem>>) target_semaphore(%246 : memref<!tpu.dma_semaphore, #tpu.memory_space<semaphore_mem>>)
      %c32_i32_161 = arith.constant 32 : i32
      %247 = arith.muli %209, %c32_i32_161 : i32
      %c4_i32_162 = arith.constant 4 : i32
      %248 = arith.addi %247, %c4_i32_162 : i32
      %c4_i32_163 = arith.constant 4 : i32
      %249 = arith.addi %210, %c4_i32_163 : i32
      %250 = arith.index_cast %249 : i32 to index
      %251 = memref.load %arg2[%250] : memref<256xi32, #tpu.memory_space<smem>>
      %c0_i32_164 = arith.constant 0 : i32
      %252 = tpu.memref_slice %arg3[%251, %c0_i32_164] : memref<256x8xf32, #tpu.memory_space<any>> -> memref<1x8xf32, #tpu.memory_space<any>>
      %c0_i32_165 = arith.constant 0 : i32
      %253 = tpu.memref_slice %arg5[%248, %c0_i32_165] : memref<64x8xf32, #tpu.memory_space<vmem>> -> memref<1x8xf32, #tpu.memory_space<vmem>>
      %254 = tpu.memref_slice %arg6[%248] : memref<64x!tpu.dma_semaphore, #tpu.memory_space<semaphore_mem>> -> memref<1x!tpu.dma_semaphore, #tpu.memory_space<semaphore_mem>>
      %255 = tpu.memref_squeeze %254 : memref<1x!tpu.dma_semaphore, #tpu.memory_space<semaphore_mem>> -> memref<!tpu.dma_semaphore, #tpu.memory_space<semaphore_mem>>
      tpu.enqueue_dma source(%252 : memref<1x8xf32, #tpu.memory_space<any>>) target(%253 : memref<1x8xf32, #tpu.memory_space<vmem>>) target_semaphore(%255 : memref<!tpu.dma_semaphore, #tpu.memory_space<semaphore_mem>>)
      %c32_i32_166 = arith.constant 32 : i32
      %256 = arith.muli %209, %c32_i32_166 : i32
      %c5_i32_167 = arith.constant 5 : i32
      %257 = arith.addi %256, %c5_i32_167 : i32
      %c5_i32_168 = arith.constant 5 : i32
      %258 = arith.addi %210, %c5_i32_168 : i32
      %259 = arith.index_cast %258 : i32 to index
      %260 = memref.load %arg2[%259] : memref<256xi32, #tpu.memory_space<smem>>
      %c0_i32_169 = arith.constant 0 : i32
      %261 = tpu.memref_slice %arg3[%260, %c0_i32_169] : memref<256x8xf32, #tpu.memory_space<any>> -> memref<1x8xf32, #tpu.memory_space<any>>
      %c0_i32_170 = arith.constant 0 : i32
      %262 = tpu.memref_slice %arg5[%257, %c0_i32_170] : memref<64x8xf32, #tpu.memory_space<vmem>> -> memref<1x8xf32, #tpu.memory_space<vmem>>
      %263 = tpu.memref_slice %arg6[%257] : memref<64x!tpu.dma_semaphore, #tpu.memory_space<semaphore_mem>> -> memref<1x!tpu.dma_semaphore, #tpu.memory_space<semaphore_mem>>
      %264 = tpu.memref_squeeze %263 : memref<1x!tpu.dma_semaphore, #tpu.memory_space<semaphore_mem>> -> memref<!tpu.dma_semaphore, #tpu.memory_space<semaphore_mem>>
      tpu.enqueue_dma source(%261 : memref<1x8xf32, #tpu.memory_space<any>>) target(%262 : memref<1x8xf32, #tpu.memory_space<vmem>>) target_semaphore(%264 : memref<!tpu.dma_semaphore, #tpu.memory_space<semaphore_mem>>)
      %c32_i32_171 = arith.constant 32 : i32
      %265 = arith.muli %209, %c32_i32_171 : i32
      %c6_i32_172 = arith.constant 6 : i32
      %266 = arith.addi %265, %c6_i32_172 : i32
      %c6_i32_173 = arith.constant 6 : i32
      %267 = arith.addi %210, %c6_i32_173 : i32
      %268 = arith.index_cast %267 : i32 to index
      %269 = memref.load %arg2[%268] : memref<256xi32, #tpu.memory_space<smem>>
      %c0_i32_174 = arith.constant 0 : i32
      %270 = tpu.memref_slice %arg3[%269, %c0_i32_174] : memref<256x8xf32, #tpu.memory_space<any>> -> memref<1x8xf32, #tpu.memory_space<any>>
      %c0_i32_175 = arith.constant 0 : i32
      %271 = tpu.memref_slice %arg5[%266, %c0_i32_175] : memref<64x8xf32, #tpu.memory_space<vmem>> -> memref<1x8xf32, #tpu.memory_space<vmem>>
      %272 = tpu.memref_slice %arg6[%266] : memref<64x!tpu.dma_semaphore, #tpu.memory_space<semaphore_mem>> -> memref<1x!tpu.dma_semaphore, #tpu.memory_space<semaphore_mem>>
      %273 = tpu.memref_squeeze %272 : memref<1x!tpu.dma_semaphore, #tpu.memory_space<semaphore_mem>> -> memref<!tpu.dma_semaphore, #tpu.memory_space<semaphore_mem>>
      tpu.enqueue_dma source(%270 : memref<1x8xf32, #tpu.memory_space<any>>) target(%271 : memref<1x8xf32, #tpu.memory_space<vmem>>) target_semaphore(%273 : memref<!tpu.dma_semaphore, #tpu.memory_space<semaphore_mem>>)
      %c32_i32_176 = arith.constant 32 : i32
      %274 = arith.muli %209, %c32_i32_176 : i32
      %c7_i32_177 = arith.constant 7 : i32
      %275 = arith.addi %274, %c7_i32_177 : i32
      %c7_i32_178 = arith.constant 7 : i32
      %276 = arith.addi %210, %c7_i32_178 : i32
      %277 = arith.index_cast %276 : i32 to index
      %278 = memref.load %arg2[%277] : memref<256xi32, #tpu.memory_space<smem>>
      %c0_i32_179 = arith.constant 0 : i32
      %279 = tpu.memref_slice %arg3[%278, %c0_i32_179] : memref<256x8xf32, #tpu.memory_space<any>> -> memref<1x8xf32, #tpu.memory_space<any>>
      %c0_i32_180 = arith.constant 0 : i32
      %280 = tpu.memref_slice %arg5[%275, %c0_i32_180] : memref<64x8xf32, #tpu.memory_space<vmem>> -> memref<1x8xf32, #tpu.memory_space<vmem>>
      %281 = tpu.memref_slice %arg6[%275] : memref<64x!tpu.dma_semaphore, #tpu.memory_space<semaphore_mem>> -> memref<1x!tpu.dma_semaphore, #tpu.memory_space<semaphore_mem>>
      %282 = tpu.memref_squeeze %281 : memref<1x!tpu.dma_semaphore, #tpu.memory_space<semaphore_mem>> -> memref<!tpu.dma_semaphore, #tpu.memory_space<semaphore_mem>>
      tpu.enqueue_dma source(%279 : memref<1x8xf32, #tpu.memory_space<any>>) target(%280 : memref<1x8xf32, #tpu.memory_space<vmem>>) target_semaphore(%282 : memref<!tpu.dma_semaphore, #tpu.memory_space<semaphore_mem>>)
      %c32_i32_181 = arith.constant 32 : i32
      %283 = arith.muli %209, %c32_i32_181 : i32
      %c8_i32_182 = arith.constant 8 : i32
      %284 = arith.addi %283, %c8_i32_182 : i32
      %c8_i32_183 = arith.constant 8 : i32
      %285 = arith.addi %210, %c8_i32_183 : i32
      %286 = arith.index_cast %285 : i32 to index
      %287 = memref.load %arg2[%286] : memref<256xi32, #tpu.memory_space<smem>>
      %c0_i32_184 = arith.constant 0 : i32
      %288 = tpu.memref_slice %arg3[%287, %c0_i32_184] : memref<256x8xf32, #tpu.memory_space<any>> -> memref<1x8xf32, #tpu.memory_space<any>>
      %c0_i32_185 = arith.constant 0 : i32
      %289 = tpu.memref_slice %arg5[%284, %c0_i32_185] : memref<64x8xf32, #tpu.memory_space<vmem>> -> memref<1x8xf32, #tpu.memory_space<vmem>>
      %290 = tpu.memref_slice %arg6[%284] : memref<64x!tpu.dma_semaphore, #tpu.memory_space<semaphore_mem>> -> memref<1x!tpu.dma_semaphore, #tpu.memory_space<semaphore_mem>>
      %291 = tpu.memref_squeeze %290 : memref<1x!tpu.dma_semaphore, #tpu.memory_space<semaphore_mem>> -> memref<!tpu.dma_semaphore, #tpu.memory_space<semaphore_mem>>
      tpu.enqueue_dma source(%288 : memref<1x8xf32, #tpu.memory_space<any>>) target(%289 : memref<1x8xf32, #tpu.memory_space<vmem>>) target_semaphore(%291 : memref<!tpu.dma_semaphore, #tpu.memory_space<semaphore_mem>>)
      %c32_i32_186 = arith.constant 32 : i32
      %292 = arith.muli %209, %c32_i32_186 : i32
      %c9_i32_187 = arith.constant 9 : i32
      %293 = arith.addi %292, %c9_i32_187 : i32
      %c9_i32_188 = arith.constant 9 : i32
      %294 = arith.addi %210, %c9_i32_188 : i32
      %295 = arith.index_cast %294 : i32 to index
      %296 = memref.load %arg2[%295] : memref<256xi32, #tpu.memory_space<smem>>
      %c0_i32_189 = arith.constant 0 : i32
      %297 = tpu.memref_slice %arg3[%296, %c0_i32_189] : memref<256x8xf32, #tpu.memory_space<any>> -> memref<1x8xf32, #tpu.memory_space<any>>
      %c0_i32_190 = arith.constant 0 : i32
      %298 = tpu.memref_slice %arg5[%293, %c0_i32_190] : memref<64x8xf32, #tpu.memory_space<vmem>> -> memref<1x8xf32, #tpu.memory_space<vmem>>
      %299 = tpu.memref_slice %arg6[%293] : memref<64x!tpu.dma_semaphore, #tpu.memory_space<semaphore_mem>> -> memref<1x!tpu.dma_semaphore, #tpu.memory_space<semaphore_mem>>
      %300 = tpu.memref_squeeze %299 : memref<1x!tpu.dma_semaphore, #tpu.memory_space<semaphore_mem>> -> memref<!tpu.dma_semaphore, #tpu.memory_space<semaphore_mem>>
      tpu.enqueue_dma source(%297 : memref<1x8xf32, #tpu.memory_space<any>>) target(%298 : memref<1x8xf32, #tpu.memory_space<vmem>>) target_semaphore(%300 : memref<!tpu.dma_semaphore, #tpu.memory_space<semaphore_mem>>)
      %c32_i32_191 = arith.constant 32 : i32
      %301 = arith.muli %209, %c32_i32_191 : i32
      %c10_i32_192 = arith.constant 10 : i32
      %302 = arith.addi %301, %c10_i32_192 : i32
      %c10_i32_193 = arith.constant 10 : i32
      %303 = arith.addi %210, %c10_i32_193 : i32
      %304 = arith.index_cast %303 : i32 to index
      %305 = memref.load %arg2[%304] : memref<256xi32, #tpu.memory_space<smem>>
      %c0_i32_194 = arith.constant 0 : i32
      %306 = tpu.memref_slice %arg3[%305, %c0_i32_194] : memref<256x8xf32, #tpu.memory_space<any>> -> memref<1x8xf32, #tpu.memory_space<any>>
      %c0_i32_195 = arith.constant 0 : i32
      %307 = tpu.memref_slice %arg5[%302, %c0_i32_195] : memref<64x8xf32, #tpu.memory_space<vmem>> -> memref<1x8xf32, #tpu.memory_space<vmem>>
      %308 = tpu.memref_slice %arg6[%302] : memref<64x!tpu.dma_semaphore, #tpu.memory_space<semaphore_mem>> -> memref<1x!tpu.dma_semaphore, #tpu.memory_space<semaphore_mem>>
      %309 = tpu.memref_squeeze %308 : memref<1x!tpu.dma_semaphore, #tpu.memory_space<semaphore_mem>> -> memref<!tpu.dma_semaphore, #tpu.memory_space<semaphore_mem>>
      tpu.enqueue_dma source(%306 : memref<1x8xf32, #tpu.memory_space<any>>) target(%307 : memref<1x8xf32, #tpu.memory_space<vmem>>) target_semaphore(%309 : memref<!tpu.dma_semaphore, #tpu.memory_space<semaphore_mem>>)
      %c32_i32_196 = arith.constant 32 : i32
      %310 = arith.muli %209, %c32_i32_196 : i32
      %c11_i32_197 = arith.constant 11 : i32
      %311 = arith.addi %310, %c11_i32_197 : i32
      %c11_i32_198 = arith.constant 11 : i32
      %312 = arith.addi %210, %c11_i32_198 : i32
      %313 = arith.index_cast %312 : i32 to index
      %314 = memref.load %arg2[%313] : memref<256xi32, #tpu.memory_space<smem>>
      %c0_i32_199 = arith.constant 0 : i32
      %315 = tpu.memref_slice %arg3[%314, %c0_i32_199] : memref<256x8xf32, #tpu.memory_space<any>> -> memref<1x8xf32, #tpu.memory_space<any>>
      %c0_i32_200 = arith.constant 0 : i32
      %316 = tpu.memref_slice %arg5[%311, %c0_i32_200] : memref<64x8xf32, #tpu.memory_space<vmem>> -> memref<1x8xf32, #tpu.memory_space<vmem>>
      %317 = tpu.memref_slice %arg6[%311] : memref<64x!tpu.dma_semaphore, #tpu.memory_space<semaphore_mem>> -> memref<1x!tpu.dma_semaphore, #tpu.memory_space<semaphore_mem>>
      %318 = tpu.memref_squeeze %317 : memref<1x!tpu.dma_semaphore, #tpu.memory_space<semaphore_mem>> -> memref<!tpu.dma_semaphore, #tpu.memory_space<semaphore_mem>>
      tpu.enqueue_dma source(%315 : memref<1x8xf32, #tpu.memory_space<any>>) target(%316 : memref<1x8xf32, #tpu.memory_space<vmem>>) target_semaphore(%318 : memref<!tpu.dma_semaphore, #tpu.memory_space<semaphore_mem>>)
      %c32_i32_201 = arith.constant 32 : i32
      %319 = arith.muli %209, %c32_i32_201 : i32
      %c12_i32_202 = arith.constant 12 : i32
      %320 = arith.addi %319, %c12_i32_202 : i32
      %c12_i32_203 = arith.constant 12 : i32
      %321 = arith.addi %210, %c12_i32_203 : i32
      %322 = arith.index_cast %321 : i32 to index
      %323 = memref.load %arg2[%322] : memref<256xi32, #tpu.memory_space<smem>>
      %c0_i32_204 = arith.constant 0 : i32
      %324 = tpu.memref_slice %arg3[%323, %c0_i32_204] : memref<256x8xf32, #tpu.memory_space<any>> -> memref<1x8xf32, #tpu.memory_space<any>>
      %c0_i32_205 = arith.constant 0 : i32
      %325 = tpu.memref_slice %arg5[%320, %c0_i32_205] : memref<64x8xf32, #tpu.memory_space<vmem>> -> memref<1x8xf32, #tpu.memory_space<vmem>>
      %326 = tpu.memref_slice %arg6[%320] : memref<64x!tpu.dma_semaphore, #tpu.memory_space<semaphore_mem>> -> memref<1x!tpu.dma_semaphore, #tpu.memory_space<semaphore_mem>>
      %327 = tpu.memref_squeeze %326 : memref<1x!tpu.dma_semaphore, #tpu.memory_space<semaphore_mem>> -> memref<!tpu.dma_semaphore, #tpu.memory_space<semaphore_mem>>
      tpu.enqueue_dma source(%324 : memref<1x8xf32, #tpu.memory_space<any>>) target(%325 : memref<1x8xf32, #tpu.memory_space<vmem>>) target_semaphore(%327 : memref<!tpu.dma_semaphore, #tpu.memory_space<semaphore_mem>>)
      %c32_i32_206 = arith.constant 32 : i32
      %328 = arith.muli %209, %c32_i32_206 : i32
      %c13_i32_207 = arith.constant 13 : i32
      %329 = arith.addi %328, %c13_i32_207 : i32
      %c13_i32_208 = arith.constant 13 : i32
      %330 = arith.addi %210, %c13_i32_208 : i32
      %331 = arith.index_cast %330 : i32 to index
      %332 = memref.load %arg2[%331] : memref<256xi32, #tpu.memory_space<smem>>
      %c0_i32_209 = arith.constant 0 : i32
      %333 = tpu.memref_slice %arg3[%332, %c0_i32_209] : memref<256x8xf32, #tpu.memory_space<any>> -> memref<1x8xf32, #tpu.memory_space<any>>
      %c0_i32_210 = arith.constant 0 : i32
      %334 = tpu.memref_slice %arg5[%329, %c0_i32_210] : memref<64x8xf32, #tpu.memory_space<vmem>> -> memref<1x8xf32, #tpu.memory_space<vmem>>
      %335 = tpu.memref_slice %arg6[%329] : memref<64x!tpu.dma_semaphore, #tpu.memory_space<semaphore_mem>> -> memref<1x!tpu.dma_semaphore, #tpu.memory_space<semaphore_mem>>
      %336 = tpu.memref_squeeze %335 : memref<1x!tpu.dma_semaphore, #tpu.memory_space<semaphore_mem>> -> memref<!tpu.dma_semaphore, #tpu.memory_space<semaphore_mem>>
      tpu.enqueue_dma source(%333 : memref<1x8xf32, #tpu.memory_space<any>>) target(%334 : memref<1x8xf32, #tpu.memory_space<vmem>>) target_semaphore(%336 : memref<!tpu.dma_semaphore, #tpu.memory_space<semaphore_mem>>)
      %c32_i32_211 = arith.constant 32 : i32
      %337 = arith.muli %209, %c32_i32_211 : i32
      %c14_i32_212 = arith.constant 14 : i32
      %338 = arith.addi %337, %c14_i32_212 : i32
      %c14_i32_213 = arith.constant 14 : i32
      %339 = arith.addi %210, %c14_i32_213 : i32
      %340 = arith.index_cast %339 : i32 to index
      %341 = memref.load %arg2[%340] : memref<256xi32, #tpu.memory_space<smem>>
      %c0_i32_214 = arith.constant 0 : i32
      %342 = tpu.memref_slice %arg3[%341, %c0_i32_214] : memref<256x8xf32, #tpu.memory_space<any>> -> memref<1x8xf32, #tpu.memory_space<any>>
      %c0_i32_215 = arith.constant 0 : i32
      %343 = tpu.memref_slice %arg5[%338, %c0_i32_215] : memref<64x8xf32, #tpu.memory_space<vmem>> -> memref<1x8xf32, #tpu.memory_space<vmem>>
      %344 = tpu.memref_slice %arg6[%338] : memref<64x!tpu.dma_semaphore, #tpu.memory_space<semaphore_mem>> -> memref<1x!tpu.dma_semaphore, #tpu.memory_space<semaphore_mem>>
      %345 = tpu.memref_squeeze %344 : memref<1x!tpu.dma_semaphore, #tpu.memory_space<semaphore_mem>> -> memref<!tpu.dma_semaphore, #tpu.memory_space<semaphore_mem>>
      tpu.enqueue_dma source(%342 : memref<1x8xf32, #tpu.memory_space<any>>) target(%343 : memref<1x8xf32, #tpu.memory_space<vmem>>) target_semaphore(%345 : memref<!tpu.dma_semaphore, #tpu.memory_space<semaphore_mem>>)
      %c32_i32_216 = arith.constant 32 : i32
      %346 = arith.muli %209, %c32_i32_216 : i32
      %c15_i32_217 = arith.constant 15 : i32
      %347 = arith.addi %346, %c15_i32_217 : i32
      %c15_i32_218 = arith.constant 15 : i32
      %348 = arith.addi %210, %c15_i32_218 : i32
      %349 = arith.index_cast %348 : i32 to index
      %350 = memref.load %arg2[%349] : memref<256xi32, #tpu.memory_space<smem>>
      %c0_i32_219 = arith.constant 0 : i32
      %351 = tpu.memref_slice %arg3[%350, %c0_i32_219] : memref<256x8xf32, #tpu.memory_space<any>> -> memref<1x8xf32, #tpu.memory_space<any>>
      %c0_i32_220 = arith.constant 0 : i32
      %352 = tpu.memref_slice %arg5[%347, %c0_i32_220] : memref<64x8xf32, #tpu.memory_space<vmem>> -> memref<1x8xf32, #tpu.memory_space<vmem>>
      %353 = tpu.memref_slice %arg6[%347] : memref<64x!tpu.dma_semaphore, #tpu.memory_space<semaphore_mem>> -> memref<1x!tpu.dma_semaphore, #tpu.memory_space<semaphore_mem>>
      %354 = tpu.memref_squeeze %353 : memref<1x!tpu.dma_semaphore, #tpu.memory_space<semaphore_mem>> -> memref<!tpu.dma_semaphore, #tpu.memory_space<semaphore_mem>>
      tpu.enqueue_dma source(%351 : memref<1x8xf32, #tpu.memory_space<any>>) target(%352 : memref<1x8xf32, #tpu.memory_space<vmem>>) target_semaphore(%354 : memref<!tpu.dma_semaphore, #tpu.memory_space<semaphore_mem>>)
      %c32_i32_221 = arith.constant 32 : i32
      %355 = arith.muli %209, %c32_i32_221 : i32
      %c16_i32_222 = arith.constant 16 : i32
      %356 = arith.addi %355, %c16_i32_222 : i32
      %c16_i32_223 = arith.constant 16 : i32
      %357 = arith.addi %210, %c16_i32_223 : i32
      %358 = arith.index_cast %357 : i32 to index
      %359 = memref.load %arg2[%358] : memref<256xi32, #tpu.memory_space<smem>>
      %c0_i32_224 = arith.constant 0 : i32
      %360 = tpu.memref_slice %arg3[%359, %c0_i32_224] : memref<256x8xf32, #tpu.memory_space<any>> -> memref<1x8xf32, #tpu.memory_space<any>>
      %c0_i32_225 = arith.constant 0 : i32
      %361 = tpu.memref_slice %arg5[%356, %c0_i32_225] : memref<64x8xf32, #tpu.memory_space<vmem>> -> memref<1x8xf32, #tpu.memory_space<vmem>>
      %362 = tpu.memref_slice %arg6[%356] : memref<64x!tpu.dma_semaphore, #tpu.memory_space<semaphore_mem>> -> memref<1x!tpu.dma_semaphore, #tpu.memory_space<semaphore_mem>>
      %363 = tpu.memref_squeeze %362 : memref<1x!tpu.dma_semaphore, #tpu.memory_space<semaphore_mem>> -> memref<!tpu.dma_semaphore, #tpu.memory_space<semaphore_mem>>
      tpu.enqueue_dma source(%360 : memref<1x8xf32, #tpu.memory_space<any>>) target(%361 : memref<1x8xf32, #tpu.memory_space<vmem>>) target_semaphore(%363 : memref<!tpu.dma_semaphore, #tpu.memory_space<semaphore_mem>>)
      %c32_i32_226 = arith.constant 32 : i32
      %364 = arith.muli %209, %c32_i32_226 : i32
      %c17_i32_227 = arith.constant 17 : i32
      %365 = arith.addi %364, %c17_i32_227 : i32
      %c17_i32_228 = arith.constant 17 : i32
      %366 = arith.addi %210, %c17_i32_228 : i32
      %367 = arith.index_cast %366 : i32 to index
      %368 = memref.load %arg2[%367] : memref<256xi32, #tpu.memory_space<smem>>
      %c0_i32_229 = arith.constant 0 : i32
      %369 = tpu.memref_slice %arg3[%368, %c0_i32_229] : memref<256x8xf32, #tpu.memory_space<any>> -> memref<1x8xf32, #tpu.memory_space<any>>
      %c0_i32_230 = arith.constant 0 : i32
      %370 = tpu.memref_slice %arg5[%365, %c0_i32_230] : memref<64x8xf32, #tpu.memory_space<vmem>> -> memref<1x8xf32, #tpu.memory_space<vmem>>
      %371 = tpu.memref_slice %arg6[%365] : memref<64x!tpu.dma_semaphore, #tpu.memory_space<semaphore_mem>> -> memref<1x!tpu.dma_semaphore, #tpu.memory_space<semaphore_mem>>
      %372 = tpu.memref_squeeze %371 : memref<1x!tpu.dma_semaphore, #tpu.memory_space<semaphore_mem>> -> memref<!tpu.dma_semaphore, #tpu.memory_space<semaphore_mem>>
      tpu.enqueue_dma source(%369 : memref<1x8xf32, #tpu.memory_space<any>>) target(%370 : memref<1x8xf32, #tpu.memory_space<vmem>>) target_semaphore(%372 : memref<!tpu.dma_semaphore, #tpu.memory_space<semaphore_mem>>)
      %c32_i32_231 = arith.constant 32 : i32
      %373 = arith.muli %209, %c32_i32_231 : i32
      %c18_i32_232 = arith.constant 18 : i32
      %374 = arith.addi %373, %c18_i32_232 : i32
      %c18_i32_233 = arith.constant 18 : i32
      %375 = arith.addi %210, %c18_i32_233 : i32
      %376 = arith.index_cast %375 : i32 to index
      %377 = memref.load %arg2[%376] : memref<256xi32, #tpu.memory_space<smem>>
      %c0_i32_234 = arith.constant 0 : i32
      %378 = tpu.memref_slice %arg3[%377, %c0_i32_234] : memref<256x8xf32, #tpu.memory_space<any>> -> memref<1x8xf32, #tpu.memory_space<any>>
      %c0_i32_235 = arith.constant 0 : i32
      %379 = tpu.memref_slice %arg5[%374, %c0_i32_235] : memref<64x8xf32, #tpu.memory_space<vmem>> -> memref<1x8xf32, #tpu.memory_space<vmem>>
      %380 = tpu.memref_slice %arg6[%374] : memref<64x!tpu.dma_semaphore, #tpu.memory_space<semaphore_mem>> -> memref<1x!tpu.dma_semaphore, #tpu.memory_space<semaphore_mem>>
      %381 = tpu.memref_squeeze %380 : memref<1x!tpu.dma_semaphore, #tpu.memory_space<semaphore_mem>> -> memref<!tpu.dma_semaphore, #tpu.memory_space<semaphore_mem>>
      tpu.enqueue_dma source(%378 : memref<1x8xf32, #tpu.memory_space<any>>) target(%379 : memref<1x8xf32, #tpu.memory_space<vmem>>) target_semaphore(%381 : memref<!tpu.dma_semaphore, #tpu.memory_space<semaphore_mem>>)
      %c32_i32_236 = arith.constant 32 : i32
      %382 = arith.muli %209, %c32_i32_236 : i32
      %c19_i32_237 = arith.constant 19 : i32
      %383 = arith.addi %382, %c19_i32_237 : i32
      %c19_i32_238 = arith.constant 19 : i32
      %384 = arith.addi %210, %c19_i32_238 : i32
      %385 = arith.index_cast %384 : i32 to index
      %386 = memref.load %arg2[%385] : memref<256xi32, #tpu.memory_space<smem>>
      %c0_i32_239 = arith.constant 0 : i32
      %387 = tpu.memref_slice %arg3[%386, %c0_i32_239] : memref<256x8xf32, #tpu.memory_space<any>> -> memref<1x8xf32, #tpu.memory_space<any>>
      %c0_i32_240 = arith.constant 0 : i32
      %388 = tpu.memref_slice %arg5[%383, %c0_i32_240] : memref<64x8xf32, #tpu.memory_space<vmem>> -> memref<1x8xf32, #tpu.memory_space<vmem>>
      %389 = tpu.memref_slice %arg6[%383] : memref<64x!tpu.dma_semaphore, #tpu.memory_space<semaphore_mem>> -> memref<1x!tpu.dma_semaphore, #tpu.memory_space<semaphore_mem>>
      %390 = tpu.memref_squeeze %389 : memref<1x!tpu.dma_semaphore, #tpu.memory_space<semaphore_mem>> -> memref<!tpu.dma_semaphore, #tpu.memory_space<semaphore_mem>>
      tpu.enqueue_dma source(%387 : memref<1x8xf32, #tpu.memory_space<any>>) target(%388 : memref<1x8xf32, #tpu.memory_space<vmem>>) target_semaphore(%390 : memref<!tpu.dma_semaphore, #tpu.memory_space<semaphore_mem>>)
      %c32_i32_241 = arith.constant 32 : i32
      %391 = arith.muli %209, %c32_i32_241 : i32
      %c20_i32_242 = arith.constant 20 : i32
      %392 = arith.addi %391, %c20_i32_242 : i32
      %c20_i32_243 = arith.constant 20 : i32
      %393 = arith.addi %210, %c20_i32_243 : i32
      %394 = arith.index_cast %393 : i32 to index
      %395 = memref.load %arg2[%394] : memref<256xi32, #tpu.memory_space<smem>>
      %c0_i32_244 = arith.constant 0 : i32
      %396 = tpu.memref_slice %arg3[%395, %c0_i32_244] : memref<256x8xf32, #tpu.memory_space<any>> -> memref<1x8xf32, #tpu.memory_space<any>>
      %c0_i32_245 = arith.constant 0 : i32
      %397 = tpu.memref_slice %arg5[%392, %c0_i32_245] : memref<64x8xf32, #tpu.memory_space<vmem>> -> memref<1x8xf32, #tpu.memory_space<vmem>>
      %398 = tpu.memref_slice %arg6[%392] : memref<64x!tpu.dma_semaphore, #tpu.memory_space<semaphore_mem>> -> memref<1x!tpu.dma_semaphore, #tpu.memory_space<semaphore_mem>>
      %399 = tpu.memref_squeeze %398 : memref<1x!tpu.dma_semaphore, #tpu.memory_space<semaphore_mem>> -> memref<!tpu.dma_semaphore, #tpu.memory_space<semaphore_mem>>
      tpu.enqueue_dma source(%396 : memref<1x8xf32, #tpu.memory_space<any>>) target(%397 : memref<1x8xf32, #tpu.memory_space<vmem>>) target_semaphore(%399 : memref<!tpu.dma_semaphore, #tpu.memory_space<semaphore_mem>>)
      %c32_i32_246 = arith.constant 32 : i32
      %400 = arith.muli %209, %c32_i32_246 : i32
      %c21_i32_247 = arith.constant 21 : i32
      %401 = arith.addi %400, %c21_i32_247 : i32
      %c21_i32_248 = arith.constant 21 : i32
      %402 = arith.addi %210, %c21_i32_248 : i32
      %403 = arith.index_cast %402 : i32 to index
      %404 = memref.load %arg2[%403] : memref<256xi32, #tpu.memory_space<smem>>
      %c0_i32_249 = arith.constant 0 : i32
      %405 = tpu.memref_slice %arg3[%404, %c0_i32_249] : memref<256x8xf32, #tpu.memory_space<any>> -> memref<1x8xf32, #tpu.memory_space<any>>
      %c0_i32_250 = arith.constant 0 : i32
      %406 = tpu.memref_slice %arg5[%401, %c0_i32_250] : memref<64x8xf32, #tpu.memory_space<vmem>> -> memref<1x8xf32, #tpu.memory_space<vmem>>
      %407 = tpu.memref_slice %arg6[%401] : memref<64x!tpu.dma_semaphore, #tpu.memory_space<semaphore_mem>> -> memref<1x!tpu.dma_semaphore, #tpu.memory_space<semaphore_mem>>
      %408 = tpu.memref_squeeze %407 : memref<1x!tpu.dma_semaphore, #tpu.memory_space<semaphore_mem>> -> memref<!tpu.dma_semaphore, #tpu.memory_space<semaphore_mem>>
      tpu.enqueue_dma source(%405 : memref<1x8xf32, #tpu.memory_space<any>>) target(%406 : memref<1x8xf32, #tpu.memory_space<vmem>>) target_semaphore(%408 : memref<!tpu.dma_semaphore, #tpu.memory_space<semaphore_mem>>)
      %c32_i32_251 = arith.constant 32 : i32
      %409 = arith.muli %209, %c32_i32_251 : i32
      %c22_i32_252 = arith.constant 22 : i32
      %410 = arith.addi %409, %c22_i32_252 : i32
      %c22_i32_253 = arith.constant 22 : i32
      %411 = arith.addi %210, %c22_i32_253 : i32
      %412 = arith.index_cast %411 : i32 to index
      %413 = memref.load %arg2[%412] : memref<256xi32, #tpu.memory_space<smem>>
      %c0_i32_254 = arith.constant 0 : i32
      %414 = tpu.memref_slice %arg3[%413, %c0_i32_254] : memref<256x8xf32, #tpu.memory_space<any>> -> memref<1x8xf32, #tpu.memory_space<any>>
      %c0_i32_255 = arith.constant 0 : i32
      %415 = tpu.memref_slice %arg5[%410, %c0_i32_255] : memref<64x8xf32, #tpu.memory_space<vmem>> -> memref<1x8xf32, #tpu.memory_space<vmem>>
      %416 = tpu.memref_slice %arg6[%410] : memref<64x!tpu.dma_semaphore, #tpu.memory_space<semaphore_mem>> -> memref<1x!tpu.dma_semaphore, #tpu.memory_space<semaphore_mem>>
      %417 = tpu.memref_squeeze %416 : memref<1x!tpu.dma_semaphore, #tpu.memory_space<semaphore_mem>> -> memref<!tpu.dma_semaphore, #tpu.memory_space<semaphore_mem>>
      tpu.enqueue_dma source(%414 : memref<1x8xf32, #tpu.memory_space<any>>) target(%415 : memref<1x8xf32, #tpu.memory_space<vmem>>) target_semaphore(%417 : memref<!tpu.dma_semaphore, #tpu.memory_space<semaphore_mem>>)
      %c32_i32_256 = arith.constant 32 : i32
      %418 = arith.muli %209, %c32_i32_256 : i32
      %c23_i32_257 = arith.constant 23 : i32
      %419 = arith.addi %418, %c23_i32_257 : i32
      %c23_i32_258 = arith.constant 23 : i32
      %420 = arith.addi %210, %c23_i32_258 : i32
      %421 = arith.index_cast %420 : i32 to index
      %422 = memref.load %arg2[%421] : memref<256xi32, #tpu.memory_space<smem>>
      %c0_i32_259 = arith.constant 0 : i32
      %423 = tpu.memref_slice %arg3[%422, %c0_i32_259] : memref<256x8xf32, #tpu.memory_space<any>> -> memref<1x8xf32, #tpu.memory_space<any>>
      %c0_i32_260 = arith.constant 0 : i32
      %424 = tpu.memref_slice %arg5[%419, %c0_i32_260] : memref<64x8xf32, #tpu.memory_space<vmem>> -> memref<1x8xf32, #tpu.memory_space<vmem>>
      %425 = tpu.memref_slice %arg6[%419] : memref<64x!tpu.dma_semaphore, #tpu.memory_space<semaphore_mem>> -> memref<1x!tpu.dma_semaphore, #tpu.memory_space<semaphore_mem>>
      %426 = tpu.memref_squeeze %425 : memref<1x!tpu.dma_semaphore, #tpu.memory_space<semaphore_mem>> -> memref<!tpu.dma_semaphore, #tpu.memory_space<semaphore_mem>>
      tpu.enqueue_dma source(%423 : memref<1x8xf32, #tpu.memory_space<any>>) target(%424 : memref<1x8xf32, #tpu.memory_space<vmem>>) target_semaphore(%426 : memref<!tpu.dma_semaphore, #tpu.memory_space<semaphore_mem>>)
      %c32_i32_261 = arith.constant 32 : i32
      %427 = arith.muli %209, %c32_i32_261 : i32
      %c24_i32_262 = arith.constant 24 : i32
      %428 = arith.addi %427, %c24_i32_262 : i32
      %c24_i32_263 = arith.constant 24 : i32
      %429 = arith.addi %210, %c24_i32_263 : i32
      %430 = arith.index_cast %429 : i32 to index
      %431 = memref.load %arg2[%430] : memref<256xi32, #tpu.memory_space<smem>>
      %c0_i32_264 = arith.constant 0 : i32
      %432 = tpu.memref_slice %arg3[%431, %c0_i32_264] : memref<256x8xf32, #tpu.memory_space<any>> -> memref<1x8xf32, #tpu.memory_space<any>>
      %c0_i32_265 = arith.constant 0 : i32
      %433 = tpu.memref_slice %arg5[%428, %c0_i32_265] : memref<64x8xf32, #tpu.memory_space<vmem>> -> memref<1x8xf32, #tpu.memory_space<vmem>>
      %434 = tpu.memref_slice %arg6[%428] : memref<64x!tpu.dma_semaphore, #tpu.memory_space<semaphore_mem>> -> memref<1x!tpu.dma_semaphore, #tpu.memory_space<semaphore_mem>>
      %435 = tpu.memref_squeeze %434 : memref<1x!tpu.dma_semaphore, #tpu.memory_space<semaphore_mem>> -> memref<!tpu.dma_semaphore, #tpu.memory_space<semaphore_mem>>
      tpu.enqueue_dma source(%432 : memref<1x8xf32, #tpu.memory_space<any>>) target(%433 : memref<1x8xf32, #tpu.memory_space<vmem>>) target_semaphore(%435 : memref<!tpu.dma_semaphore, #tpu.memory_space<semaphore_mem>>)
      %c32_i32_266 = arith.constant 32 : i32
      %436 = arith.muli %209, %c32_i32_266 : i32
      %c25_i32_267 = arith.constant 25 : i32
      %437 = arith.addi %436, %c25_i32_267 : i32
      %c25_i32_268 = arith.constant 25 : i32
      %438 = arith.addi %210, %c25_i32_268 : i32
      %439 = arith.index_cast %438 : i32 to index
      %440 = memref.load %arg2[%439] : memref<256xi32, #tpu.memory_space<smem>>
      %c0_i32_269 = arith.constant 0 : i32
      %441 = tpu.memref_slice %arg3[%440, %c0_i32_269] : memref<256x8xf32, #tpu.memory_space<any>> -> memref<1x8xf32, #tpu.memory_space<any>>
      %c0_i32_270 = arith.constant 0 : i32
      %442 = tpu.memref_slice %arg5[%437, %c0_i32_270] : memref<64x8xf32, #tpu.memory_space<vmem>> -> memref<1x8xf32, #tpu.memory_space<vmem>>
      %443 = tpu.memref_slice %arg6[%437] : memref<64x!tpu.dma_semaphore, #tpu.memory_space<semaphore_mem>> -> memref<1x!tpu.dma_semaphore, #tpu.memory_space<semaphore_mem>>
      %444 = tpu.memref_squeeze %443 : memref<1x!tpu.dma_semaphore, #tpu.memory_space<semaphore_mem>> -> memref<!tpu.dma_semaphore, #tpu.memory_space<semaphore_mem>>
      tpu.enqueue_dma source(%441 : memref<1x8xf32, #tpu.memory_space<any>>) target(%442 : memref<1x8xf32, #tpu.memory_space<vmem>>) target_semaphore(%444 : memref<!tpu.dma_semaphore, #tpu.memory_space<semaphore_mem>>)
      %c32_i32_271 = arith.constant 32 : i32
      %445 = arith.muli %209, %c32_i32_271 : i32
      %c26_i32_272 = arith.constant 26 : i32
      %446 = arith.addi %445, %c26_i32_272 : i32
      %c26_i32_273 = arith.constant 26 : i32
      %447 = arith.addi %210, %c26_i32_273 : i32
      %448 = arith.index_cast %447 : i32 to index
      %449 = memref.load %arg2[%448] : memref<256xi32, #tpu.memory_space<smem>>
      %c0_i32_274 = arith.constant 0 : i32
      %450 = tpu.memref_slice %arg3[%449, %c0_i32_274] : memref<256x8xf32, #tpu.memory_space<any>> -> memref<1x8xf32, #tpu.memory_space<any>>
      %c0_i32_275 = arith.constant 0 : i32
      %451 = tpu.memref_slice %arg5[%446, %c0_i32_275] : memref<64x8xf32, #tpu.memory_space<vmem>> -> memref<1x8xf32, #tpu.memory_space<vmem>>
      %452 = tpu.memref_slice %arg6[%446] : memref<64x!tpu.dma_semaphore, #tpu.memory_space<semaphore_mem>> -> memref<1x!tpu.dma_semaphore, #tpu.memory_space<semaphore_mem>>
      %453 = tpu.memref_squeeze %452 : memref<1x!tpu.dma_semaphore, #tpu.memory_space<semaphore_mem>> -> memref<!tpu.dma_semaphore, #tpu.memory_space<semaphore_mem>>
      tpu.enqueue_dma source(%450 : memref<1x8xf32, #tpu.memory_space<any>>) target(%451 : memref<1x8xf32, #tpu.memory_space<vmem>>) target_semaphore(%453 : memref<!tpu.dma_semaphore, #tpu.memory_space<semaphore_mem>>)
      %c32_i32_276 = arith.constant 32 : i32
      %454 = arith.muli %209, %c32_i32_276 : i32
      %c27_i32_277 = arith.constant 27 : i32
      %455 = arith.addi %454, %c27_i32_277 : i32
      %c27_i32_278 = arith.constant 27 : i32
      %456 = arith.addi %210, %c27_i32_278 : i32
      %457 = arith.index_cast %456 : i32 to index
      %458 = memref.load %arg2[%457] : memref<256xi32, #tpu.memory_space<smem>>
      %c0_i32_279 = arith.constant 0 : i32
      %459 = tpu.memref_slice %arg3[%458, %c0_i32_279] : memref<256x8xf32, #tpu.memory_space<any>> -> memref<1x8xf32, #tpu.memory_space<any>>
      %c0_i32_280 = arith.constant 0 : i32
      %460 = tpu.memref_slice %arg5[%455, %c0_i32_280] : memref<64x8xf32, #tpu.memory_space<vmem>> -> memref<1x8xf32, #tpu.memory_space<vmem>>
      %461 = tpu.memref_slice %arg6[%455] : memref<64x!tpu.dma_semaphore, #tpu.memory_space<semaphore_mem>> -> memref<1x!tpu.dma_semaphore, #tpu.memory_space<semaphore_mem>>
      %462 = tpu.memref_squeeze %461 : memref<1x!tpu.dma_semaphore, #tpu.memory_space<semaphore_mem>> -> memref<!tpu.dma_semaphore, #tpu.memory_space<semaphore_mem>>
      tpu.enqueue_dma source(%459 : memref<1x8xf32, #tpu.memory_space<any>>) target(%460 : memref<1x8xf32, #tpu.memory_space<vmem>>) target_semaphore(%462 : memref<!tpu.dma_semaphore, #tpu.memory_space<semaphore_mem>>)
      %c32_i32_281 = arith.constant 32 : i32
      %463 = arith.muli %209, %c32_i32_281 : i32
      %c28_i32_282 = arith.constant 28 : i32
      %464 = arith.addi %463, %c28_i32_282 : i32
      %c28_i32_283 = arith.constant 28 : i32
      %465 = arith.addi %210, %c28_i32_283 : i32
      %466 = arith.index_cast %465 : i32 to index
      %467 = memref.load %arg2[%466] : memref<256xi32, #tpu.memory_space<smem>>
      %c0_i32_284 = arith.constant 0 : i32
      %468 = tpu.memref_slice %arg3[%467, %c0_i32_284] : memref<256x8xf32, #tpu.memory_space<any>> -> memref<1x8xf32, #tpu.memory_space<any>>
      %c0_i32_285 = arith.constant 0 : i32
      %469 = tpu.memref_slice %arg5[%464, %c0_i32_285] : memref<64x8xf32, #tpu.memory_space<vmem>> -> memref<1x8xf32, #tpu.memory_space<vmem>>
      %470 = tpu.memref_slice %arg6[%464] : memref<64x!tpu.dma_semaphore, #tpu.memory_space<semaphore_mem>> -> memref<1x!tpu.dma_semaphore, #tpu.memory_space<semaphore_mem>>
      %471 = tpu.memref_squeeze %470 : memref<1x!tpu.dma_semaphore, #tpu.memory_space<semaphore_mem>> -> memref<!tpu.dma_semaphore, #tpu.memory_space<semaphore_mem>>
      tpu.enqueue_dma source(%468 : memref<1x8xf32, #tpu.memory_space<any>>) target(%469 : memref<1x8xf32, #tpu.memory_space<vmem>>) target_semaphore(%471 : memref<!tpu.dma_semaphore, #tpu.memory_space<semaphore_mem>>)
      %c32_i32_286 = arith.constant 32 : i32
      %472 = arith.muli %209, %c32_i32_286 : i32
      %c29_i32_287 = arith.constant 29 : i32
      %473 = arith.addi %472, %c29_i32_287 : i32
      %c29_i32_288 = arith.constant 29 : i32
      %474 = arith.addi %210, %c29_i32_288 : i32
      %475 = arith.index_cast %474 : i32 to index
      %476 = memref.load %arg2[%475] : memref<256xi32, #tpu.memory_space<smem>>
      %c0_i32_289 = arith.constant 0 : i32
      %477 = tpu.memref_slice %arg3[%476, %c0_i32_289] : memref<256x8xf32, #tpu.memory_space<any>> -> memref<1x8xf32, #tpu.memory_space<any>>
      %c0_i32_290 = arith.constant 0 : i32
      %478 = tpu.memref_slice %arg5[%473, %c0_i32_290] : memref<64x8xf32, #tpu.memory_space<vmem>> -> memref<1x8xf32, #tpu.memory_space<vmem>>
      %479 = tpu.memref_slice %arg6[%473] : memref<64x!tpu.dma_semaphore, #tpu.memory_space<semaphore_mem>> -> memref<1x!tpu.dma_semaphore, #tpu.memory_space<semaphore_mem>>
      %480 = tpu.memref_squeeze %479 : memref<1x!tpu.dma_semaphore, #tpu.memory_space<semaphore_mem>> -> memref<!tpu.dma_semaphore, #tpu.memory_space<semaphore_mem>>
      tpu.enqueue_dma source(%477 : memref<1x8xf32, #tpu.memory_space<any>>) target(%478 : memref<1x8xf32, #tpu.memory_space<vmem>>) target_semaphore(%480 : memref<!tpu.dma_semaphore, #tpu.memory_space<semaphore_mem>>)
      %c32_i32_291 = arith.constant 32 : i32
      %481 = arith.muli %209, %c32_i32_291 : i32
      %c30_i32_292 = arith.constant 30 : i32
      %482 = arith.addi %481, %c30_i32_292 : i32
      %c30_i32_293 = arith.constant 30 : i32
      %483 = arith.addi %210, %c30_i32_293 : i32
      %484 = arith.index_cast %483 : i32 to index
      %485 = memref.load %arg2[%484] : memref<256xi32, #tpu.memory_space<smem>>
      %c0_i32_294 = arith.constant 0 : i32
      %486 = tpu.memref_slice %arg3[%485, %c0_i32_294] : memref<256x8xf32, #tpu.memory_space<any>> -> memref<1x8xf32, #tpu.memory_space<any>>
      %c0_i32_295 = arith.constant 0 : i32
      %487 = tpu.memref_slice %arg5[%482, %c0_i32_295] : memref<64x8xf32, #tpu.memory_space<vmem>> -> memref<1x8xf32, #tpu.memory_space<vmem>>
      %488 = tpu.memref_slice %arg6[%482] : memref<64x!tpu.dma_semaphore, #tpu.memory_space<semaphore_mem>> -> memref<1x!tpu.dma_semaphore, #tpu.memory_space<semaphore_mem>>
      %489 = tpu.memref_squeeze %488 : memref<1x!tpu.dma_semaphore, #tpu.memory_space<semaphore_mem>> -> memref<!tpu.dma_semaphore, #tpu.memory_space<semaphore_mem>>
      tpu.enqueue_dma source(%486 : memref<1x8xf32, #tpu.memory_space<any>>) target(%487 : memref<1x8xf32, #tpu.memory_space<vmem>>) target_semaphore(%489 : memref<!tpu.dma_semaphore, #tpu.memory_space<semaphore_mem>>)
      %c32_i32_296 = arith.constant 32 : i32
      %490 = arith.muli %209, %c32_i32_296 : i32
      %c31_i32_297 = arith.constant 31 : i32
      %491 = arith.addi %490, %c31_i32_297 : i32
      %c31_i32_298 = arith.constant 31 : i32
      %492 = arith.addi %210, %c31_i32_298 : i32
      %493 = arith.index_cast %492 : i32 to index
      %494 = memref.load %arg2[%493] : memref<256xi32, #tpu.memory_space<smem>>
      %c0_i32_299 = arith.constant 0 : i32
      %495 = tpu.memref_slice %arg3[%494, %c0_i32_299] : memref<256x8xf32, #tpu.memory_space<any>> -> memref<1x8xf32, #tpu.memory_space<any>>
      %c0_i32_300 = arith.constant 0 : i32
      %496 = tpu.memref_slice %arg5[%491, %c0_i32_300] : memref<64x8xf32, #tpu.memory_space<vmem>> -> memref<1x8xf32, #tpu.memory_space<vmem>>
      %497 = tpu.memref_slice %arg6[%491] : memref<64x!tpu.dma_semaphore, #tpu.memory_space<semaphore_mem>> -> memref<1x!tpu.dma_semaphore, #tpu.memory_space<semaphore_mem>>
      %498 = tpu.memref_squeeze %497 : memref<1x!tpu.dma_semaphore, #tpu.memory_space<semaphore_mem>> -> memref<!tpu.dma_semaphore, #tpu.memory_space<semaphore_mem>>
      tpu.enqueue_dma source(%495 : memref<1x8xf32, #tpu.memory_space<any>>) target(%496 : memref<1x8xf32, #tpu.memory_space<vmem>>) target_semaphore(%498 : memref<!tpu.dma_semaphore, #tpu.memory_space<semaphore_mem>>)
    } else {
    }
    %c1_i32_3 = arith.constant 1 : i32
    %9 = arith.andi %arg1, %c1_i32_3 : i32
    %c32_i32 = arith.constant 32 : i32
    %10 = arith.muli %9, %c32_i32 : i32
    %c0_i32_4 = arith.constant 0 : i32
    %11 = arith.addi %10, %c0_i32_4 : i32
    %c0_i32_5 = arith.constant 0 : i32
    %c0_i32_6 = arith.constant 0 : i32
    %12 = tpu.memref_slice %arg3[%c0_i32_5, %c0_i32_6] : memref<256x8xf32, #tpu.memory_space<any>> -> memref<1x8xf32, #tpu.memory_space<any>>
    %c0_i32_7 = arith.constant 0 : i32
    %13 = tpu.memref_slice %arg5[%11, %c0_i32_7] : memref<64x8xf32, #tpu.memory_space<vmem>> -> memref<1x8xf32, #tpu.memory_space<vmem>>
    %14 = tpu.memref_slice %arg6[%11] : memref<64x!tpu.dma_semaphore, #tpu.memory_space<semaphore_mem>> -> memref<1x!tpu.dma_semaphore, #tpu.memory_space<semaphore_mem>>
    %15 = tpu.memref_squeeze %14 : memref<1x!tpu.dma_semaphore, #tpu.memory_space<semaphore_mem>> -> memref<!tpu.dma_semaphore, #tpu.memory_space<semaphore_mem>>
    tpu.wait_dma2 semaphore(%15 : memref<!tpu.dma_semaphore, #tpu.memory_space<semaphore_mem>>) src(%12 : memref<1x8xf32, #tpu.memory_space<any>>) dst(%13 : memref<1x8xf32, #tpu.memory_space<vmem>>)
    %c32_i32_8 = arith.constant 32 : i32
    %16 = arith.muli %9, %c32_i32_8 : i32
    %c1_i32_9 = arith.constant 1 : i32
    %17 = arith.addi %16, %c1_i32_9 : i32
    %c0_i32_10 = arith.constant 0 : i32
    %c0_i32_11 = arith.constant 0 : i32
    %18 = tpu.memref_slice %arg3[%c0_i32_10, %c0_i32_11] : memref<256x8xf32, #tpu.memory_space<any>> -> memref<1x8xf32, #tpu.memory_space<any>>
    %c0_i32_12 = arith.constant 0 : i32
    %19 = tpu.memref_slice %arg5[%17, %c0_i32_12] : memref<64x8xf32, #tpu.memory_space<vmem>> -> memref<1x8xf32, #tpu.memory_space<vmem>>
    %20 = tpu.memref_slice %arg6[%17] : memref<64x!tpu.dma_semaphore, #tpu.memory_space<semaphore_mem>> -> memref<1x!tpu.dma_semaphore, #tpu.memory_space<semaphore_mem>>
    %21 = tpu.memref_squeeze %20 : memref<1x!tpu.dma_semaphore, #tpu.memory_space<semaphore_mem>> -> memref<!tpu.dma_semaphore, #tpu.memory_space<semaphore_mem>>
    tpu.wait_dma2 semaphore(%21 : memref<!tpu.dma_semaphore, #tpu.memory_space<semaphore_mem>>) src(%18 : memref<1x8xf32, #tpu.memory_space<any>>) dst(%19 : memref<1x8xf32, #tpu.memory_space<vmem>>)
    %c32_i32_13 = arith.constant 32 : i32
    %22 = arith.muli %9, %c32_i32_13 : i32
    %c2_i32 = arith.constant 2 : i32
    %23 = arith.addi %22, %c2_i32 : i32
    %c0_i32_14 = arith.constant 0 : i32
    %c0_i32_15 = arith.constant 0 : i32
    %24 = tpu.memref_slice %arg3[%c0_i32_14, %c0_i32_15] : memref<256x8xf32, #tpu.memory_space<any>> -> memref<1x8xf32, #tpu.memory_space<any>>
    %c0_i32_16 = arith.constant 0 : i32
    %25 = tpu.memref_slice %arg5[%23, %c0_i32_16] : memref<64x8xf32, #tpu.memory_space<vmem>> -> memref<1x8xf32, #tpu.memory_space<vmem>>
    %26 = tpu.memref_slice %arg6[%23] : memref<64x!tpu.dma_semaphore, #tpu.memory_space<semaphore_mem>> -> memref<1x!tpu.dma_semaphore, #tpu.memory_space<semaphore_mem>>
    %27 = tpu.memref_squeeze %26 : memref<1x!tpu.dma_semaphore, #tpu.memory_space<semaphore_mem>> -> memref<!tpu.dma_semaphore, #tpu.memory_space<semaphore_mem>>
    tpu.wait_dma2 semaphore(%27 : memref<!tpu.dma_semaphore, #tpu.memory_space<semaphore_mem>>) src(%24 : memref<1x8xf32, #tpu.memory_space<any>>) dst(%25 : memref<1x8xf32, #tpu.memory_space<vmem>>)
    %c32_i32_17 = arith.constant 32 : i32
    %28 = arith.muli %9, %c32_i32_17 : i32
    %c3_i32 = arith.constant 3 : i32
    %29 = arith.addi %28, %c3_i32 : i32
    %c0_i32_18 = arith.constant 0 : i32
    %c0_i32_19 = arith.constant 0 : i32
    %30 = tpu.memref_slice %arg3[%c0_i32_18, %c0_i32_19] : memref<256x8xf32, #tpu.memory_space<any>> -> memref<1x8xf32, #tpu.memory_space<any>>
    %c0_i32_20 = arith.constant 0 : i32
    %31 = tpu.memref_slice %arg5[%29, %c0_i32_20] : memref<64x8xf32, #tpu.memory_space<vmem>> -> memref<1x8xf32, #tpu.memory_space<vmem>>
    %32 = tpu.memref_slice %arg6[%29] : memref<64x!tpu.dma_semaphore, #tpu.memory_space<semaphore_mem>> -> memref<1x!tpu.dma_semaphore, #tpu.memory_space<semaphore_mem>>
    %33 = tpu.memref_squeeze %32 : memref<1x!tpu.dma_semaphore, #tpu.memory_space<semaphore_mem>> -> memref<!tpu.dma_semaphore, #tpu.memory_space<semaphore_mem>>
    tpu.wait_dma2 semaphore(%33 : memref<!tpu.dma_semaphore, #tpu.memory_space<semaphore_mem>>) src(%30 : memref<1x8xf32, #tpu.memory_space<any>>) dst(%31 : memref<1x8xf32, #tpu.memory_space<vmem>>)
    %c32_i32_21 = arith.constant 32 : i32
    %34 = arith.muli %9, %c32_i32_21 : i32
    %c4_i32_22 = arith.constant 4 : i32
    %35 = arith.addi %34, %c4_i32_22 : i32
    %c0_i32_23 = arith.constant 0 : i32
    %c0_i32_24 = arith.constant 0 : i32
    %36 = tpu.memref_slice %arg3[%c0_i32_23, %c0_i32_24] : memref<256x8xf32, #tpu.memory_space<any>> -> memref<1x8xf32, #tpu.memory_space<any>>
    %c0_i32_25 = arith.constant 0 : i32
    %37 = tpu.memref_slice %arg5[%35, %c0_i32_25] : memref<64x8xf32, #tpu.memory_space<vmem>> -> memref<1x8xf32, #tpu.memory_space<vmem>>
    %38 = tpu.memref_slice %arg6[%35] : memref<64x!tpu.dma_semaphore, #tpu.memory_space<semaphore_mem>> -> memref<1x!tpu.dma_semaphore, #tpu.memory_space<semaphore_mem>>
    %39 = tpu.memref_squeeze %38 : memref<1x!tpu.dma_semaphore, #tpu.memory_space<semaphore_mem>> -> memref<!tpu.dma_semaphore, #tpu.memory_space<semaphore_mem>>
    tpu.wait_dma2 semaphore(%39 : memref<!tpu.dma_semaphore, #tpu.memory_space<semaphore_mem>>) src(%36 : memref<1x8xf32, #tpu.memory_space<any>>) dst(%37 : memref<1x8xf32, #tpu.memory_space<vmem>>)
    %c32_i32_26 = arith.constant 32 : i32
    %40 = arith.muli %9, %c32_i32_26 : i32
    %c5_i32 = arith.constant 5 : i32
    %41 = arith.addi %40, %c5_i32 : i32
    %c0_i32_27 = arith.constant 0 : i32
    %c0_i32_28 = arith.constant 0 : i32
    %42 = tpu.memref_slice %arg3[%c0_i32_27, %c0_i32_28] : memref<256x8xf32, #tpu.memory_space<any>> -> memref<1x8xf32, #tpu.memory_space<any>>
    %c0_i32_29 = arith.constant 0 : i32
    %43 = tpu.memref_slice %arg5[%41, %c0_i32_29] : memref<64x8xf32, #tpu.memory_space<vmem>> -> memref<1x8xf32, #tpu.memory_space<vmem>>
    %44 = tpu.memref_slice %arg6[%41] : memref<64x!tpu.dma_semaphore, #tpu.memory_space<semaphore_mem>> -> memref<1x!tpu.dma_semaphore, #tpu.memory_space<semaphore_mem>>
    %45 = tpu.memref_squeeze %44 : memref<1x!tpu.dma_semaphore, #tpu.memory_space<semaphore_mem>> -> memref<!tpu.dma_semaphore, #tpu.memory_space<semaphore_mem>>
    tpu.wait_dma2 semaphore(%45 : memref<!tpu.dma_semaphore, #tpu.memory_space<semaphore_mem>>) src(%42 : memref<1x8xf32, #tpu.memory_space<any>>) dst(%43 : memref<1x8xf32, #tpu.memory_space<vmem>>)
    %c32_i32_30 = arith.constant 32 : i32
    %46 = arith.muli %9, %c32_i32_30 : i32
    %c6_i32 = arith.constant 6 : i32
    %47 = arith.addi %46, %c6_i32 : i32
    %c0_i32_31 = arith.constant 0 : i32
    %c0_i32_32 = arith.constant 0 : i32
    %48 = tpu.memref_slice %arg3[%c0_i32_31, %c0_i32_32] : memref<256x8xf32, #tpu.memory_space<any>> -> memref<1x8xf32, #tpu.memory_space<any>>
    %c0_i32_33 = arith.constant 0 : i32
    %49 = tpu.memref_slice %arg5[%47, %c0_i32_33] : memref<64x8xf32, #tpu.memory_space<vmem>> -> memref<1x8xf32, #tpu.memory_space<vmem>>
    %50 = tpu.memref_slice %arg6[%47] : memref<64x!tpu.dma_semaphore, #tpu.memory_space<semaphore_mem>> -> memref<1x!tpu.dma_semaphore, #tpu.memory_space<semaphore_mem>>
    %51 = tpu.memref_squeeze %50 : memref<1x!tpu.dma_semaphore, #tpu.memory_space<semaphore_mem>> -> memref<!tpu.dma_semaphore, #tpu.memory_space<semaphore_mem>>
    tpu.wait_dma2 semaphore(%51 : memref<!tpu.dma_semaphore, #tpu.memory_space<semaphore_mem>>) src(%48 : memref<1x8xf32, #tpu.memory_space<any>>) dst(%49 : memref<1x8xf32, #tpu.memory_space<vmem>>)
    %c32_i32_34 = arith.constant 32 : i32
    %52 = arith.muli %9, %c32_i32_34 : i32
    %c7_i32 = arith.constant 7 : i32
    %53 = arith.addi %52, %c7_i32 : i32
    %c0_i32_35 = arith.constant 0 : i32
    %c0_i32_36 = arith.constant 0 : i32
    %54 = tpu.memref_slice %arg3[%c0_i32_35, %c0_i32_36] : memref<256x8xf32, #tpu.memory_space<any>> -> memref<1x8xf32, #tpu.memory_space<any>>
    %c0_i32_37 = arith.constant 0 : i32
    %55 = tpu.memref_slice %arg5[%53, %c0_i32_37] : memref<64x8xf32, #tpu.memory_space<vmem>> -> memref<1x8xf32, #tpu.memory_space<vmem>>
    %56 = tpu.memref_slice %arg6[%53] : memref<64x!tpu.dma_semaphore, #tpu.memory_space<semaphore_mem>> -> memref<1x!tpu.dma_semaphore, #tpu.memory_space<semaphore_mem>>
    %57 = tpu.memref_squeeze %56 : memref<1x!tpu.dma_semaphore, #tpu.memory_space<semaphore_mem>> -> memref<!tpu.dma_semaphore, #tpu.memory_space<semaphore_mem>>
    tpu.wait_dma2 semaphore(%57 : memref<!tpu.dma_semaphore, #tpu.memory_space<semaphore_mem>>) src(%54 : memref<1x8xf32, #tpu.memory_space<any>>) dst(%55 : memref<1x8xf32, #tpu.memory_space<vmem>>)
    %c32_i32_38 = arith.constant 32 : i32
    %58 = arith.muli %9, %c32_i32_38 : i32
    %c8_i32 = arith.constant 8 : i32
    %59 = arith.addi %58, %c8_i32 : i32
    %c0_i32_39 = arith.constant 0 : i32
    %c0_i32_40 = arith.constant 0 : i32
    %60 = tpu.memref_slice %arg3[%c0_i32_39, %c0_i32_40] : memref<256x8xf32, #tpu.memory_space<any>> -> memref<1x8xf32, #tpu.memory_space<any>>
    %c0_i32_41 = arith.constant 0 : i32
    %61 = tpu.memref_slice %arg5[%59, %c0_i32_41] : memref<64x8xf32, #tpu.memory_space<vmem>> -> memref<1x8xf32, #tpu.memory_space<vmem>>
    %62 = tpu.memref_slice %arg6[%59] : memref<64x!tpu.dma_semaphore, #tpu.memory_space<semaphore_mem>> -> memref<1x!tpu.dma_semaphore, #tpu.memory_space<semaphore_mem>>
    %63 = tpu.memref_squeeze %62 : memref<1x!tpu.dma_semaphore, #tpu.memory_space<semaphore_mem>> -> memref<!tpu.dma_semaphore, #tpu.memory_space<semaphore_mem>>
    tpu.wait_dma2 semaphore(%63 : memref<!tpu.dma_semaphore, #tpu.memory_space<semaphore_mem>>) src(%60 : memref<1x8xf32, #tpu.memory_space<any>>) dst(%61 : memref<1x8xf32, #tpu.memory_space<vmem>>)
    %c32_i32_42 = arith.constant 32 : i32
    %64 = arith.muli %9, %c32_i32_42 : i32
    %c9_i32 = arith.constant 9 : i32
    %65 = arith.addi %64, %c9_i32 : i32
    %c0_i32_43 = arith.constant 0 : i32
    %c0_i32_44 = arith.constant 0 : i32
    %66 = tpu.memref_slice %arg3[%c0_i32_43, %c0_i32_44] : memref<256x8xf32, #tpu.memory_space<any>> -> memref<1x8xf32, #tpu.memory_space<any>>
    %c0_i32_45 = arith.constant 0 : i32
    %67 = tpu.memref_slice %arg5[%65, %c0_i32_45] : memref<64x8xf32, #tpu.memory_space<vmem>> -> memref<1x8xf32, #tpu.memory_space<vmem>>
    %68 = tpu.memref_slice %arg6[%65] : memref<64x!tpu.dma_semaphore, #tpu.memory_space<semaphore_mem>> -> memref<1x!tpu.dma_semaphore, #tpu.memory_space<semaphore_mem>>
    %69 = tpu.memref_squeeze %68 : memref<1x!tpu.dma_semaphore, #tpu.memory_space<semaphore_mem>> -> memref<!tpu.dma_semaphore, #tpu.memory_space<semaphore_mem>>
    tpu.wait_dma2 semaphore(%69 : memref<!tpu.dma_semaphore, #tpu.memory_space<semaphore_mem>>) src(%66 : memref<1x8xf32, #tpu.memory_space<any>>) dst(%67 : memref<1x8xf32, #tpu.memory_space<vmem>>)
    %c32_i32_46 = arith.constant 32 : i32
    %70 = arith.muli %9, %c32_i32_46 : i32
    %c10_i32 = arith.constant 10 : i32
    %71 = arith.addi %70, %c10_i32 : i32
    %c0_i32_47 = arith.constant 0 : i32
    %c0_i32_48 = arith.constant 0 : i32
    %72 = tpu.memref_slice %arg3[%c0_i32_47, %c0_i32_48] : memref<256x8xf32, #tpu.memory_space<any>> -> memref<1x8xf32, #tpu.memory_space<any>>
    %c0_i32_49 = arith.constant 0 : i32
    %73 = tpu.memref_slice %arg5[%71, %c0_i32_49] : memref<64x8xf32, #tpu.memory_space<vmem>> -> memref<1x8xf32, #tpu.memory_space<vmem>>
    %74 = tpu.memref_slice %arg6[%71] : memref<64x!tpu.dma_semaphore, #tpu.memory_space<semaphore_mem>> -> memref<1x!tpu.dma_semaphore, #tpu.memory_space<semaphore_mem>>
    %75 = tpu.memref_squeeze %74 : memref<1x!tpu.dma_semaphore, #tpu.memory_space<semaphore_mem>> -> memref<!tpu.dma_semaphore, #tpu.memory_space<semaphore_mem>>
    tpu.wait_dma2 semaphore(%75 : memref<!tpu.dma_semaphore, #tpu.memory_space<semaphore_mem>>) src(%72 : memref<1x8xf32, #tpu.memory_space<any>>) dst(%73 : memref<1x8xf32, #tpu.memory_space<vmem>>)
    %c32_i32_50 = arith.constant 32 : i32
    %76 = arith.muli %9, %c32_i32_50 : i32
    %c11_i32 = arith.constant 11 : i32
    %77 = arith.addi %76, %c11_i32 : i32
    %c0_i32_51 = arith.constant 0 : i32
    %c0_i32_52 = arith.constant 0 : i32
    %78 = tpu.memref_slice %arg3[%c0_i32_51, %c0_i32_52] : memref<256x8xf32, #tpu.memory_space<any>> -> memref<1x8xf32, #tpu.memory_space<any>>
    %c0_i32_53 = arith.constant 0 : i32
    %79 = tpu.memref_slice %arg5[%77, %c0_i32_53] : memref<64x8xf32, #tpu.memory_space<vmem>> -> memref<1x8xf32, #tpu.memory_space<vmem>>
    %80 = tpu.memref_slice %arg6[%77] : memref<64x!tpu.dma_semaphore, #tpu.memory_space<semaphore_mem>> -> memref<1x!tpu.dma_semaphore, #tpu.memory_space<semaphore_mem>>
    %81 = tpu.memref_squeeze %80 : memref<1x!tpu.dma_semaphore, #tpu.memory_space<semaphore_mem>> -> memref<!tpu.dma_semaphore, #tpu.memory_space<semaphore_mem>>
    tpu.wait_dma2 semaphore(%81 : memref<!tpu.dma_semaphore, #tpu.memory_space<semaphore_mem>>) src(%78 : memref<1x8xf32, #tpu.memory_space<any>>) dst(%79 : memref<1x8xf32, #tpu.memory_space<vmem>>)
    %c32_i32_54 = arith.constant 32 : i32
    %82 = arith.muli %9, %c32_i32_54 : i32
    %c12_i32 = arith.constant 12 : i32
    %83 = arith.addi %82, %c12_i32 : i32
    %c0_i32_55 = arith.constant 0 : i32
    %c0_i32_56 = arith.constant 0 : i32
    %84 = tpu.memref_slice %arg3[%c0_i32_55, %c0_i32_56] : memref<256x8xf32, #tpu.memory_space<any>> -> memref<1x8xf32, #tpu.memory_space<any>>
    %c0_i32_57 = arith.constant 0 : i32
    %85 = tpu.memref_slice %arg5[%83, %c0_i32_57] : memref<64x8xf32, #tpu.memory_space<vmem>> -> memref<1x8xf32, #tpu.memory_space<vmem>>
    %86 = tpu.memref_slice %arg6[%83] : memref<64x!tpu.dma_semaphore, #tpu.memory_space<semaphore_mem>> -> memref<1x!tpu.dma_semaphore, #tpu.memory_space<semaphore_mem>>
    %87 = tpu.memref_squeeze %86 : memref<1x!tpu.dma_semaphore, #tpu.memory_space<semaphore_mem>> -> memref<!tpu.dma_semaphore, #tpu.memory_space<semaphore_mem>>
    tpu.wait_dma2 semaphore(%87 : memref<!tpu.dma_semaphore, #tpu.memory_space<semaphore_mem>>) src(%84 : memref<1x8xf32, #tpu.memory_space<any>>) dst(%85 : memref<1x8xf32, #tpu.memory_space<vmem>>)
    %c32_i32_58 = arith.constant 32 : i32
    %88 = arith.muli %9, %c32_i32_58 : i32
    %c13_i32 = arith.constant 13 : i32
    %89 = arith.addi %88, %c13_i32 : i32
    %c0_i32_59 = arith.constant 0 : i32
    %c0_i32_60 = arith.constant 0 : i32
    %90 = tpu.memref_slice %arg3[%c0_i32_59, %c0_i32_60] : memref<256x8xf32, #tpu.memory_space<any>> -> memref<1x8xf32, #tpu.memory_space<any>>
    %c0_i32_61 = arith.constant 0 : i32
    %91 = tpu.memref_slice %arg5[%89, %c0_i32_61] : memref<64x8xf32, #tpu.memory_space<vmem>> -> memref<1x8xf32, #tpu.memory_space<vmem>>
    %92 = tpu.memref_slice %arg6[%89] : memref<64x!tpu.dma_semaphore, #tpu.memory_space<semaphore_mem>> -> memref<1x!tpu.dma_semaphore, #tpu.memory_space<semaphore_mem>>
    %93 = tpu.memref_squeeze %92 : memref<1x!tpu.dma_semaphore, #tpu.memory_space<semaphore_mem>> -> memref<!tpu.dma_semaphore, #tpu.memory_space<semaphore_mem>>
    tpu.wait_dma2 semaphore(%93 : memref<!tpu.dma_semaphore, #tpu.memory_space<semaphore_mem>>) src(%90 : memref<1x8xf32, #tpu.memory_space<any>>) dst(%91 : memref<1x8xf32, #tpu.memory_space<vmem>>)
    %c32_i32_62 = arith.constant 32 : i32
    %94 = arith.muli %9, %c32_i32_62 : i32
    %c14_i32 = arith.constant 14 : i32
    %95 = arith.addi %94, %c14_i32 : i32
    %c0_i32_63 = arith.constant 0 : i32
    %c0_i32_64 = arith.constant 0 : i32
    %96 = tpu.memref_slice %arg3[%c0_i32_63, %c0_i32_64] : memref<256x8xf32, #tpu.memory_space<any>> -> memref<1x8xf32, #tpu.memory_space<any>>
    %c0_i32_65 = arith.constant 0 : i32
    %97 = tpu.memref_slice %arg5[%95, %c0_i32_65] : memref<64x8xf32, #tpu.memory_space<vmem>> -> memref<1x8xf32, #tpu.memory_space<vmem>>
    %98 = tpu.memref_slice %arg6[%95] : memref<64x!tpu.dma_semaphore, #tpu.memory_space<semaphore_mem>> -> memref<1x!tpu.dma_semaphore, #tpu.memory_space<semaphore_mem>>
    %99 = tpu.memref_squeeze %98 : memref<1x!tpu.dma_semaphore, #tpu.memory_space<semaphore_mem>> -> memref<!tpu.dma_semaphore, #tpu.memory_space<semaphore_mem>>
    tpu.wait_dma2 semaphore(%99 : memref<!tpu.dma_semaphore, #tpu.memory_space<semaphore_mem>>) src(%96 : memref<1x8xf32, #tpu.memory_space<any>>) dst(%97 : memref<1x8xf32, #tpu.memory_space<vmem>>)
    %c32_i32_66 = arith.constant 32 : i32
    %100 = arith.muli %9, %c32_i32_66 : i32
    %c15_i32 = arith.constant 15 : i32
    %101 = arith.addi %100, %c15_i32 : i32
    %c0_i32_67 = arith.constant 0 : i32
    %c0_i32_68 = arith.constant 0 : i32
    %102 = tpu.memref_slice %arg3[%c0_i32_67, %c0_i32_68] : memref<256x8xf32, #tpu.memory_space<any>> -> memref<1x8xf32, #tpu.memory_space<any>>
    %c0_i32_69 = arith.constant 0 : i32
    %103 = tpu.memref_slice %arg5[%101, %c0_i32_69] : memref<64x8xf32, #tpu.memory_space<vmem>> -> memref<1x8xf32, #tpu.memory_space<vmem>>
    %104 = tpu.memref_slice %arg6[%101] : memref<64x!tpu.dma_semaphore, #tpu.memory_space<semaphore_mem>> -> memref<1x!tpu.dma_semaphore, #tpu.memory_space<semaphore_mem>>
    %105 = tpu.memref_squeeze %104 : memref<1x!tpu.dma_semaphore, #tpu.memory_space<semaphore_mem>> -> memref<!tpu.dma_semaphore, #tpu.memory_space<semaphore_mem>>
    tpu.wait_dma2 semaphore(%105 : memref<!tpu.dma_semaphore, #tpu.memory_space<semaphore_mem>>) src(%102 : memref<1x8xf32, #tpu.memory_space<any>>) dst(%103 : memref<1x8xf32, #tpu.memory_space<vmem>>)
    %c32_i32_70 = arith.constant 32 : i32
    %106 = arith.muli %9, %c32_i32_70 : i32
    %c16_i32 = arith.constant 16 : i32
    %107 = arith.addi %106, %c16_i32 : i32
    %c0_i32_71 = arith.constant 0 : i32
    %c0_i32_72 = arith.constant 0 : i32
    %108 = tpu.memref_slice %arg3[%c0_i32_71, %c0_i32_72] : memref<256x8xf32, #tpu.memory_space<any>> -> memref<1x8xf32, #tpu.memory_space<any>>
    %c0_i32_73 = arith.constant 0 : i32
    %109 = tpu.memref_slice %arg5[%107, %c0_i32_73] : memref<64x8xf32, #tpu.memory_space<vmem>> -> memref<1x8xf32, #tpu.memory_space<vmem>>
    %110 = tpu.memref_slice %arg6[%107] : memref<64x!tpu.dma_semaphore, #tpu.memory_space<semaphore_mem>> -> memref<1x!tpu.dma_semaphore, #tpu.memory_space<semaphore_mem>>
    %111 = tpu.memref_squeeze %110 : memref<1x!tpu.dma_semaphore, #tpu.memory_space<semaphore_mem>> -> memref<!tpu.dma_semaphore, #tpu.memory_space<semaphore_mem>>
    tpu.wait_dma2 semaphore(%111 : memref<!tpu.dma_semaphore, #tpu.memory_space<semaphore_mem>>) src(%108 : memref<1x8xf32, #tpu.memory_space<any>>) dst(%109 : memref<1x8xf32, #tpu.memory_space<vmem>>)
    %c32_i32_74 = arith.constant 32 : i32
    %112 = arith.muli %9, %c32_i32_74 : i32
    %c17_i32 = arith.constant 17 : i32
    %113 = arith.addi %112, %c17_i32 : i32
    %c0_i32_75 = arith.constant 0 : i32
    %c0_i32_76 = arith.constant 0 : i32
    %114 = tpu.memref_slice %arg3[%c0_i32_75, %c0_i32_76] : memref<256x8xf32, #tpu.memory_space<any>> -> memref<1x8xf32, #tpu.memory_space<any>>
    %c0_i32_77 = arith.constant 0 : i32
    %115 = tpu.memref_slice %arg5[%113, %c0_i32_77] : memref<64x8xf32, #tpu.memory_space<vmem>> -> memref<1x8xf32, #tpu.memory_space<vmem>>
    %116 = tpu.memref_slice %arg6[%113] : memref<64x!tpu.dma_semaphore, #tpu.memory_space<semaphore_mem>> -> memref<1x!tpu.dma_semaphore, #tpu.memory_space<semaphore_mem>>
    %117 = tpu.memref_squeeze %116 : memref<1x!tpu.dma_semaphore, #tpu.memory_space<semaphore_mem>> -> memref<!tpu.dma_semaphore, #tpu.memory_space<semaphore_mem>>
    tpu.wait_dma2 semaphore(%117 : memref<!tpu.dma_semaphore, #tpu.memory_space<semaphore_mem>>) src(%114 : memref<1x8xf32, #tpu.memory_space<any>>) dst(%115 : memref<1x8xf32, #tpu.memory_space<vmem>>)
    %c32_i32_78 = arith.constant 32 : i32
    %118 = arith.muli %9, %c32_i32_78 : i32
    %c18_i32 = arith.constant 18 : i32
    %119 = arith.addi %118, %c18_i32 : i32
    %c0_i32_79 = arith.constant 0 : i32
    %c0_i32_80 = arith.constant 0 : i32
    %120 = tpu.memref_slice %arg3[%c0_i32_79, %c0_i32_80] : memref<256x8xf32, #tpu.memory_space<any>> -> memref<1x8xf32, #tpu.memory_space<any>>
    %c0_i32_81 = arith.constant 0 : i32
    %121 = tpu.memref_slice %arg5[%119, %c0_i32_81] : memref<64x8xf32, #tpu.memory_space<vmem>> -> memref<1x8xf32, #tpu.memory_space<vmem>>
    %122 = tpu.memref_slice %arg6[%119] : memref<64x!tpu.dma_semaphore, #tpu.memory_space<semaphore_mem>> -> memref<1x!tpu.dma_semaphore, #tpu.memory_space<semaphore_mem>>
    %123 = tpu.memref_squeeze %122 : memref<1x!tpu.dma_semaphore, #tpu.memory_space<semaphore_mem>> -> memref<!tpu.dma_semaphore, #tpu.memory_space<semaphore_mem>>
    tpu.wait_dma2 semaphore(%123 : memref<!tpu.dma_semaphore, #tpu.memory_space<semaphore_mem>>) src(%120 : memref<1x8xf32, #tpu.memory_space<any>>) dst(%121 : memref<1x8xf32, #tpu.memory_space<vmem>>)
    %c32_i32_82 = arith.constant 32 : i32
    %124 = arith.muli %9, %c32_i32_82 : i32
    %c19_i32 = arith.constant 19 : i32
    %125 = arith.addi %124, %c19_i32 : i32
    %c0_i32_83 = arith.constant 0 : i32
    %c0_i32_84 = arith.constant 0 : i32
    %126 = tpu.memref_slice %arg3[%c0_i32_83, %c0_i32_84] : memref<256x8xf32, #tpu.memory_space<any>> -> memref<1x8xf32, #tpu.memory_space<any>>
    %c0_i32_85 = arith.constant 0 : i32
    %127 = tpu.memref_slice %arg5[%125, %c0_i32_85] : memref<64x8xf32, #tpu.memory_space<vmem>> -> memref<1x8xf32, #tpu.memory_space<vmem>>
    %128 = tpu.memref_slice %arg6[%125] : memref<64x!tpu.dma_semaphore, #tpu.memory_space<semaphore_mem>> -> memref<1x!tpu.dma_semaphore, #tpu.memory_space<semaphore_mem>>
    %129 = tpu.memref_squeeze %128 : memref<1x!tpu.dma_semaphore, #tpu.memory_space<semaphore_mem>> -> memref<!tpu.dma_semaphore, #tpu.memory_space<semaphore_mem>>
    tpu.wait_dma2 semaphore(%129 : memref<!tpu.dma_semaphore, #tpu.memory_space<semaphore_mem>>) src(%126 : memref<1x8xf32, #tpu.memory_space<any>>) dst(%127 : memref<1x8xf32, #tpu.memory_space<vmem>>)
    %c32_i32_86 = arith.constant 32 : i32
    %130 = arith.muli %9, %c32_i32_86 : i32
    %c20_i32 = arith.constant 20 : i32
    %131 = arith.addi %130, %c20_i32 : i32
    %c0_i32_87 = arith.constant 0 : i32
    %c0_i32_88 = arith.constant 0 : i32
    %132 = tpu.memref_slice %arg3[%c0_i32_87, %c0_i32_88] : memref<256x8xf32, #tpu.memory_space<any>> -> memref<1x8xf32, #tpu.memory_space<any>>
    %c0_i32_89 = arith.constant 0 : i32
    %133 = tpu.memref_slice %arg5[%131, %c0_i32_89] : memref<64x8xf32, #tpu.memory_space<vmem>> -> memref<1x8xf32, #tpu.memory_space<vmem>>
    %134 = tpu.memref_slice %arg6[%131] : memref<64x!tpu.dma_semaphore, #tpu.memory_space<semaphore_mem>> -> memref<1x!tpu.dma_semaphore, #tpu.memory_space<semaphore_mem>>
    %135 = tpu.memref_squeeze %134 : memref<1x!tpu.dma_semaphore, #tpu.memory_space<semaphore_mem>> -> memref<!tpu.dma_semaphore, #tpu.memory_space<semaphore_mem>>
    tpu.wait_dma2 semaphore(%135 : memref<!tpu.dma_semaphore, #tpu.memory_space<semaphore_mem>>) src(%132 : memref<1x8xf32, #tpu.memory_space<any>>) dst(%133 : memref<1x8xf32, #tpu.memory_space<vmem>>)
    %c32_i32_90 = arith.constant 32 : i32
    %136 = arith.muli %9, %c32_i32_90 : i32
    %c21_i32 = arith.constant 21 : i32
    %137 = arith.addi %136, %c21_i32 : i32
    %c0_i32_91 = arith.constant 0 : i32
    %c0_i32_92 = arith.constant 0 : i32
    %138 = tpu.memref_slice %arg3[%c0_i32_91, %c0_i32_92] : memref<256x8xf32, #tpu.memory_space<any>> -> memref<1x8xf32, #tpu.memory_space<any>>
    %c0_i32_93 = arith.constant 0 : i32
    %139 = tpu.memref_slice %arg5[%137, %c0_i32_93] : memref<64x8xf32, #tpu.memory_space<vmem>> -> memref<1x8xf32, #tpu.memory_space<vmem>>
    %140 = tpu.memref_slice %arg6[%137] : memref<64x!tpu.dma_semaphore, #tpu.memory_space<semaphore_mem>> -> memref<1x!tpu.dma_semaphore, #tpu.memory_space<semaphore_mem>>
    %141 = tpu.memref_squeeze %140 : memref<1x!tpu.dma_semaphore, #tpu.memory_space<semaphore_mem>> -> memref<!tpu.dma_semaphore, #tpu.memory_space<semaphore_mem>>
    tpu.wait_dma2 semaphore(%141 : memref<!tpu.dma_semaphore, #tpu.memory_space<semaphore_mem>>) src(%138 : memref<1x8xf32, #tpu.memory_space<any>>) dst(%139 : memref<1x8xf32, #tpu.memory_space<vmem>>)
    %c32_i32_94 = arith.constant 32 : i32
    %142 = arith.muli %9, %c32_i32_94 : i32
    %c22_i32 = arith.constant 22 : i32
    %143 = arith.addi %142, %c22_i32 : i32
    %c0_i32_95 = arith.constant 0 : i32
    %c0_i32_96 = arith.constant 0 : i32
    %144 = tpu.memref_slice %arg3[%c0_i32_95, %c0_i32_96] : memref<256x8xf32, #tpu.memory_space<any>> -> memref<1x8xf32, #tpu.memory_space<any>>
    %c0_i32_97 = arith.constant 0 : i32
    %145 = tpu.memref_slice %arg5[%143, %c0_i32_97] : memref<64x8xf32, #tpu.memory_space<vmem>> -> memref<1x8xf32, #tpu.memory_space<vmem>>
    %146 = tpu.memref_slice %arg6[%143] : memref<64x!tpu.dma_semaphore, #tpu.memory_space<semaphore_mem>> -> memref<1x!tpu.dma_semaphore, #tpu.memory_space<semaphore_mem>>
    %147 = tpu.memref_squeeze %146 : memref<1x!tpu.dma_semaphore, #tpu.memory_space<semaphore_mem>> -> memref<!tpu.dma_semaphore, #tpu.memory_space<semaphore_mem>>
    tpu.wait_dma2 semaphore(%147 : memref<!tpu.dma_semaphore, #tpu.memory_space<semaphore_mem>>) src(%144 : memref<1x8xf32, #tpu.memory_space<any>>) dst(%145 : memref<1x8xf32, #tpu.memory_space<vmem>>)
    %c32_i32_98 = arith.constant 32 : i32
    %148 = arith.muli %9, %c32_i32_98 : i32
    %c23_i32 = arith.constant 23 : i32
    %149 = arith.addi %148, %c23_i32 : i32
    %c0_i32_99 = arith.constant 0 : i32
    %c0_i32_100 = arith.constant 0 : i32
    %150 = tpu.memref_slice %arg3[%c0_i32_99, %c0_i32_100] : memref<256x8xf32, #tpu.memory_space<any>> -> memref<1x8xf32, #tpu.memory_space<any>>
    %c0_i32_101 = arith.constant 0 : i32
    %151 = tpu.memref_slice %arg5[%149, %c0_i32_101] : memref<64x8xf32, #tpu.memory_space<vmem>> -> memref<1x8xf32, #tpu.memory_space<vmem>>
    %152 = tpu.memref_slice %arg6[%149] : memref<64x!tpu.dma_semaphore, #tpu.memory_space<semaphore_mem>> -> memref<1x!tpu.dma_semaphore, #tpu.memory_space<semaphore_mem>>
    %153 = tpu.memref_squeeze %152 : memref<1x!tpu.dma_semaphore, #tpu.memory_space<semaphore_mem>> -> memref<!tpu.dma_semaphore, #tpu.memory_space<semaphore_mem>>
    tpu.wait_dma2 semaphore(%153 : memref<!tpu.dma_semaphore, #tpu.memory_space<semaphore_mem>>) src(%150 : memref<1x8xf32, #tpu.memory_space<any>>) dst(%151 : memref<1x8xf32, #tpu.memory_space<vmem>>)
    %c32_i32_102 = arith.constant 32 : i32
    %154 = arith.muli %9, %c32_i32_102 : i32
    %c24_i32 = arith.constant 24 : i32
    %155 = arith.addi %154, %c24_i32 : i32
    %c0_i32_103 = arith.constant 0 : i32
    %c0_i32_104 = arith.constant 0 : i32
    %156 = tpu.memref_slice %arg3[%c0_i32_103, %c0_i32_104] : memref<256x8xf32, #tpu.memory_space<any>> -> memref<1x8xf32, #tpu.memory_space<any>>
    %c0_i32_105 = arith.constant 0 : i32
    %157 = tpu.memref_slice %arg5[%155, %c0_i32_105] : memref<64x8xf32, #tpu.memory_space<vmem>> -> memref<1x8xf32, #tpu.memory_space<vmem>>
    %158 = tpu.memref_slice %arg6[%155] : memref<64x!tpu.dma_semaphore, #tpu.memory_space<semaphore_mem>> -> memref<1x!tpu.dma_semaphore, #tpu.memory_space<semaphore_mem>>
    %159 = tpu.memref_squeeze %158 : memref<1x!tpu.dma_semaphore, #tpu.memory_space<semaphore_mem>> -> memref<!tpu.dma_semaphore, #tpu.memory_space<semaphore_mem>>
    tpu.wait_dma2 semaphore(%159 : memref<!tpu.dma_semaphore, #tpu.memory_space<semaphore_mem>>) src(%156 : memref<1x8xf32, #tpu.memory_space<any>>) dst(%157 : memref<1x8xf32, #tpu.memory_space<vmem>>)
    %c32_i32_106 = arith.constant 32 : i32
    %160 = arith.muli %9, %c32_i32_106 : i32
    %c25_i32 = arith.constant 25 : i32
    %161 = arith.addi %160, %c25_i32 : i32
    %c0_i32_107 = arith.constant 0 : i32
    %c0_i32_108 = arith.constant 0 : i32
    %162 = tpu.memref_slice %arg3[%c0_i32_107, %c0_i32_108] : memref<256x8xf32, #tpu.memory_space<any>> -> memref<1x8xf32, #tpu.memory_space<any>>
    %c0_i32_109 = arith.constant 0 : i32
    %163 = tpu.memref_slice %arg5[%161, %c0_i32_109] : memref<64x8xf32, #tpu.memory_space<vmem>> -> memref<1x8xf32, #tpu.memory_space<vmem>>
    %164 = tpu.memref_slice %arg6[%161] : memref<64x!tpu.dma_semaphore, #tpu.memory_space<semaphore_mem>> -> memref<1x!tpu.dma_semaphore, #tpu.memory_space<semaphore_mem>>
    %165 = tpu.memref_squeeze %164 : memref<1x!tpu.dma_semaphore, #tpu.memory_space<semaphore_mem>> -> memref<!tpu.dma_semaphore, #tpu.memory_space<semaphore_mem>>
    tpu.wait_dma2 semaphore(%165 : memref<!tpu.dma_semaphore, #tpu.memory_space<semaphore_mem>>) src(%162 : memref<1x8xf32, #tpu.memory_space<any>>) dst(%163 : memref<1x8xf32, #tpu.memory_space<vmem>>)
    %c32_i32_110 = arith.constant 32 : i32
    %166 = arith.muli %9, %c32_i32_110 : i32
    %c26_i32 = arith.constant 26 : i32
    %167 = arith.addi %166, %c26_i32 : i32
    %c0_i32_111 = arith.constant 0 : i32
    %c0_i32_112 = arith.constant 0 : i32
    %168 = tpu.memref_slice %arg3[%c0_i32_111, %c0_i32_112] : memref<256x8xf32, #tpu.memory_space<any>> -> memref<1x8xf32, #tpu.memory_space<any>>
    %c0_i32_113 = arith.constant 0 : i32
    %169 = tpu.memref_slice %arg5[%167, %c0_i32_113] : memref<64x8xf32, #tpu.memory_space<vmem>> -> memref<1x8xf32, #tpu.memory_space<vmem>>
    %170 = tpu.memref_slice %arg6[%167] : memref<64x!tpu.dma_semaphore, #tpu.memory_space<semaphore_mem>> -> memref<1x!tpu.dma_semaphore, #tpu.memory_space<semaphore_mem>>
    %171 = tpu.memref_squeeze %170 : memref<1x!tpu.dma_semaphore, #tpu.memory_space<semaphore_mem>> -> memref<!tpu.dma_semaphore, #tpu.memory_space<semaphore_mem>>
    tpu.wait_dma2 semaphore(%171 : memref<!tpu.dma_semaphore, #tpu.memory_space<semaphore_mem>>) src(%168 : memref<1x8xf32, #tpu.memory_space<any>>) dst(%169 : memref<1x8xf32, #tpu.memory_space<vmem>>)
    %c32_i32_114 = arith.constant 32 : i32
    %172 = arith.muli %9, %c32_i32_114 : i32
    %c27_i32 = arith.constant 27 : i32
    %173 = arith.addi %172, %c27_i32 : i32
    %c0_i32_115 = arith.constant 0 : i32
    %c0_i32_116 = arith.constant 0 : i32
    %174 = tpu.memref_slice %arg3[%c0_i32_115, %c0_i32_116] : memref<256x8xf32, #tpu.memory_space<any>> -> memref<1x8xf32, #tpu.memory_space<any>>
    %c0_i32_117 = arith.constant 0 : i32
    %175 = tpu.memref_slice %arg5[%173, %c0_i32_117] : memref<64x8xf32, #tpu.memory_space<vmem>> -> memref<1x8xf32, #tpu.memory_space<vmem>>
    %176 = tpu.memref_slice %arg6[%173] : memref<64x!tpu.dma_semaphore, #tpu.memory_space<semaphore_mem>> -> memref<1x!tpu.dma_semaphore, #tpu.memory_space<semaphore_mem>>
    %177 = tpu.memref_squeeze %176 : memref<1x!tpu.dma_semaphore, #tpu.memory_space<semaphore_mem>> -> memref<!tpu.dma_semaphore, #tpu.memory_space<semaphore_mem>>
    tpu.wait_dma2 semaphore(%177 : memref<!tpu.dma_semaphore, #tpu.memory_space<semaphore_mem>>) src(%174 : memref<1x8xf32, #tpu.memory_space<any>>) dst(%175 : memref<1x8xf32, #tpu.memory_space<vmem>>)
    %c32_i32_118 = arith.constant 32 : i32
    %178 = arith.muli %9, %c32_i32_118 : i32
    %c28_i32 = arith.constant 28 : i32
    %179 = arith.addi %178, %c28_i32 : i32
    %c0_i32_119 = arith.constant 0 : i32
    %c0_i32_120 = arith.constant 0 : i32
    %180 = tpu.memref_slice %arg3[%c0_i32_119, %c0_i32_120] : memref<256x8xf32, #tpu.memory_space<any>> -> memref<1x8xf32, #tpu.memory_space<any>>
    %c0_i32_121 = arith.constant 0 : i32
    %181 = tpu.memref_slice %arg5[%179, %c0_i32_121] : memref<64x8xf32, #tpu.memory_space<vmem>> -> memref<1x8xf32, #tpu.memory_space<vmem>>
    %182 = tpu.memref_slice %arg6[%179] : memref<64x!tpu.dma_semaphore, #tpu.memory_space<semaphore_mem>> -> memref<1x!tpu.dma_semaphore, #tpu.memory_space<semaphore_mem>>
    %183 = tpu.memref_squeeze %182 : memref<1x!tpu.dma_semaphore, #tpu.memory_space<semaphore_mem>> -> memref<!tpu.dma_semaphore, #tpu.memory_space<semaphore_mem>>
    tpu.wait_dma2 semaphore(%183 : memref<!tpu.dma_semaphore, #tpu.memory_space<semaphore_mem>>) src(%180 : memref<1x8xf32, #tpu.memory_space<any>>) dst(%181 : memref<1x8xf32, #tpu.memory_space<vmem>>)
    %c32_i32_122 = arith.constant 32 : i32
    %184 = arith.muli %9, %c32_i32_122 : i32
    %c29_i32 = arith.constant 29 : i32
    %185 = arith.addi %184, %c29_i32 : i32
    %c0_i32_123 = arith.constant 0 : i32
    %c0_i32_124 = arith.constant 0 : i32
    %186 = tpu.memref_slice %arg3[%c0_i32_123, %c0_i32_124] : memref<256x8xf32, #tpu.memory_space<any>> -> memref<1x8xf32, #tpu.memory_space<any>>
    %c0_i32_125 = arith.constant 0 : i32
    %187 = tpu.memref_slice %arg5[%185, %c0_i32_125] : memref<64x8xf32, #tpu.memory_space<vmem>> -> memref<1x8xf32, #tpu.memory_space<vmem>>
    %188 = tpu.memref_slice %arg6[%185] : memref<64x!tpu.dma_semaphore, #tpu.memory_space<semaphore_mem>> -> memref<1x!tpu.dma_semaphore, #tpu.memory_space<semaphore_mem>>
    %189 = tpu.memref_squeeze %188 : memref<1x!tpu.dma_semaphore, #tpu.memory_space<semaphore_mem>> -> memref<!tpu.dma_semaphore, #tpu.memory_space<semaphore_mem>>
    tpu.wait_dma2 semaphore(%189 : memref<!tpu.dma_semaphore, #tpu.memory_space<semaphore_mem>>) src(%186 : memref<1x8xf32, #tpu.memory_space<any>>) dst(%187 : memref<1x8xf32, #tpu.memory_space<vmem>>)
    %c32_i32_126 = arith.constant 32 : i32
    %190 = arith.muli %9, %c32_i32_126 : i32
    %c30_i32 = arith.constant 30 : i32
    %191 = arith.addi %190, %c30_i32 : i32
    %c0_i32_127 = arith.constant 0 : i32
    %c0_i32_128 = arith.constant 0 : i32
    %192 = tpu.memref_slice %arg3[%c0_i32_127, %c0_i32_128] : memref<256x8xf32, #tpu.memory_space<any>> -> memref<1x8xf32, #tpu.memory_space<any>>
    %c0_i32_129 = arith.constant 0 : i32
    %193 = tpu.memref_slice %arg5[%191, %c0_i32_129] : memref<64x8xf32, #tpu.memory_space<vmem>> -> memref<1x8xf32, #tpu.memory_space<vmem>>
    %194 = tpu.memref_slice %arg6[%191] : memref<64x!tpu.dma_semaphore, #tpu.memory_space<semaphore_mem>> -> memref<1x!tpu.dma_semaphore, #tpu.memory_space<semaphore_mem>>
    %195 = tpu.memref_squeeze %194 : memref<1x!tpu.dma_semaphore, #tpu.memory_space<semaphore_mem>> -> memref<!tpu.dma_semaphore, #tpu.memory_space<semaphore_mem>>
    tpu.wait_dma2 semaphore(%195 : memref<!tpu.dma_semaphore, #tpu.memory_space<semaphore_mem>>) src(%192 : memref<1x8xf32, #tpu.memory_space<any>>) dst(%193 : memref<1x8xf32, #tpu.memory_space<vmem>>)
    %c32_i32_130 = arith.constant 32 : i32
    %196 = arith.muli %9, %c32_i32_130 : i32
    %c31_i32 = arith.constant 31 : i32
    %197 = arith.addi %196, %c31_i32 : i32
    %c0_i32_131 = arith.constant 0 : i32
    %c0_i32_132 = arith.constant 0 : i32
    %198 = tpu.memref_slice %arg3[%c0_i32_131, %c0_i32_132] : memref<256x8xf32, #tpu.memory_space<any>> -> memref<1x8xf32, #tpu.memory_space<any>>
    %c0_i32_133 = arith.constant 0 : i32
    %199 = tpu.memref_slice %arg5[%197, %c0_i32_133] : memref<64x8xf32, #tpu.memory_space<vmem>> -> memref<1x8xf32, #tpu.memory_space<vmem>>
    %200 = tpu.memref_slice %arg6[%197] : memref<64x!tpu.dma_semaphore, #tpu.memory_space<semaphore_mem>> -> memref<1x!tpu.dma_semaphore, #tpu.memory_space<semaphore_mem>>
    %201 = tpu.memref_squeeze %200 : memref<1x!tpu.dma_semaphore, #tpu.memory_space<semaphore_mem>> -> memref<!tpu.dma_semaphore, #tpu.memory_space<semaphore_mem>>
    tpu.wait_dma2 semaphore(%201 : memref<!tpu.dma_semaphore, #tpu.memory_space<semaphore_mem>>) src(%198 : memref<1x8xf32, #tpu.memory_space<any>>) dst(%199 : memref<1x8xf32, #tpu.memory_space<vmem>>)
    %c32_i32_134 = arith.constant 32 : i32
    %202 = arith.muli %9, %c32_i32_134 : i32
    %203 = tpu.assume_multiple %202, 8 : i32
    %204 = arith.index_cast %203 : i32 to index
    %c0 = arith.constant 0 : index
    %205 = vector.load %arg5[%204, %c0] : memref<64x8xf32, #tpu.memory_space<vmem>>, vector<32x8xf32>
    %c0_135 = arith.constant 0 : index
    %c0_136 = arith.constant 0 : index
    %206 = vector.load %arg4[%c0_135, %c0_136] : memref<32x8xf32, #tpu.memory_space<vmem>>, vector<32x8xf32>
    tpu.vector_store %arg4[%c0_135, %c0_136], %205 {strides = array<i32>} : memref<32x8xf32, #tpu.memory_space<vmem>>, vector<32x8xf32>,
    return
  }
  func.func @transform_1(%arg0: i32, %arg1: i32, %arg2: memref<256xi32, #tpu.memory_space<smem>>) -> (i32, i32) {
    %c4_i32 = arith.constant 4 : i32
    %0 = arith.muli %arg0, %c4_i32 : i32
    %1 = arith.addi %0, %arg1 : i32
    %c0_i32 = arith.constant 0 : i32
    %c0_i32_0 = arith.constant 0 : i32
    return %1, %c0_i32 : i32, i32
  }
}

</mosaic_0001>

<llo_original>
// kernel: _clop_apply.1
$region0: #{_clop_apply.1}
  #allocation0 [shape = 'u32[]', space=smem, size = 0x4, offset = 0x4, fixed_abs, tag = 'smem constant byte address 0x4 - core index']
  #allocation1 [shape = 'u32[144,128]{1,0:T(1,128)}', space=vmem, size = 0x12000, scoped, tag = 'internal scratch']
  #allocation2 [shape = 'f32[64,8]{1,0:T(8,128)}', space=vmem, size = 0x8000, scoped, tag = 'scratch operand']
  #allocation3 [shape = 's32[64]{0}', space=sflag, size = 0x100, scoped, tag = 'scratch operand']
  #allocation4 [shape = 's32[1]{0}', space=sflag, size = 0x4, scoped, tag = 'scoped memory for _clop_apply.1']
  #allocation5 [shape = 'u8[1024]{0}', space=smem, size = 0x400, scoped, tag = 'prefetched SMEM operand 0']
  #allocation6 [shape = 's32[]', space=sflag, size = 0x4, offset = 0, fixed_abs, tag = 'sflag constant byte address 0x0 - dummy sync flag']
  #allocation7 [shape = 's32[]', space=sflag, size = 0x4, offset = 0, fixed_abs, tag = 'sflag constant byte address 0x0 - dummy sync flag']
  #allocation8 [shape = 's32[]', space=sflag, size = 0x4, offset = 0, fixed_abs, tag = 'sflag constant byte address 0x0 - dummy sync flag']
  #allocation9 [shape = 's32[]', space=sflag, size = 0x4, offset = 0, fixed_abs, tag = 'sflag constant byte address 0x0 - dummy sync flag']
  #allocation10 [shape = 's32[]', space=sflag, size = 0x4, offset = 0, fixed_abs, tag = 'sflag constant byte address 0x0 - dummy sync flag']
  #allocation11 [shape = 's32[]', space=sflag, size = 0x4, offset = 0, fixed_abs, tag = 'sflag constant byte address 0x0 - dummy sync flag']
  #allocation12 [shape = 's32[]', space=sflag, size = 0x4, offset = 0, fixed_abs, tag = 'sflag constant byte address 0x0 - dummy sync flag']
  #allocation13 [shape = 's32[]', space=sflag, size = 0x4, offset = 0, fixed_abs, tag = 'sflag constant byte address 0x0 - dummy sync flag']
  #allocation14 [shape = 's32[]', space=sflag, size = 0x4, offset = 0, fixed_abs, tag = 'sflag constant byte address 0x0 - dummy sync flag']
  #allocation15 [shape = 's32[]', space=sflag, size = 0x4, offset = 0, fixed_abs, tag = 'sflag constant byte address 0x0 - dummy sync flag']
  #allocation16 [shape = 's32[]', space=sflag, size = 0x4, offset = 0, fixed_abs, tag = 'sflag constant byte address 0x0 - dummy sync flag']
  #allocation17 [shape = 's32[]', space=sflag, size = 0x4, offset = 0, fixed_abs, tag = 'sflag constant byte address 0x0 - dummy sync flag']
  #allocation18 [shape = 's32[]', space=sflag, size = 0x4, offset = 0, fixed_abs, tag = 'sflag constant byte address 0x0 - dummy sync flag']
  #allocation19 [shape = 's32[]', space=sflag, size = 0x4, offset = 0, fixed_abs, tag = 'sflag constant byte address 0x0 - dummy sync flag']
  #allocation20 [shape = 's32[]', space=sflag, size = 0x4, offset = 0, fixed_abs, tag = 'sflag constant byte address 0x0 - dummy sync flag']
  #allocation21 [shape = 's32[]', space=sflag, size = 0x4, offset = 0, fixed_abs, tag = 'sflag constant byte address 0x0 - dummy sync flag']
  #allocation22 [shape = 's32[]', space=sflag, size = 0x4, offset = 0, fixed_abs, tag = 'sflag constant byte address 0x0 - dummy sync flag']
  #allocation23 [shape = 's32[]', space=sflag, size = 0x4, offset = 0, fixed_abs, tag = 'sflag constant byte address 0x0 - dummy sync flag']
  #allocation24 [shape = 's32[]', space=sflag, size = 0x4, offset = 0, fixed_abs, tag = 'sflag constant byte address 0x0 - dummy sync flag']
  #allocation25 [shape = 's32[]', space=sflag, size = 0x4, offset = 0, fixed_abs, tag = 'sflag constant byte address 0x0 - dummy sync flag']
  #allocation26 [shape = 's32[]', space=sflag, size = 0x4, offset = 0, fixed_abs, tag = 'sflag constant byte address 0x0 - dummy sync flag']
  #allocation27 [shape = 's32[]', space=sflag, size = 0x4, offset = 0, fixed_abs, tag = 'sflag constant byte address 0x0 - dummy sync flag']
  #allocation28 [shape = 's32[]', space=sflag, size = 0x4, offset = 0, fixed_abs, tag = 'sflag constant byte address 0x0 - dummy sync flag']
  #allocation29 [shape = 's32[]', space=sflag, size = 0x4, offset = 0, fixed_abs, tag = 'sflag constant byte address 0x0 - dummy sync flag']
  #allocation30 [shape = 's32[]', space=sflag, size = 0x4, offset = 0, fixed_abs, tag = 'sflag constant byte address 0x0 - dummy sync flag']
  #allocation31 [shape = 's32[]', space=sflag, size = 0x4, offset = 0, fixed_abs, tag = 'sflag constant byte address 0x0 - dummy sync flag']
  #allocation32 [shape = 's32[]', space=sflag, size = 0x4, offset = 0, fixed_abs, tag = 'sflag constant byte address 0x0 - dummy sync flag']
  #allocation33 [shape = 's32[]', space=sflag, size = 0x4, offset = 0, fixed_abs, tag = 'sflag constant byte address 0x0 - dummy sync flag']
  #allocation34 [shape = 's32[]', space=sflag, size = 0x4, offset = 0, fixed_abs, tag = 'sflag constant byte address 0x0 - dummy sync flag']
  #allocation35 [shape = 's32[]', space=sflag, size = 0x4, offset = 0, fixed_abs, tag = 'sflag constant byte address 0x0 - dummy sync flag']
  #allocation36 [shape = 's32[]', space=sflag, size = 0x4, offset = 0, fixed_abs, tag = 'sflag constant byte address 0x0 - dummy sync flag']
  #allocation37 [shape = 's32[]', space=sflag, size = 0x4, offset = 0, fixed_abs, tag = 'sflag constant byte address 0x0 - dummy sync flag']
  #allocation38 [shape = 's32[]', space=sflag, size = 0x4, offset = 0, fixed_abs, tag = 'sflag constant byte address 0x0 - dummy sync flag']
  #allocation39 [shape = 's32[]', space=sflag, size = 0x4, offset = 0, fixed_abs, tag = 'sflag constant byte address 0x0 - dummy sync flag']
  #allocation40 [shape = 's32[]', space=sflag, size = 0x4, offset = 0, fixed_abs, tag = 'sflag constant byte address 0x0 - dummy sync flag']
  #allocation41 [shape = 's32[]', space=sflag, size = 0x4, offset = 0, fixed_abs, tag = 'sflag constant byte address 0x0 - dummy sync flag']
  #allocation42 [shape = 's32[]', space=sflag, size = 0x4, offset = 0, fixed_abs, tag = 'sflag constant byte address 0x0 - dummy sync flag']
  #allocation43 [shape = 's32[]', space=sflag, size = 0x4, offset = 0, fixed_abs, tag = 'sflag constant byte address 0x0 - dummy sync flag']
  #allocation44 [shape = 's32[]', space=sflag, size = 0x4, offset = 0, fixed_abs, tag = 'sflag constant byte address 0x0 - dummy sync flag']
  #allocation45 [shape = 's32[]', space=sflag, size = 0x4, offset = 0, fixed_abs, tag = 'sflag constant byte address 0x0 - dummy sync flag']
  #allocation46 [shape = 's32[]', space=sflag, size = 0x4, offset = 0, fixed_abs, tag = 'sflag constant byte address 0x0 - dummy sync flag']
  #allocation47 [shape = 's32[]', space=sflag, size = 0x4, offset = 0, fixed_abs, tag = 'sflag constant byte address 0x0 - dummy sync flag']
  #allocation48 [shape = 's32[]', space=sflag, size = 0x4, offset = 0, fixed_abs, tag = 'sflag constant byte address 0x0 - dummy sync flag']
  #allocation49 [shape = 's32[]', space=sflag, size = 0x4, offset = 0, fixed_abs, tag = 'sflag constant byte address 0x0 - dummy sync flag']
  #allocation50 [shape = 's32[]', space=sflag, size = 0x4, offset = 0, fixed_abs, tag = 'sflag constant byte address 0x0 - dummy sync flag']
  #allocation51 [shape = 's32[]', space=sflag, size = 0x4, offset = 0, fixed_abs, tag = 'sflag constant byte address 0x0 - dummy sync flag']
  #allocation52 [shape = 's32[]', space=sflag, size = 0x4, offset = 0, fixed_abs, tag = 'sflag constant byte address 0x0 - dummy sync flag']
  #allocation53 [shape = 's32[]', space=sflag, size = 0x4, offset = 0, fixed_abs, tag = 'sflag constant byte address 0x0 - dummy sync flag']
  #allocation54 [shape = 's32[]', space=sflag, size = 0x4, offset = 0, fixed_abs, tag = 'sflag constant byte address 0x0 - dummy sync flag']
  #allocation55 [shape = 's32[]', space=sflag, size = 0x4, offset = 0, fixed_abs, tag = 'sflag constant byte address 0x0 - dummy sync flag']
  #allocation56 [shape = 's32[]', space=sflag, size = 0x4, offset = 0, fixed_abs, tag = 'sflag constant byte address 0x0 - dummy sync flag']
  #allocation57 [shape = 's32[]', space=sflag, size = 0x4, offset = 0, fixed_abs, tag = 'sflag constant byte address 0x0 - dummy sync flag']
  #allocation58 [shape = 's32[]', space=sflag, size = 0x4, offset = 0, fixed_abs, tag = 'sflag constant byte address 0x0 - dummy sync flag']
  #allocation59 [shape = 's32[]', space=sflag, size = 0x4, offset = 0, fixed_abs, tag = 'sflag constant byte address 0x0 - dummy sync flag']
  #allocation60 [shape = 's32[]', space=sflag, size = 0x4, offset = 0, fixed_abs, tag = 'sflag constant byte address 0x0 - dummy sync flag']
  #allocation61 [shape = 's32[]', space=sflag, size = 0x4, offset = 0, fixed_abs, tag = 'sflag constant byte address 0x0 - dummy sync flag']
  #allocation62 [shape = 's32[]', space=sflag, size = 0x4, offset = 0, fixed_abs, tag = 'sflag constant byte address 0x0 - dummy sync flag']
  #allocation63 [shape = 's32[]', space=sflag, size = 0x4, offset = 0, fixed_abs, tag = 'sflag constant byte address 0x0 - dummy sync flag']
  #allocation64 [shape = 's32[]', space=sflag, size = 0x4, offset = 0, fixed_abs, tag = 'sflag constant byte address 0x0 - dummy sync flag']
  #allocation65 [shape = 's32[]', space=sflag, size = 0x4, offset = 0, fixed_abs, tag = 'sflag constant byte address 0x0 - dummy sync flag']
  #allocation66 [shape = 's32[]', space=sflag, size = 0x4, offset = 0, fixed_abs, tag = 'sflag constant byte address 0x0 - dummy sync flag']
  #allocation67 [shape = 's32[]', space=sflag, size = 0x4, offset = 0, fixed_abs, tag = 'sflag constant byte address 0x0 - dummy sync flag']
  #allocation68 [shape = 's32[]', space=sflag, size = 0x4, offset = 0, fixed_abs, tag = 'sflag constant byte address 0x0 - dummy sync flag']
  #allocation69 [shape = 's32[]', space=sflag, size = 0x4, offset = 0, fixed_abs, tag = 'sflag constant byte address 0x0 - dummy sync flag']
  %s0 = inlined_call_operand.vmem [shape: s32[256], index: 0, kind: input, shape index: {}]
  %s1 = inlined_call_operand.vmem [shape: f32[256,8], index: 1, kind: input, shape index: {}]
  %s2 = inlined_call_operand.vmem [shape: f32[256,8], index: 2, kind: output, shape index: {}]
  %s3 = sld [smem:[#allocation0]]
  $region1953: #{_clop_apply.1} parent=0
    _
  %s5 = ssub.s32 1, %s3
  %s6 = scalar_select 0, %s5, %s3
  %s7 = sshll.u32 %s0, 4
  %s8 = int_to_ptr.vmem [resolvable:$true] %s7
  %10 = dma.vmem_to_smem %s8, 32, [#allocation5], [#allocation4]
  %11 = dma.done [#allocation4], 32
  %12 = sfence
  loop: start=0, step=1, limit=9
  $region2: #{_clop_apply.1} parent=0 // loop_pre_header
    _
  $region3: #{_clop_apply.1} parent=0 // loop_header
    %s14 = sphi 0, %s18
    %p15 = scmp.ge.s32.totalorder %s14, 9
    %s20 = sphi 0, %s30
    %s21 = sphi 0, %s26
    %s22 = sphi 0, %s20
    %s23 = sphi 0, %s21
    %s37 = sphi 0, %s39
    %s40 = sphi 0, %s37
    %s50 = sphi 0, %s40
  $region4: #{_clop_apply.1} parent=0 // loop_header_branch
    %17 = sbr.rel (%p15) target = $region8
  $region5: #{_clop_apply.1} parent=0 // loop_body
    %s19 = ssub.s32 %s14, 1
    %s24 = sadd.s32 1, %s21
    %p25 = scmp.ge.s32.totalorder %s24, 4
    %s26 = scalar_select %p25, 0, %s24
    %s27 = sadd.s32 1, %s20
    %s28 = scalar_select %p25, %s27, %s20
    %p29 = scmp.ge.s32.totalorder %s28, 2
    %s30 = scalar_select %p29, 0, %s28
    %s31 = smul.u32 %s20, 4
    %s32 = sadd.s32 %s31, %s21
    %s33 = smul.u32 %s30, 4
    %s34 = sadd.s32 %s33, %s26
    %s35 = ssub.s32 %s32, %s34
    %p36 = scmp.eq.s32.totalorder %s35, 0
    %s38 = sadd.s32 %s37, 1
    %s39 = scalar_select %p36, %s37, %s38
    %p41 = pneg %p36
    %p42 = scmp.eq.s32.totalorder %s14, 7
    %p43 = por %p41, %p42
    %p44 = scmp.ne.s32.totalorder %s37, %s40
    %p45 = scmp.eq.s32.totalorder %s14, 0
    %p46 = por %p44, %p45
    %p47 = scmp.ne.s32.totalorder %s37, %s40
    %p48 = scmp.eq.s32.totalorder %s19, 7
    %p49 = por %p47, %p48
    %p51 = scmp.ne.s32.totalorder %s40, %s50
    %p52 = scmp.eq.s32.totalorder %s19, 0
    %p53 = por %p51, %p52
    %p54 = scmp.lt.s32.totalorder %s14, 8
    // Predicated region
    $region9: #{_clop_apply.1} parent=5 // pred_check
      %p55 = pneg %p54
    $region10: #{_clop_apply.1} parent=5 // pred_check_branch
      %57 = sbr.rel (%p55) target = $region12
    $region11: #{_clop_apply.1} parent=5 // pred_region
      %p58 = pneg %p46
      %p59 = pneg %p43
      %s60 = smul.u32 %s20, 4
      %s61 = sadd.s32 %s60, %s21
      %s62 = smul.u32 4, %s61
      %p63 = scmp.lt.s32.totalorder %s62, 31
      %s64 = scalar_select %p63, %s62, 31
      %s65 = smul.addr %s64, 8
      %s66 = scalar_lea.vmem %s2, %s65
      %s67 = smul.u32 %s20, 4
      %s68 = sadd.s32 %s67, %s21
      %s69 = smul.u32 4, %s68
      %p70 = scmp.lt.s32.totalorder %s69, 31
      %s71 = scalar_select %p70, %s69, 31
      %s72 = smul.addr %s71, 8
      %s73 = scalar_lea.vmem %s2, %s72
      %s74 = smul.u32 %s20, 4
      %s75 = sadd.s32 %s74, %s21
      %s76 = smul.u32 4, %s75
      %s77 = smul.u32 %s20, 4
      %s78 = sadd.s32 %s77, %s21
      %p79 = scmp.eq.s32.totalorder %s21, 0
      // Predicated region
      $region13: #{_clop_apply.1} parent=11 // pred_check
        %p80 = pneg %p79
      $region14: #{_clop_apply.1} parent=11 // pred_check_branch
        %82 = sbr.rel (%p80) target = $region16
      $region15: #{_clop_apply.1} parent=11 // pred_region
        %s83 = smul.u32 %s78, 32
        %s84 = sld [smem:[#allocation5 + %s83]]
        %s85 = scalar_lea.vmem %s1, %s84
        %p87 = scmp.lt.u32.totalorder 1, 8
        %p88 = pneg %p87
        // Predicated region
        $region17: #{_clop_apply.1} parent=15 // pred_check
          _
        $region18: #{_clop_apply.1} parent=15 // pred_check_branch
          %90 = sbr.rel (%p87) target = $region20
        $region19: #{_clop_apply.1} parent=15 // pred_region
          %s105 = sand.u32 1, 7
          %p106 = scmp.eq.s32.totalorder %s105, 0
          %p107 = pneg %p106
          // Predicated region
          $region32: #{_clop_apply.1} parent=19 // pred_check
            _
          $region33: #{_clop_apply.1} parent=19 // pred_check_branch
            %109 = sbr.rel (%p106) target = $region35
          $region34: #{_clop_apply.1} parent=19 // pred_region
            %s110 = sand.u32 1, 7
            %s111 = ssub.s32 1, %s110
            %s112 = scalar_lea.vmem %s85, %s111
            %s113 = ssub.s32 1, %s110
            %s114 = scalar_lea.vmem [#allocation2], %s113
            %s115 = sshllo.u32 0, %s110
            loop: start=0, step=1, limit=1
            $region36: #{_clop_apply.1} parent=34 // loop_pre_header
              _
            $region37: #{_clop_apply.1} parent=34 // loop_header
              %s117 = sphi 0, %s121
              %p118 = scmp.ge.s32.totalorder %s117, 1
              %s122 = sphi %s112, %s112
              %s123 = sphi %s114, %s114
            $region38: #{_clop_apply.1} parent=34 // loop_header_branch
              %120 = sbr.rel (%p118) target = $region42
            $region39: #{_clop_apply.1} parent=34 // loop_body
              %v124 = vld [vmem:[%s122] sm:%s115]
              %125 = vst [vmem:[%s123] sm:%s115] %v124
            $region40: #{_clop_apply.1} parent=34 // loop_footer
              %s121 = sadd.s32 1, %s117
            $region41: #{_clop_apply.1} parent=34 // loop_footer_branch
              %116 = sbr.rel target = $region37
            $region42: #{_clop_apply.1} parent=34 // loop_exit
              _
          $region35: #{_clop_apply.1} parent=19 // pred_fallthru
            _
        $region20: #{_clop_apply.1} parent=15 // pred_fallthru
          _
        // Predicated region
        $region21: #{_clop_apply.1} parent=15 // pred_check
          %p91 = pneg %p87
        $region22: #{_clop_apply.1} parent=15 // pred_check_branch
          %93 = sbr.rel (%p91) target = $region24
        $region23: #{_clop_apply.1} parent=15 // pred_region
          %s94 = sshllo.u32 0, 1
          loop: start=0, step=1, limit=1
          $region25: #{_clop_apply.1} parent=23 // loop_pre_header
            _
          $region26: #{_clop_apply.1} parent=23 // loop_header
            %s96 = sphi 0, %s100
            %p97 = scmp.ge.s32.totalorder %s96, 1
            %s101 = sphi %s85, %s85
            %s102 = sphi [#allocation2], [#allocation2]
          $region27: #{_clop_apply.1} parent=23 // loop_header_branch
            %99 = sbr.rel (%p97) target = $region31
          $region28: #{_clop_apply.1} parent=23 // loop_body
            %v103 = vld [vmem:[%s101] sm:%s94]
            %104 = vst [vmem:[%s102] sm:%s94] %v103
          $region29: #{_clop_apply.1} parent=23 // loop_footer
            %s100 = sadd.s32 1, %s96
          $region30: #{_clop_apply.1} parent=23 // loop_footer_branch
            %95 = sbr.rel target = $region26
          $region31: #{_clop_apply.1} parent=23 // loop_exit
            _
        $region24: #{_clop_apply.1} parent=15 // pred_fallthru
          _
        // Predicated region
        $region43: #{_clop_apply.1} parent=15 // pred_check
          _
        $region44: #{_clop_apply.1} parent=15 // pred_check_branch
          %128 = sbr.rel (0) target = $region46
        $region45: #{_clop_apply.1} parent=15 // pred_region
          %129 = vsyncadd [#allocation3], 16
        $region46: #{_clop_apply.1} parent=15 // pred_fallthru
          _
        %s130 = sadd.s32 %s83, 1
        %s131 = sld [smem:[#allocation5 + %s130]]
        %s132 = scalar_lea.vmem %s1, %s131
        %s133 = scalar_lea.vmem [#allocation2], 1
        %s134 = scalar_lea.sflag [#allocation3], 1
        %p136 = scmp.lt.u32.totalorder 1, 8
        %p137 = pneg %p136
        // Predicated region
        $region47: #{_clop_apply.1} parent=15 // pred_check
          _
        $region48: #{_clop_apply.1} parent=15 // pred_check_branch
          %139 = sbr.rel (%p136) target = $region50
        $region49: #{_clop_apply.1} parent=15 // pred_region
          %s154 = sand.u32 1, 7
          %p155 = scmp.eq.s32.totalorder %s154, 0
          %p156 = pneg %p155
          // Predicated region
          $region62: #{_clop_apply.1} parent=49 // pred_check
            _
          $region63: #{_clop_apply.1} parent=49 // pred_check_branch
            %158 = sbr.rel (%p155) target = $region65
          $region64: #{_clop_apply.1} parent=49 // pred_region
            %s159 = sand.u32 1, 7
            %s160 = ssub.s32 1, %s159
            %s161 = scalar_lea.vmem %s132, %s160
            %s162 = ssub.s32 1, %s159
            %s163 = scalar_lea.vmem %s133, %s162 [#allocation2]
            %s164 = sshllo.u32 0, %s159
            loop: start=0, step=1, limit=1
            $region66: #{_clop_apply.1} parent=64 // loop_pre_header
              _
            $region67: #{_clop_apply.1} parent=64 // loop_header
              %s166 = sphi 0, %s170
              %p167 = scmp.ge.s32.totalorder %s166, 1
              %s171 = sphi %s161, %s161
              %s172 = sphi %s163, %s163
            $region68: #{_clop_apply.1} parent=64 // loop_header_branch
              %169 = sbr.rel (%p167) target = $region72
            $region69: #{_clop_apply.1} parent=64 // loop_body
              %v173 = vld [vmem:[%s171] sm:%s164]
              %174 = vst [vmem:[%s172] sm:%s164] %v173
            $region70: #{_clop_apply.1} parent=64 // loop_footer
              %s170 = sadd.s32 1, %s166
            $region71: #{_clop_apply.1} parent=64 // loop_footer_branch
              %165 = sbr.rel target = $region67
            $region72: #{_clop_apply.1} parent=64 // loop_exit
              _
          $region65: #{_clop_apply.1} parent=49 // pred_fallthru
            _
        $region50: #{_clop_apply.1} parent=15 // pred_fallthru
          _
        // Predicated region
        $region51: #{_clop_apply.1} parent=15 // pred_check
          %p140 = pneg %p136
        $region52: #{_clop_apply.1} parent=15 // pred_check_branch
          %142 = sbr.rel (%p140) target = $region54
        $region53: #{_clop_apply.1} parent=15 // pred_region
          %s143 = sshllo.u32 0, 1
          loop: start=0, step=1, limit=1
          $region55: #{_clop_apply.1} parent=53 // loop_pre_header
            _
          $region56: #{_clop_apply.1} parent=53 // loop_header
            %s145 = sphi 0, %s149
            %p146 = scmp.ge.s32.totalorder %s145, 1
            %s150 = sphi %s132, %s132
            %s151 = sphi %s133, %s133
          $region57: #{_clop_apply.1} parent=53 // loop_header_branch
            %148 = sbr.rel (%p146) target = $region61
          $region58: #{_clop_apply.1} parent=53 // loop_body
            %v152 = vld [vmem:[%s150] sm:%s143]
            %153 = vst [vmem:[%s151] sm:%s143] %v152
          $region59: #{_clop_apply.1} parent=53 // loop_footer
            %s149 = sadd.s32 1, %s145
          $region60: #{_clop_apply.1} parent=53 // loop_footer_branch
            %144 = sbr.rel target = $region56
          $region61: #{_clop_apply.1} parent=53 // loop_exit
            _
        $region54: #{_clop_apply.1} parent=15 // pred_fallthru
          _
        // Predicated region
        $region73: #{_clop_apply.1} parent=15 // pred_check
          _
        $region74: #{_clop_apply.1} parent=15 // pred_check_branch
          %177 = sbr.rel (0) target = $region76
        $region75: #{_clop_apply.1} parent=15 // pred_region
          %178 = vsyncadd %s134, 16
        $region76: #{_clop_apply.1} parent=15 // pred_fallthru
          _
        %s179 = sadd.s32 %s83, 2
        %s180 = sld [smem:[#allocation5 + %s179]]
        %s181 = scalar_lea.vmem %s1, %s180
        %s182 = scalar_lea.vmem [#allocation2], 2
        %s183 = scalar_lea.sflag [#allocation3], 2
        %p185 = scmp.lt.u32.totalorder 1, 8
        %p186 = pneg %p185
        // Predicated region
        $region77: #{_clop_apply.1} parent=15 // pred_check
          _
        $region78: #{_clop_apply.1} parent=15 // pred_check_branch
          %188 = sbr.rel (%p185) target = $region80
        $region79: #{_clop_apply.1} parent=15 // pred_region
          %s203 = sand.u32 1, 7
          %p204 = scmp.eq.s32.totalorder %s203, 0
          %p205 = pneg %p204
          // Predicated region
          $region92: #{_clop_apply.1} parent=79 // pred_check
            _
          $region93: #{_clop_apply.1} parent=79 // pred_check_branch
            %207 = sbr.rel (%p204) target = $region95
          $region94: #{_clop_apply.1} parent=79 // pred_region
            %s208 = sand.u32 1, 7
            %s209 = ssub.s32 1, %s208
            %s210 = scalar_lea.vmem %s181, %s209
            %s211 = ssub.s32 1, %s208
            %s212 = scalar_lea.vmem %s182, %s211 [#allocation2]
            %s213 = sshllo.u32 0, %s208
            loop: start=0, step=1, limit=1
            $region96: #{_clop_apply.1} parent=94 // loop_pre_header
              _
            $region97: #{_clop_apply.1} parent=94 // loop_header
              %s215 = sphi 0, %s219
              %p216 = scmp.ge.s32.totalorder %s215, 1
              %s220 = sphi %s210, %s210
              %s221 = sphi %s212, %s212
            $region98: #{_clop_apply.1} parent=94 // loop_header_branch
              %218 = sbr.rel (%p216) target = $region102
            $region99: #{_clop_apply.1} parent=94 // loop_body
              %v222 = vld [vmem:[%s220] sm:%s213]
              %223 = vst [vmem:[%s221] sm:%s213] %v222
            $region100: #{_clop_apply.1} parent=94 // loop_footer
              %s219 = sadd.s32 1, %s215
            $region101: #{_clop_apply.1} parent=94 // loop_footer_branch
              %214 = sbr.rel target = $region97
            $region102: #{_clop_apply.1} parent=94 // loop_exit
              _
          $region95: #{_clop_apply.1} parent=79 // pred_fallthru
            _
        $region80: #{_clop_apply.1} parent=15 // pred_fallthru
          _
        // Predicated region
        $region81: #{_clop_apply.1} parent=15 // pred_check
          %p189 = pneg %p185
        $region82: #{_clop_apply.1} parent=15 // pred_check_branch
          %191 = sbr.rel (%p189) target = $region84
        $region83: #{_clop_apply.1} parent=15 // pred_region
          %s192 = sshllo.u32 0, 1
          loop: start=0, step=1, limit=1
          $region85: #{_clop_apply.1} parent=83 // loop_pre_header
            _
          $region86: #{_clop_apply.1} parent=83 // loop_header
            %s194 = sphi 0, %s198
            %p195 = scmp.ge.s32.totalorder %s194, 1
            %s199 = sphi %s181, %s181
            %s200 = sphi %s182, %s182
          $region87: #{_clop_apply.1} parent=83 // loop_header_branch
            %197 = sbr.rel (%p195) target = $region91
          $region88: #{_clop_apply.1} parent=83 // loop_body
            %v201 = vld [vmem:[%s199] sm:%s192]
            %202 = vst [vmem:[%s200] sm:%s192] %v201
          $region89: #{_clop_apply.1} parent=83 // loop_footer
            %s198 = sadd.s32 1, %s194
          $region90: #{_clop_apply.1} parent=83 // loop_footer_branch
            %193 = sbr.rel target = $region86
          $region91: #{_clop_apply.1} parent=83 // loop_exit
            _
        $region84: #{_clop_apply.1} parent=15 // pred_fallthru
          _
        // Predicated region
        $region103: #{_clop_apply.1} parent=15 // pred_check
          _
        $region104: #{_clop_apply.1} parent=15 // pred_check_branch
          %226 = sbr.rel (0) target = $region106
        $region105: #{_clop_apply.1} parent=15 // pred_region
          %227 = vsyncadd %s183, 16
        $region106: #{_clop_apply.1} parent=15 // pred_fallthru
          _
        %s228 = sadd.s32 %s83, 3
        %s229 = sld [smem:[#allocation5 + %s228]]
        %s230 = scalar_lea.vmem %s1, %s229
        %s231 = scalar_lea.vmem [#allocation2], 3
        %s232 = scalar_lea.sflag [#allocation3], 3
        %p234 = scmp.lt.u32.totalorder 1, 8
        %p235 = pneg %p234
        // Predicated region
        $region107: #{_clop_apply.1} parent=15 // pred_check
          _
        $region108: #{_clop_apply.1} parent=15 // pred_check_branch
          %237 = sbr.rel (%p234) target = $region110
        $region109: #{_clop_apply.1} parent=15 // pred_region
          %s252 = sand.u32 1, 7
          %p253 = scmp.eq.s32.totalorder %s252, 0
          %p254 = pneg %p253
          // Predicated region
          $region122: #{_clop_apply.1} parent=109 // pred_check
            _
          $region123: #{_clop_apply.1} parent=109 // pred_check_branch
            %256 = sbr.rel (%p253) target = $region125
          $region124: #{_clop_apply.1} parent=109 // pred_region
            %s257 = sand.u32 1, 7
            %s258 = ssub.s32 1, %s257
            %s259 = scalar_lea.vmem %s230, %s258
            %s260 = ssub.s32 1, %s257
            %s261 = scalar_lea.vmem %s231, %s260 [#allocation2]
            %s262 = sshllo.u32 0, %s257
            loop: start=0, step=1, limit=1
            $region126: #{_clop_apply.1} parent=124 // loop_pre_header
              _
            $region127: #{_clop_apply.1} parent=124 // loop_header
              %s264 = sphi 0, %s268
              %p265 = scmp.ge.s32.totalorder %s264, 1
              %s269 = sphi %s259, %s259
              %s270 = sphi %s261, %s261
            $region128: #{_clop_apply.1} parent=124 // loop_header_branch
              %267 = sbr.rel (%p265) target = $region132
            $region129: #{_clop_apply.1} parent=124 // loop_body
              %v271 = vld [vmem:[%s269] sm:%s262]
              %272 = vst [vmem:[%s270] sm:%s262] %v271
            $region130: #{_clop_apply.1} parent=124 // loop_footer
              %s268 = sadd.s32 1, %s264
            $region131: #{_clop_apply.1} parent=124 // loop_footer_branch
              %263 = sbr.rel target = $region127
            $region132: #{_clop_apply.1} parent=124 // loop_exit
              _
          $region125: #{_clop_apply.1} parent=109 // pred_fallthru
            _
        $region110: #{_clop_apply.1} parent=15 // pred_fallthru
          _
        // Predicated region
        $region111: #{_clop_apply.1} parent=15 // pred_check
          %p238 = pneg %p234
        $region112: #{_clop_apply.1} parent=15 // pred_check_branch
          %240 = sbr.rel (%p238) target = $region114
        $region113: #{_clop_apply.1} parent=15 // pred_region
          %s241 = sshllo.u32 0, 1
          loop: start=0, step=1, limit=1
          $region115: #{_clop_apply.1} parent=113 // loop_pre_header
            _
          $region116: #{_clop_apply.1} parent=113 // loop_header
            %s243 = sphi 0, %s247
            %p244 = scmp.ge.s32.totalorder %s243, 1
            %s248 = sphi %s230, %s230
            %s249 = sphi %s231, %s231
          $region117: #{_clop_apply.1} parent=113 // loop_header_branch
            %246 = sbr.rel (%p244) target = $region121
          $region118: #{_clop_apply.1} parent=113 // loop_body
            %v250 = vld [vmem:[%s248] sm:%s241]
            %251 = vst [vmem:[%s249] sm:%s241] %v250
          $region119: #{_clop_apply.1} parent=113 // loop_footer
            %s247 = sadd.s32 1, %s243
          $region120: #{_clop_apply.1} parent=113 // loop_footer_branch
            %242 = sbr.rel target = $region116
          $region121: #{_clop_apply.1} parent=113 // loop_exit
            _
        $region114: #{_clop_apply.1} parent=15 // pred_fallthru
          _
        // Predicated region
        $region133: #{_clop_apply.1} parent=15 // pred_check
          _
        $region134: #{_clop_apply.1} parent=15 // pred_check_branch
          %275 = sbr.rel (0) target = $region136
        $region135: #{_clop_apply.1} parent=15 // pred_region
          %276 = vsyncadd %s232, 16
        $region136: #{_clop_apply.1} parent=15 // pred_fallthru
          _
        %s277 = sadd.s32 %s83, 4
        %s278 = sld [smem:[#allocation5 + %s277]]
        %s279 = scalar_lea.vmem %s1, %s278
        %s280 = scalar_lea.vmem [#allocation2], 4
        %s281 = scalar_lea.sflag [#allocation3], 4
        %p283 = scmp.lt.u32.totalorder 1, 8
        %p284 = pneg %p283
        // Predicated region
        $region137: #{_clop_apply.1} parent=15 // pred_check
          _
        $region138: #{_clop_apply.1} parent=15 // pred_check_branch
          %286 = sbr.rel (%p283) target = $region140
        $region139: #{_clop_apply.1} parent=15 // pred_region
          %s301 = sand.u32 1, 7
          %p302 = scmp.eq.s32.totalorder %s301, 0
          %p303 = pneg %p302
          // Predicated region
          $region152: #{_clop_apply.1} parent=139 // pred_check
            _
          $region153: #{_clop_apply.1} parent=139 // pred_check_branch
            %305 = sbr.rel (%p302) target = $region155
          $region154: #{_clop_apply.1} parent=139 // pred_region
            %s306 = sand.u32 1, 7
            %s307 = ssub.s32 1, %s306
            %s308 = scalar_lea.vmem %s279, %s307
            %s309 = ssub.s32 1, %s306
            %s310 = scalar_lea.vmem %s280, %s309 [#allocation2]
            %s311 = sshllo.u32 0, %s306
            loop: start=0, step=1, limit=1
            $region156: #{_clop_apply.1} parent=154 // loop_pre_header
              _
            $region157: #{_clop_apply.1} parent=154 // loop_header
              %s313 = sphi 0, %s317
              %p314 = scmp.ge.s32.totalorder %s313, 1
              %s318 = sphi %s308, %s308
              %s319 = sphi %s310, %s310
            $region158: #{_clop_apply.1} parent=154 // loop_header_branch
              %316 = sbr.rel (%p314) target = $region162
            $region159: #{_clop_apply.1} parent=154 // loop_body
              %v320 = vld [vmem:[%s318] sm:%s311]
              %321 = vst [vmem:[%s319] sm:%s311] %v320
            $region160: #{_clop_apply.1} parent=154 // loop_footer
              %s317 = sadd.s32 1, %s313
            $region161: #{_clop_apply.1} parent=154 // loop_footer_branch
              %312 = sbr.rel target = $region157
            $region162: #{_clop_apply.1} parent=154 // loop_exit
              _
          $region155: #{_clop_apply.1} parent=139 // pred_fallthru
            _
        $region140: #{_clop_apply.1} parent=15 // pred_fallthru
          _
        // Predicated region
        $region141: #{_clop_apply.1} parent=15 // pred_check
          %p287 = pneg %p283
        $region142: #{_clop_apply.1} parent=15 // pred_check_branch
          %289 = sbr.rel (%p287) target = $region144
        $region143: #{_clop_apply.1} parent=15 // pred_region
          %s290 = sshllo.u32 0, 1
          loop: start=0, step=1, limit=1
          $region145: #{_clop_apply.1} parent=143 // loop_pre_header
            _
          $region146: #{_clop_apply.1} parent=143 // loop_header
            %s292 = sphi 0, %s296
            %p293 = scmp.ge.s32.totalorder %s292, 1
            %s297 = sphi %s279, %s279
            %s298 = sphi %s280, %s280
          $region147: #{_clop_apply.1} parent=143 // loop_header_branch
            %295 = sbr.rel (%p293) target = $region151
          $region148: #{_clop_apply.1} parent=143 // loop_body
            %v299 = vld [vmem:[%s297] sm:%s290]
            %300 = vst [vmem:[%s298] sm:%s290] %v299
          $region149: #{_clop_apply.1} parent=143 // loop_footer
            %s296 = sadd.s32 1, %s292
          $region150: #{_clop_apply.1} parent=143 // loop_footer_branch
            %291 = sbr.rel target = $region146
          $region151: #{_clop_apply.1} parent=143 // loop_exit
            _
        $region144: #{_clop_apply.1} parent=15 // pred_fallthru
          _
        // Predicated region
        $region163: #{_clop_apply.1} parent=15 // pred_check
          _
        $region164: #{_clop_apply.1} parent=15 // pred_check_branch
          %324 = sbr.rel (0) target = $region166
        $region165: #{_clop_apply.1} parent=15 // pred_region
          %325 = vsyncadd %s281, 16
        $region166: #{_clop_apply.1} parent=15 // pred_fallthru
          _
        %s326 = sadd.s32 %s83, 5
        %s327 = sld [smem:[#allocation5 + %s326]]
        %s328 = scalar_lea.vmem %s1, %s327
        %s329 = scalar_lea.vmem [#allocation2], 5
        %s330 = scalar_lea.sflag [#allocation3], 5
        %p332 = scmp.lt.u32.totalorder 1, 8
        %p333 = pneg %p332
        // Predicated region
        $region167: #{_clop_apply.1} parent=15 // pred_check
          _
        $region168: #{_clop_apply.1} parent=15 // pred_check_branch
          %335 = sbr.rel (%p332) target = $region170
        $region169: #{_clop_apply.1} parent=15 // pred_region
          %s350 = sand.u32 1, 7
          %p351 = scmp.eq.s32.totalorder %s350, 0
          %p352 = pneg %p351
          // Predicated region
          $region182: #{_clop_apply.1} parent=169 // pred_check
            _
          $region183: #{_clop_apply.1} parent=169 // pred_check_branch
            %354 = sbr.rel (%p351) target = $region185
          $region184: #{_clop_apply.1} parent=169 // pred_region
            %s355 = sand.u32 1, 7
            %s356 = ssub.s32 1, %s355
            %s357 = scalar_lea.vmem %s328, %s356
            %s358 = ssub.s32 1, %s355
            %s359 = scalar_lea.vmem %s329, %s358 [#allocation2]
            %s360 = sshllo.u32 0, %s355
            loop: start=0, step=1, limit=1
            $region186: #{_clop_apply.1} parent=184 // loop_pre_header
              _
            $region187: #{_clop_apply.1} parent=184 // loop_header
              %s362 = sphi 0, %s366
              %p363 = scmp.ge.s32.totalorder %s362, 1
              %s367 = sphi %s357, %s357
              %s368 = sphi %s359, %s359
            $region188: #{_clop_apply.1} parent=184 // loop_header_branch
              %365 = sbr.rel (%p363) target = $region192
            $region189: #{_clop_apply.1} parent=184 // loop_body
              %v369 = vld [vmem:[%s367] sm:%s360]
              %370 = vst [vmem:[%s368] sm:%s360] %v369
            $region190: #{_clop_apply.1} parent=184 // loop_footer
              %s366 = sadd.s32 1, %s362
            $region191: #{_clop_apply.1} parent=184 // loop_footer_branch
              %361 = sbr.rel target = $region187
            $region192: #{_clop_apply.1} parent=184 // loop_exit
              _
          $region185: #{_clop_apply.1} parent=169 // pred_fallthru
            _
        $region170: #{_clop_apply.1} parent=15 // pred_fallthru
          _
        // Predicated region
        $region171: #{_clop_apply.1} parent=15 // pred_check
          %p336 = pneg %p332
        $region172: #{_clop_apply.1} parent=15 // pred_check_branch
          %338 = sbr.rel (%p336) target = $region174
        $region173: #{_clop_apply.1} parent=15 // pred_region
          %s339 = sshllo.u32 0, 1
          loop: start=0, step=1, limit=1
          $region175: #{_clop_apply.1} parent=173 // loop_pre_header
            _
          $region176: #{_clop_apply.1} parent=173 // loop_header
            %s341 = sphi 0, %s345
            %p342 = scmp.ge.s32.totalorder %s341, 1
            %s346 = sphi %s328, %s328
            %s347 = sphi %s329, %s329
          $region177: #{_clop_apply.1} parent=173 // loop_header_branch
            %344 = sbr.rel (%p342) target = $region181
          $region178: #{_clop_apply.1} parent=173 // loop_body
            %v348 = vld [vmem:[%s346] sm:%s339]
            %349 = vst [vmem:[%s347] sm:%s339] %v348
          $region179: #{_clop_apply.1} parent=173 // loop_footer
            %s345 = sadd.s32 1, %s341
          $region180: #{_clop_apply.1} parent=173 // loop_footer_branch
            %340 = sbr.rel target = $region176
          $region181: #{_clop_apply.1} parent=173 // loop_exit
            _
        $region174: #{_clop_apply.1} parent=15 // pred_fallthru
          _
        // Predicated region
        $region193: #{_clop_apply.1} parent=15 // pred_check
          _
        $region194: #{_clop_apply.1} parent=15 // pred_check_branch
          %373 = sbr.rel (0) target = $region196
        $region195: #{_clop_apply.1} parent=15 // pred_region
          %374 = vsyncadd %s330, 16
        $region196: #{_clop_apply.1} parent=15 // pred_fallthru
          _
        %s375 = sadd.s32 %s83, 6
        %s376 = sld [smem:[#allocation5 + %s375]]
        %s377 = scalar_lea.vmem %s1, %s376
        %s378 = scalar_lea.vmem [#allocation2], 6
        %s379 = scalar_lea.sflag [#allocation3], 6
        %p381 = scmp.lt.u32.totalorder 1, 8
        %p382 = pneg %p381
        // Predicated region
        $region197: #{_clop_apply.1} parent=15 // pred_check
          _
        $region198: #{_clop_apply.1} parent=15 // pred_check_branch
          %384 = sbr.rel (%p381) target = $region200
        $region199: #{_clop_apply.1} parent=15 // pred_region
          %s399 = sand.u32 1, 7
          %p400 = scmp.eq.s32.totalorder %s399, 0
          %p401 = pneg %p400
          // Predicated region
          $region212: #{_clop_apply.1} parent=199 // pred_check
            _
          $region213: #{_clop_apply.1} parent=199 // pred_check_branch
            %403 = sbr.rel (%p400) target = $region215
          $region214: #{_clop_apply.1} parent=199 // pred_region
            %s404 = sand.u32 1, 7
            %s405 = ssub.s32 1, %s404
            %s406 = scalar_lea.vmem %s377, %s405
            %s407 = ssub.s32 1, %s404
            %s408 = scalar_lea.vmem %s378, %s407 [#allocation2]
            %s409 = sshllo.u32 0, %s404
            loop: start=0, step=1, limit=1
            $region216: #{_clop_apply.1} parent=214 // loop_pre_header
              _
            $region217: #{_clop_apply.1} parent=214 // loop_header
              %s411 = sphi 0, %s415
              %p412 = scmp.ge.s32.totalorder %s411, 1
              %s416 = sphi %s406, %s406
              %s417 = sphi %s408, %s408
            $region218: #{_clop_apply.1} parent=214 // loop_header_branch
              %414 = sbr.rel (%p412) target = $region222
            $region219: #{_clop_apply.1} parent=214 // loop_body
              %v418 = vld [vmem:[%s416] sm:%s409]
              %419 = vst [vmem:[%s417] sm:%s409] %v418
            $region220: #{_clop_apply.1} parent=214 // loop_footer
              %s415 = sadd.s32 1, %s411
            $region221: #{_clop_apply.1} parent=214 // loop_footer_branch
              %410 = sbr.rel target = $region217
            $region222: #{_clop_apply.1} parent=214 // loop_exit
              _
          $region215: #{_clop_apply.1} parent=199 // pred_fallthru
            _
        $region200: #{_clop_apply.1} parent=15 // pred_fallthru
          _
        // Predicated region
        $region201: #{_clop_apply.1} parent=15 // pred_check
          %p385 = pneg %p381
        $region202: #{_clop_apply.1} parent=15 // pred_check_branch
          %387 = sbr.rel (%p385) target = $region204
        $region203: #{_clop_apply.1} parent=15 // pred_region
          %s388 = sshllo.u32 0, 1
          loop: start=0, step=1, limit=1
          $region205: #{_clop_apply.1} parent=203 // loop_pre_header
            _
          $region206: #{_clop_apply.1} parent=203 // loop_header
            %s390 = sphi 0, %s394
            %p391 = scmp.ge.s32.totalorder %s390, 1
            %s395 = sphi %s377, %s377
            %s396 = sphi %s378, %s378
          $region207: #{_clop_apply.1} parent=203 // loop_header_branch
            %393 = sbr.rel (%p391) target = $region211
          $region208: #{_clop_apply.1} parent=203 // loop_body
            %v397 = vld [vmem:[%s395] sm:%s388]
            %398 = vst [vmem:[%s396] sm:%s388] %v397
          $region209: #{_clop_apply.1} parent=203 // loop_footer
            %s394 = sadd.s32 1, %s390
          $region210: #{_clop_apply.1} parent=203 // loop_footer_branch
            %389 = sbr.rel target = $region206
          $region211: #{_clop_apply.1} parent=203 // loop_exit
            _
        $region204: #{_clop_apply.1} parent=15 // pred_fallthru
          _
        // Predicated region
        $region223: #{_clop_apply.1} parent=15 // pred_check
          _
        $region224: #{_clop_apply.1} parent=15 // pred_check_branch
          %422 = sbr.rel (0) target = $region226
        $region225: #{_clop_apply.1} parent=15 // pred_region
          %423 = vsyncadd %s379, 16
        $region226: #{_clop_apply.1} parent=15 // pred_fallthru
          _
        %s424 = sadd.s32 %s83, 7
        %s425 = sld [smem:[#allocation5 + %s424]]
        %s426 = scalar_lea.vmem %s1, %s425
        %s427 = scalar_lea.vmem [#allocation2], 7
        %s428 = scalar_lea.sflag [#allocation3], 7
        %p430 = scmp.lt.u32.totalorder 1, 8
        %p431 = pneg %p430
        // Predicated region
        $region227: #{_clop_apply.1} parent=15 // pred_check
          _
        $region228: #{_clop_apply.1} parent=15 // pred_check_branch
          %433 = sbr.rel (%p430) target = $region230
        $region229: #{_clop_apply.1} parent=15 // pred_region
          %s448 = sand.u32 1, 7
          %p449 = scmp.eq.s32.totalorder %s448, 0
          %p450 = pneg %p449
          // Predicated region
          $region242: #{_clop_apply.1} parent=229 // pred_check
            _
          $region243: #{_clop_apply.1} parent=229 // pred_check_branch
            %452 = sbr.rel (%p449) target = $region245
          $region244: #{_clop_apply.1} parent=229 // pred_region
            %s453 = sand.u32 1, 7
            %s454 = ssub.s32 1, %s453
            %s455 = scalar_lea.vmem %s426, %s454
            %s456 = ssub.s32 1, %s453
            %s457 = scalar_lea.vmem %s427, %s456 [#allocation2]
            %s458 = sshllo.u32 0, %s453
            loop: start=0, step=1, limit=1
            $region246: #{_clop_apply.1} parent=244 // loop_pre_header
              _
            $region247: #{_clop_apply.1} parent=244 // loop_header
              %s460 = sphi 0, %s464
              %p461 = scmp.ge.s32.totalorder %s460, 1
              %s465 = sphi %s455, %s455
              %s466 = sphi %s457, %s457
            $region248: #{_clop_apply.1} parent=244 // loop_header_branch
              %463 = sbr.rel (%p461) target = $region252
            $region249: #{_clop_apply.1} parent=244 // loop_body
              %v467 = vld [vmem:[%s465] sm:%s458]
              %468 = vst [vmem:[%s466] sm:%s458] %v467
            $region250: #{_clop_apply.1} parent=244 // loop_footer
              %s464 = sadd.s32 1, %s460
            $region251: #{_clop_apply.1} parent=244 // loop_footer_branch
              %459 = sbr.rel target = $region247
            $region252: #{_clop_apply.1} parent=244 // loop_exit
              _
          $region245: #{_clop_apply.1} parent=229 // pred_fallthru
            _
        $region230: #{_clop_apply.1} parent=15 // pred_fallthru
          _
        // Predicated region
        $region231: #{_clop_apply.1} parent=15 // pred_check
          %p434 = pneg %p430
        $region232: #{_clop_apply.1} parent=15 // pred_check_branch
          %436 = sbr.rel (%p434) target = $region234
        $region233: #{_clop_apply.1} parent=15 // pred_region
          %s437 = sshllo.u32 0, 1
          loop: start=0, step=1, limit=1
          $region235: #{_clop_apply.1} parent=233 // loop_pre_header
            _
          $region236: #{_clop_apply.1} parent=233 // loop_header
            %s439 = sphi 0, %s443
            %p440 = scmp.ge.s32.totalorder %s439, 1
            %s444 = sphi %s426, %s426
            %s445 = sphi %s427, %s427
          $region237: #{_clop_apply.1} parent=233 // loop_header_branch
            %442 = sbr.rel (%p440) target = $region241
          $region238: #{_clop_apply.1} parent=233 // loop_body
            %v446 = vld [vmem:[%s444] sm:%s437]
            %447 = vst [vmem:[%s445] sm:%s437] %v446
          $region239: #{_clop_apply.1} parent=233 // loop_footer
            %s443 = sadd.s32 1, %s439
          $region240: #{_clop_apply.1} parent=233 // loop_footer_branch
            %438 = sbr.rel target = $region236
          $region241: #{_clop_apply.1} parent=233 // loop_exit
            _
        $region234: #{_clop_apply.1} parent=15 // pred_fallthru
          _
        // Predicated region
        $region253: #{_clop_apply.1} parent=15 // pred_check
          _
        $region254: #{_clop_apply.1} parent=15 // pred_check_branch
          %471 = sbr.rel (0) target = $region256
        $region255: #{_clop_apply.1} parent=15 // pred_region
          %472 = vsyncadd %s428, 16
        $region256: #{_clop_apply.1} parent=15 // pred_fallthru
          _
        %s473 = sadd.s32 %s83, 8
        %s474 = sld [smem:[#allocation5 + %s473]]
        %s475 = scalar_lea.vmem %s1, %s474
        %s476 = scalar_lea.vmem [#allocation2], 8
        %s477 = scalar_lea.sflag [#allocation3], 8
        %p479 = scmp.lt.u32.totalorder 1, 8
        %p480 = pneg %p479
        // Predicated region
        $region257: #{_clop_apply.1} parent=15 // pred_check
          _
        $region258: #{_clop_apply.1} parent=15 // pred_check_branch
          %482 = sbr.rel (%p479) target = $region260
        $region259: #{_clop_apply.1} parent=15 // pred_region
          %s497 = sand.u32 1, 7
          %p498 = scmp.eq.s32.totalorder %s497, 0
          %p499 = pneg %p498
          // Predicated region
          $region272: #{_clop_apply.1} parent=259 // pred_check
            _
          $region273: #{_clop_apply.1} parent=259 // pred_check_branch
            %501 = sbr.rel (%p498) target = $region275
          $region274: #{_clop_apply.1} parent=259 // pred_region
            %s502 = sand.u32 1, 7
            %s503 = ssub.s32 1, %s502
            %s504 = scalar_lea.vmem %s475, %s503
            %s505 = ssub.s32 1, %s502
            %s506 = scalar_lea.vmem %s476, %s505 [#allocation2]
            %s507 = sshllo.u32 0, %s502
            loop: start=0, step=1, limit=1
            $region276: #{_clop_apply.1} parent=274 // loop_pre_header
              _
            $region277: #{_clop_apply.1} parent=274 // loop_header
              %s509 = sphi 0, %s513
              %p510 = scmp.ge.s32.totalorder %s509, 1
              %s514 = sphi %s504, %s504
              %s515 = sphi %s506, %s506
            $region278: #{_clop_apply.1} parent=274 // loop_header_branch
              %512 = sbr.rel (%p510) target = $region282
            $region279: #{_clop_apply.1} parent=274 // loop_body
              %v516 = vld [vmem:[%s514] sm:%s507]
              %517 = vst [vmem:[%s515] sm:%s507] %v516
            $region280: #{_clop_apply.1} parent=274 // loop_footer
              %s513 = sadd.s32 1, %s509
            $region281: #{_clop_apply.1} parent=274 // loop_footer_branch
              %508 = sbr.rel target = $region277
            $region282: #{_clop_apply.1} parent=274 // loop_exit
              _
          $region275: #{_clop_apply.1} parent=259 // pred_fallthru
            _
        $region260: #{_clop_apply.1} parent=15 // pred_fallthru
          _
        // Predicated region
        $region261: #{_clop_apply.1} parent=15 // pred_check
          %p483 = pneg %p479
        $region262: #{_clop_apply.1} parent=15 // pred_check_branch
          %485 = sbr.rel (%p483) target = $region264
        $region263: #{_clop_apply.1} parent=15 // pred_region
          %s486 = sshllo.u32 0, 1
          loop: start=0, step=1, limit=1
          $region265: #{_clop_apply.1} parent=263 // loop_pre_header
            _
          $region266: #{_clop_apply.1} parent=263 // loop_header
            %s488 = sphi 0, %s492
            %p489 = scmp.ge.s32.totalorder %s488, 1
            %s493 = sphi %s475, %s475
            %s494 = sphi %s476, %s476
          $region267: #{_clop_apply.1} parent=263 // loop_header_branch
            %491 = sbr.rel (%p489) target = $region271
          $region268: #{_clop_apply.1} parent=263 // loop_body
            %v495 = vld [vmem:[%s493] sm:%s486]
            %496 = vst [vmem:[%s494] sm:%s486] %v495
          $region269: #{_clop_apply.1} parent=263 // loop_footer
            %s492 = sadd.s32 1, %s488
          $region270: #{_clop_apply.1} parent=263 // loop_footer_branch
            %487 = sbr.rel target = $region266
          $region271: #{_clop_apply.1} parent=263 // loop_exit
            _
        $region264: #{_clop_apply.1} parent=15 // pred_fallthru
          _
        // Predicated region
        $region283: #{_clop_apply.1} parent=15 // pred_check
          _
        $region284: #{_clop_apply.1} parent=15 // pred_check_branch
          %520 = sbr.rel (0) target = $region286
        $region285: #{_clop_apply.1} parent=15 // pred_region
          %521 = vsyncadd %s477, 16
        $region286: #{_clop_apply.1} parent=15 // pred_fallthru
          _
        %s522 = sadd.s32 %s83, 9
        %s523 = sld [smem:[#allocation5 + %s522]]
        %s524 = scalar_lea.vmem %s1, %s523
        %s525 = scalar_lea.vmem [#allocation2], 9
        %s526 = scalar_lea.sflag [#allocation3], 9
        %p528 = scmp.lt.u32.totalorder 1, 8
        %p529 = pneg %p528
        // Predicated region
        $region287: #{_clop_apply.1} parent=15 // pred_check
          _
        $region288: #{_clop_apply.1} parent=15 // pred_check_branch
          %531 = sbr.rel (%p528) target = $region290
        $region289: #{_clop_apply.1} parent=15 // pred_region
          %s546 = sand.u32 1, 7
          %p547 = scmp.eq.s32.totalorder %s546, 0
          %p548 = pneg %p547
          // Predicated region
          $region302: #{_clop_apply.1} parent=289 // pred_check
            _
          $region303: #{_clop_apply.1} parent=289 // pred_check_branch
            %550 = sbr.rel (%p547) target = $region305
          $region304: #{_clop_apply.1} parent=289 // pred_region
            %s551 = sand.u32 1, 7
            %s552 = ssub.s32 1, %s551
            %s553 = scalar_lea.vmem %s524, %s552
            %s554 = ssub.s32 1, %s551
            %s555 = scalar_lea.vmem %s525, %s554 [#allocation2]
            %s556 = sshllo.u32 0, %s551
            loop: start=0, step=1, limit=1
            $region306: #{_clop_apply.1} parent=304 // loop_pre_header
              _
            $region307: #{_clop_apply.1} parent=304 // loop_header
              %s558 = sphi 0, %s562
              %p559 = scmp.ge.s32.totalorder %s558, 1
              %s563 = sphi %s553, %s553
              %s564 = sphi %s555, %s555
            $region308: #{_clop_apply.1} parent=304 // loop_header_branch
              %561 = sbr.rel (%p559) target = $region312
            $region309: #{_clop_apply.1} parent=304 // loop_body
              %v565 = vld [vmem:[%s563] sm:%s556]
              %566 = vst [vmem:[%s564] sm:%s556] %v565
            $region310: #{_clop_apply.1} parent=304 // loop_footer
              %s562 = sadd.s32 1, %s558
            $region311: #{_clop_apply.1} parent=304 // loop_footer_branch
              %557 = sbr.rel target = $region307
            $region312: #{_clop_apply.1} parent=304 // loop_exit
              _
          $region305: #{_clop_apply.1} parent=289 // pred_fallthru
            _
        $region290: #{_clop_apply.1} parent=15 // pred_fallthru
          _
        // Predicated region
        $region291: #{_clop_apply.1} parent=15 // pred_check
          %p532 = pneg %p528
        $region292: #{_clop_apply.1} parent=15 // pred_check_branch
          %534 = sbr.rel (%p532) target = $region294
        $region293: #{_clop_apply.1} parent=15 // pred_region
          %s535 = sshllo.u32 0, 1
          loop: start=0, step=1, limit=1
          $region295: #{_clop_apply.1} parent=293 // loop_pre_header
            _
          $region296: #{_clop_apply.1} parent=293 // loop_header
            %s537 = sphi 0, %s541
            %p538 = scmp.ge.s32.totalorder %s537, 1
            %s542 = sphi %s524, %s524
            %s543 = sphi %s525, %s525
          $region297: #{_clop_apply.1} parent=293 // loop_header_branch
            %540 = sbr.rel (%p538) target = $region301
          $region298: #{_clop_apply.1} parent=293 // loop_body
            %v544 = vld [vmem:[%s542] sm:%s535]
            %545 = vst [vmem:[%s543] sm:%s535] %v544
          $region299: #{_clop_apply.1} parent=293 // loop_footer
            %s541 = sadd.s32 1, %s537
          $region300: #{_clop_apply.1} parent=293 // loop_footer_branch
            %536 = sbr.rel target = $region296
          $region301: #{_clop_apply.1} parent=293 // loop_exit
            _
        $region294: #{_clop_apply.1} parent=15 // pred_fallthru
          _
        // Predicated region
        $region313: #{_clop_apply.1} parent=15 // pred_check
          _
        $region314: #{_clop_apply.1} parent=15 // pred_check_branch
          %569 = sbr.rel (0) target = $region316
        $region315: #{_clop_apply.1} parent=15 // pred_region
          %570 = vsyncadd %s526, 16
        $region316: #{_clop_apply.1} parent=15 // pred_fallthru
          _
        %s571 = sadd.s32 %s83, 10
        %s572 = sld [smem:[#allocation5 + %s571]]
        %s573 = scalar_lea.vmem %s1, %s572
        %s574 = scalar_lea.vmem [#allocation2], 10
        %s575 = scalar_lea.sflag [#allocation3], 10
        %p577 = scmp.lt.u32.totalorder 1, 8
        %p578 = pneg %p577
        // Predicated region
        $region317: #{_clop_apply.1} parent=15 // pred_check
          _
        $region318: #{_clop_apply.1} parent=15 // pred_check_branch
          %580 = sbr.rel (%p577) target = $region320
        $region319: #{_clop_apply.1} parent=15 // pred_region
          %s595 = sand.u32 1, 7
          %p596 = scmp.eq.s32.totalorder %s595, 0
          %p597 = pneg %p596
          // Predicated region
          $region332: #{_clop_apply.1} parent=319 // pred_check
            _
          $region333: #{_clop_apply.1} parent=319 // pred_check_branch
            %599 = sbr.rel (%p596) target = $region335
          $region334: #{_clop_apply.1} parent=319 // pred_region
            %s600 = sand.u32 1, 7
            %s601 = ssub.s32 1, %s600
            %s602 = scalar_lea.vmem %s573, %s601
            %s603 = ssub.s32 1, %s600
            %s604 = scalar_lea.vmem %s574, %s603 [#allocation2]
            %s605 = sshllo.u32 0, %s600
            loop: start=0, step=1, limit=1
            $region336: #{_clop_apply.1} parent=334 // loop_pre_header
              _
            $region337: #{_clop_apply.1} parent=334 // loop_header
              %s607 = sphi 0, %s611
              %p608 = scmp.ge.s32.totalorder %s607, 1
              %s612 = sphi %s602, %s602
              %s613 = sphi %s604, %s604
            $region338: #{_clop_apply.1} parent=334 // loop_header_branch
              %610 = sbr.rel (%p608) target = $region342
            $region339: #{_clop_apply.1} parent=334 // loop_body
              %v614 = vld [vmem:[%s612] sm:%s605]
              %615 = vst [vmem:[%s613] sm:%s605] %v614
            $region340: #{_clop_apply.1} parent=334 // loop_footer
              %s611 = sadd.s32 1, %s607
            $region341: #{_clop_apply.1} parent=334 // loop_footer_branch
              %606 = sbr.rel target = $region337
            $region342: #{_clop_apply.1} parent=334 // loop_exit
              _
          $region335: #{_clop_apply.1} parent=319 // pred_fallthru
            _
        $region320: #{_clop_apply.1} parent=15 // pred_fallthru
          _
        // Predicated region
        $region321: #{_clop_apply.1} parent=15 // pred_check
          %p581 = pneg %p577
        $region322: #{_clop_apply.1} parent=15 // pred_check_branch
          %583 = sbr.rel (%p581) target = $region324
        $region323: #{_clop_apply.1} parent=15 // pred_region
          %s584 = sshllo.u32 0, 1
          loop: start=0, step=1, limit=1
          $region325: #{_clop_apply.1} parent=323 // loop_pre_header
            _
          $region326: #{_clop_apply.1} parent=323 // loop_header
            %s586 = sphi 0, %s590
            %p587 = scmp.ge.s32.totalorder %s586, 1
            %s591 = sphi %s573, %s573
            %s592 = sphi %s574, %s574
          $region327: #{_clop_apply.1} parent=323 // loop_header_branch
            %589 = sbr.rel (%p587) target = $region331
          $region328: #{_clop_apply.1} parent=323 // loop_body
            %v593 = vld [vmem:[%s591] sm:%s584]
            %594 = vst [vmem:[%s592] sm:%s584] %v593
          $region329: #{_clop_apply.1} parent=323 // loop_footer
            %s590 = sadd.s32 1, %s586
          $region330: #{_clop_apply.1} parent=323 // loop_footer_branch
            %585 = sbr.rel target = $region326
          $region331: #{_clop_apply.1} parent=323 // loop_exit
            _
        $region324: #{_clop_apply.1} parent=15 // pred_fallthru
          _
        // Predicated region
        $region343: #{_clop_apply.1} parent=15 // pred_check
          _
        $region344: #{_clop_apply.1} parent=15 // pred_check_branch
          %618 = sbr.rel (0) target = $region346
        $region345: #{_clop_apply.1} parent=15 // pred_region
          %619 = vsyncadd %s575, 16
        $region346: #{_clop_apply.1} parent=15 // pred_fallthru
          _
        %s620 = sadd.s32 %s83, 11
        %s621 = sld [smem:[#allocation5 + %s620]]
        %s622 = scalar_lea.vmem %s1, %s621
        %s623 = scalar_lea.vmem [#allocation2], 11
        %s624 = scalar_lea.sflag [#allocation3], 11
        %p626 = scmp.lt.u32.totalorder 1, 8
        %p627 = pneg %p626
        // Predicated region
        $region347: #{_clop_apply.1} parent=15 // pred_check
          _
        $region348: #{_clop_apply.1} parent=15 // pred_check_branch
          %629 = sbr.rel (%p626) target = $region350
        $region349: #{_clop_apply.1} parent=15 // pred_region
          %s644 = sand.u32 1, 7
          %p645 = scmp.eq.s32.totalorder %s644, 0
          %p646 = pneg %p645
          // Predicated region
          $region362: #{_clop_apply.1} parent=349 // pred_check
            _
          $region363: #{_clop_apply.1} parent=349 // pred_check_branch
            %648 = sbr.rel (%p645) target = $region365
          $region364: #{_clop_apply.1} parent=349 // pred_region
            %s649 = sand.u32 1, 7
            %s650 = ssub.s32 1, %s649
            %s651 = scalar_lea.vmem %s622, %s650
            %s652 = ssub.s32 1, %s649
            %s653 = scalar_lea.vmem %s623, %s652 [#allocation2]
            %s654 = sshllo.u32 0, %s649
            loop: start=0, step=1, limit=1
            $region366: #{_clop_apply.1} parent=364 // loop_pre_header
              _
            $region367: #{_clop_apply.1} parent=364 // loop_header
              %s656 = sphi 0, %s660
              %p657 = scmp.ge.s32.totalorder %s656, 1
              %s661 = sphi %s651, %s651
              %s662 = sphi %s653, %s653
            $region368: #{_clop_apply.1} parent=364 // loop_header_branch
              %659 = sbr.rel (%p657) target = $region372
            $region369: #{_clop_apply.1} parent=364 // loop_body
              %v663 = vld [vmem:[%s661] sm:%s654]
              %664 = vst [vmem:[%s662] sm:%s654] %v663
            $region370: #{_clop_apply.1} parent=364 // loop_footer
              %s660 = sadd.s32 1, %s656
            $region371: #{_clop_apply.1} parent=364 // loop_footer_branch
              %655 = sbr.rel target = $region367
            $region372: #{_clop_apply.1} parent=364 // loop_exit
              _
          $region365: #{_clop_apply.1} parent=349 // pred_fallthru
            _
        $region350: #{_clop_apply.1} parent=15 // pred_fallthru
          _
        // Predicated region
        $region351: #{_clop_apply.1} parent=15 // pred_check
          %p630 = pneg %p626
        $region352: #{_clop_apply.1} parent=15 // pred_check_branch
          %632 = sbr.rel (%p630) target = $region354
        $region353: #{_clop_apply.1} parent=15 // pred_region
          %s633 = sshllo.u32 0, 1
          loop: start=0, step=1, limit=1
          $region355: #{_clop_apply.1} parent=353 // loop_pre_header
            _
          $region356: #{_clop_apply.1} parent=353 // loop_header
            %s635 = sphi 0, %s639
            %p636 = scmp.ge.s32.totalorder %s635, 1
            %s640 = sphi %s622, %s622
            %s641 = sphi %s623, %s623
          $region357: #{_clop_apply.1} parent=353 // loop_header_branch
            %638 = sbr.rel (%p636) target = $region361
          $region358: #{_clop_apply.1} parent=353 // loop_body
            %v642 = vld [vmem:[%s640] sm:%s633]
            %643 = vst [vmem:[%s641] sm:%s633] %v642
          $region359: #{_clop_apply.1} parent=353 // loop_footer
            %s639 = sadd.s32 1, %s635
          $region360: #{_clop_apply.1} parent=353 // loop_footer_branch
            %634 = sbr.rel target = $region356
          $region361: #{_clop_apply.1} parent=353 // loop_exit
            _
        $region354: #{_clop_apply.1} parent=15 // pred_fallthru
          _
        // Predicated region
        $region373: #{_clop_apply.1} parent=15 // pred_check
          _
        $region374: #{_clop_apply.1} parent=15 // pred_check_branch
          %667 = sbr.rel (0) target = $region376
        $region375: #{_clop_apply.1} parent=15 // pred_region
          %668 = vsyncadd %s624, 16
        $region376: #{_clop_apply.1} parent=15 // pred_fallthru
          _
        %s669 = sadd.s32 %s83, 12
        %s670 = sld [smem:[#allocation5 + %s669]]
        %s671 = scalar_lea.vmem %s1, %s670
        %s672 = scalar_lea.vmem [#allocation2], 12
        %s673 = scalar_lea.sflag [#allocation3], 12
        %p675 = scmp.lt.u32.totalorder 1, 8
        %p676 = pneg %p675
        // Predicated region
        $region377: #{_clop_apply.1} parent=15 // pred_check
          _
        $region378: #{_clop_apply.1} parent=15 // pred_check_branch
          %678 = sbr.rel (%p675) target = $region380
        $region379: #{_clop_apply.1} parent=15 // pred_region
          %s693 = sand.u32 1, 7
          %p694 = scmp.eq.s32.totalorder %s693, 0
          %p695 = pneg %p694
          // Predicated region
          $region392: #{_clop_apply.1} parent=379 // pred_check
            _
          $region393: #{_clop_apply.1} parent=379 // pred_check_branch
            %697 = sbr.rel (%p694) target = $region395
          $region394: #{_clop_apply.1} parent=379 // pred_region
            %s698 = sand.u32 1, 7
            %s699 = ssub.s32 1, %s698
            %s700 = scalar_lea.vmem %s671, %s699
            %s701 = ssub.s32 1, %s698
            %s702 = scalar_lea.vmem %s672, %s701 [#allocation2]
            %s703 = sshllo.u32 0, %s698
            loop: start=0, step=1, limit=1
            $region396: #{_clop_apply.1} parent=394 // loop_pre_header
              _
            $region397: #{_clop_apply.1} parent=394 // loop_header
              %s705 = sphi 0, %s709
              %p706 = scmp.ge.s32.totalorder %s705, 1
              %s710 = sphi %s700, %s700
              %s711 = sphi %s702, %s702
            $region398: #{_clop_apply.1} parent=394 // loop_header_branch
              %708 = sbr.rel (%p706) target = $region402
            $region399: #{_clop_apply.1} parent=394 // loop_body
              %v712 = vld [vmem:[%s710] sm:%s703]
              %713 = vst [vmem:[%s711] sm:%s703] %v712
            $region400: #{_clop_apply.1} parent=394 // loop_footer
              %s709 = sadd.s32 1, %s705
            $region401: #{_clop_apply.1} parent=394 // loop_footer_branch
              %704 = sbr.rel target = $region397
            $region402: #{_clop_apply.1} parent=394 // loop_exit
              _
          $region395: #{_clop_apply.1} parent=379 // pred_fallthru
            _
        $region380: #{_clop_apply.1} parent=15 // pred_fallthru
          _
        // Predicated region
        $region381: #{_clop_apply.1} parent=15 // pred_check
          %p679 = pneg %p675
        $region382: #{_clop_apply.1} parent=15 // pred_check_branch
          %681 = sbr.rel (%p679) target = $region384
        $region383: #{_clop_apply.1} parent=15 // pred_region
          %s682 = sshllo.u32 0, 1
          loop: start=0, step=1, limit=1
          $region385: #{_clop_apply.1} parent=383 // loop_pre_header
            _
          $region386: #{_clop_apply.1} parent=383 // loop_header
            %s684 = sphi 0, %s688
            %p685 = scmp.ge.s32.totalorder %s684, 1
            %s689 = sphi %s671, %s671
            %s690 = sphi %s672, %s672
          $region387: #{_clop_apply.1} parent=383 // loop_header_branch
            %687 = sbr.rel (%p685) target = $region391
          $region388: #{_clop_apply.1} parent=383 // loop_body
            %v691 = vld [vmem:[%s689] sm:%s682]
            %692 = vst [vmem:[%s690] sm:%s682] %v691
          $region389: #{_clop_apply.1} parent=383 // loop_footer
            %s688 = sadd.s32 1, %s684
          $region390: #{_clop_apply.1} parent=383 // loop_footer_branch
            %683 = sbr.rel target = $region386
          $region391: #{_clop_apply.1} parent=383 // loop_exit
            _
        $region384: #{_clop_apply.1} parent=15 // pred_fallthru
          _
        // Predicated region
        $region403: #{_clop_apply.1} parent=15 // pred_check
          _
        $region404: #{_clop_apply.1} parent=15 // pred_check_branch
          %716 = sbr.rel (0) target = $region406
        $region405: #{_clop_apply.1} parent=15 // pred_region
          %717 = vsyncadd %s673, 16
        $region406: #{_clop_apply.1} parent=15 // pred_fallthru
          _
        %s718 = sadd.s32 %s83, 13
        %s719 = sld [smem:[#allocation5 + %s718]]
        %s720 = scalar_lea.vmem %s1, %s719
        %s721 = scalar_lea.vmem [#allocation2], 13
        %s722 = scalar_lea.sflag [#allocation3], 13
        %p724 = scmp.lt.u32.totalorder 1, 8
        %p725 = pneg %p724
        // Predicated region
        $region407: #{_clop_apply.1} parent=15 // pred_check
          _
        $region408: #{_clop_apply.1} parent=15 // pred_check_branch
          %727 = sbr.rel (%p724) target = $region410
        $region409: #{_clop_apply.1} parent=15 // pred_region
          %s742 = sand.u32 1, 7
          %p743 = scmp.eq.s32.totalorder %s742, 0
          %p744 = pneg %p743
          // Predicated region
          $region422: #{_clop_apply.1} parent=409 // pred_check
            _
          $region423: #{_clop_apply.1} parent=409 // pred_check_branch
            %746 = sbr.rel (%p743) target = $region425
          $region424: #{_clop_apply.1} parent=409 // pred_region
            %s747 = sand.u32 1, 7
            %s748 = ssub.s32 1, %s747
            %s749 = scalar_lea.vmem %s720, %s748
            %s750 = ssub.s32 1, %s747
            %s751 = scalar_lea.vmem %s721, %s750 [#allocation2]
            %s752 = sshllo.u32 0, %s747
            loop: start=0, step=1, limit=1
            $region426: #{_clop_apply.1} parent=424 // loop_pre_header
              _
            $region427: #{_clop_apply.1} parent=424 // loop_header
              %s754 = sphi 0, %s758
              %p755 = scmp.ge.s32.totalorder %s754, 1
              %s759 = sphi %s749, %s749
              %s760 = sphi %s751, %s751
            $region428: #{_clop_apply.1} parent=424 // loop_header_branch
              %757 = sbr.rel (%p755) target = $region432
            $region429: #{_clop_apply.1} parent=424 // loop_body
              %v761 = vld [vmem:[%s759] sm:%s752]
              %762 = vst [vmem:[%s760] sm:%s752] %v761
            $region430: #{_clop_apply.1} parent=424 // loop_footer
              %s758 = sadd.s32 1, %s754
            $region431: #{_clop_apply.1} parent=424 // loop_footer_branch
              %753 = sbr.rel target = $region427
            $region432: #{_clop_apply.1} parent=424 // loop_exit
              _
          $region425: #{_clop_apply.1} parent=409 // pred_fallthru
            _
        $region410: #{_clop_apply.1} parent=15 // pred_fallthru
          _
        // Predicated region
        $region411: #{_clop_apply.1} parent=15 // pred_check
          %p728 = pneg %p724
        $region412: #{_clop_apply.1} parent=15 // pred_check_branch
          %730 = sbr.rel (%p728) target = $region414
        $region413: #{_clop_apply.1} parent=15 // pred_region
          %s731 = sshllo.u32 0, 1
          loop: start=0, step=1, limit=1
          $region415: #{_clop_apply.1} parent=413 // loop_pre_header
            _
          $region416: #{_clop_apply.1} parent=413 // loop_header
            %s733 = sphi 0, %s737
            %p734 = scmp.ge.s32.totalorder %s733, 1
            %s738 = sphi %s720, %s720
            %s739 = sphi %s721, %s721
          $region417: #{_clop_apply.1} parent=413 // loop_header_branch
            %736 = sbr.rel (%p734) target = $region421
          $region418: #{_clop_apply.1} parent=413 // loop_body
            %v740 = vld [vmem:[%s738] sm:%s731]
            %741 = vst [vmem:[%s739] sm:%s731] %v740
          $region419: #{_clop_apply.1} parent=413 // loop_footer
            %s737 = sadd.s32 1, %s733
          $region420: #{_clop_apply.1} parent=413 // loop_footer_branch
            %732 = sbr.rel target = $region416
          $region421: #{_clop_apply.1} parent=413 // loop_exit
            _
        $region414: #{_clop_apply.1} parent=15 // pred_fallthru
          _
        // Predicated region
        $region433: #{_clop_apply.1} parent=15 // pred_check
          _
        $region434: #{_clop_apply.1} parent=15 // pred_check_branch
          %765 = sbr.rel (0) target = $region436
        $region435: #{_clop_apply.1} parent=15 // pred_region
          %766 = vsyncadd %s722, 16
        $region436: #{_clop_apply.1} parent=15 // pred_fallthru
          _
        %s767 = sadd.s32 %s83, 14
        %s768 = sld [smem:[#allocation5 + %s767]]
        %s769 = scalar_lea.vmem %s1, %s768
        %s770 = scalar_lea.vmem [#allocation2], 14
        %s771 = scalar_lea.sflag [#allocation3], 14
        %p773 = scmp.lt.u32.totalorder 1, 8
        %p774 = pneg %p773
        // Predicated region
        $region437: #{_clop_apply.1} parent=15 // pred_check
          _
        $region438: #{_clop_apply.1} parent=15 // pred_check_branch
          %776 = sbr.rel (%p773) target = $region440
        $region439: #{_clop_apply.1} parent=15 // pred_region
          %s791 = sand.u32 1, 7
          %p792 = scmp.eq.s32.totalorder %s791, 0
          %p793 = pneg %p792
          // Predicated region
          $region452: #{_clop_apply.1} parent=439 // pred_check
            _
          $region453: #{_clop_apply.1} parent=439 // pred_check_branch
            %795 = sbr.rel (%p792) target = $region455
          $region454: #{_clop_apply.1} parent=439 // pred_region
            %s796 = sand.u32 1, 7
            %s797 = ssub.s32 1, %s796
            %s798 = scalar_lea.vmem %s769, %s797
            %s799 = ssub.s32 1, %s796
            %s800 = scalar_lea.vmem %s770, %s799 [#allocation2]
            %s801 = sshllo.u32 0, %s796
            loop: start=0, step=1, limit=1
            $region456: #{_clop_apply.1} parent=454 // loop_pre_header
              _
            $region457: #{_clop_apply.1} parent=454 // loop_header
              %s803 = sphi 0, %s807
              %p804 = scmp.ge.s32.totalorder %s803, 1
              %s808 = sphi %s798, %s798
              %s809 = sphi %s800, %s800
            $region458: #{_clop_apply.1} parent=454 // loop_header_branch
              %806 = sbr.rel (%p804) target = $region462
            $region459: #{_clop_apply.1} parent=454 // loop_body
              %v810 = vld [vmem:[%s808] sm:%s801]
              %811 = vst [vmem:[%s809] sm:%s801] %v810
            $region460: #{_clop_apply.1} parent=454 // loop_footer
              %s807 = sadd.s32 1, %s803
            $region461: #{_clop_apply.1} parent=454 // loop_footer_branch
              %802 = sbr.rel target = $region457
            $region462: #{_clop_apply.1} parent=454 // loop_exit
              _
          $region455: #{_clop_apply.1} parent=439 // pred_fallthru
            _
        $region440: #{_clop_apply.1} parent=15 // pred_fallthru
          _
        // Predicated region
        $region441: #{_clop_apply.1} parent=15 // pred_check
          %p777 = pneg %p773
        $region442: #{_clop_apply.1} parent=15 // pred_check_branch
          %779 = sbr.rel (%p777) target = $region444
        $region443: #{_clop_apply.1} parent=15 // pred_region
          %s780 = sshllo.u32 0, 1
          loop: start=0, step=1, limit=1
          $region445: #{_clop_apply.1} parent=443 // loop_pre_header
            _
          $region446: #{_clop_apply.1} parent=443 // loop_header
            %s782 = sphi 0, %s786
            %p783 = scmp.ge.s32.totalorder %s782, 1
            %s787 = sphi %s769, %s769
            %s788 = sphi %s770, %s770
          $region447: #{_clop_apply.1} parent=443 // loop_header_branch
            %785 = sbr.rel (%p783) target = $region451
          $region448: #{_clop_apply.1} parent=443 // loop_body
            %v789 = vld [vmem:[%s787] sm:%s780]
            %790 = vst [vmem:[%s788] sm:%s780] %v789
          $region449: #{_clop_apply.1} parent=443 // loop_footer
            %s786 = sadd.s32 1, %s782
          $region450: #{_clop_apply.1} parent=443 // loop_footer_branch
            %781 = sbr.rel target = $region446
          $region451: #{_clop_apply.1} parent=443 // loop_exit
            _
        $region444: #{_clop_apply.1} parent=15 // pred_fallthru
          _
        // Predicated region
        $region463: #{_clop_apply.1} parent=15 // pred_check
          _
        $region464: #{_clop_apply.1} parent=15 // pred_check_branch
          %814 = sbr.rel (0) target = $region466
        $region465: #{_clop_apply.1} parent=15 // pred_region
          %815 = vsyncadd %s771, 16
        $region466: #{_clop_apply.1} parent=15 // pred_fallthru
          _
        %s816 = sadd.s32 %s83, 15
        %s817 = sld [smem:[#allocation5 + %s816]]
        %s818 = scalar_lea.vmem %s1, %s817
        %s819 = scalar_lea.vmem [#allocation2], 15
        %s820 = scalar_lea.sflag [#allocation3], 15
        %p822 = scmp.lt.u32.totalorder 1, 8
        %p823 = pneg %p822
        // Predicated region
        $region467: #{_clop_apply.1} parent=15 // pred_check
          _
        $region468: #{_clop_apply.1} parent=15 // pred_check_branch
          %825 = sbr.rel (%p822) target = $region470
        $region469: #{_clop_apply.1} parent=15 // pred_region
          %s840 = sand.u32 1, 7
          %p841 = scmp.eq.s32.totalorder %s840, 0
          %p842 = pneg %p841
          // Predicated region
          $region482: #{_clop_apply.1} parent=469 // pred_check
            _
          $region483: #{_clop_apply.1} parent=469 // pred_check_branch
            %844 = sbr.rel (%p841) target = $region485
          $region484: #{_clop_apply.1} parent=469 // pred_region
            %s845 = sand.u32 1, 7
            %s846 = ssub.s32 1, %s845
            %s847 = scalar_lea.vmem %s818, %s846
            %s848 = ssub.s32 1, %s845
            %s849 = scalar_lea.vmem %s819, %s848 [#allocation2]
            %s850 = sshllo.u32 0, %s845
            loop: start=0, step=1, limit=1
            $region486: #{_clop_apply.1} parent=484 // loop_pre_header
              _
            $region487: #{_clop_apply.1} parent=484 // loop_header
              %s852 = sphi 0, %s856
              %p853 = scmp.ge.s32.totalorder %s852, 1
              %s857 = sphi %s847, %s847
              %s858 = sphi %s849, %s849
            $region488: #{_clop_apply.1} parent=484 // loop_header_branch
              %855 = sbr.rel (%p853) target = $region492
            $region489: #{_clop_apply.1} parent=484 // loop_body
              %v859 = vld [vmem:[%s857] sm:%s850]
              %860 = vst [vmem:[%s858] sm:%s850] %v859
            $region490: #{_clop_apply.1} parent=484 // loop_footer
              %s856 = sadd.s32 1, %s852
            $region491: #{_clop_apply.1} parent=484 // loop_footer_branch
              %851 = sbr.rel target = $region487
            $region492: #{_clop_apply.1} parent=484 // loop_exit
              _
          $region485: #{_clop_apply.1} parent=469 // pred_fallthru
            _
        $region470: #{_clop_apply.1} parent=15 // pred_fallthru
          _
        // Predicated region
        $region471: #{_clop_apply.1} parent=15 // pred_check
          %p826 = pneg %p822
        $region472: #{_clop_apply.1} parent=15 // pred_check_branch
          %828 = sbr.rel (%p826) target = $region474
        $region473: #{_clop_apply.1} parent=15 // pred_region
          %s829 = sshllo.u32 0, 1
          loop: start=0, step=1, limit=1
          $region475: #{_clop_apply.1} parent=473 // loop_pre_header
            _
          $region476: #{_clop_apply.1} parent=473 // loop_header
            %s831 = sphi 0, %s835
            %p832 = scmp.ge.s32.totalorder %s831, 1
            %s836 = sphi %s818, %s818
            %s837 = sphi %s819, %s819
          $region477: #{_clop_apply.1} parent=473 // loop_header_branch
            %834 = sbr.rel (%p832) target = $region481
          $region478: #{_clop_apply.1} parent=473 // loop_body
            %v838 = vld [vmem:[%s836] sm:%s829]
            %839 = vst [vmem:[%s837] sm:%s829] %v838
          $region479: #{_clop_apply.1} parent=473 // loop_footer
            %s835 = sadd.s32 1, %s831
          $region480: #{_clop_apply.1} parent=473 // loop_footer_branch
            %830 = sbr.rel target = $region476
          $region481: #{_clop_apply.1} parent=473 // loop_exit
            _
        $region474: #{_clop_apply.1} parent=15 // pred_fallthru
          _
        // Predicated region
        $region493: #{_clop_apply.1} parent=15 // pred_check
          _
        $region494: #{_clop_apply.1} parent=15 // pred_check_branch
          %863 = sbr.rel (0) target = $region496
        $region495: #{_clop_apply.1} parent=15 // pred_region
          %864 = vsyncadd %s820, 16
        $region496: #{_clop_apply.1} parent=15 // pred_fallthru
          _
        %s865 = sadd.s32 %s83, 16
        %s866 = sld [smem:[#allocation5 + %s865]]
        %s867 = scalar_lea.vmem %s1, %s866
        %s868 = scalar_lea.vmem [#allocation2], 16
        %s869 = scalar_lea.sflag [#allocation3], 16
        %p871 = scmp.lt.u32.totalorder 1, 8
        %p872 = pneg %p871
        // Predicated region
        $region497: #{_clop_apply.1} parent=15 // pred_check
          _
        $region498: #{_clop_apply.1} parent=15 // pred_check_branch
          %874 = sbr.rel (%p871) target = $region500
        $region499: #{_clop_apply.1} parent=15 // pred_region
          %s889 = sand.u32 1, 7
          %p890 = scmp.eq.s32.totalorder %s889, 0
          %p891 = pneg %p890
          // Predicated region
          $region512: #{_clop_apply.1} parent=499 // pred_check
            _
          $region513: #{_clop_apply.1} parent=499 // pred_check_branch
            %893 = sbr.rel (%p890) target = $region515
          $region514: #{_clop_apply.1} parent=499 // pred_region
            %s894 = sand.u32 1, 7
            %s895 = ssub.s32 1, %s894
            %s896 = scalar_lea.vmem %s867, %s895
            %s897 = ssub.s32 1, %s894
            %s898 = scalar_lea.vmem %s868, %s897 [#allocation2]
            %s899 = sshllo.u32 0, %s894
            loop: start=0, step=1, limit=1
            $region516: #{_clop_apply.1} parent=514 // loop_pre_header
              _
            $region517: #{_clop_apply.1} parent=514 // loop_header
              %s901 = sphi 0, %s905
              %p902 = scmp.ge.s32.totalorder %s901, 1
              %s906 = sphi %s896, %s896
              %s907 = sphi %s898, %s898
            $region518: #{_clop_apply.1} parent=514 // loop_header_branch
              %904 = sbr.rel (%p902) target = $region522
            $region519: #{_clop_apply.1} parent=514 // loop_body
              %v908 = vld [vmem:[%s906] sm:%s899]
              %909 = vst [vmem:[%s907] sm:%s899] %v908
            $region520: #{_clop_apply.1} parent=514 // loop_footer
              %s905 = sadd.s32 1, %s901
            $region521: #{_clop_apply.1} parent=514 // loop_footer_branch
              %900 = sbr.rel target = $region517
            $region522: #{_clop_apply.1} parent=514 // loop_exit
              _
          $region515: #{_clop_apply.1} parent=499 // pred_fallthru
            _
        $region500: #{_clop_apply.1} parent=15 // pred_fallthru
          _
        // Predicated region
        $region501: #{_clop_apply.1} parent=15 // pred_check
          %p875 = pneg %p871
        $region502: #{_clop_apply.1} parent=15 // pred_check_branch
          %877 = sbr.rel (%p875) target = $region504
        $region503: #{_clop_apply.1} parent=15 // pred_region
          %s878 = sshllo.u32 0, 1
          loop: start=0, step=1, limit=1
          $region505: #{_clop_apply.1} parent=503 // loop_pre_header
            _
          $region506: #{_clop_apply.1} parent=503 // loop_header
            %s880 = sphi 0, %s884
            %p881 = scmp.ge.s32.totalorder %s880, 1
            %s885 = sphi %s867, %s867
            %s886 = sphi %s868, %s868
          $region507: #{_clop_apply.1} parent=503 // loop_header_branch
            %883 = sbr.rel (%p881) target = $region511
          $region508: #{_clop_apply.1} parent=503 // loop_body
            %v887 = vld [vmem:[%s885] sm:%s878]
            %888 = vst [vmem:[%s886] sm:%s878] %v887
          $region509: #{_clop_apply.1} parent=503 // loop_footer
            %s884 = sadd.s32 1, %s880
          $region510: #{_clop_apply.1} parent=503 // loop_footer_branch
            %879 = sbr.rel target = $region506
          $region511: #{_clop_apply.1} parent=503 // loop_exit
            _
        $region504: #{_clop_apply.1} parent=15 // pred_fallthru
          _
        // Predicated region
        $region523: #{_clop_apply.1} parent=15 // pred_check
          _
        $region524: #{_clop_apply.1} parent=15 // pred_check_branch
          %912 = sbr.rel (0) target = $region526
        $region525: #{_clop_apply.1} parent=15 // pred_region
          %913 = vsyncadd %s869, 16
        $region526: #{_clop_apply.1} parent=15 // pred_fallthru
          _
        %s914 = sadd.s32 %s83, 17
        %s915 = sld [smem:[#allocation5 + %s914]]
        %s916 = scalar_lea.vmem %s1, %s915
        %s917 = scalar_lea.vmem [#allocation2], 17
        %s918 = scalar_lea.sflag [#allocation3], 17
        %p920 = scmp.lt.u32.totalorder 1, 8
        %p921 = pneg %p920
        // Predicated region
        $region527: #{_clop_apply.1} parent=15 // pred_check
          _
        $region528: #{_clop_apply.1} parent=15 // pred_check_branch
          %923 = sbr.rel (%p920) target = $region530
        $region529: #{_clop_apply.1} parent=15 // pred_region
          %s938 = sand.u32 1, 7
          %p939 = scmp.eq.s32.totalorder %s938, 0
          %p940 = pneg %p939
          // Predicated region
          $region542: #{_clop_apply.1} parent=529 // pred_check
            _
          $region543: #{_clop_apply.1} parent=529 // pred_check_branch
            %942 = sbr.rel (%p939) target = $region545
          $region544: #{_clop_apply.1} parent=529 // pred_region
            %s943 = sand.u32 1, 7
            %s944 = ssub.s32 1, %s943
            %s945 = scalar_lea.vmem %s916, %s944
            %s946 = ssub.s32 1, %s943
            %s947 = scalar_lea.vmem %s917, %s946 [#allocation2]
            %s948 = sshllo.u32 0, %s943
            loop: start=0, step=1, limit=1
            $region546: #{_clop_apply.1} parent=544 // loop_pre_header
              _
            $region547: #{_clop_apply.1} parent=544 // loop_header
              %s950 = sphi 0, %s954
              %p951 = scmp.ge.s32.totalorder %s950, 1
              %s955 = sphi %s945, %s945
              %s956 = sphi %s947, %s947
            $region548: #{_clop_apply.1} parent=544 // loop_header_branch
              %953 = sbr.rel (%p951) target = $region552
            $region549: #{_clop_apply.1} parent=544 // loop_body
              %v957 = vld [vmem:[%s955] sm:%s948]
              %958 = vst [vmem:[%s956] sm:%s948] %v957
            $region550: #{_clop_apply.1} parent=544 // loop_footer
              %s954 = sadd.s32 1, %s950
            $region551: #{_clop_apply.1} parent=544 // loop_footer_branch
              %949 = sbr.rel target = $region547
            $region552: #{_clop_apply.1} parent=544 // loop_exit
              _
          $region545: #{_clop_apply.1} parent=529 // pred_fallthru
            _
        $region530: #{_clop_apply.1} parent=15 // pred_fallthru
          _
        // Predicated region
        $region531: #{_clop_apply.1} parent=15 // pred_check
          %p924 = pneg %p920
        $region532: #{_clop_apply.1} parent=15 // pred_check_branch
          %926 = sbr.rel (%p924) target = $region534
        $region533: #{_clop_apply.1} parent=15 // pred_region
          %s927 = sshllo.u32 0, 1
          loop: start=0, step=1, limit=1
          $region535: #{_clop_apply.1} parent=533 // loop_pre_header
            _
          $region536: #{_clop_apply.1} parent=533 // loop_header
            %s929 = sphi 0, %s933
            %p930 = scmp.ge.s32.totalorder %s929, 1
            %s934 = sphi %s916, %s916
            %s935 = sphi %s917, %s917
          $region537: #{_clop_apply.1} parent=533 // loop_header_branch
            %932 = sbr.rel (%p930) target = $region541
          $region538: #{_clop_apply.1} parent=533 // loop_body
            %v936 = vld [vmem:[%s934] sm:%s927]
            %937 = vst [vmem:[%s935] sm:%s927] %v936
          $region539: #{_clop_apply.1} parent=533 // loop_footer
            %s933 = sadd.s32 1, %s929
          $region540: #{_clop_apply.1} parent=533 // loop_footer_branch
            %928 = sbr.rel target = $region536
          $region541: #{_clop_apply.1} parent=533 // loop_exit
            _
        $region534: #{_clop_apply.1} parent=15 // pred_fallthru
          _
        // Predicated region
        $region553: #{_clop_apply.1} parent=15 // pred_check
          _
        $region554: #{_clop_apply.1} parent=15 // pred_check_branch
          %961 = sbr.rel (0) target = $region556
        $region555: #{_clop_apply.1} parent=15 // pred_region
          %962 = vsyncadd %s918, 16
        $region556: #{_clop_apply.1} parent=15 // pred_fallthru
          _
        %s963 = sadd.s32 %s83, 18
        %s964 = sld [smem:[#allocation5 + %s963]]
        %s965 = scalar_lea.vmem %s1, %s964
        %s966 = scalar_lea.vmem [#allocation2], 18
        %s967 = scalar_lea.sflag [#allocation3], 18
        %p969 = scmp.lt.u32.totalorder 1, 8
        %p970 = pneg %p969
        // Predicated region
        $region557: #{_clop_apply.1} parent=15 // pred_check
          _
        $region558: #{_clop_apply.1} parent=15 // pred_check_branch
          %972 = sbr.rel (%p969) target = $region560
        $region559: #{_clop_apply.1} parent=15 // pred_region
          %s987 = sand.u32 1, 7
          %p988 = scmp.eq.s32.totalorder %s987, 0
          %p989 = pneg %p988
          // Predicated region
          $region572: #{_clop_apply.1} parent=559 // pred_check
            _
          $region573: #{_clop_apply.1} parent=559 // pred_check_branch
            %991 = sbr.rel (%p988) target = $region575
          $region574: #{_clop_apply.1} parent=559 // pred_region
            %s992 = sand.u32 1, 7
            %s993 = ssub.s32 1, %s992
            %s994 = scalar_lea.vmem %s965, %s993
            %s995 = ssub.s32 1, %s992
            %s996 = scalar_lea.vmem %s966, %s995 [#allocation2]
            %s997 = sshllo.u32 0, %s992
            loop: start=0, step=1, limit=1
            $region576: #{_clop_apply.1} parent=574 // loop_pre_header
              _
            $region577: #{_clop_apply.1} parent=574 // loop_header
              %s999 = sphi 0, %s1003
              %p1000 = scmp.ge.s32.totalorder %s999, 1
              %s1004 = sphi %s994, %s994
              %s1005 = sphi %s996, %s996
            $region578: #{_clop_apply.1} parent=574 // loop_header_branch
              %1002 = sbr.rel (%p1000) target = $region582
            $region579: #{_clop_apply.1} parent=574 // loop_body
              %v1006 = vld [vmem:[%s1004] sm:%s997]
              %1007 = vst [vmem:[%s1005] sm:%s997] %v1006
            $region580: #{_clop_apply.1} parent=574 // loop_footer
              %s1003 = sadd.s32 1, %s999
            $region581: #{_clop_apply.1} parent=574 // loop_footer_branch
              %998 = sbr.rel target = $region577
            $region582: #{_clop_apply.1} parent=574 // loop_exit
              _
          $region575: #{_clop_apply.1} parent=559 // pred_fallthru
            _
        $region560: #{_clop_apply.1} parent=15 // pred_fallthru
          _
        // Predicated region
        $region561: #{_clop_apply.1} parent=15 // pred_check
          %p973 = pneg %p969
        $region562: #{_clop_apply.1} parent=15 // pred_check_branch
          %975 = sbr.rel (%p973) target = $region564
        $region563: #{_clop_apply.1} parent=15 // pred_region
          %s976 = sshllo.u32 0, 1
          loop: start=0, step=1, limit=1
          $region565: #{_clop_apply.1} parent=563 // loop_pre_header
            _
          $region566: #{_clop_apply.1} parent=563 // loop_header
            %s978 = sphi 0, %s982
            %p979 = scmp.ge.s32.totalorder %s978, 1
            %s983 = sphi %s965, %s965
            %s984 = sphi %s966, %s966
          $region567: #{_clop_apply.1} parent=563 // loop_header_branch
            %981 = sbr.rel (%p979) target = $region571
          $region568: #{_clop_apply.1} parent=563 // loop_body
            %v985 = vld [vmem:[%s983] sm:%s976]
            %986 = vst [vmem:[%s984] sm:%s976] %v985
          $region569: #{_clop_apply.1} parent=563 // loop_footer
            %s982 = sadd.s32 1, %s978
          $region570: #{_clop_apply.1} parent=563 // loop_footer_branch
            %977 = sbr.rel target = $region566
          $region571: #{_clop_apply.1} parent=563 // loop_exit
            _
        $region564: #{_clop_apply.1} parent=15 // pred_fallthru
          _
        // Predicated region
        $region583: #{_clop_apply.1} parent=15 // pred_check
          _
        $region584: #{_clop_apply.1} parent=15 // pred_check_branch
          %1010 = sbr.rel (0) target = $region586
        $region585: #{_clop_apply.1} parent=15 // pred_region
          %1011 = vsyncadd %s967, 16
        $region586: #{_clop_apply.1} parent=15 // pred_fallthru
          _
        %s1012 = sadd.s32 %s83, 19
        %s1013 = sld [smem:[#allocation5 + %s1012]]
        %s1014 = scalar_lea.vmem %s1, %s1013
        %s1015 = scalar_lea.vmem [#allocation2], 19
        %s1016 = scalar_lea.sflag [#allocation3], 19
        %p1018 = scmp.lt.u32.totalorder 1, 8
        %p1019 = pneg %p1018
        // Predicated region
        $region587: #{_clop_apply.1} parent=15 // pred_check
          _
        $region588: #{_clop_apply.1} parent=15 // pred_check_branch
          %1021 = sbr.rel (%p1018) target = $region590
        $region589: #{_clop_apply.1} parent=15 // pred_region
          %s1036 = sand.u32 1, 7
          %p1037 = scmp.eq.s32.totalorder %s1036, 0
          %p1038 = pneg %p1037
          // Predicated region
          $region602: #{_clop_apply.1} parent=589 // pred_check
            _
          $region603: #{_clop_apply.1} parent=589 // pred_check_branch
            %1040 = sbr.rel (%p1037) target = $region605
          $region604: #{_clop_apply.1} parent=589 // pred_region
            %s1041 = sand.u32 1, 7
            %s1042 = ssub.s32 1, %s1041
            %s1043 = scalar_lea.vmem %s1014, %s1042
            %s1044 = ssub.s32 1, %s1041
            %s1045 = scalar_lea.vmem %s1015, %s1044 [#allocation2]
            %s1046 = sshllo.u32 0, %s1041
            loop: start=0, step=1, limit=1
            $region606: #{_clop_apply.1} parent=604 // loop_pre_header
              _
            $region607: #{_clop_apply.1} parent=604 // loop_header
              %s1048 = sphi 0, %s1052
              %p1049 = scmp.ge.s32.totalorder %s1048, 1
              %s1053 = sphi %s1043, %s1043
              %s1054 = sphi %s1045, %s1045
            $region608: #{_clop_apply.1} parent=604 // loop_header_branch
              %1051 = sbr.rel (%p1049) target = $region612
            $region609: #{_clop_apply.1} parent=604 // loop_body
              %v1055 = vld [vmem:[%s1053] sm:%s1046]
              %1056 = vst [vmem:[%s1054] sm:%s1046] %v1055
            $region610: #{_clop_apply.1} parent=604 // loop_footer
              %s1052 = sadd.s32 1, %s1048
            $region611: #{_clop_apply.1} parent=604 // loop_footer_branch
              %1047 = sbr.rel target = $region607
            $region612: #{_clop_apply.1} parent=604 // loop_exit
              _
          $region605: #{_clop_apply.1} parent=589 // pred_fallthru
            _
        $region590: #{_clop_apply.1} parent=15 // pred_fallthru
          _
        // Predicated region
        $region591: #{_clop_apply.1} parent=15 // pred_check
          %p1022 = pneg %p1018
        $region592: #{_clop_apply.1} parent=15 // pred_check_branch
          %1024 = sbr.rel (%p1022) target = $region594
        $region593: #{_clop_apply.1} parent=15 // pred_region
          %s1025 = sshllo.u32 0, 1
          loop: start=0, step=1, limit=1
          $region595: #{_clop_apply.1} parent=593 // loop_pre_header
            _
          $region596: #{_clop_apply.1} parent=593 // loop_header
            %s1027 = sphi 0, %s1031
            %p1028 = scmp.ge.s32.totalorder %s1027, 1
            %s1032 = sphi %s1014, %s1014
            %s1033 = sphi %s1015, %s1015
          $region597: #{_clop_apply.1} parent=593 // loop_header_branch
            %1030 = sbr.rel (%p1028) target = $region601
          $region598: #{_clop_apply.1} parent=593 // loop_body
            %v1034 = vld [vmem:[%s1032] sm:%s1025]
            %1035 = vst [vmem:[%s1033] sm:%s1025] %v1034
          $region599: #{_clop_apply.1} parent=593 // loop_footer
            %s1031 = sadd.s32 1, %s1027
          $region600: #{_clop_apply.1} parent=593 // loop_footer_branch
            %1026 = sbr.rel target = $region596
          $region601: #{_clop_apply.1} parent=593 // loop_exit
            _
        $region594: #{_clop_apply.1} parent=15 // pred_fallthru
          _
        // Predicated region
        $region613: #{_clop_apply.1} parent=15 // pred_check
          _
        $region614: #{_clop_apply.1} parent=15 // pred_check_branch
          %1059 = sbr.rel (0) target = $region616
        $region615: #{_clop_apply.1} parent=15 // pred_region
          %1060 = vsyncadd %s1016, 16
        $region616: #{_clop_apply.1} parent=15 // pred_fallthru
          _
        %s1061 = sadd.s32 %s83, 20
        %s1062 = sld [smem:[#allocation5 + %s1061]]
        %s1063 = scalar_lea.vmem %s1, %s1062
        %s1064 = scalar_lea.vmem [#allocation2], 20
        %s1065 = scalar_lea.sflag [#allocation3], 20
        %p1067 = scmp.lt.u32.totalorder 1, 8
        %p1068 = pneg %p1067
        // Predicated region
        $region617: #{_clop_apply.1} parent=15 // pred_check
          _
        $region618: #{_clop_apply.1} parent=15 // pred_check_branch
          %1070 = sbr.rel (%p1067) target = $region620
        $region619: #{_clop_apply.1} parent=15 // pred_region
          %s1085 = sand.u32 1, 7
          %p1086 = scmp.eq.s32.totalorder %s1085, 0
          %p1087 = pneg %p1086
          // Predicated region
          $region632: #{_clop_apply.1} parent=619 // pred_check
            _
          $region633: #{_clop_apply.1} parent=619 // pred_check_branch
            %1089 = sbr.rel (%p1086) target = $region635
          $region634: #{_clop_apply.1} parent=619 // pred_region
            %s1090 = sand.u32 1, 7
            %s1091 = ssub.s32 1, %s1090
            %s1092 = scalar_lea.vmem %s1063, %s1091
            %s1093 = ssub.s32 1, %s1090
            %s1094 = scalar_lea.vmem %s1064, %s1093 [#allocation2]
            %s1095 = sshllo.u32 0, %s1090
            loop: start=0, step=1, limit=1
            $region636: #{_clop_apply.1} parent=634 // loop_pre_header
              _
            $region637: #{_clop_apply.1} parent=634 // loop_header
              %s1097 = sphi 0, %s1101
              %p1098 = scmp.ge.s32.totalorder %s1097, 1
              %s1102 = sphi %s1092, %s1092
              %s1103 = sphi %s1094, %s1094
            $region638: #{_clop_apply.1} parent=634 // loop_header_branch
              %1100 = sbr.rel (%p1098) target = $region642
            $region639: #{_clop_apply.1} parent=634 // loop_body
              %v1104 = vld [vmem:[%s1102] sm:%s1095]
              %1105 = vst [vmem:[%s1103] sm:%s1095] %v1104
            $region640: #{_clop_apply.1} parent=634 // loop_footer
              %s1101 = sadd.s32 1, %s1097
            $region641: #{_clop_apply.1} parent=634 // loop_footer_branch
              %1096 = sbr.rel target = $region637
            $region642: #{_clop_apply.1} parent=634 // loop_exit
              _
          $region635: #{_clop_apply.1} parent=619 // pred_fallthru
            _
        $region620: #{_clop_apply.1} parent=15 // pred_fallthru
          _
        // Predicated region
        $region621: #{_clop_apply.1} parent=15 // pred_check
          %p1071 = pneg %p1067
        $region622: #{_clop_apply.1} parent=15 // pred_check_branch
          %1073 = sbr.rel (%p1071) target = $region624
        $region623: #{_clop_apply.1} parent=15 // pred_region
          %s1074 = sshllo.u32 0, 1
          loop: start=0, step=1, limit=1
          $region625: #{_clop_apply.1} parent=623 // loop_pre_header
            _
          $region626: #{_clop_apply.1} parent=623 // loop_header
            %s1076 = sphi 0, %s1080
            %p1077 = scmp.ge.s32.totalorder %s1076, 1
            %s1081 = sphi %s1063, %s1063
            %s1082 = sphi %s1064, %s1064
          $region627: #{_clop_apply.1} parent=623 // loop_header_branch
            %1079 = sbr.rel (%p1077) target = $region631
          $region628: #{_clop_apply.1} parent=623 // loop_body
            %v1083 = vld [vmem:[%s1081] sm:%s1074]
            %1084 = vst [vmem:[%s1082] sm:%s1074] %v1083
          $region629: #{_clop_apply.1} parent=623 // loop_footer
            %s1080 = sadd.s32 1, %s1076
          $region630: #{_clop_apply.1} parent=623 // loop_footer_branch
            %1075 = sbr.rel target = $region626
          $region631: #{_clop_apply.1} parent=623 // loop_exit
            _
        $region624: #{_clop_apply.1} parent=15 // pred_fallthru
          _
        // Predicated region
        $region643: #{_clop_apply.1} parent=15 // pred_check
          _
        $region644: #{_clop_apply.1} parent=15 // pred_check_branch
          %1108 = sbr.rel (0) target = $region646
        $region645: #{_clop_apply.1} parent=15 // pred_region
          %1109 = vsyncadd %s1065, 16
        $region646: #{_clop_apply.1} parent=15 // pred_fallthru
          _
        %s1110 = sadd.s32 %s83, 21
        %s1111 = sld [smem:[#allocation5 + %s1110]]
        %s1112 = scalar_lea.vmem %s1, %s1111
        %s1113 = scalar_lea.vmem [#allocation2], 21
        %s1114 = scalar_lea.sflag [#allocation3], 21
        %p1116 = scmp.lt.u32.totalorder 1, 8
        %p1117 = pneg %p1116
        // Predicated region
        $region647: #{_clop_apply.1} parent=15 // pred_check
          _
        $region648: #{_clop_apply.1} parent=15 // pred_check_branch
          %1119 = sbr.rel (%p1116) target = $region650
        $region649: #{_clop_apply.1} parent=15 // pred_region
          %s1134 = sand.u32 1, 7
          %p1135 = scmp.eq.s32.totalorder %s1134, 0
          %p1136 = pneg %p1135
          // Predicated region
          $region662: #{_clop_apply.1} parent=649 // pred_check
            _
          $region663: #{_clop_apply.1} parent=649 // pred_check_branch
            %1138 = sbr.rel (%p1135) target = $region665
          $region664: #{_clop_apply.1} parent=649 // pred_region
            %s1139 = sand.u32 1, 7
            %s1140 = ssub.s32 1, %s1139
            %s1141 = scalar_lea.vmem %s1112, %s1140
            %s1142 = ssub.s32 1, %s1139
            %s1143 = scalar_lea.vmem %s1113, %s1142 [#allocation2]
            %s1144 = sshllo.u32 0, %s1139
            loop: start=0, step=1, limit=1
            $region666: #{_clop_apply.1} parent=664 // loop_pre_header
              _
            $region667: #{_clop_apply.1} parent=664 // loop_header
              %s1146 = sphi 0, %s1150
              %p1147 = scmp.ge.s32.totalorder %s1146, 1
              %s1151 = sphi %s1141, %s1141
              %s1152 = sphi %s1143, %s1143
            $region668: #{_clop_apply.1} parent=664 // loop_header_branch
              %1149 = sbr.rel (%p1147) target = $region672
            $region669: #{_clop_apply.1} parent=664 // loop_body
              %v1153 = vld [vmem:[%s1151] sm:%s1144]
              %1154 = vst [vmem:[%s1152] sm:%s1144] %v1153
            $region670: #{_clop_apply.1} parent=664 // loop_footer
              %s1150 = sadd.s32 1, %s1146
            $region671: #{_clop_apply.1} parent=664 // loop_footer_branch
              %1145 = sbr.rel target = $region667
            $region672: #{_clop_apply.1} parent=664 // loop_exit
              _
          $region665: #{_clop_apply.1} parent=649 // pred_fallthru
            _
        $region650: #{_clop_apply.1} parent=15 // pred_fallthru
          _
        // Predicated region
        $region651: #{_clop_apply.1} parent=15 // pred_check
          %p1120 = pneg %p1116
        $region652: #{_clop_apply.1} parent=15 // pred_check_branch
          %1122 = sbr.rel (%p1120) target = $region654
        $region653: #{_clop_apply.1} parent=15 // pred_region
          %s1123 = sshllo.u32 0, 1
          loop: start=0, step=1, limit=1
          $region655: #{_clop_apply.1} parent=653 // loop_pre_header
            _
          $region656: #{_clop_apply.1} parent=653 // loop_header
            %s1125 = sphi 0, %s1129
            %p1126 = scmp.ge.s32.totalorder %s1125, 1
            %s1130 = sphi %s1112, %s1112
            %s1131 = sphi %s1113, %s1113
          $region657: #{_clop_apply.1} parent=653 // loop_header_branch
            %1128 = sbr.rel (%p1126) target = $region661
          $region658: #{_clop_apply.1} parent=653 // loop_body
            %v1132 = vld [vmem:[%s1130] sm:%s1123]
            %1133 = vst [vmem:[%s1131] sm:%s1123] %v1132
          $region659: #{_clop_apply.1} parent=653 // loop_footer
            %s1129 = sadd.s32 1, %s1125
          $region660: #{_clop_apply.1} parent=653 // loop_footer_branch
            %1124 = sbr.rel target = $region656
          $region661: #{_clop_apply.1} parent=653 // loop_exit
            _
        $region654: #{_clop_apply.1} parent=15 // pred_fallthru
          _
        // Predicated region
        $region673: #{_clop_apply.1} parent=15 // pred_check
          _
        $region674: #{_clop_apply.1} parent=15 // pred_check_branch
          %1157 = sbr.rel (0) target = $region676
        $region675: #{_clop_apply.1} parent=15 // pred_region
          %1158 = vsyncadd %s1114, 16
        $region676: #{_clop_apply.1} parent=15 // pred_fallthru
          _
        %s1159 = sadd.s32 %s83, 22
        %s1160 = sld [smem:[#allocation5 + %s1159]]
        %s1161 = scalar_lea.vmem %s1, %s1160
        %s1162 = scalar_lea.vmem [#allocation2], 22
        %s1163 = scalar_lea.sflag [#allocation3], 22
        %p1165 = scmp.lt.u32.totalorder 1, 8
        %p1166 = pneg %p1165
        // Predicated region
        $region677: #{_clop_apply.1} parent=15 // pred_check
          _
        $region678: #{_clop_apply.1} parent=15 // pred_check_branch
          %1168 = sbr.rel (%p1165) target = $region680
        $region679: #{_clop_apply.1} parent=15 // pred_region
          %s1183 = sand.u32 1, 7
          %p1184 = scmp.eq.s32.totalorder %s1183, 0
          %p1185 = pneg %p1184
          // Predicated region
          $region692: #{_clop_apply.1} parent=679 // pred_check
            _
          $region693: #{_clop_apply.1} parent=679 // pred_check_branch
            %1187 = sbr.rel (%p1184) target = $region695
          $region694: #{_clop_apply.1} parent=679 // pred_region
            %s1188 = sand.u32 1, 7
            %s1189 = ssub.s32 1, %s1188
            %s1190 = scalar_lea.vmem %s1161, %s1189
            %s1191 = ssub.s32 1, %s1188
            %s1192 = scalar_lea.vmem %s1162, %s1191 [#allocation2]
            %s1193 = sshllo.u32 0, %s1188
            loop: start=0, step=1, limit=1
            $region696: #{_clop_apply.1} parent=694 // loop_pre_header
              _
            $region697: #{_clop_apply.1} parent=694 // loop_header
              %s1195 = sphi 0, %s1199
              %p1196 = scmp.ge.s32.totalorder %s1195, 1
              %s1200 = sphi %s1190, %s1190
              %s1201 = sphi %s1192, %s1192
            $region698: #{_clop_apply.1} parent=694 // loop_header_branch
              %1198 = sbr.rel (%p1196) target = $region702
            $region699: #{_clop_apply.1} parent=694 // loop_body
              %v1202 = vld [vmem:[%s1200] sm:%s1193]
              %1203 = vst [vmem:[%s1201] sm:%s1193] %v1202
            $region700: #{_clop_apply.1} parent=694 // loop_footer
              %s1199 = sadd.s32 1, %s1195
            $region701: #{_clop_apply.1} parent=694 // loop_footer_branch
              %1194 = sbr.rel target = $region697
            $region702: #{_clop_apply.1} parent=694 // loop_exit
              _
          $region695: #{_clop_apply.1} parent=679 // pred_fallthru
            _
        $region680: #{_clop_apply.1} parent=15 // pred_fallthru
          _
        // Predicated region
        $region681: #{_clop_apply.1} parent=15 // pred_check
          %p1169 = pneg %p1165
        $region682: #{_clop_apply.1} parent=15 // pred_check_branch
          %1171 = sbr.rel (%p1169) target = $region684
        $region683: #{_clop_apply.1} parent=15 // pred_region
          %s1172 = sshllo.u32 0, 1
          loop: start=0, step=1, limit=1
          $region685: #{_clop_apply.1} parent=683 // loop_pre_header
            _
          $region686: #{_clop_apply.1} parent=683 // loop_header
            %s1174 = sphi 0, %s1178
            %p1175 = scmp.ge.s32.totalorder %s1174, 1
            %s1179 = sphi %s1161, %s1161
            %s1180 = sphi %s1162, %s1162
          $region687: #{_clop_apply.1} parent=683 // loop_header_branch
            %1177 = sbr.rel (%p1175) target = $region691
          $region688: #{_clop_apply.1} parent=683 // loop_body
            %v1181 = vld [vmem:[%s1179] sm:%s1172]
            %1182 = vst [vmem:[%s1180] sm:%s1172] %v1181
          $region689: #{_clop_apply.1} parent=683 // loop_footer
            %s1178 = sadd.s32 1, %s1174
          $region690: #{_clop_apply.1} parent=683 // loop_footer_branch
            %1173 = sbr.rel target = $region686
          $region691: #{_clop_apply.1} parent=683 // loop_exit
            _
        $region684: #{_clop_apply.1} parent=15 // pred_fallthru
          _
        // Predicated region
        $region703: #{_clop_apply.1} parent=15 // pred_check
          _
        $region704: #{_clop_apply.1} parent=15 // pred_check_branch
          %1206 = sbr.rel (0) target = $region706
        $region705: #{_clop_apply.1} parent=15 // pred_region
          %1207 = vsyncadd %s1163, 16
        $region706: #{_clop_apply.1} parent=15 // pred_fallthru
          _
        %s1208 = sadd.s32 %s83, 23
        %s1209 = sld [smem:[#allocation5 + %s1208]]
        %s1210 = scalar_lea.vmem %s1, %s1209
        %s1211 = scalar_lea.vmem [#allocation2], 23
        %s1212 = scalar_lea.sflag [#allocation3], 23
        %p1214 = scmp.lt.u32.totalorder 1, 8
        %p1215 = pneg %p1214
        // Predicated region
        $region707: #{_clop_apply.1} parent=15 // pred_check
          _
        $region708: #{_clop_apply.1} parent=15 // pred_check_branch
          %1217 = sbr.rel (%p1214) target = $region710
        $region709: #{_clop_apply.1} parent=15 // pred_region
          %s1232 = sand.u32 1, 7
          %p1233 = scmp.eq.s32.totalorder %s1232, 0
          %p1234 = pneg %p1233
          // Predicated region
          $region722: #{_clop_apply.1} parent=709 // pred_check
            _
          $region723: #{_clop_apply.1} parent=709 // pred_check_branch
            %1236 = sbr.rel (%p1233) target = $region725
          $region724: #{_clop_apply.1} parent=709 // pred_region
            %s1237 = sand.u32 1, 7
            %s1238 = ssub.s32 1, %s1237
            %s1239 = scalar_lea.vmem %s1210, %s1238
            %s1240 = ssub.s32 1, %s1237
            %s1241 = scalar_lea.vmem %s1211, %s1240 [#allocation2]
            %s1242 = sshllo.u32 0, %s1237
            loop: start=0, step=1, limit=1
            $region726: #{_clop_apply.1} parent=724 // loop_pre_header
              _
            $region727: #{_clop_apply.1} parent=724 // loop_header
              %s1244 = sphi 0, %s1248
              %p1245 = scmp.ge.s32.totalorder %s1244, 1
              %s1249 = sphi %s1239, %s1239
              %s1250 = sphi %s1241, %s1241
            $region728: #{_clop_apply.1} parent=724 // loop_header_branch
              %1247 = sbr.rel (%p1245) target = $region732
            $region729: #{_clop_apply.1} parent=724 // loop_body
              %v1251 = vld [vmem:[%s1249] sm:%s1242]
              %1252 = vst [vmem:[%s1250] sm:%s1242] %v1251
            $region730: #{_clop_apply.1} parent=724 // loop_footer
              %s1248 = sadd.s32 1, %s1244
            $region731: #{_clop_apply.1} parent=724 // loop_footer_branch
              %1243 = sbr.rel target = $region727
            $region732: #{_clop_apply.1} parent=724 // loop_exit
              _
          $region725: #{_clop_apply.1} parent=709 // pred_fallthru
            _
        $region710: #{_clop_apply.1} parent=15 // pred_fallthru
          _
        // Predicated region
        $region711: #{_clop_apply.1} parent=15 // pred_check
          %p1218 = pneg %p1214
        $region712: #{_clop_apply.1} parent=15 // pred_check_branch
          %1220 = sbr.rel (%p1218) target = $region714
        $region713: #{_clop_apply.1} parent=15 // pred_region
          %s1221 = sshllo.u32 0, 1
          loop: start=0, step=1, limit=1
          $region715: #{_clop_apply.1} parent=713 // loop_pre_header
            _
          $region716: #{_clop_apply.1} parent=713 // loop_header
            %s1223 = sphi 0, %s1227
            %p1224 = scmp.ge.s32.totalorder %s1223, 1
            %s1228 = sphi %s1210, %s1210
            %s1229 = sphi %s1211, %s1211
          $region717: #{_clop_apply.1} parent=713 // loop_header_branch
            %1226 = sbr.rel (%p1224) target = $region721
          $region718: #{_clop_apply.1} parent=713 // loop_body
            %v1230 = vld [vmem:[%s1228] sm:%s1221]
            %1231 = vst [vmem:[%s1229] sm:%s1221] %v1230
          $region719: #{_clop_apply.1} parent=713 // loop_footer
            %s1227 = sadd.s32 1, %s1223
          $region720: #{_clop_apply.1} parent=713 // loop_footer_branch
            %1222 = sbr.rel target = $region716
          $region721: #{_clop_apply.1} parent=713 // loop_exit
            _
        $region714: #{_clop_apply.1} parent=15 // pred_fallthru
          _
        // Predicated region
        $region733: #{_clop_apply.1} parent=15 // pred_check
          _
        $region734: #{_clop_apply.1} parent=15 // pred_check_branch
          %1255 = sbr.rel (0) target = $region736
        $region735: #{_clop_apply.1} parent=15 // pred_region
          %1256 = vsyncadd %s1212, 16
        $region736: #{_clop_apply.1} parent=15 // pred_fallthru
          _
        %s1257 = sadd.s32 %s83, 24
        %s1258 = sld [smem:[#allocation5 + %s1257]]
        %s1259 = scalar_lea.vmem %s1, %s1258
        %s1260 = scalar_lea.vmem [#allocation2], 24
        %s1261 = scalar_lea.sflag [#allocation3], 24
        %p1263 = scmp.lt.u32.totalorder 1, 8
        %p1264 = pneg %p1263
        // Predicated region
        $region737: #{_clop_apply.1} parent=15 // pred_check
          _
        $region738: #{_clop_apply.1} parent=15 // pred_check_branch
          %1266 = sbr.rel (%p1263) target = $region740
        $region739: #{_clop_apply.1} parent=15 // pred_region
          %s1281 = sand.u32 1, 7
          %p1282 = scmp.eq.s32.totalorder %s1281, 0
          %p1283 = pneg %p1282
          // Predicated region
          $region752: #{_clop_apply.1} parent=739 // pred_check
            _
          $region753: #{_clop_apply.1} parent=739 // pred_check_branch
            %1285 = sbr.rel (%p1282) target = $region755
          $region754: #{_clop_apply.1} parent=739 // pred_region
            %s1286 = sand.u32 1, 7
            %s1287 = ssub.s32 1, %s1286
            %s1288 = scalar_lea.vmem %s1259, %s1287
            %s1289 = ssub.s32 1, %s1286
            %s1290 = scalar_lea.vmem %s1260, %s1289 [#allocation2]
            %s1291 = sshllo.u32 0, %s1286
            loop: start=0, step=1, limit=1
            $region756: #{_clop_apply.1} parent=754 // loop_pre_header
              _
            $region757: #{_clop_apply.1} parent=754 // loop_header
              %s1293 = sphi 0, %s1297
              %p1294 = scmp.ge.s32.totalorder %s1293, 1
              %s1298 = sphi %s1288, %s1288
              %s1299 = sphi %s1290, %s1290
            $region758: #{_clop_apply.1} parent=754 // loop_header_branch
              %1296 = sbr.rel (%p1294) target = $region762
            $region759: #{_clop_apply.1} parent=754 // loop_body
              %v1300 = vld [vmem:[%s1298] sm:%s1291]
              %1301 = vst [vmem:[%s1299] sm:%s1291] %v1300
            $region760: #{_clop_apply.1} parent=754 // loop_footer
              %s1297 = sadd.s32 1, %s1293
            $region761: #{_clop_apply.1} parent=754 // loop_footer_branch
              %1292 = sbr.rel target = $region757
            $region762: #{_clop_apply.1} parent=754 // loop_exit
              _
          $region755: #{_clop_apply.1} parent=739 // pred_fallthru
            _
        $region740: #{_clop_apply.1} parent=15 // pred_fallthru
          _
        // Predicated region
        $region741: #{_clop_apply.1} parent=15 // pred_check
          %p1267 = pneg %p1263
        $region742: #{_clop_apply.1} parent=15 // pred_check_branch
          %1269 = sbr.rel (%p1267) target = $region744
        $region743: #{_clop_apply.1} parent=15 // pred_region
          %s1270 = sshllo.u32 0, 1
          loop: start=0, step=1, limit=1
          $region745: #{_clop_apply.1} parent=743 // loop_pre_header
            _
          $region746: #{_clop_apply.1} parent=743 // loop_header
            %s1272 = sphi 0, %s1276
            %p1273 = scmp.ge.s32.totalorder %s1272, 1
            %s1277 = sphi %s1259, %s1259
            %s1278 = sphi %s1260, %s1260
          $region747: #{_clop_apply.1} parent=743 // loop_header_branch
            %1275 = sbr.rel (%p1273) target = $region751
          $region748: #{_clop_apply.1} parent=743 // loop_body
            %v1279 = vld [vmem:[%s1277] sm:%s1270]
            %1280 = vst [vmem:[%s1278] sm:%s1270] %v1279
          $region749: #{_clop_apply.1} parent=743 // loop_footer
            %s1276 = sadd.s32 1, %s1272
          $region750: #{_clop_apply.1} parent=743 // loop_footer_branch
            %1271 = sbr.rel target = $region746
          $region751: #{_clop_apply.1} parent=743 // loop_exit
            _
        $region744: #{_clop_apply.1} parent=15 // pred_fallthru
          _
        // Predicated region
        $region763: #{_clop_apply.1} parent=15 // pred_check
          _
        $region764: #{_clop_apply.1} parent=15 // pred_check_branch
          %1304 = sbr.rel (0) target = $region766
        $region765: #{_clop_apply.1} parent=15 // pred_region
          %1305 = vsyncadd %s1261, 16
        $region766: #{_clop_apply.1} parent=15 // pred_fallthru
          _
        %s1306 = sadd.s32 %s83, 25
        %s1307 = sld [smem:[#allocation5 + %s1306]]
        %s1308 = scalar_lea.vmem %s1, %s1307
        %s1309 = scalar_lea.vmem [#allocation2], 25
        %s1310 = scalar_lea.sflag [#allocation3], 25
        %p1312 = scmp.lt.u32.totalorder 1, 8
        %p1313 = pneg %p1312
        // Predicated region
        $region767: #{_clop_apply.1} parent=15 // pred_check
          _
        $region768: #{_clop_apply.1} parent=15 // pred_check_branch
          %1315 = sbr.rel (%p1312) target = $region770
        $region769: #{_clop_apply.1} parent=15 // pred_region
          %s1330 = sand.u32 1, 7
          %p1331 = scmp.eq.s32.totalorder %s1330, 0
          %p1332 = pneg %p1331
          // Predicated region
          $region782: #{_clop_apply.1} parent=769 // pred_check
            _
          $region783: #{_clop_apply.1} parent=769 // pred_check_branch
            %1334 = sbr.rel (%p1331) target = $region785
          $region784: #{_clop_apply.1} parent=769 // pred_region
            %s1335 = sand.u32 1, 7
            %s1336 = ssub.s32 1, %s1335
            %s1337 = scalar_lea.vmem %s1308, %s1336
            %s1338 = ssub.s32 1, %s1335
            %s1339 = scalar_lea.vmem %s1309, %s1338 [#allocation2]
            %s1340 = sshllo.u32 0, %s1335
            loop: start=0, step=1, limit=1
            $region786: #{_clop_apply.1} parent=784 // loop_pre_header
              _
            $region787: #{_clop_apply.1} parent=784 // loop_header
              %s1342 = sphi 0, %s1346
              %p1343 = scmp.ge.s32.totalorder %s1342, 1
              %s1347 = sphi %s1337, %s1337
              %s1348 = sphi %s1339, %s1339
            $region788: #{_clop_apply.1} parent=784 // loop_header_branch
              %1345 = sbr.rel (%p1343) target = $region792
            $region789: #{_clop_apply.1} parent=784 // loop_body
              %v1349 = vld [vmem:[%s1347] sm:%s1340]
              %1350 = vst [vmem:[%s1348] sm:%s1340] %v1349
            $region790: #{_clop_apply.1} parent=784 // loop_footer
              %s1346 = sadd.s32 1, %s1342
            $region791: #{_clop_apply.1} parent=784 // loop_footer_branch
              %1341 = sbr.rel target = $region787
            $region792: #{_clop_apply.1} parent=784 // loop_exit
              _
          $region785: #{_clop_apply.1} parent=769 // pred_fallthru
            _
        $region770: #{_clop_apply.1} parent=15 // pred_fallthru
          _
        // Predicated region
        $region771: #{_clop_apply.1} parent=15 // pred_check
          %p1316 = pneg %p1312
        $region772: #{_clop_apply.1} parent=15 // pred_check_branch
          %1318 = sbr.rel (%p1316) target = $region774
        $region773: #{_clop_apply.1} parent=15 // pred_region
          %s1319 = sshllo.u32 0, 1
          loop: start=0, step=1, limit=1
          $region775: #{_clop_apply.1} parent=773 // loop_pre_header
            _
          $region776: #{_clop_apply.1} parent=773 // loop_header
            %s1321 = sphi 0, %s1325
            %p1322 = scmp.ge.s32.totalorder %s1321, 1
            %s1326 = sphi %s1308, %s1308
            %s1327 = sphi %s1309, %s1309
          $region777: #{_clop_apply.1} parent=773 // loop_header_branch
            %1324 = sbr.rel (%p1322) target = $region781
          $region778: #{_clop_apply.1} parent=773 // loop_body
            %v1328 = vld [vmem:[%s1326] sm:%s1319]
            %1329 = vst [vmem:[%s1327] sm:%s1319] %v1328
          $region779: #{_clop_apply.1} parent=773 // loop_footer
            %s1325 = sadd.s32 1, %s1321
          $region780: #{_clop_apply.1} parent=773 // loop_footer_branch
            %1320 = sbr.rel target = $region776
          $region781: #{_clop_apply.1} parent=773 // loop_exit
            _
        $region774: #{_clop_apply.1} parent=15 // pred_fallthru
          _
        // Predicated region
        $region793: #{_clop_apply.1} parent=15 // pred_check
          _
        $region794: #{_clop_apply.1} parent=15 // pred_check_branch
          %1353 = sbr.rel (0) target = $region796
        $region795: #{_clop_apply.1} parent=15 // pred_region
          %1354 = vsyncadd %s1310, 16
        $region796: #{_clop_apply.1} parent=15 // pred_fallthru
          _
        %s1355 = sadd.s32 %s83, 26
        %s1356 = sld [smem:[#allocation5 + %s1355]]
        %s1357 = scalar_lea.vmem %s1, %s1356
        %s1358 = scalar_lea.vmem [#allocation2], 26
        %s1359 = scalar_lea.sflag [#allocation3], 26
        %p1361 = scmp.lt.u32.totalorder 1, 8
        %p1362 = pneg %p1361
        // Predicated region
        $region797: #{_clop_apply.1} parent=15 // pred_check
          _
        $region798: #{_clop_apply.1} parent=15 // pred_check_branch
          %1364 = sbr.rel (%p1361) target = $region800
        $region799: #{_clop_apply.1} parent=15 // pred_region
          %s1379 = sand.u32 1, 7
          %p1380 = scmp.eq.s32.totalorder %s1379, 0
          %p1381 = pneg %p1380
          // Predicated region
          $region812: #{_clop_apply.1} parent=799 // pred_check
            _
          $region813: #{_clop_apply.1} parent=799 // pred_check_branch
            %1383 = sbr.rel (%p1380) target = $region815
          $region814: #{_clop_apply.1} parent=799 // pred_region
            %s1384 = sand.u32 1, 7
            %s1385 = ssub.s32 1, %s1384
            %s1386 = scalar_lea.vmem %s1357, %s1385
            %s1387 = ssub.s32 1, %s1384
            %s1388 = scalar_lea.vmem %s1358, %s1387 [#allocation2]
            %s1389 = sshllo.u32 0, %s1384
            loop: start=0, step=1, limit=1
            $region816: #{_clop_apply.1} parent=814 // loop_pre_header
              _
            $region817: #{_clop_apply.1} parent=814 // loop_header
              %s1391 = sphi 0, %s1395
              %p1392 = scmp.ge.s32.totalorder %s1391, 1
              %s1396 = sphi %s1386, %s1386
              %s1397 = sphi %s1388, %s1388
            $region818: #{_clop_apply.1} parent=814 // loop_header_branch
              %1394 = sbr.rel (%p1392) target = $region822
            $region819: #{_clop_apply.1} parent=814 // loop_body
              %v1398 = vld [vmem:[%s1396] sm:%s1389]
              %1399 = vst [vmem:[%s1397] sm:%s1389] %v1398
            $region820: #{_clop_apply.1} parent=814 // loop_footer
              %s1395 = sadd.s32 1, %s1391
            $region821: #{_clop_apply.1} parent=814 // loop_footer_branch
              %1390 = sbr.rel target = $region817
            $region822: #{_clop_apply.1} parent=814 // loop_exit
              _
          $region815: #{_clop_apply.1} parent=799 // pred_fallthru
            _
        $region800: #{_clop_apply.1} parent=15 // pred_fallthru
          _
        // Predicated region
        $region801: #{_clop_apply.1} parent=15 // pred_check
          %p1365 = pneg %p1361
        $region802: #{_clop_apply.1} parent=15 // pred_check_branch
          %1367 = sbr.rel (%p1365) target = $region804
        $region803: #{_clop_apply.1} parent=15 // pred_region
          %s1368 = sshllo.u32 0, 1
          loop: start=0, step=1, limit=1
          $region805: #{_clop_apply.1} parent=803 // loop_pre_header
            _
          $region806: #{_clop_apply.1} parent=803 // loop_header
            %s1370 = sphi 0, %s1374
            %p1371 = scmp.ge.s32.totalorder %s1370, 1
            %s1375 = sphi %s1357, %s1357
            %s1376 = sphi %s1358, %s1358
          $region807: #{_clop_apply.1} parent=803 // loop_header_branch
            %1373 = sbr.rel (%p1371) target = $region811
          $region808: #{_clop_apply.1} parent=803 // loop_body
            %v1377 = vld [vmem:[%s1375] sm:%s1368]
            %1378 = vst [vmem:[%s1376] sm:%s1368] %v1377
          $region809: #{_clop_apply.1} parent=803 // loop_footer
            %s1374 = sadd.s32 1, %s1370
          $region810: #{_clop_apply.1} parent=803 // loop_footer_branch
            %1369 = sbr.rel target = $region806
          $region811: #{_clop_apply.1} parent=803 // loop_exit
            _
        $region804: #{_clop_apply.1} parent=15 // pred_fallthru
          _
        // Predicated region
        $region823: #{_clop_apply.1} parent=15 // pred_check
          _
        $region824: #{_clop_apply.1} parent=15 // pred_check_branch
          %1402 = sbr.rel (0) target = $region826
        $region825: #{_clop_apply.1} parent=15 // pred_region
          %1403 = vsyncadd %s1359, 16
        $region826: #{_clop_apply.1} parent=15 // pred_fallthru
          _
        %s1404 = sadd.s32 %s83, 27
        %s1405 = sld [smem:[#allocation5 + %s1404]]
        %s1406 = scalar_lea.vmem %s1, %s1405
        %s1407 = scalar_lea.vmem [#allocation2], 27
        %s1408 = scalar_lea.sflag [#allocation3], 27
        %p1410 = scmp.lt.u32.totalorder 1, 8
        %p1411 = pneg %p1410
        // Predicated region
        $region827: #{_clop_apply.1} parent=15 // pred_check
          _
        $region828: #{_clop_apply.1} parent=15 // pred_check_branch
          %1413 = sbr.rel (%p1410) target = $region830
        $region829: #{_clop_apply.1} parent=15 // pred_region
          %s1428 = sand.u32 1, 7
          %p1429 = scmp.eq.s32.totalorder %s1428, 0
          %p1430 = pneg %p1429
          // Predicated region
          $region842: #{_clop_apply.1} parent=829 // pred_check
            _
          $region843: #{_clop_apply.1} parent=829 // pred_check_branch
            %1432 = sbr.rel (%p1429) target = $region845
          $region844: #{_clop_apply.1} parent=829 // pred_region
            %s1433 = sand.u32 1, 7
            %s1434 = ssub.s32 1, %s1433
            %s1435 = scalar_lea.vmem %s1406, %s1434
            %s1436 = ssub.s32 1, %s1433
            %s1437 = scalar_lea.vmem %s1407, %s1436 [#allocation2]
            %s1438 = sshllo.u32 0, %s1433
            loop: start=0, step=1, limit=1
            $region846: #{_clop_apply.1} parent=844 // loop_pre_header
              _
            $region847: #{_clop_apply.1} parent=844 // loop_header
              %s1440 = sphi 0, %s1444
              %p1441 = scmp.ge.s32.totalorder %s1440, 1
              %s1445 = sphi %s1435, %s1435
              %s1446 = sphi %s1437, %s1437
            $region848: #{_clop_apply.1} parent=844 // loop_header_branch
              %1443 = sbr.rel (%p1441) target = $region852
            $region849: #{_clop_apply.1} parent=844 // loop_body
              %v1447 = vld [vmem:[%s1445] sm:%s1438]
              %1448 = vst [vmem:[%s1446] sm:%s1438] %v1447
            $region850: #{_clop_apply.1} parent=844 // loop_footer
              %s1444 = sadd.s32 1, %s1440
            $region851: #{_clop_apply.1} parent=844 // loop_footer_branch
              %1439 = sbr.rel target = $region847
            $region852: #{_clop_apply.1} parent=844 // loop_exit
              _
          $region845: #{_clop_apply.1} parent=829 // pred_fallthru
            _
        $region830: #{_clop_apply.1} parent=15 // pred_fallthru
          _
        // Predicated region
        $region831: #{_clop_apply.1} parent=15 // pred_check
          %p1414 = pneg %p1410
        $region832: #{_clop_apply.1} parent=15 // pred_check_branch
          %1416 = sbr.rel (%p1414) target = $region834
        $region833: #{_clop_apply.1} parent=15 // pred_region
          %s1417 = sshllo.u32 0, 1
          loop: start=0, step=1, limit=1
          $region835: #{_clop_apply.1} parent=833 // loop_pre_header
            _
          $region836: #{_clop_apply.1} parent=833 // loop_header
            %s1419 = sphi 0, %s1423
            %p1420 = scmp.ge.s32.totalorder %s1419, 1
            %s1424 = sphi %s1406, %s1406
            %s1425 = sphi %s1407, %s1407
          $region837: #{_clop_apply.1} parent=833 // loop_header_branch
            %1422 = sbr.rel (%p1420) target = $region841
          $region838: #{_clop_apply.1} parent=833 // loop_body
            %v1426 = vld [vmem:[%s1424] sm:%s1417]
            %1427 = vst [vmem:[%s1425] sm:%s1417] %v1426
          $region839: #{_clop_apply.1} parent=833 // loop_footer
            %s1423 = sadd.s32 1, %s1419
          $region840: #{_clop_apply.1} parent=833 // loop_footer_branch
            %1418 = sbr.rel target = $region836
          $region841: #{_clop_apply.1} parent=833 // loop_exit
            _
        $region834: #{_clop_apply.1} parent=15 // pred_fallthru
          _
        // Predicated region
        $region853: #{_clop_apply.1} parent=15 // pred_check
          _
        $region854: #{_clop_apply.1} parent=15 // pred_check_branch
          %1451 = sbr.rel (0) target = $region856
        $region855: #{_clop_apply.1} parent=15 // pred_region
          %1452 = vsyncadd %s1408, 16
        $region856: #{_clop_apply.1} parent=15 // pred_fallthru
          _
        %s1453 = sadd.s32 %s83, 28
        %s1454 = sld [smem:[#allocation5 + %s1453]]
        %s1455 = scalar_lea.vmem %s1, %s1454
        %s1456 = scalar_lea.vmem [#allocation2], 28
        %s1457 = scalar_lea.sflag [#allocation3], 28
        %p1459 = scmp.lt.u32.totalorder 1, 8
        %p1460 = pneg %p1459
        // Predicated region
        $region857: #{_clop_apply.1} parent=15 // pred_check
          _
        $region858: #{_clop_apply.1} parent=15 // pred_check_branch
          %1462 = sbr.rel (%p1459) target = $region860
        $region859: #{_clop_apply.1} parent=15 // pred_region
          %s1477 = sand.u32 1, 7
          %p1478 = scmp.eq.s32.totalorder %s1477, 0
          %p1479 = pneg %p1478
          // Predicated region
          $region872: #{_clop_apply.1} parent=859 // pred_check
            _
          $region873: #{_clop_apply.1} parent=859 // pred_check_branch
            %1481 = sbr.rel (%p1478) target = $region875
          $region874: #{_clop_apply.1} parent=859 // pred_region
            %s1482 = sand.u32 1, 7
            %s1483 = ssub.s32 1, %s1482
            %s1484 = scalar_lea.vmem %s1455, %s1483
            %s1485 = ssub.s32 1, %s1482
            %s1486 = scalar_lea.vmem %s1456, %s1485 [#allocation2]
            %s1487 = sshllo.u32 0, %s1482
            loop: start=0, step=1, limit=1
            $region876: #{_clop_apply.1} parent=874 // loop_pre_header
              _
            $region877: #{_clop_apply.1} parent=874 // loop_header
              %s1489 = sphi 0, %s1493
              %p1490 = scmp.ge.s32.totalorder %s1489, 1
              %s1494 = sphi %s1484, %s1484
              %s1495 = sphi %s1486, %s1486
            $region878: #{_clop_apply.1} parent=874 // loop_header_branch
              %1492 = sbr.rel (%p1490) target = $region882
            $region879: #{_clop_apply.1} parent=874 // loop_body
              %v1496 = vld [vmem:[%s1494] sm:%s1487]
              %1497 = vst [vmem:[%s1495] sm:%s1487] %v1496
            $region880: #{_clop_apply.1} parent=874 // loop_footer
              %s1493 = sadd.s32 1, %s1489
            $region881: #{_clop_apply.1} parent=874 // loop_footer_branch
              %1488 = sbr.rel target = $region877
            $region882: #{_clop_apply.1} parent=874 // loop_exit
              _
          $region875: #{_clop_apply.1} parent=859 // pred_fallthru
            _
        $region860: #{_clop_apply.1} parent=15 // pred_fallthru
          _
        // Predicated region
        $region861: #{_clop_apply.1} parent=15 // pred_check
          %p1463 = pneg %p1459
        $region862: #{_clop_apply.1} parent=15 // pred_check_branch
          %1465 = sbr.rel (%p1463) target = $region864
        $region863: #{_clop_apply.1} parent=15 // pred_region
          %s1466 = sshllo.u32 0, 1
          loop: start=0, step=1, limit=1
          $region865: #{_clop_apply.1} parent=863 // loop_pre_header
            _
          $region866: #{_clop_apply.1} parent=863 // loop_header
            %s1468 = sphi 0, %s1472
            %p1469 = scmp.ge.s32.totalorder %s1468, 1
            %s1473 = sphi %s1455, %s1455
            %s1474 = sphi %s1456, %s1456
          $region867: #{_clop_apply.1} parent=863 // loop_header_branch
            %1471 = sbr.rel (%p1469) target = $region871
          $region868: #{_clop_apply.1} parent=863 // loop_body
            %v1475 = vld [vmem:[%s1473] sm:%s1466]
            %1476 = vst [vmem:[%s1474] sm:%s1466] %v1475
          $region869: #{_clop_apply.1} parent=863 // loop_footer
            %s1472 = sadd.s32 1, %s1468
          $region870: #{_clop_apply.1} parent=863 // loop_footer_branch
            %1467 = sbr.rel target = $region866
          $region871: #{_clop_apply.1} parent=863 // loop_exit
            _
        $region864: #{_clop_apply.1} parent=15 // pred_fallthru
          _
        // Predicated region
        $region883: #{_clop_apply.1} parent=15 // pred_check
          _
        $region884: #{_clop_apply.1} parent=15 // pred_check_branch
          %1500 = sbr.rel (0) target = $region886
        $region885: #{_clop_apply.1} parent=15 // pred_region
          %1501 = vsyncadd %s1457, 16
        $region886: #{_clop_apply.1} parent=15 // pred_fallthru
          _
        %s1502 = sadd.s32 %s83, 29
        %s1503 = sld [smem:[#allocation5 + %s1502]]
        %s1504 = scalar_lea.vmem %s1, %s1503
        %s1505 = scalar_lea.vmem [#allocation2], 29
        %s1506 = scalar_lea.sflag [#allocation3], 29
        %p1508 = scmp.lt.u32.totalorder 1, 8
        %p1509 = pneg %p1508
        // Predicated region
        $region887: #{_clop_apply.1} parent=15 // pred_check
          _
        $region888: #{_clop_apply.1} parent=15 // pred_check_branch
          %1511 = sbr.rel (%p1508) target = $region890
        $region889: #{_clop_apply.1} parent=15 // pred_region
          %s1526 = sand.u32 1, 7
          %p1527 = scmp.eq.s32.totalorder %s1526, 0
          %p1528 = pneg %p1527
          // Predicated region
          $region902: #{_clop_apply.1} parent=889 // pred_check
            _
          $region903: #{_clop_apply.1} parent=889 // pred_check_branch
            %1530 = sbr.rel (%p1527) target = $region905
          $region904: #{_clop_apply.1} parent=889 // pred_region
            %s1531 = sand.u32 1, 7
            %s1532 = ssub.s32 1, %s1531
            %s1533 = scalar_lea.vmem %s1504, %s1532
            %s1534 = ssub.s32 1, %s1531
            %s1535 = scalar_lea.vmem %s1505, %s1534 [#allocation2]
            %s1536 = sshllo.u32 0, %s1531
            loop: start=0, step=1, limit=1
            $region906: #{_clop_apply.1} parent=904 // loop_pre_header
              _
            $region907: #{_clop_apply.1} parent=904 // loop_header
              %s1538 = sphi 0, %s1542
              %p1539 = scmp.ge.s32.totalorder %s1538, 1
              %s1543 = sphi %s1533, %s1533
              %s1544 = sphi %s1535, %s1535
            $region908: #{_clop_apply.1} parent=904 // loop_header_branch
              %1541 = sbr.rel (%p1539) target = $region912
            $region909: #{_clop_apply.1} parent=904 // loop_body
              %v1545 = vld [vmem:[%s1543] sm:%s1536]
              %1546 = vst [vmem:[%s1544] sm:%s1536] %v1545
            $region910: #{_clop_apply.1} parent=904 // loop_footer
              %s1542 = sadd.s32 1, %s1538
            $region911: #{_clop_apply.1} parent=904 // loop_footer_branch
              %1537 = sbr.rel target = $region907
            $region912: #{_clop_apply.1} parent=904 // loop_exit
              _
          $region905: #{_clop_apply.1} parent=889 // pred_fallthru
            _
        $region890: #{_clop_apply.1} parent=15 // pred_fallthru
          _
        // Predicated region
        $region891: #{_clop_apply.1} parent=15 // pred_check
          %p1512 = pneg %p1508
        $region892: #{_clop_apply.1} parent=15 // pred_check_branch
          %1514 = sbr.rel (%p1512) target = $region894
        $region893: #{_clop_apply.1} parent=15 // pred_region
          %s1515 = sshllo.u32 0, 1
          loop: start=0, step=1, limit=1
          $region895: #{_clop_apply.1} parent=893 // loop_pre_header
            _
          $region896: #{_clop_apply.1} parent=893 // loop_header
            %s1517 = sphi 0, %s1521
            %p1518 = scmp.ge.s32.totalorder %s1517, 1
            %s1522 = sphi %s1504, %s1504
            %s1523 = sphi %s1505, %s1505
          $region897: #{_clop_apply.1} parent=893 // loop_header_branch
            %1520 = sbr.rel (%p1518) target = $region901
          $region898: #{_clop_apply.1} parent=893 // loop_body
            %v1524 = vld [vmem:[%s1522] sm:%s1515]
            %1525 = vst [vmem:[%s1523] sm:%s1515] %v1524
          $region899: #{_clop_apply.1} parent=893 // loop_footer
            %s1521 = sadd.s32 1, %s1517
          $region900: #{_clop_apply.1} parent=893 // loop_footer_branch
            %1516 = sbr.rel target = $region896
          $region901: #{_clop_apply.1} parent=893 // loop_exit
            _
        $region894: #{_clop_apply.1} parent=15 // pred_fallthru
          _
        // Predicated region
        $region913: #{_clop_apply.1} parent=15 // pred_check
          _
        $region914: #{_clop_apply.1} parent=15 // pred_check_branch
          %1549 = sbr.rel (0) target = $region916
        $region915: #{_clop_apply.1} parent=15 // pred_region
          %1550 = vsyncadd %s1506, 16
        $region916: #{_clop_apply.1} parent=15 // pred_fallthru
          _
        %s1551 = sadd.s32 %s83, 30
        %s1552 = sld [smem:[#allocation5 + %s1551]]
        %s1553 = scalar_lea.vmem %s1, %s1552
        %s1554 = scalar_lea.vmem [#allocation2], 30
        %s1555 = scalar_lea.sflag [#allocation3], 30
        %p1557 = scmp.lt.u32.totalorder 1, 8
        %p1558 = pneg %p1557
        // Predicated region
        $region917: #{_clop_apply.1} parent=15 // pred_check
          _
        $region918: #{_clop_apply.1} parent=15 // pred_check_branch
          %1560 = sbr.rel (%p1557) target = $region920
        $region919: #{_clop_apply.1} parent=15 // pred_region
          %s1575 = sand.u32 1, 7
          %p1576 = scmp.eq.s32.totalorder %s1575, 0
          %p1577 = pneg %p1576
          // Predicated region
          $region932: #{_clop_apply.1} parent=919 // pred_check
            _
          $region933: #{_clop_apply.1} parent=919 // pred_check_branch
            %1579 = sbr.rel (%p1576) target = $region935
          $region934: #{_clop_apply.1} parent=919 // pred_region
            %s1580 = sand.u32 1, 7
            %s1581 = ssub.s32 1, %s1580
            %s1582 = scalar_lea.vmem %s1553, %s1581
            %s1583 = ssub.s32 1, %s1580
            %s1584 = scalar_lea.vmem %s1554, %s1583 [#allocation2]
            %s1585 = sshllo.u32 0, %s1580
            loop: start=0, step=1, limit=1
            $region936: #{_clop_apply.1} parent=934 // loop_pre_header
              _
            $region937: #{_clop_apply.1} parent=934 // loop_header
              %s1587 = sphi 0, %s1591
              %p1588 = scmp.ge.s32.totalorder %s1587, 1
              %s1592 = sphi %s1582, %s1582
              %s1593 = sphi %s1584, %s1584
            $region938: #{_clop_apply.1} parent=934 // loop_header_branch
              %1590 = sbr.rel (%p1588) target = $region942
            $region939: #{_clop_apply.1} parent=934 // loop_body
              %v1594 = vld [vmem:[%s1592] sm:%s1585]
              %1595 = vst [vmem:[%s1593] sm:%s1585] %v1594
            $region940: #{_clop_apply.1} parent=934 // loop_footer
              %s1591 = sadd.s32 1, %s1587
            $region941: #{_clop_apply.1} parent=934 // loop_footer_branch
              %1586 = sbr.rel target = $region937
            $region942: #{_clop_apply.1} parent=934 // loop_exit
              _
          $region935: #{_clop_apply.1} parent=919 // pred_fallthru
            _
        $region920: #{_clop_apply.1} parent=15 // pred_fallthru
          _
        // Predicated region
        $region921: #{_clop_apply.1} parent=15 // pred_check
          %p1561 = pneg %p1557
        $region922: #{_clop_apply.1} parent=15 // pred_check_branch
          %1563 = sbr.rel (%p1561) target = $region924
        $region923: #{_clop_apply.1} parent=15 // pred_region
          %s1564 = sshllo.u32 0, 1
          loop: start=0, step=1, limit=1
          $region925: #{_clop_apply.1} parent=923 // loop_pre_header
            _
          $region926: #{_clop_apply.1} parent=923 // loop_header
            %s1566 = sphi 0, %s1570
            %p1567 = scmp.ge.s32.totalorder %s1566, 1
            %s1571 = sphi %s1553, %s1553
            %s1572 = sphi %s1554, %s1554
          $region927: #{_clop_apply.1} parent=923 // loop_header_branch
            %1569 = sbr.rel (%p1567) target = $region931
          $region928: #{_clop_apply.1} parent=923 // loop_body
            %v1573 = vld [vmem:[%s1571] sm:%s1564]
            %1574 = vst [vmem:[%s1572] sm:%s1564] %v1573
          $region929: #{_clop_apply.1} parent=923 // loop_footer
            %s1570 = sadd.s32 1, %s1566
          $region930: #{_clop_apply.1} parent=923 // loop_footer_branch
            %1565 = sbr.rel target = $region926
          $region931: #{_clop_apply.1} parent=923 // loop_exit
            _
        $region924: #{_clop_apply.1} parent=15 // pred_fallthru
          _
        // Predicated region
        $region943: #{_clop_apply.1} parent=15 // pred_check
          _
        $region944: #{_clop_apply.1} parent=15 // pred_check_branch
          %1598 = sbr.rel (0) target = $region946
        $region945: #{_clop_apply.1} parent=15 // pred_region
          %1599 = vsyncadd %s1555, 16
        $region946: #{_clop_apply.1} parent=15 // pred_fallthru
          _
        %s1600 = sadd.s32 %s83, 31
        %s1601 = sld [smem:[#allocation5 + %s1600]]
        %s1602 = scalar_lea.vmem %s1, %s1601
        %s1603 = scalar_lea.vmem [#allocation2], 31
        %s1604 = scalar_lea.sflag [#allocation3], 31
        %p1606 = scmp.lt.u32.totalorder 1, 8
        %p1607 = pneg %p1606
        // Predicated region
        $region947: #{_clop_apply.1} parent=15 // pred_check
          _
        $region948: #{_clop_apply.1} parent=15 // pred_check_branch
          %1609 = sbr.rel (%p1606) target = $region950
        $region949: #{_clop_apply.1} parent=15 // pred_region
          %s1624 = sand.u32 1, 7
          %p1625 = scmp.eq.s32.totalorder %s1624, 0
          %p1626 = pneg %p1625
          // Predicated region
          $region962: #{_clop_apply.1} parent=949 // pred_check
            _
          $region963: #{_clop_apply.1} parent=949 // pred_check_branch
            %1628 = sbr.rel (%p1625) target = $region965
          $region964: #{_clop_apply.1} parent=949 // pred_region
            %s1629 = sand.u32 1, 7
            %s1630 = ssub.s32 1, %s1629
            %s1631 = scalar_lea.vmem %s1602, %s1630
            %s1632 = ssub.s32 1, %s1629
            %s1633 = scalar_lea.vmem %s1603, %s1632 [#allocation2]
            %s1634 = sshllo.u32 0, %s1629
            loop: start=0, step=1, limit=1
            $region966: #{_clop_apply.1} parent=964 // loop_pre_header
              _
            $region967: #{_clop_apply.1} parent=964 // loop_header
              %s1636 = sphi 0, %s1640
              %p1637 = scmp.ge.s32.totalorder %s1636, 1
              %s1641 = sphi %s1631, %s1631
              %s1642 = sphi %s1633, %s1633
            $region968: #{_clop_apply.1} parent=964 // loop_header_branch
              %1639 = sbr.rel (%p1637) target = $region972
            $region969: #{_clop_apply.1} parent=964 // loop_body
              %v1643 = vld [vmem:[%s1641] sm:%s1634]
              %1644 = vst [vmem:[%s1642] sm:%s1634] %v1643
            $region970: #{_clop_apply.1} parent=964 // loop_footer
              %s1640 = sadd.s32 1, %s1636
            $region971: #{_clop_apply.1} parent=964 // loop_footer_branch
              %1635 = sbr.rel target = $region967
            $region972: #{_clop_apply.1} parent=964 // loop_exit
              _
          $region965: #{_clop_apply.1} parent=949 // pred_fallthru
            _
        $region950: #{_clop_apply.1} parent=15 // pred_fallthru
          _
        // Predicated region
        $region951: #{_clop_apply.1} parent=15 // pred_check
          %p1610 = pneg %p1606
        $region952: #{_clop_apply.1} parent=15 // pred_check_branch
          %1612 = sbr.rel (%p1610) target = $region954
        $region953: #{_clop_apply.1} parent=15 // pred_region
          %s1613 = sshllo.u32 0, 1
          loop: start=0, step=1, limit=1
          $region955: #{_clop_apply.1} parent=953 // loop_pre_header
            _
          $region956: #{_clop_apply.1} parent=953 // loop_header
            %s1615 = sphi 0, %s1619
            %p1616 = scmp.ge.s32.totalorder %s1615, 1
            %s1620 = sphi %s1602, %s1602
            %s1621 = sphi %s1603, %s1603
          $region957: #{_clop_apply.1} parent=953 // loop_header_branch
            %1618 = sbr.rel (%p1616) target = $region961
          $region958: #{_clop_apply.1} parent=953 // loop_body
            %v1622 = vld [vmem:[%s1620] sm:%s1613]
            %1623 = vst [vmem:[%s1621] sm:%s1613] %v1622
          $region959: #{_clop_apply.1} parent=953 // loop_footer
            %s1619 = sadd.s32 1, %s1615
          $region960: #{_clop_apply.1} parent=953 // loop_footer_branch
            %1614 = sbr.rel target = $region956
          $region961: #{_clop_apply.1} parent=953 // loop_exit
            _
        $region954: #{_clop_apply.1} parent=15 // pred_fallthru
          _
        // Predicated region
        $region973: #{_clop_apply.1} parent=15 // pred_check
          _
        $region974: #{_clop_apply.1} parent=15 // pred_check_branch
          %1647 = sbr.rel (0) target = $region976
        $region975: #{_clop_apply.1} parent=15 // pred_region
          %1648 = vsyncadd %s1604, 16
        $region976: #{_clop_apply.1} parent=15 // pred_fallthru
          _
      $region16: #{_clop_apply.1} parent=11 // pred_fallthru
        _
      %s1649 = sadd.s32 %s21, 1
      %p1650 = scmp.lt.s32.totalorder %s1649, 4
      // Predicated region
      $region977: #{_clop_apply.1} parent=11 // pred_check
        %p1651 = pneg %p1650
      $region978: #{_clop_apply.1} parent=11 // pred_check_branch
        %1653 = sbr.rel (%p1651) target = $region980
      $region979: #{_clop_apply.1} parent=11 // pred_region
        %s1654 = sadd.s32 %s78, 1
        %s1655 = sand.u32 %s1649, 1
        %s1656 = smul.u32 %s1654, 32
        %s1657 = smul.u32 %s1655, 32
        %s1658 = sld [smem:[#allocation5 + %s1656]]
        %s1659 = scalar_lea.vmem %s1, %s1658
        %s1660 = scalar_lea.vmem [#allocation2], %s1657
        %s1661 = scalar_lea.sflag [#allocation3], %s1657
        %p1663 = scmp.lt.u32.totalorder 1, 8
        %p1664 = pneg %p1663
        // Predicated region
        $region981: #{_clop_apply.1} parent=979 // pred_check
          _
        $region982: #{_clop_apply.1} parent=979 // pred_check_branch
          %1666 = sbr.rel (%p1663) target = $region984
        $region983: #{_clop_apply.1} parent=979 // pred_region
          %s1681 = sand.u32 1, 7
          %p1682 = scmp.eq.s32.totalorder %s1681, 0
          %p1683 = pneg %p1682
          // Predicated region
          $region996: #{_clop_apply.1} parent=983 // pred_check
            _
          $region997: #{_clop_apply.1} parent=983 // pred_check_branch
            %1685 = sbr.rel (%p1682) target = $region999
          $region998: #{_clop_apply.1} parent=983 // pred_region
            %s1686 = sand.u32 1, 7
            %s1687 = ssub.s32 1, %s1686
            %s1688 = scalar_lea.vmem %s1659, %s1687
            %s1689 = ssub.s32 1, %s1686
            %s1690 = scalar_lea.vmem %s1660, %s1689 [#allocation2]
            %s1691 = sshllo.u32 0, %s1686
            loop: start=0, step=1, limit=1
            $region1000: #{_clop_apply.1} parent=998 // loop_pre_header
              _
            $region1001: #{_clop_apply.1} parent=998 // loop_header
              %s1693 = sphi 0, %s1697
              %p1694 = scmp.ge.s32.totalorder %s1693, 1
              %s1698 = sphi %s1688, %s1688
              %s1699 = sphi %s1690, %s1690
            $region1002: #{_clop_apply.1} parent=998 // loop_header_branch
              %1696 = sbr.rel (%p1694) target = $region1006
            $region1003: #{_clop_apply.1} parent=998 // loop_body
              %v1700 = vld [vmem:[%s1698] sm:%s1691]
              %1701 = vst [vmem:[%s1699] sm:%s1691] %v1700
            $region1004: #{_clop_apply.1} parent=998 // loop_footer
              %s1697 = sadd.s32 1, %s1693
            $region1005: #{_clop_apply.1} parent=998 // loop_footer_branch
              %1692 = sbr.rel target = $region1001
            $region1006: #{_clop_apply.1} parent=998 // loop_exit
              _
          $region999: #{_clop_apply.1} parent=983 // pred_fallthru
            _
        $region984: #{_clop_apply.1} parent=979 // pred_fallthru
          _
        // Predicated region
        $region985: #{_clop_apply.1} parent=979 // pred_check
          %p1667 = pneg %p1663
        $region986: #{_clop_apply.1} parent=979 // pred_check_branch
          %1669 = sbr.rel (%p1667) target = $region988
        $region987: #{_clop_apply.1} parent=979 // pred_region
          %s1670 = sshllo.u32 0, 1
          loop: start=0, step=1, limit=1
          $region989: #{_clop_apply.1} parent=987 // loop_pre_header
            _
          $region990: #{_clop_apply.1} parent=987 // loop_header
            %s1672 = sphi 0, %s1676
            %p1673 = scmp.ge.s32.totalorder %s1672, 1
            %s1677 = sphi %s1659, %s1659
            %s1678 = sphi %s1660, %s1660
          $region991: #{_clop_apply.1} parent=987 // loop_header_branch
            %1675 = sbr.rel (%p1673) target = $region995
          $region992: #{_clop_apply.1} parent=987 // loop_body
            %v1679 = vld [vmem:[%s1677] sm:%s1670]
            %1680 = vst [vmem:[%s1678] sm:%s1670] %v1679
          $region993: #{_clop_apply.1} parent=987 // loop_footer
            %s1676 = sadd.s32 1, %s1672
          $region994: #{_clop_apply.1} parent=987 // loop_footer_branch
            %1671 = sbr.rel target = $region990
          $region995: #{_clop_apply.1} parent=987 // loop_exit
            _
        $region988: #{_clop_apply.1} parent=979 // pred_fallthru
          _
        // Predicated region
        $region1007: #{_clop_apply.1} parent=979 // pred_check
          _
        $region1008: #{_clop_apply.1} parent=979 // pred_check_branch
          %1704 = sbr.rel (0) target = $region1010
        $region1009: #{_clop_apply.1} parent=979 // pred_region
          %1705 = vsyncadd %s1661, 16
        $region1010: #{_clop_apply.1} parent=979 // pred_fallthru
          _
        %s1706 = sadd.s32 %s1657, 1
        %s1707 = sadd.s32 %s1656, 1
        %s1708 = sld [smem:[#allocation5 + %s1707]]
        %s1709 = scalar_lea.vmem %s1, %s1708
        %s1710 = scalar_lea.vmem [#allocation2], %s1706
        %s1711 = scalar_lea.sflag [#allocation3], %s1706
        %p1713 = scmp.lt.u32.totalorder 1, 8
        %p1714 = pneg %p1713
        // Predicated region
        $region1011: #{_clop_apply.1} parent=979 // pred_check
          _
        $region1012: #{_clop_apply.1} parent=979 // pred_check_branch
          %1716 = sbr.rel (%p1713) target = $region1014
        $region1013: #{_clop_apply.1} parent=979 // pred_region
          %s1731 = sand.u32 1, 7
          %p1732 = scmp.eq.s32.totalorder %s1731, 0
          %p1733 = pneg %p1732
          // Predicated region
          $region1026: #{_clop_apply.1} parent=1013 // pred_check
            _
          $region1027: #{_clop_apply.1} parent=1013 // pred_check_branch
            %1735 = sbr.rel (%p1732) target = $region1029
          $region1028: #{_clop_apply.1} parent=1013 // pred_region
            %s1736 = sand.u32 1, 7
            %s1737 = ssub.s32 1, %s1736
            %s1738 = scalar_lea.vmem %s1709, %s1737
            %s1739 = ssub.s32 1, %s1736
            %s1740 = scalar_lea.vmem %s1710, %s1739 [#allocation2]
            %s1741 = sshllo.u32 0, %s1736
            loop: start=0, step=1, limit=1
            $region1030: #{_clop_apply.1} parent=1028 // loop_pre_header
              _
            $region1031: #{_clop_apply.1} parent=1028 // loop_header
              %s1743 = sphi 0, %s1747
              %p1744 = scmp.ge.s32.totalorder %s1743, 1
              %s1748 = sphi %s1738, %s1738
              %s1749 = sphi %s1740, %s1740
            $region1032: #{_clop_apply.1} parent=1028 // loop_header_branch
              %1746 = sbr.rel (%p1744) target = $region1036
            $region1033: #{_clop_apply.1} parent=1028 // loop_body
              %v1750 = vld [vmem:[%s1748] sm:%s1741]
              %1751 = vst [vmem:[%s1749] sm:%s1741] %v1750
            $region1034: #{_clop_apply.1} parent=1028 // loop_footer
              %s1747 = sadd.s32 1, %s1743
            $region1035: #{_clop_apply.1} parent=1028 // loop_footer_branch
              %1742 = sbr.rel target = $region1031
            $region1036: #{_clop_apply.1} parent=1028 // loop_exit
              _
          $region1029: #{_clop_apply.1} parent=1013 // pred_fallthru
            _
        $region1014: #{_clop_apply.1} parent=979 // pred_fallthru
          _
        // Predicated region
        $region1015: #{_clop_apply.1} parent=979 // pred_check
          %p1717 = pneg %p1713
        $region1016: #{_clop_apply.1} parent=979 // pred_check_branch
          %1719 = sbr.rel (%p1717) target = $region1018
        $region1017: #{_clop_apply.1} parent=979 // pred_region
          %s1720 = sshllo.u32 0, 1
          loop: start=0, step=1, limit=1
          $region1019: #{_clop_apply.1} parent=1017 // loop_pre_header
            _
          $region1020: #{_clop_apply.1} parent=1017 // loop_header
            %s1722 = sphi 0, %s1726
            %p1723 = scmp.ge.s32.totalorder %s1722, 1
            %s1727 = sphi %s1709, %s1709
            %s1728 = sphi %s1710, %s1710
          $region1021: #{_clop_apply.1} parent=1017 // loop_header_branch
            %1725 = sbr.rel (%p1723) target = $region1025
          $region1022: #{_clop_apply.1} parent=1017 // loop_body
            %v1729 = vld [vmem:[%s1727] sm:%s1720]
            %1730 = vst [vmem:[%s1728] sm:%s1720] %v1729
          $region1023: #{_clop_apply.1} parent=1017 // loop_footer
            %s1726 = sadd.s32 1, %s1722
          $region1024: #{_clop_apply.1} parent=1017 // loop_footer_branch
            %1721 = sbr.rel target = $region1020
          $region1025: #{_clop_apply.1} parent=1017 // loop_exit
            _
        $region1018: #{_clop_apply.1} parent=979 // pred_fallthru
          _
        // Predicated region
        $region1037: #{_clop_apply.1} parent=979 // pred_check
          _
        $region1038: #{_clop_apply.1} parent=979 // pred_check_branch
          %1754 = sbr.rel (0) target = $region1040
        $region1039: #{_clop_apply.1} parent=979 // pred_region
          %1755 = vsyncadd %s1711, 16
        $region1040: #{_clop_apply.1} parent=979 // pred_fallthru
          _
        %s1756 = sadd.s32 %s1657, 2
        %s1757 = sadd.s32 %s1656, 2
        %s1758 = sld [smem:[#allocation5 + %s1757]]
        %s1759 = scalar_lea.vmem %s1, %s1758
        %s1760 = scalar_lea.vmem [#allocation2], %s1756
        %s1761 = scalar_lea.sflag [#allocation3], %s1756
        %p1763 = scmp.lt.u32.totalorder 1, 8
        %p1764 = pneg %p1763
        // Predicated region
        $region1041: #{_clop_apply.1} parent=979 // pred_check
          _
        $region1042: #{_clop_apply.1} parent=979 // pred_check_branch
          %1766 = sbr.rel (%p1763) target = $region1044
        $region1043: #{_clop_apply.1} parent=979 // pred_region
          %s1781 = sand.u32 1, 7
          %p1782 = scmp.eq.s32.totalorder %s1781, 0
          %p1783 = pneg %p1782
          // Predicated region
          $region1056: #{_clop_apply.1} parent=1043 // pred_check
            _
          $region1057: #{_clop_apply.1} parent=1043 // pred_check_branch
            %1785 = sbr.rel (%p1782) target = $region1059
          $region1058: #{_clop_apply.1} parent=1043 // pred_region
            %s1786 = sand.u32 1, 7
            %s1787 = ssub.s32 1, %s1786
            %s1788 = scalar_lea.vmem %s1759, %s1787
            %s1789 = ssub.s32 1, %s1786
            %s1790 = scalar_lea.vmem %s1760, %s1789 [#allocation2]
            %s1791 = sshllo.u32 0, %s1786
            loop: start=0, step=1, limit=1
            $region1060: #{_clop_apply.1} parent=1058 // loop_pre_header
              _
            $region1061: #{_clop_apply.1} parent=1058 // loop_header
              %s1793 = sphi 0, %s1797
              %p1794 = scmp.ge.s32.totalorder %s1793, 1
              %s1798 = sphi %s1788, %s1788
              %s1799 = sphi %s1790, %s1790
            $region1062: #{_clop_apply.1} parent=1058 // loop_header_branch
              %1796 = sbr.rel (%p1794) target = $region1066
            $region1063: #{_clop_apply.1} parent=1058 // loop_body
              %v1800 = vld [vmem:[%s1798] sm:%s1791]
              %1801 = vst [vmem:[%s1799] sm:%s1791] %v1800
            $region1064: #{_clop_apply.1} parent=1058 // loop_footer
              %s1797 = sadd.s32 1, %s1793
            $region1065: #{_clop_apply.1} parent=1058 // loop_footer_branch
              %1792 = sbr.rel target = $region1061
            $region1066: #{_clop_apply.1} parent=1058 // loop_exit
              _
          $region1059: #{_clop_apply.1} parent=1043 // pred_fallthru
            _
        $region1044: #{_clop_apply.1} parent=979 // pred_fallthru
          _
        // Predicated region
        $region1045: #{_clop_apply.1} parent=979 // pred_check
          %p1767 = pneg %p1763
        $region1046: #{_clop_apply.1} parent=979 // pred_check_branch
          %1769 = sbr.rel (%p1767) target = $region1048
        $region1047: #{_clop_apply.1} parent=979 // pred_region
          %s1770 = sshllo.u32 0, 1
          loop: start=0, step=1, limit=1
          $region1049: #{_clop_apply.1} parent=1047 // loop_pre_header
            _
          $region1050: #{_clop_apply.1} parent=1047 // loop_header
            %s1772 = sphi 0, %s1776
            %p1773 = scmp.ge.s32.totalorder %s1772, 1
            %s1777 = sphi %s1759, %s1759
            %s1778 = sphi %s1760, %s1760
          $region1051: #{_clop_apply.1} parent=1047 // loop_header_branch
            %1775 = sbr.rel (%p1773) target = $region1055
          $region1052: #{_clop_apply.1} parent=1047 // loop_body
            %v1779 = vld [vmem:[%s1777] sm:%s1770]
            %1780 = vst [vmem:[%s1778] sm:%s1770] %v1779
          $region1053: #{_clop_apply.1} parent=1047 // loop_footer
            %s1776 = sadd.s32 1, %s1772
          $region1054: #{_clop_apply.1} parent=1047 // loop_footer_branch
            %1771 = sbr.rel target = $region1050
          $region1055: #{_clop_apply.1} parent=1047 // loop_exit
            _
        $region1048: #{_clop_apply.1} parent=979 // pred_fallthru
          _
        // Predicated region
        $region1067: #{_clop_apply.1} parent=979 // pred_check
          _
        $region1068: #{_clop_apply.1} parent=979 // pred_check_branch
          %1804 = sbr.rel (0) target = $region1070
        $region1069: #{_clop_apply.1} parent=979 // pred_region
          %1805 = vsyncadd %s1761, 16
        $region1070: #{_clop_apply.1} parent=979 // pred_fallthru
          _
        %s1806 = sadd.s32 %s1657, 3
        %s1807 = sadd.s32 %s1656, 3
        %s1808 = sld [smem:[#allocation5 + %s1807]]
        %s1809 = scalar_lea.vmem %s1, %s1808
        %s1810 = scalar_lea.vmem [#allocation2], %s1806
        %s1811 = scalar_lea.sflag [#allocation3], %s1806
        %p1813 = scmp.lt.u32.totalorder 1, 8
        %p1814 = pneg %p1813
        // Predicated region
        $region1071: #{_clop_apply.1} parent=979 // pred_check
          _
        $region1072: #{_clop_apply.1} parent=979 // pred_check_branch
          %1816 = sbr.rel (%p1813) target = $region1074
        $region1073: #{_clop_apply.1} parent=979 // pred_region
          %s1831 = sand.u32 1, 7
          %p1832 = scmp.eq.s32.totalorder %s1831, 0
          %p1833 = pneg %p1832
          // Predicated region
          $region1086: #{_clop_apply.1} parent=1073 // pred_check
            _
          $region1087: #{_clop_apply.1} parent=1073 // pred_check_branch
            %1835 = sbr.rel (%p1832) target = $region1089
          $region1088: #{_clop_apply.1} parent=1073 // pred_region
            %s1836 = sand.u32 1, 7
            %s1837 = ssub.s32 1, %s1836
            %s1838 = scalar_lea.vmem %s1809, %s1837
            %s1839 = ssub.s32 1, %s1836
            %s1840 = scalar_lea.vmem %s1810, %s1839 [#allocation2]
            %s1841 = sshllo.u32 0, %s1836
            loop: start=0, step=1, limit=1
            $region1090: #{_clop_apply.1} parent=1088 // loop_pre_header
              _
            $region1091: #{_clop_apply.1} parent=1088 // loop_header
              %s1843 = sphi 0, %s1847
              %p1844 = scmp.ge.s32.totalorder %s1843, 1
              %s1848 = sphi %s1838, %s1838
              %s1849 = sphi %s1840, %s1840
            $region1092: #{_clop_apply.1} parent=1088 // loop_header_branch
              %1846 = sbr.rel (%p1844) target = $region1096
            $region1093: #{_clop_apply.1} parent=1088 // loop_body
              %v1850 = vld [vmem:[%s1848] sm:%s1841]
              %1851 = vst [vmem:[%s1849] sm:%s1841] %v1850
            $region1094: #{_clop_apply.1} parent=1088 // loop_footer
              %s1847 = sadd.s32 1, %s1843
            $region1095: #{_clop_apply.1} parent=1088 // loop_footer_branch
              %1842 = sbr.rel target = $region1091
            $region1096: #{_clop_apply.1} parent=1088 // loop_exit
              _
          $region1089: #{_clop_apply.1} parent=1073 // pred_fallthru
            _
        $region1074: #{_clop_apply.1} parent=979 // pred_fallthru
          _
        // Predicated region
        $region1075: #{_clop_apply.1} parent=979 // pred_check
          %p1817 = pneg %p1813
        $region1076: #{_clop_apply.1} parent=979 // pred_check_branch
          %1819 = sbr.rel (%p1817) target = $region1078
        $region1077: #{_clop_apply.1} parent=979 // pred_region
          %s1820 = sshllo.u32 0, 1
          loop: start=0, step=1, limit=1
          $region1079: #{_clop_apply.1} parent=1077 // loop_pre_header
            _
          $region1080: #{_clop_apply.1} parent=1077 // loop_header
            %s1822 = sphi 0, %s1826
            %p1823 = scmp.ge.s32.totalorder %s1822, 1
            %s1827 = sphi %s1809, %s1809
            %s1828 = sphi %s1810, %s1810
          $region1081: #{_clop_apply.1} parent=1077 // loop_header_branch
            %1825 = sbr.rel (%p1823) target = $region1085
          $region1082: #{_clop_apply.1} parent=1077 // loop_body
            %v1829 = vld [vmem:[%s1827] sm:%s1820]
            %1830 = vst [vmem:[%s1828] sm:%s1820] %v1829
          $region1083: #{_clop_apply.1} parent=1077 // loop_footer
            %s1826 = sadd.s32 1, %s1822
          $region1084: #{_clop_apply.1} parent=1077 // loop_footer_branch
            %1821 = sbr.rel target = $region1080
          $region1085: #{_clop_apply.1} parent=1077 // loop_exit
            _
        $region1078: #{_clop_apply.1} parent=979 // pred_fallthru
          _
        // Predicated region
        $region1097: #{_clop_apply.1} parent=979 // pred_check
          _
        $region1098: #{_clop_apply.1} parent=979 // pred_check_branch
          %1854 = sbr.rel (0) target = $region1100
        $region1099: #{_clop_apply.1} parent=979 // pred_region
          %1855 = vsyncadd %s1811, 16
        $region1100: #{_clop_apply.1} parent=979 // pred_fallthru
          _
        %s1856 = sadd.s32 %s1657, 4
        %s1857 = sadd.s32 %s1656, 4
        %s1858 = sld [smem:[#allocation5 + %s1857]]
        %s1859 = scalar_lea.vmem %s1, %s1858
        %s1860 = scalar_lea.vmem [#allocation2], %s1856
        %s1861 = scalar_lea.sflag [#allocation3], %s1856
        %p1863 = scmp.lt.u32.totalorder 1, 8
        %p1864 = pneg %p1863
        // Predicated region
        $region1101: #{_clop_apply.1} parent=979 // pred_check
          _
        $region1102: #{_clop_apply.1} parent=979 // pred_check_branch
          %1866 = sbr.rel (%p1863) target = $region1104
        $region1103: #{_clop_apply.1} parent=979 // pred_region
          %s1881 = sand.u32 1, 7
          %p1882 = scmp.eq.s32.totalorder %s1881, 0
          %p1883 = pneg %p1882
          // Predicated region
          $region1116: #{_clop_apply.1} parent=1103 // pred_check
            _
          $region1117: #{_clop_apply.1} parent=1103 // pred_check_branch
            %1885 = sbr.rel (%p1882) target = $region1119
          $region1118: #{_clop_apply.1} parent=1103 // pred_region
            %s1886 = sand.u32 1, 7
            %s1887 = ssub.s32 1, %s1886
            %s1888 = scalar_lea.vmem %s1859, %s1887
            %s1889 = ssub.s32 1, %s1886
            %s1890 = scalar_lea.vmem %s1860, %s1889 [#allocation2]
            %s1891 = sshllo.u32 0, %s1886
            loop: start=0, step=1, limit=1
            $region1120: #{_clop_apply.1} parent=1118 // loop_pre_header
              _
            $region1121: #{_clop_apply.1} parent=1118 // loop_header
              %s1893 = sphi 0, %s1897
              %p1894 = scmp.ge.s32.totalorder %s1893, 1
              %s1898 = sphi %s1888, %s1888
              %s1899 = sphi %s1890, %s1890
            $region1122: #{_clop_apply.1} parent=1118 // loop_header_branch
              %1896 = sbr.rel (%p1894) target = $region1126
            $region1123: #{_clop_apply.1} parent=1118 // loop_body
              %v1900 = vld [vmem:[%s1898] sm:%s1891]
              %1901 = vst [vmem:[%s1899] sm:%s1891] %v1900
            $region1124: #{_clop_apply.1} parent=1118 // loop_footer
              %s1897 = sadd.s32 1, %s1893
            $region1125: #{_clop_apply.1} parent=1118 // loop_footer_branch
              %1892 = sbr.rel target = $region1121
            $region1126: #{_clop_apply.1} parent=1118 // loop_exit
              _
          $region1119: #{_clop_apply.1} parent=1103 // pred_fallthru
            _
        $region1104: #{_clop_apply.1} parent=979 // pred_fallthru
          _
        // Predicated region
        $region1105: #{_clop_apply.1} parent=979 // pred_check
          %p1867 = pneg %p1863
        $region1106: #{_clop_apply.1} parent=979 // pred_check_branch
          %1869 = sbr.rel (%p1867) target = $region1108
        $region1107: #{_clop_apply.1} parent=979 // pred_region
          %s1870 = sshllo.u32 0, 1
          loop: start=0, step=1, limit=1
          $region1109: #{_clop_apply.1} parent=1107 // loop_pre_header
            _
          $region1110: #{_clop_apply.1} parent=1107 // loop_header
            %s1872 = sphi 0, %s1876
            %p1873 = scmp.ge.s32.totalorder %s1872, 1
            %s1877 = sphi %s1859, %s1859
            %s1878 = sphi %s1860, %s1860
          $region1111: #{_clop_apply.1} parent=1107 // loop_header_branch
            %1875 = sbr.rel (%p1873) target = $region1115
          $region1112: #{_clop_apply.1} parent=1107 // loop_body
            %v1879 = vld [vmem:[%s1877] sm:%s1870]
            %1880 = vst [vmem:[%s1878] sm:%s1870] %v1879
          $region1113: #{_clop_apply.1} parent=1107 // loop_footer
            %s1876 = sadd.s32 1, %s1872
          $region1114: #{_clop_apply.1} parent=1107 // loop_footer_branch
            %1871 = sbr.rel target = $region1110
          $region1115: #{_clop_apply.1} parent=1107 // loop_exit
            _
        $region1108: #{_clop_apply.1} parent=979 // pred_fallthru
          _
        // Predicated region
        $region1127: #{_clop_apply.1} parent=979 // pred_check
          _
        $region1128: #{_clop_apply.1} parent=979 // pred_check_branch
          %1904 = sbr.rel (0) target = $region1130
        $region1129: #{_clop_apply.1} parent=979 // pred_region
          %1905 = vsyncadd %s1861, 16
        $region1130: #{_clop_apply.1} parent=979 // pred_fallthru
          _
        %s1906 = sadd.s32 %s1657, 5
        %s1907 = sadd.s32 %s1656, 5
        %s1908 = sld [smem:[#allocation5 + %s1907]]
        %s1909 = scalar_lea.vmem %s1, %s1908
        %s1910 = scalar_lea.vmem [#allocation2], %s1906
        %s1911 = scalar_lea.sflag [#allocation3], %s1906
        %p1913 = scmp.lt.u32.totalorder 1, 8
        %p1914 = pneg %p1913
        // Predicated region
        $region1131: #{_clop_apply.1} parent=979 // pred_check
          _
        $region1132: #{_clop_apply.1} parent=979 // pred_check_branch
          %1916 = sbr.rel (%p1913) target = $region1134
        $region1133: #{_clop_apply.1} parent=979 // pred_region
          %s1931 = sand.u32 1, 7
          %p1932 = scmp.eq.s32.totalorder %s1931, 0
          %p1933 = pneg %p1932
          // Predicated region
          $region1146: #{_clop_apply.1} parent=1133 // pred_check
            _
          $region1147: #{_clop_apply.1} parent=1133 // pred_check_branch
            %1935 = sbr.rel (%p1932) target = $region1149
          $region1148: #{_clop_apply.1} parent=1133 // pred_region
            %s1936 = sand.u32 1, 7
            %s1937 = ssub.s32 1, %s1936
            %s1938 = scalar_lea.vmem %s1909, %s1937
            %s1939 = ssub.s32 1, %s1936
            %s1940 = scalar_lea.vmem %s1910, %s1939 [#allocation2]
            %s1941 = sshllo.u32 0, %s1936
            loop: start=0, step=1, limit=1
            $region1150: #{_clop_apply.1} parent=1148 // loop_pre_header
              _
            $region1151: #{_clop_apply.1} parent=1148 // loop_header
              %s1943 = sphi 0, %s1947
              %p1944 = scmp.ge.s32.totalorder %s1943, 1
              %s1948 = sphi %s1938, %s1938
              %s1949 = sphi %s1940, %s1940
            $region1152: #{_clop_apply.1} parent=1148 // loop_header_branch
              %1946 = sbr.rel (%p1944) target = $region1156
            $region1153: #{_clop_apply.1} parent=1148 // loop_body
              %v1950 = vld [vmem:[%s1948] sm:%s1941]
              %1951 = vst [vmem:[%s1949] sm:%s1941] %v1950
            $region1154: #{_clop_apply.1} parent=1148 // loop_footer
              %s1947 = sadd.s32 1, %s1943
            $region1155: #{_clop_apply.1} parent=1148 // loop_footer_branch
              %1942 = sbr.rel target = $region1151
            $region1156: #{_clop_apply.1} parent=1148 // loop_exit
              _
          $region1149: #{_clop_apply.1} parent=1133 // pred_fallthru
            _
        $region1134: #{_clop_apply.1} parent=979 // pred_fallthru
          _
        // Predicated region
        $region1135: #{_clop_apply.1} parent=979 // pred_check
          %p1917 = pneg %p1913
        $region1136: #{_clop_apply.1} parent=979 // pred_check_branch
          %1919 = sbr.rel (%p1917) target = $region1138
        $region1137: #{_clop_apply.1} parent=979 // pred_region
          %s1920 = sshllo.u32 0, 1
          loop: start=0, step=1, limit=1
          $region1139: #{_clop_apply.1} parent=1137 // loop_pre_header
            _
          $region1140: #{_clop_apply.1} parent=1137 // loop_header
            %s1922 = sphi 0, %s1926
            %p1923 = scmp.ge.s32.totalorder %s1922, 1
            %s1927 = sphi %s1909, %s1909
            %s1928 = sphi %s1910, %s1910
          $region1141: #{_clop_apply.1} parent=1137 // loop_header_branch
            %1925 = sbr.rel (%p1923) target = $region1145
          $region1142: #{_clop_apply.1} parent=1137 // loop_body
            %v1929 = vld [vmem:[%s1927] sm:%s1920]
            %1930 = vst [vmem:[%s1928] sm:%s1920] %v1929
          $region1143: #{_clop_apply.1} parent=1137 // loop_footer
            %s1926 = sadd.s32 1, %s1922
          $region1144: #{_clop_apply.1} parent=1137 // loop_footer_branch
            %1921 = sbr.rel target = $region1140
          $region1145: #{_clop_apply.1} parent=1137 // loop_exit
            _
        $region1138: #{_clop_apply.1} parent=979 // pred_fallthru
          _
        // Predicated region
        $region1157: #{_clop_apply.1} parent=979 // pred_check
          _
        $region1158: #{_clop_apply.1} parent=979 // pred_check_branch
          %1954 = sbr.rel (0) target = $region1160
        $region1159: #{_clop_apply.1} parent=979 // pred_region
          %1955 = vsyncadd %s1911, 16
        $region1160: #{_clop_apply.1} parent=979 // pred_fallthru
          _
        %s1956 = sadd.s32 %s1657, 6
        %s1957 = sadd.s32 %s1656, 6
        %s1958 = sld [smem:[#allocation5 + %s1957]]
        %s1959 = scalar_lea.vmem %s1, %s1958
        %s1960 = scalar_lea.vmem [#allocation2], %s1956
        %s1961 = scalar_lea.sflag [#allocation3], %s1956
        %p1963 = scmp.lt.u32.totalorder 1, 8
        %p1964 = pneg %p1963
        // Predicated region
        $region1161: #{_clop_apply.1} parent=979 // pred_check
          _
        $region1162: #{_clop_apply.1} parent=979 // pred_check_branch
          %1966 = sbr.rel (%p1963) target = $region1164
        $region1163: #{_clop_apply.1} parent=979 // pred_region
          %s1981 = sand.u32 1, 7
          %p1982 = scmp.eq.s32.totalorder %s1981, 0
          %p1983 = pneg %p1982
          // Predicated region
          $region1176: #{_clop_apply.1} parent=1163 // pred_check
            _
          $region1177: #{_clop_apply.1} parent=1163 // pred_check_branch
            %1985 = sbr.rel (%p1982) target = $region1179
          $region1178: #{_clop_apply.1} parent=1163 // pred_region
            %s1986 = sand.u32 1, 7
            %s1987 = ssub.s32 1, %s1986
            %s1988 = scalar_lea.vmem %s1959, %s1987
            %s1989 = ssub.s32 1, %s1986
            %s1990 = scalar_lea.vmem %s1960, %s1989 [#allocation2]
            %s1991 = sshllo.u32 0, %s1986
            loop: start=0, step=1, limit=1
            $region1180: #{_clop_apply.1} parent=1178 // loop_pre_header
              _
            $region1181: #{_clop_apply.1} parent=1178 // loop_header
              %s1993 = sphi 0, %s1997
              %p1994 = scmp.ge.s32.totalorder %s1993, 1
              %s1998 = sphi %s1988, %s1988
              %s1999 = sphi %s1990, %s1990
            $region1182: #{_clop_apply.1} parent=1178 // loop_header_branch
              %1996 = sbr.rel (%p1994) target = $region1186
            $region1183: #{_clop_apply.1} parent=1178 // loop_body
              %v2000 = vld [vmem:[%s1998] sm:%s1991]
              %2001 = vst [vmem:[%s1999] sm:%s1991] %v2000
            $region1184: #{_clop_apply.1} parent=1178 // loop_footer
              %s1997 = sadd.s32 1, %s1993
            $region1185: #{_clop_apply.1} parent=1178 // loop_footer_branch
              %1992 = sbr.rel target = $region1181
            $region1186: #{_clop_apply.1} parent=1178 // loop_exit
              _
          $region1179: #{_clop_apply.1} parent=1163 // pred_fallthru
            _
        $region1164: #{_clop_apply.1} parent=979 // pred_fallthru
          _
        // Predicated region
        $region1165: #{_clop_apply.1} parent=979 // pred_check
          %p1967 = pneg %p1963
        $region1166: #{_clop_apply.1} parent=979 // pred_check_branch
          %1969 = sbr.rel (%p1967) target = $region1168
        $region1167: #{_clop_apply.1} parent=979 // pred_region
          %s1970 = sshllo.u32 0, 1
          loop: start=0, step=1, limit=1
          $region1169: #{_clop_apply.1} parent=1167 // loop_pre_header
            _
          $region1170: #{_clop_apply.1} parent=1167 // loop_header
            %s1972 = sphi 0, %s1976
            %p1973 = scmp.ge.s32.totalorder %s1972, 1
            %s1977 = sphi %s1959, %s1959
            %s1978 = sphi %s1960, %s1960
          $region1171: #{_clop_apply.1} parent=1167 // loop_header_branch
            %1975 = sbr.rel (%p1973) target = $region1175
          $region1172: #{_clop_apply.1} parent=1167 // loop_body
            %v1979 = vld [vmem:[%s1977] sm:%s1970]
            %1980 = vst [vmem:[%s1978] sm:%s1970] %v1979
          $region1173: #{_clop_apply.1} parent=1167 // loop_footer
            %s1976 = sadd.s32 1, %s1972
          $region1174: #{_clop_apply.1} parent=1167 // loop_footer_branch
            %1971 = sbr.rel target = $region1170
          $region1175: #{_clop_apply.1} parent=1167 // loop_exit
            _
        $region1168: #{_clop_apply.1} parent=979 // pred_fallthru
          _
        // Predicated region
        $region1187: #{_clop_apply.1} parent=979 // pred_check
          _
        $region1188: #{_clop_apply.1} parent=979 // pred_check_branch
          %2004 = sbr.rel (0) target = $region1190
        $region1189: #{_clop_apply.1} parent=979 // pred_region
          %2005 = vsyncadd %s1961, 16
        $region1190: #{_clop_apply.1} parent=979 // pred_fallthru
          _
        %s2006 = sadd.s32 %s1657, 7
        %s2007 = sadd.s32 %s1656, 7
        %s2008 = sld [smem:[#allocation5 + %s2007]]
        %s2009 = scalar_lea.vmem %s1, %s2008
        %s2010 = scalar_lea.vmem [#allocation2], %s2006
        %s2011 = scalar_lea.sflag [#allocation3], %s2006
        %p2013 = scmp.lt.u32.totalorder 1, 8
        %p2014 = pneg %p2013
        // Predicated region
        $region1191: #{_clop_apply.1} parent=979 // pred_check
          _
        $region1192: #{_clop_apply.1} parent=979 // pred_check_branch
          %2016 = sbr.rel (%p2013) target = $region1194
        $region1193: #{_clop_apply.1} parent=979 // pred_region
          %s2031 = sand.u32 1, 7
          %p2032 = scmp.eq.s32.totalorder %s2031, 0
          %p2033 = pneg %p2032
          // Predicated region
          $region1206: #{_clop_apply.1} parent=1193 // pred_check
            _
          $region1207: #{_clop_apply.1} parent=1193 // pred_check_branch
            %2035 = sbr.rel (%p2032) target = $region1209
          $region1208: #{_clop_apply.1} parent=1193 // pred_region
            %s2036 = sand.u32 1, 7
            %s2037 = ssub.s32 1, %s2036
            %s2038 = scalar_lea.vmem %s2009, %s2037
            %s2039 = ssub.s32 1, %s2036
            %s2040 = scalar_lea.vmem %s2010, %s2039 [#allocation2]
            %s2041 = sshllo.u32 0, %s2036
            loop: start=0, step=1, limit=1
            $region1210: #{_clop_apply.1} parent=1208 // loop_pre_header
              _
            $region1211: #{_clop_apply.1} parent=1208 // loop_header
              %s2043 = sphi 0, %s2047
              %p2044 = scmp.ge.s32.totalorder %s2043, 1
              %s2048 = sphi %s2038, %s2038
              %s2049 = sphi %s2040, %s2040
            $region1212: #{_clop_apply.1} parent=1208 // loop_header_branch
              %2046 = sbr.rel (%p2044) target = $region1216
            $region1213: #{_clop_apply.1} parent=1208 // loop_body
              %v2050 = vld [vmem:[%s2048] sm:%s2041]
              %2051 = vst [vmem:[%s2049] sm:%s2041] %v2050
            $region1214: #{_clop_apply.1} parent=1208 // loop_footer
              %s2047 = sadd.s32 1, %s2043
            $region1215: #{_clop_apply.1} parent=1208 // loop_footer_branch
              %2042 = sbr.rel target = $region1211
            $region1216: #{_clop_apply.1} parent=1208 // loop_exit
              _
          $region1209: #{_clop_apply.1} parent=1193 // pred_fallthru
            _
        $region1194: #{_clop_apply.1} parent=979 // pred_fallthru
          _
        // Predicated region
        $region1195: #{_clop_apply.1} parent=979 // pred_check
          %p2017 = pneg %p2013
        $region1196: #{_clop_apply.1} parent=979 // pred_check_branch
          %2019 = sbr.rel (%p2017) target = $region1198
        $region1197: #{_clop_apply.1} parent=979 // pred_region
          %s2020 = sshllo.u32 0, 1
          loop: start=0, step=1, limit=1
          $region1199: #{_clop_apply.1} parent=1197 // loop_pre_header
            _
          $region1200: #{_clop_apply.1} parent=1197 // loop_header
            %s2022 = sphi 0, %s2026
            %p2023 = scmp.ge.s32.totalorder %s2022, 1
            %s2027 = sphi %s2009, %s2009
            %s2028 = sphi %s2010, %s2010
          $region1201: #{_clop_apply.1} parent=1197 // loop_header_branch
            %2025 = sbr.rel (%p2023) target = $region1205
          $region1202: #{_clop_apply.1} parent=1197 // loop_body
            %v2029 = vld [vmem:[%s2027] sm:%s2020]
            %2030 = vst [vmem:[%s2028] sm:%s2020] %v2029
          $region1203: #{_clop_apply.1} parent=1197 // loop_footer
            %s2026 = sadd.s32 1, %s2022
          $region1204: #{_clop_apply.1} parent=1197 // loop_footer_branch
            %2021 = sbr.rel target = $region1200
          $region1205: #{_clop_apply.1} parent=1197 // loop_exit
            _
        $region1198: #{_clop_apply.1} parent=979 // pred_fallthru
          _
        // Predicated region
        $region1217: #{_clop_apply.1} parent=979 // pred_check
          _
        $region1218: #{_clop_apply.1} parent=979 // pred_check_branch
          %2054 = sbr.rel (0) target = $region1220
        $region1219: #{_clop_apply.1} parent=979 // pred_region
          %2055 = vsyncadd %s2011, 16
        $region1220: #{_clop_apply.1} parent=979 // pred_fallthru
          _
        %s2056 = sadd.s32 %s1657, 8
        %s2057 = sadd.s32 %s1656, 8
        %s2058 = sld [smem:[#allocation5 + %s2057]]
        %s2059 = scalar_lea.vmem %s1, %s2058
        %s2060 = scalar_lea.vmem [#allocation2], %s2056
        %s2061 = scalar_lea.sflag [#allocation3], %s2056
        %p2063 = scmp.lt.u32.totalorder 1, 8
        %p2064 = pneg %p2063
        // Predicated region
        $region1221: #{_clop_apply.1} parent=979 // pred_check
          _
        $region1222: #{_clop_apply.1} parent=979 // pred_check_branch
          %2066 = sbr.rel (%p2063) target = $region1224
        $region1223: #{_clop_apply.1} parent=979 // pred_region
          %s2081 = sand.u32 1, 7
          %p2082 = scmp.eq.s32.totalorder %s2081, 0
          %p2083 = pneg %p2082
          // Predicated region
          $region1236: #{_clop_apply.1} parent=1223 // pred_check
            _
          $region1237: #{_clop_apply.1} parent=1223 // pred_check_branch
            %2085 = sbr.rel (%p2082) target = $region1239
          $region1238: #{_clop_apply.1} parent=1223 // pred_region
            %s2086 = sand.u32 1, 7
            %s2087 = ssub.s32 1, %s2086
            %s2088 = scalar_lea.vmem %s2059, %s2087
            %s2089 = ssub.s32 1, %s2086
            %s2090 = scalar_lea.vmem %s2060, %s2089 [#allocation2]
            %s2091 = sshllo.u32 0, %s2086
            loop: start=0, step=1, limit=1
            $region1240: #{_clop_apply.1} parent=1238 // loop_pre_header
              _
            $region1241: #{_clop_apply.1} parent=1238 // loop_header
              %s2093 = sphi 0, %s2097
              %p2094 = scmp.ge.s32.totalorder %s2093, 1
              %s2098 = sphi %s2088, %s2088
              %s2099 = sphi %s2090, %s2090
            $region1242: #{_clop_apply.1} parent=1238 // loop_header_branch
              %2096 = sbr.rel (%p2094) target = $region1246
            $region1243: #{_clop_apply.1} parent=1238 // loop_body
              %v2100 = vld [vmem:[%s2098] sm:%s2091]
              %2101 = vst [vmem:[%s2099] sm:%s2091] %v2100
            $region1244: #{_clop_apply.1} parent=1238 // loop_footer
              %s2097 = sadd.s32 1, %s2093
            $region1245: #{_clop_apply.1} parent=1238 // loop_footer_branch
              %2092 = sbr.rel target = $region1241
            $region1246: #{_clop_apply.1} parent=1238 // loop_exit
              _
          $region1239: #{_clop_apply.1} parent=1223 // pred_fallthru
            _
        $region1224: #{_clop_apply.1} parent=979 // pred_fallthru
          _
        // Predicated region
        $region1225: #{_clop_apply.1} parent=979 // pred_check
          %p2067 = pneg %p2063
        $region1226: #{_clop_apply.1} parent=979 // pred_check_branch
          %2069 = sbr.rel (%p2067) target = $region1228
        $region1227: #{_clop_apply.1} parent=979 // pred_region
          %s2070 = sshllo.u32 0, 1
          loop: start=0, step=1, limit=1
          $region1229: #{_clop_apply.1} parent=1227 // loop_pre_header
            _
          $region1230: #{_clop_apply.1} parent=1227 // loop_header
            %s2072 = sphi 0, %s2076
            %p2073 = scmp.ge.s32.totalorder %s2072, 1
            %s2077 = sphi %s2059, %s2059
            %s2078 = sphi %s2060, %s2060
          $region1231: #{_clop_apply.1} parent=1227 // loop_header_branch
            %2075 = sbr.rel (%p2073) target = $region1235
          $region1232: #{_clop_apply.1} parent=1227 // loop_body
            %v2079 = vld [vmem:[%s2077] sm:%s2070]
            %2080 = vst [vmem:[%s2078] sm:%s2070] %v2079
          $region1233: #{_clop_apply.1} parent=1227 // loop_footer
            %s2076 = sadd.s32 1, %s2072
          $region1234: #{_clop_apply.1} parent=1227 // loop_footer_branch
            %2071 = sbr.rel target = $region1230
          $region1235: #{_clop_apply.1} parent=1227 // loop_exit
            _
        $region1228: #{_clop_apply.1} parent=979 // pred_fallthru
          _
        // Predicated region
        $region1247: #{_clop_apply.1} parent=979 // pred_check
          _
        $region1248: #{_clop_apply.1} parent=979 // pred_check_branch
          %2104 = sbr.rel (0) target = $region1250
        $region1249: #{_clop_apply.1} parent=979 // pred_region
          %2105 = vsyncadd %s2061, 16
        $region1250: #{_clop_apply.1} parent=979 // pred_fallthru
          _
        %s2106 = sadd.s32 %s1657, 9
        %s2107 = sadd.s32 %s1656, 9
        %s2108 = sld [smem:[#allocation5 + %s2107]]
        %s2109 = scalar_lea.vmem %s1, %s2108
        %s2110 = scalar_lea.vmem [#allocation2], %s2106
        %s2111 = scalar_lea.sflag [#allocation3], %s2106
        %p2113 = scmp.lt.u32.totalorder 1, 8
        %p2114 = pneg %p2113
        // Predicated region
        $region1251: #{_clop_apply.1} parent=979 // pred_check
          _
        $region1252: #{_clop_apply.1} parent=979 // pred_check_branch
          %2116 = sbr.rel (%p2113) target = $region1254
        $region1253: #{_clop_apply.1} parent=979 // pred_region
          %s2131 = sand.u32 1, 7
          %p2132 = scmp.eq.s32.totalorder %s2131, 0
          %p2133 = pneg %p2132
          // Predicated region
          $region1266: #{_clop_apply.1} parent=1253 // pred_check
            _
          $region1267: #{_clop_apply.1} parent=1253 // pred_check_branch
            %2135 = sbr.rel (%p2132) target = $region1269
          $region1268: #{_clop_apply.1} parent=1253 // pred_region
            %s2136 = sand.u32 1, 7
            %s2137 = ssub.s32 1, %s2136
            %s2138 = scalar_lea.vmem %s2109, %s2137
            %s2139 = ssub.s32 1, %s2136
            %s2140 = scalar_lea.vmem %s2110, %s2139 [#allocation2]
            %s2141 = sshllo.u32 0, %s2136
            loop: start=0, step=1, limit=1
            $region1270: #{_clop_apply.1} parent=1268 // loop_pre_header
              _
            $region1271: #{_clop_apply.1} parent=1268 // loop_header
              %s2143 = sphi 0, %s2147
              %p2144 = scmp.ge.s32.totalorder %s2143, 1
              %s2148 = sphi %s2138, %s2138
              %s2149 = sphi %s2140, %s2140
            $region1272: #{_clop_apply.1} parent=1268 // loop_header_branch
              %2146 = sbr.rel (%p2144) target = $region1276
            $region1273: #{_clop_apply.1} parent=1268 // loop_body
              %v2150 = vld [vmem:[%s2148] sm:%s2141]
              %2151 = vst [vmem:[%s2149] sm:%s2141] %v2150
            $region1274: #{_clop_apply.1} parent=1268 // loop_footer
              %s2147 = sadd.s32 1, %s2143
            $region1275: #{_clop_apply.1} parent=1268 // loop_footer_branch
              %2142 = sbr.rel target = $region1271
            $region1276: #{_clop_apply.1} parent=1268 // loop_exit
              _
          $region1269: #{_clop_apply.1} parent=1253 // pred_fallthru
            _
        $region1254: #{_clop_apply.1} parent=979 // pred_fallthru
          _
        // Predicated region
        $region1255: #{_clop_apply.1} parent=979 // pred_check
          %p2117 = pneg %p2113
        $region1256: #{_clop_apply.1} parent=979 // pred_check_branch
          %2119 = sbr.rel (%p2117) target = $region1258
        $region1257: #{_clop_apply.1} parent=979 // pred_region
          %s2120 = sshllo.u32 0, 1
          loop: start=0, step=1, limit=1
          $region1259: #{_clop_apply.1} parent=1257 // loop_pre_header
            _
          $region1260: #{_clop_apply.1} parent=1257 // loop_header
            %s2122 = sphi 0, %s2126
            %p2123 = scmp.ge.s32.totalorder %s2122, 1
            %s2127 = sphi %s2109, %s2109
            %s2128 = sphi %s2110, %s2110
          $region1261: #{_clop_apply.1} parent=1257 // loop_header_branch
            %2125 = sbr.rel (%p2123) target = $region1265
          $region1262: #{_clop_apply.1} parent=1257 // loop_body
            %v2129 = vld [vmem:[%s2127] sm:%s2120]
            %2130 = vst [vmem:[%s2128] sm:%s2120] %v2129
          $region1263: #{_clop_apply.1} parent=1257 // loop_footer
            %s2126 = sadd.s32 1, %s2122
          $region1264: #{_clop_apply.1} parent=1257 // loop_footer_branch
            %2121 = sbr.rel target = $region1260
          $region1265: #{_clop_apply.1} parent=1257 // loop_exit
            _
        $region1258: #{_clop_apply.1} parent=979 // pred_fallthru
          _
        // Predicated region
        $region1277: #{_clop_apply.1} parent=979 // pred_check
          _
        $region1278: #{_clop_apply.1} parent=979 // pred_check_branch
          %2154 = sbr.rel (0) target = $region1280
        $region1279: #{_clop_apply.1} parent=979 // pred_region
          %2155 = vsyncadd %s2111, 16
        $region1280: #{_clop_apply.1} parent=979 // pred_fallthru
          _
        %s2156 = sadd.s32 %s1657, 10
        %s2157 = sadd.s32 %s1656, 10
        %s2158 = sld [smem:[#allocation5 + %s2157]]
        %s2159 = scalar_lea.vmem %s1, %s2158
        %s2160 = scalar_lea.vmem [#allocation2], %s2156
        %s2161 = scalar_lea.sflag [#allocation3], %s2156
        %p2163 = scmp.lt.u32.totalorder 1, 8
        %p2164 = pneg %p2163
        // Predicated region
        $region1281: #{_clop_apply.1} parent=979 // pred_check
          _
        $region1282: #{_clop_apply.1} parent=979 // pred_check_branch
          %2166 = sbr.rel (%p2163) target = $region1284
        $region1283: #{_clop_apply.1} parent=979 // pred_region
          %s2181 = sand.u32 1, 7
          %p2182 = scmp.eq.s32.totalorder %s2181, 0
          %p2183 = pneg %p2182
          // Predicated region
          $region1296: #{_clop_apply.1} parent=1283 // pred_check
            _
          $region1297: #{_clop_apply.1} parent=1283 // pred_check_branch
            %2185 = sbr.rel (%p2182) target = $region1299
          $region1298: #{_clop_apply.1} parent=1283 // pred_region
            %s2186 = sand.u32 1, 7
            %s2187 = ssub.s32 1, %s2186
            %s2188 = scalar_lea.vmem %s2159, %s2187
            %s2189 = ssub.s32 1, %s2186
            %s2190 = scalar_lea.vmem %s2160, %s2189 [#allocation2]
            %s2191 = sshllo.u32 0, %s2186
            loop: start=0, step=1, limit=1
            $region1300: #{_clop_apply.1} parent=1298 // loop_pre_header
              _
            $region1301: #{_clop_apply.1} parent=1298 // loop_header
              %s2193 = sphi 0, %s2197
              %p2194 = scmp.ge.s32.totalorder %s2193, 1
              %s2198 = sphi %s2188, %s2188
              %s2199 = sphi %s2190, %s2190
            $region1302: #{_clop_apply.1} parent=1298 // loop_header_branch
              %2196 = sbr.rel (%p2194) target = $region1306
            $region1303: #{_clop_apply.1} parent=1298 // loop_body
              %v2200 = vld [vmem:[%s2198] sm:%s2191]
              %2201 = vst [vmem:[%s2199] sm:%s2191] %v2200
            $region1304: #{_clop_apply.1} parent=1298 // loop_footer
              %s2197 = sadd.s32 1, %s2193
            $region1305: #{_clop_apply.1} parent=1298 // loop_footer_branch
              %2192 = sbr.rel target = $region1301
            $region1306: #{_clop_apply.1} parent=1298 // loop_exit
              _
          $region1299: #{_clop_apply.1} parent=1283 // pred_fallthru
            _
        $region1284: #{_clop_apply.1} parent=979 // pred_fallthru
          _
        // Predicated region
        $region1285: #{_clop_apply.1} parent=979 // pred_check
          %p2167 = pneg %p2163
        $region1286: #{_clop_apply.1} parent=979 // pred_check_branch
          %2169 = sbr.rel (%p2167) target = $region1288
        $region1287: #{_clop_apply.1} parent=979 // pred_region
          %s2170 = sshllo.u32 0, 1
          loop: start=0, step=1, limit=1
          $region1289: #{_clop_apply.1} parent=1287 // loop_pre_header
            _
          $region1290: #{_clop_apply.1} parent=1287 // loop_header
            %s2172 = sphi 0, %s2176
            %p2173 = scmp.ge.s32.totalorder %s2172, 1
            %s2177 = sphi %s2159, %s2159
            %s2178 = sphi %s2160, %s2160
          $region1291: #{_clop_apply.1} parent=1287 // loop_header_branch
            %2175 = sbr.rel (%p2173) target = $region1295
          $region1292: #{_clop_apply.1} parent=1287 // loop_body
            %v2179 = vld [vmem:[%s2177] sm:%s2170]
            %2180 = vst [vmem:[%s2178] sm:%s2170] %v2179
          $region1293: #{_clop_apply.1} parent=1287 // loop_footer
            %s2176 = sadd.s32 1, %s2172
          $region1294: #{_clop_apply.1} parent=1287 // loop_footer_branch
            %2171 = sbr.rel target = $region1290
          $region1295: #{_clop_apply.1} parent=1287 // loop_exit
            _
        $region1288: #{_clop_apply.1} parent=979 // pred_fallthru
          _
        // Predicated region
        $region1307: #{_clop_apply.1} parent=979 // pred_check
          _
        $region1308: #{_clop_apply.1} parent=979 // pred_check_branch
          %2204 = sbr.rel (0) target = $region1310
        $region1309: #{_clop_apply.1} parent=979 // pred_region
          %2205 = vsyncadd %s2161, 16
        $region1310: #{_clop_apply.1} parent=979 // pred_fallthru
          _
        %s2206 = sadd.s32 %s1657, 11
        %s2207 = sadd.s32 %s1656, 11
        %s2208 = sld [smem:[#allocation5 + %s2207]]
        %s2209 = scalar_lea.vmem %s1, %s2208
        %s2210 = scalar_lea.vmem [#allocation2], %s2206
        %s2211 = scalar_lea.sflag [#allocation3], %s2206
        %p2213 = scmp.lt.u32.totalorder 1, 8
        %p2214 = pneg %p2213
        // Predicated region
        $region1311: #{_clop_apply.1} parent=979 // pred_check
          _
        $region1312: #{_clop_apply.1} parent=979 // pred_check_branch
          %2216 = sbr.rel (%p2213) target = $region1314
        $region1313: #{_clop_apply.1} parent=979 // pred_region
          %s2231 = sand.u32 1, 7
          %p2232 = scmp.eq.s32.totalorder %s2231, 0
          %p2233 = pneg %p2232
          // Predicated region
          $region1326: #{_clop_apply.1} parent=1313 // pred_check
            _
          $region1327: #{_clop_apply.1} parent=1313 // pred_check_branch
            %2235 = sbr.rel (%p2232) target = $region1329
          $region1328: #{_clop_apply.1} parent=1313 // pred_region
            %s2236 = sand.u32 1, 7
            %s2237 = ssub.s32 1, %s2236
            %s2238 = scalar_lea.vmem %s2209, %s2237
            %s2239 = ssub.s32 1, %s2236
            %s2240 = scalar_lea.vmem %s2210, %s2239 [#allocation2]
            %s2241 = sshllo.u32 0, %s2236
            loop: start=0, step=1, limit=1
            $region1330: #{_clop_apply.1} parent=1328 // loop_pre_header
              _
            $region1331: #{_clop_apply.1} parent=1328 // loop_header
              %s2243 = sphi 0, %s2247
              %p2244 = scmp.ge.s32.totalorder %s2243, 1
              %s2248 = sphi %s2238, %s2238
              %s2249 = sphi %s2240, %s2240
            $region1332: #{_clop_apply.1} parent=1328 // loop_header_branch
              %2246 = sbr.rel (%p2244) target = $region1336
            $region1333: #{_clop_apply.1} parent=1328 // loop_body
              %v2250 = vld [vmem:[%s2248] sm:%s2241]
              %2251 = vst [vmem:[%s2249] sm:%s2241] %v2250
            $region1334: #{_clop_apply.1} parent=1328 // loop_footer
              %s2247 = sadd.s32 1, %s2243
            $region1335: #{_clop_apply.1} parent=1328 // loop_footer_branch
              %2242 = sbr.rel target = $region1331
            $region1336: #{_clop_apply.1} parent=1328 // loop_exit
              _
          $region1329: #{_clop_apply.1} parent=1313 // pred_fallthru
            _
        $region1314: #{_clop_apply.1} parent=979 // pred_fallthru
          _
        // Predicated region
        $region1315: #{_clop_apply.1} parent=979 // pred_check
          %p2217 = pneg %p2213
        $region1316: #{_clop_apply.1} parent=979 // pred_check_branch
          %2219 = sbr.rel (%p2217) target = $region1318
        $region1317: #{_clop_apply.1} parent=979 // pred_region
          %s2220 = sshllo.u32 0, 1
          loop: start=0, step=1, limit=1
          $region1319: #{_clop_apply.1} parent=1317 // loop_pre_header
            _
          $region1320: #{_clop_apply.1} parent=1317 // loop_header
            %s2222 = sphi 0, %s2226
            %p2223 = scmp.ge.s32.totalorder %s2222, 1
            %s2227 = sphi %s2209, %s2209
            %s2228 = sphi %s2210, %s2210
          $region1321: #{_clop_apply.1} parent=1317 // loop_header_branch
            %2225 = sbr.rel (%p2223) target = $region1325
          $region1322: #{_clop_apply.1} parent=1317 // loop_body
            %v2229 = vld [vmem:[%s2227] sm:%s2220]
            %2230 = vst [vmem:[%s2228] sm:%s2220] %v2229
          $region1323: #{_clop_apply.1} parent=1317 // loop_footer
            %s2226 = sadd.s32 1, %s2222
          $region1324: #{_clop_apply.1} parent=1317 // loop_footer_branch
            %2221 = sbr.rel target = $region1320
          $region1325: #{_clop_apply.1} parent=1317 // loop_exit
            _
        $region1318: #{_clop_apply.1} parent=979 // pred_fallthru
          _
        // Predicated region
        $region1337: #{_clop_apply.1} parent=979 // pred_check
          _
        $region1338: #{_clop_apply.1} parent=979 // pred_check_branch
          %2254 = sbr.rel (0) target = $region1340
        $region1339: #{_clop_apply.1} parent=979 // pred_region
          %2255 = vsyncadd %s2211, 16
        $region1340: #{_clop_apply.1} parent=979 // pred_fallthru
          _
        %s2256 = sadd.s32 %s1657, 12
        %s2257 = sadd.s32 %s1656, 12
        %s2258 = sld [smem:[#allocation5 + %s2257]]
        %s2259 = scalar_lea.vmem %s1, %s2258
        %s2260 = scalar_lea.vmem [#allocation2], %s2256
        %s2261 = scalar_lea.sflag [#allocation3], %s2256
        %p2263 = scmp.lt.u32.totalorder 1, 8
        %p2264 = pneg %p2263
        // Predicated region
        $region1341: #{_clop_apply.1} parent=979 // pred_check
          _
        $region1342: #{_clop_apply.1} parent=979 // pred_check_branch
          %2266 = sbr.rel (%p2263) target = $region1344
        $region1343: #{_clop_apply.1} parent=979 // pred_region
          %s2281 = sand.u32 1, 7
          %p2282 = scmp.eq.s32.totalorder %s2281, 0
          %p2283 = pneg %p2282
          // Predicated region
          $region1356: #{_clop_apply.1} parent=1343 // pred_check
            _
          $region1357: #{_clop_apply.1} parent=1343 // pred_check_branch
            %2285 = sbr.rel (%p2282) target = $region1359
          $region1358: #{_clop_apply.1} parent=1343 // pred_region
            %s2286 = sand.u32 1, 7
            %s2287 = ssub.s32 1, %s2286
            %s2288 = scalar_lea.vmem %s2259, %s2287
            %s2289 = ssub.s32 1, %s2286
            %s2290 = scalar_lea.vmem %s2260, %s2289 [#allocation2]
            %s2291 = sshllo.u32 0, %s2286
            loop: start=0, step=1, limit=1
            $region1360: #{_clop_apply.1} parent=1358 // loop_pre_header
              _
            $region1361: #{_clop_apply.1} parent=1358 // loop_header
              %s2293 = sphi 0, %s2297
              %p2294 = scmp.ge.s32.totalorder %s2293, 1
              %s2298 = sphi %s2288, %s2288
              %s2299 = sphi %s2290, %s2290
            $region1362: #{_clop_apply.1} parent=1358 // loop_header_branch
              %2296 = sbr.rel (%p2294) target = $region1366
            $region1363: #{_clop_apply.1} parent=1358 // loop_body
              %v2300 = vld [vmem:[%s2298] sm:%s2291]
              %2301 = vst [vmem:[%s2299] sm:%s2291] %v2300
            $region1364: #{_clop_apply.1} parent=1358 // loop_footer
              %s2297 = sadd.s32 1, %s2293
            $region1365: #{_clop_apply.1} parent=1358 // loop_footer_branch
              %2292 = sbr.rel target = $region1361
            $region1366: #{_clop_apply.1} parent=1358 // loop_exit
              _
          $region1359: #{_clop_apply.1} parent=1343 // pred_fallthru
            _
        $region1344: #{_clop_apply.1} parent=979 // pred_fallthru
          _
        // Predicated region
        $region1345: #{_clop_apply.1} parent=979 // pred_check
          %p2267 = pneg %p2263
        $region1346: #{_clop_apply.1} parent=979 // pred_check_branch
          %2269 = sbr.rel (%p2267) target = $region1348
        $region1347: #{_clop_apply.1} parent=979 // pred_region
          %s2270 = sshllo.u32 0, 1
          loop: start=0, step=1, limit=1
          $region1349: #{_clop_apply.1} parent=1347 // loop_pre_header
            _
          $region1350: #{_clop_apply.1} parent=1347 // loop_header
            %s2272 = sphi 0, %s2276
            %p2273 = scmp.ge.s32.totalorder %s2272, 1
            %s2277 = sphi %s2259, %s2259
            %s2278 = sphi %s2260, %s2260
          $region1351: #{_clop_apply.1} parent=1347 // loop_header_branch
            %2275 = sbr.rel (%p2273) target = $region1355
          $region1352: #{_clop_apply.1} parent=1347 // loop_body
            %v2279 = vld [vmem:[%s2277] sm:%s2270]
            %2280 = vst [vmem:[%s2278] sm:%s2270] %v2279
          $region1353: #{_clop_apply.1} parent=1347 // loop_footer
            %s2276 = sadd.s32 1, %s2272
          $region1354: #{_clop_apply.1} parent=1347 // loop_footer_branch
            %2271 = sbr.rel target = $region1350
          $region1355: #{_clop_apply.1} parent=1347 // loop_exit
            _
        $region1348: #{_clop_apply.1} parent=979 // pred_fallthru
          _
        // Predicated region
        $region1367: #{_clop_apply.1} parent=979 // pred_check
          _
        $region1368: #{_clop_apply.1} parent=979 // pred_check_branch
          %2304 = sbr.rel (0) target = $region1370
        $region1369: #{_clop_apply.1} parent=979 // pred_region
          %2305 = vsyncadd %s2261, 16
        $region1370: #{_clop_apply.1} parent=979 // pred_fallthru
          _
        %s2306 = sadd.s32 %s1657, 13
        %s2307 = sadd.s32 %s1656, 13
        %s2308 = sld [smem:[#allocation5 + %s2307]]
        %s2309 = scalar_lea.vmem %s1, %s2308
        %s2310 = scalar_lea.vmem [#allocation2], %s2306
        %s2311 = scalar_lea.sflag [#allocation3], %s2306
        %p2313 = scmp.lt.u32.totalorder 1, 8
        %p2314 = pneg %p2313
        // Predicated region
        $region1371: #{_clop_apply.1} parent=979 // pred_check
          _
        $region1372: #{_clop_apply.1} parent=979 // pred_check_branch
          %2316 = sbr.rel (%p2313) target = $region1374
        $region1373: #{_clop_apply.1} parent=979 // pred_region
          %s2331 = sand.u32 1, 7
          %p2332 = scmp.eq.s32.totalorder %s2331, 0
          %p2333 = pneg %p2332
          // Predicated region
          $region1386: #{_clop_apply.1} parent=1373 // pred_check
            _
          $region1387: #{_clop_apply.1} parent=1373 // pred_check_branch
            %2335 = sbr.rel (%p2332) target = $region1389
          $region1388: #{_clop_apply.1} parent=1373 // pred_region
            %s2336 = sand.u32 1, 7
            %s2337 = ssub.s32 1, %s2336
            %s2338 = scalar_lea.vmem %s2309, %s2337
            %s2339 = ssub.s32 1, %s2336
            %s2340 = scalar_lea.vmem %s2310, %s2339 [#allocation2]
            %s2341 = sshllo.u32 0, %s2336
            loop: start=0, step=1, limit=1
            $region1390: #{_clop_apply.1} parent=1388 // loop_pre_header
              _
            $region1391: #{_clop_apply.1} parent=1388 // loop_header
              %s2343 = sphi 0, %s2347
              %p2344 = scmp.ge.s32.totalorder %s2343, 1
              %s2348 = sphi %s2338, %s2338
              %s2349 = sphi %s2340, %s2340
            $region1392: #{_clop_apply.1} parent=1388 // loop_header_branch
              %2346 = sbr.rel (%p2344) target = $region1396
            $region1393: #{_clop_apply.1} parent=1388 // loop_body
              %v2350 = vld [vmem:[%s2348] sm:%s2341]
              %2351 = vst [vmem:[%s2349] sm:%s2341] %v2350
            $region1394: #{_clop_apply.1} parent=1388 // loop_footer
              %s2347 = sadd.s32 1, %s2343
            $region1395: #{_clop_apply.1} parent=1388 // loop_footer_branch
              %2342 = sbr.rel target = $region1391
            $region1396: #{_clop_apply.1} parent=1388 // loop_exit
              _
          $region1389: #{_clop_apply.1} parent=1373 // pred_fallthru
            _
        $region1374: #{_clop_apply.1} parent=979 // pred_fallthru
          _
        // Predicated region
        $region1375: #{_clop_apply.1} parent=979 // pred_check
          %p2317 = pneg %p2313
        $region1376: #{_clop_apply.1} parent=979 // pred_check_branch
          %2319 = sbr.rel (%p2317) target = $region1378
        $region1377: #{_clop_apply.1} parent=979 // pred_region
          %s2320 = sshllo.u32 0, 1
          loop: start=0, step=1, limit=1
          $region1379: #{_clop_apply.1} parent=1377 // loop_pre_header
            _
          $region1380: #{_clop_apply.1} parent=1377 // loop_header
            %s2322 = sphi 0, %s2326
            %p2323 = scmp.ge.s32.totalorder %s2322, 1
            %s2327 = sphi %s2309, %s2309
            %s2328 = sphi %s2310, %s2310
          $region1381: #{_clop_apply.1} parent=1377 // loop_header_branch
            %2325 = sbr.rel (%p2323) target = $region1385
          $region1382: #{_clop_apply.1} parent=1377 // loop_body
            %v2329 = vld [vmem:[%s2327] sm:%s2320]
            %2330 = vst [vmem:[%s2328] sm:%s2320] %v2329
          $region1383: #{_clop_apply.1} parent=1377 // loop_footer
            %s2326 = sadd.s32 1, %s2322
          $region1384: #{_clop_apply.1} parent=1377 // loop_footer_branch
            %2321 = sbr.rel target = $region1380
          $region1385: #{_clop_apply.1} parent=1377 // loop_exit
            _
        $region1378: #{_clop_apply.1} parent=979 // pred_fallthru
          _
        // Predicated region
        $region1397: #{_clop_apply.1} parent=979 // pred_check
          _
        $region1398: #{_clop_apply.1} parent=979 // pred_check_branch
          %2354 = sbr.rel (0) target = $region1400
        $region1399: #{_clop_apply.1} parent=979 // pred_region
          %2355 = vsyncadd %s2311, 16
        $region1400: #{_clop_apply.1} parent=979 // pred_fallthru
          _
        %s2356 = sadd.s32 %s1657, 14
        %s2357 = sadd.s32 %s1656, 14
        %s2358 = sld [smem:[#allocation5 + %s2357]]
        %s2359 = scalar_lea.vmem %s1, %s2358
        %s2360 = scalar_lea.vmem [#allocation2], %s2356
        %s2361 = scalar_lea.sflag [#allocation3], %s2356
        %p2363 = scmp.lt.u32.totalorder 1, 8
        %p2364 = pneg %p2363
        // Predicated region
        $region1401: #{_clop_apply.1} parent=979 // pred_check
          _
        $region1402: #{_clop_apply.1} parent=979 // pred_check_branch
          %2366 = sbr.rel (%p2363) target = $region1404
        $region1403: #{_clop_apply.1} parent=979 // pred_region
          %s2381 = sand.u32 1, 7
          %p2382 = scmp.eq.s32.totalorder %s2381, 0
          %p2383 = pneg %p2382
          // Predicated region
          $region1416: #{_clop_apply.1} parent=1403 // pred_check
            _
          $region1417: #{_clop_apply.1} parent=1403 // pred_check_branch
            %2385 = sbr.rel (%p2382) target = $region1419
          $region1418: #{_clop_apply.1} parent=1403 // pred_region
            %s2386 = sand.u32 1, 7
            %s2387 = ssub.s32 1, %s2386
            %s2388 = scalar_lea.vmem %s2359, %s2387
            %s2389 = ssub.s32 1, %s2386
            %s2390 = scalar_lea.vmem %s2360, %s2389 [#allocation2]
            %s2391 = sshllo.u32 0, %s2386
            loop: start=0, step=1, limit=1
            $region1420: #{_clop_apply.1} parent=1418 // loop_pre_header
              _
            $region1421: #{_clop_apply.1} parent=1418 // loop_header
              %s2393 = sphi 0, %s2397
              %p2394 = scmp.ge.s32.totalorder %s2393, 1
              %s2398 = sphi %s2388, %s2388
              %s2399 = sphi %s2390, %s2390
            $region1422: #{_clop_apply.1} parent=1418 // loop_header_branch
              %2396 = sbr.rel (%p2394) target = $region1426
            $region1423: #{_clop_apply.1} parent=1418 // loop_body
              %v2400 = vld [vmem:[%s2398] sm:%s2391]
              %2401 = vst [vmem:[%s2399] sm:%s2391] %v2400
            $region1424: #{_clop_apply.1} parent=1418 // loop_footer
              %s2397 = sadd.s32 1, %s2393
            $region1425: #{_clop_apply.1} parent=1418 // loop_footer_branch
              %2392 = sbr.rel target = $region1421
            $region1426: #{_clop_apply.1} parent=1418 // loop_exit
              _
          $region1419: #{_clop_apply.1} parent=1403 // pred_fallthru
            _
        $region1404: #{_clop_apply.1} parent=979 // pred_fallthru
          _
        // Predicated region
        $region1405: #{_clop_apply.1} parent=979 // pred_check
          %p2367 = pneg %p2363
        $region1406: #{_clop_apply.1} parent=979 // pred_check_branch
          %2369 = sbr.rel (%p2367) target = $region1408
        $region1407: #{_clop_apply.1} parent=979 // pred_region
          %s2370 = sshllo.u32 0, 1
          loop: start=0, step=1, limit=1
          $region1409: #{_clop_apply.1} parent=1407 // loop_pre_header
            _
          $region1410: #{_clop_apply.1} parent=1407 // loop_header
            %s2372 = sphi 0, %s2376
            %p2373 = scmp.ge.s32.totalorder %s2372, 1
            %s2377 = sphi %s2359, %s2359
            %s2378 = sphi %s2360, %s2360
          $region1411: #{_clop_apply.1} parent=1407 // loop_header_branch
            %2375 = sbr.rel (%p2373) target = $region1415
          $region1412: #{_clop_apply.1} parent=1407 // loop_body
            %v2379 = vld [vmem:[%s2377] sm:%s2370]
            %2380 = vst [vmem:[%s2378] sm:%s2370] %v2379
          $region1413: #{_clop_apply.1} parent=1407 // loop_footer
            %s2376 = sadd.s32 1, %s2372
          $region1414: #{_clop_apply.1} parent=1407 // loop_footer_branch
            %2371 = sbr.rel target = $region1410
          $region1415: #{_clop_apply.1} parent=1407 // loop_exit
            _
        $region1408: #{_clop_apply.1} parent=979 // pred_fallthru
          _
        // Predicated region
        $region1427: #{_clop_apply.1} parent=979 // pred_check
          _
        $region1428: #{_clop_apply.1} parent=979 // pred_check_branch
          %2404 = sbr.rel (0) target = $region1430
        $region1429: #{_clop_apply.1} parent=979 // pred_region
          %2405 = vsyncadd %s2361, 16
        $region1430: #{_clop_apply.1} parent=979 // pred_fallthru
          _
        %s2406 = sadd.s32 %s1657, 15
        %s2407 = sadd.s32 %s1656, 15
        %s2408 = sld [smem:[#allocation5 + %s2407]]
        %s2409 = scalar_lea.vmem %s1, %s2408
        %s2410 = scalar_lea.vmem [#allocation2], %s2406
        %s2411 = scalar_lea.sflag [#allocation3], %s2406
        %p2413 = scmp.lt.u32.totalorder 1, 8
        %p2414 = pneg %p2413
        // Predicated region
        $region1431: #{_clop_apply.1} parent=979 // pred_check
          _
        $region1432: #{_clop_apply.1} parent=979 // pred_check_branch
          %2416 = sbr.rel (%p2413) target = $region1434
        $region1433: #{_clop_apply.1} parent=979 // pred_region
          %s2431 = sand.u32 1, 7
          %p2432 = scmp.eq.s32.totalorder %s2431, 0
          %p2433 = pneg %p2432
          // Predicated region
          $region1446: #{_clop_apply.1} parent=1433 // pred_check
            _
          $region1447: #{_clop_apply.1} parent=1433 // pred_check_branch
            %2435 = sbr.rel (%p2432) target = $region1449
          $region1448: #{_clop_apply.1} parent=1433 // pred_region
            %s2436 = sand.u32 1, 7
            %s2437 = ssub.s32 1, %s2436
            %s2438 = scalar_lea.vmem %s2409, %s2437
            %s2439 = ssub.s32 1, %s2436
            %s2440 = scalar_lea.vmem %s2410, %s2439 [#allocation2]
            %s2441 = sshllo.u32 0, %s2436
            loop: start=0, step=1, limit=1
            $region1450: #{_clop_apply.1} parent=1448 // loop_pre_header
              _
            $region1451: #{_clop_apply.1} parent=1448 // loop_header
              %s2443 = sphi 0, %s2447
              %p2444 = scmp.ge.s32.totalorder %s2443, 1
              %s2448 = sphi %s2438, %s2438
              %s2449 = sphi %s2440, %s2440
            $region1452: #{_clop_apply.1} parent=1448 // loop_header_branch
              %2446 = sbr.rel (%p2444) target = $region1456
            $region1453: #{_clop_apply.1} parent=1448 // loop_body
              %v2450 = vld [vmem:[%s2448] sm:%s2441]
              %2451 = vst [vmem:[%s2449] sm:%s2441] %v2450
            $region1454: #{_clop_apply.1} parent=1448 // loop_footer
              %s2447 = sadd.s32 1, %s2443
            $region1455: #{_clop_apply.1} parent=1448 // loop_footer_branch
              %2442 = sbr.rel target = $region1451
            $region1456: #{_clop_apply.1} parent=1448 // loop_exit
              _
          $region1449: #{_clop_apply.1} parent=1433 // pred_fallthru
            _
        $region1434: #{_clop_apply.1} parent=979 // pred_fallthru
          _
        // Predicated region
        $region1435: #{_clop_apply.1} parent=979 // pred_check
          %p2417 = pneg %p2413
        $region1436: #{_clop_apply.1} parent=979 // pred_check_branch
          %2419 = sbr.rel (%p2417) target = $region1438
        $region1437: #{_clop_apply.1} parent=979 // pred_region
          %s2420 = sshllo.u32 0, 1
          loop: start=0, step=1, limit=1
          $region1439: #{_clop_apply.1} parent=1437 // loop_pre_header
            _
          $region1440: #{_clop_apply.1} parent=1437 // loop_header
            %s2422 = sphi 0, %s2426
            %p2423 = scmp.ge.s32.totalorder %s2422, 1
            %s2427 = sphi %s2409, %s2409
            %s2428 = sphi %s2410, %s2410
          $region1441: #{_clop_apply.1} parent=1437 // loop_header_branch
            %2425 = sbr.rel (%p2423) target = $region1445
          $region1442: #{_clop_apply.1} parent=1437 // loop_body
            %v2429 = vld [vmem:[%s2427] sm:%s2420]
            %2430 = vst [vmem:[%s2428] sm:%s2420] %v2429
          $region1443: #{_clop_apply.1} parent=1437 // loop_footer
            %s2426 = sadd.s32 1, %s2422
          $region1444: #{_clop_apply.1} parent=1437 // loop_footer_branch
            %2421 = sbr.rel target = $region1440
          $region1445: #{_clop_apply.1} parent=1437 // loop_exit
            _
        $region1438: #{_clop_apply.1} parent=979 // pred_fallthru
          _
        // Predicated region
        $region1457: #{_clop_apply.1} parent=979 // pred_check
          _
        $region1458: #{_clop_apply.1} parent=979 // pred_check_branch
          %2454 = sbr.rel (0) target = $region1460
        $region1459: #{_clop_apply.1} parent=979 // pred_region
          %2455 = vsyncadd %s2411, 16
        $region1460: #{_clop_apply.1} parent=979 // pred_fallthru
          _
        %s2456 = sadd.s32 %s1657, 16
        %s2457 = sadd.s32 %s1656, 16
        %s2458 = sld [smem:[#allocation5 + %s2457]]
        %s2459 = scalar_lea.vmem %s1, %s2458
        %s2460 = scalar_lea.vmem [#allocation2], %s2456
        %s2461 = scalar_lea.sflag [#allocation3], %s2456
        %p2463 = scmp.lt.u32.totalorder 1, 8
        %p2464 = pneg %p2463
        // Predicated region
        $region1461: #{_clop_apply.1} parent=979 // pred_check
          _
        $region1462: #{_clop_apply.1} parent=979 // pred_check_branch
          %2466 = sbr.rel (%p2463) target = $region1464
        $region1463: #{_clop_apply.1} parent=979 // pred_region
          %s2481 = sand.u32 1, 7
          %p2482 = scmp.eq.s32.totalorder %s2481, 0
          %p2483 = pneg %p2482
          // Predicated region
          $region1476: #{_clop_apply.1} parent=1463 // pred_check
            _
          $region1477: #{_clop_apply.1} parent=1463 // pred_check_branch
            %2485 = sbr.rel (%p2482) target = $region1479
          $region1478: #{_clop_apply.1} parent=1463 // pred_region
            %s2486 = sand.u32 1, 7
            %s2487 = ssub.s32 1, %s2486
            %s2488 = scalar_lea.vmem %s2459, %s2487
            %s2489 = ssub.s32 1, %s2486
            %s2490 = scalar_lea.vmem %s2460, %s2489 [#allocation2]
            %s2491 = sshllo.u32 0, %s2486
            loop: start=0, step=1, limit=1
            $region1480: #{_clop_apply.1} parent=1478 // loop_pre_header
              _
            $region1481: #{_clop_apply.1} parent=1478 // loop_header
              %s2493 = sphi 0, %s2497
              %p2494 = scmp.ge.s32.totalorder %s2493, 1
              %s2498 = sphi %s2488, %s2488
              %s2499 = sphi %s2490, %s2490
            $region1482: #{_clop_apply.1} parent=1478 // loop_header_branch
              %2496 = sbr.rel (%p2494) target = $region1486
            $region1483: #{_clop_apply.1} parent=1478 // loop_body
              %v2500 = vld [vmem:[%s2498] sm:%s2491]
              %2501 = vst [vmem:[%s2499] sm:%s2491] %v2500
            $region1484: #{_clop_apply.1} parent=1478 // loop_footer
              %s2497 = sadd.s32 1, %s2493
            $region1485: #{_clop_apply.1} parent=1478 // loop_footer_branch
              %2492 = sbr.rel target = $region1481
            $region1486: #{_clop_apply.1} parent=1478 // loop_exit
              _
          $region1479: #{_clop_apply.1} parent=1463 // pred_fallthru
            _
        $region1464: #{_clop_apply.1} parent=979 // pred_fallthru
          _
        // Predicated region
        $region1465: #{_clop_apply.1} parent=979 // pred_check
          %p2467 = pneg %p2463
        $region1466: #{_clop_apply.1} parent=979 // pred_check_branch
          %2469 = sbr.rel (%p2467) target = $region1468
        $region1467: #{_clop_apply.1} parent=979 // pred_region
          %s2470 = sshllo.u32 0, 1
          loop: start=0, step=1, limit=1
          $region1469: #{_clop_apply.1} parent=1467 // loop_pre_header
            _
          $region1470: #{_clop_apply.1} parent=1467 // loop_header
            %s2472 = sphi 0, %s2476
            %p2473 = scmp.ge.s32.totalorder %s2472, 1
            %s2477 = sphi %s2459, %s2459
            %s2478 = sphi %s2460, %s2460
          $region1471: #{_clop_apply.1} parent=1467 // loop_header_branch
            %2475 = sbr.rel (%p2473) target = $region1475
          $region1472: #{_clop_apply.1} parent=1467 // loop_body
            %v2479 = vld [vmem:[%s2477] sm:%s2470]
            %2480 = vst [vmem:[%s2478] sm:%s2470] %v2479
          $region1473: #{_clop_apply.1} parent=1467 // loop_footer
            %s2476 = sadd.s32 1, %s2472
          $region1474: #{_clop_apply.1} parent=1467 // loop_footer_branch
            %2471 = sbr.rel target = $region1470
          $region1475: #{_clop_apply.1} parent=1467 // loop_exit
            _
        $region1468: #{_clop_apply.1} parent=979 // pred_fallthru
          _
        // Predicated region
        $region1487: #{_clop_apply.1} parent=979 // pred_check
          _
        $region1488: #{_clop_apply.1} parent=979 // pred_check_branch
          %2504 = sbr.rel (0) target = $region1490
        $region1489: #{_clop_apply.1} parent=979 // pred_region
          %2505 = vsyncadd %s2461, 16
        $region1490: #{_clop_apply.1} parent=979 // pred_fallthru
          _
        %s2506 = sadd.s32 %s1657, 17
        %s2507 = sadd.s32 %s1656, 17
        %s2508 = sld [smem:[#allocation5 + %s2507]]
        %s2509 = scalar_lea.vmem %s1, %s2508
        %s2510 = scalar_lea.vmem [#allocation2], %s2506
        %s2511 = scalar_lea.sflag [#allocation3], %s2506
        %p2513 = scmp.lt.u32.totalorder 1, 8
        %p2514 = pneg %p2513
        // Predicated region
        $region1491: #{_clop_apply.1} parent=979 // pred_check
          _
        $region1492: #{_clop_apply.1} parent=979 // pred_check_branch
          %2516 = sbr.rel (%p2513) target = $region1494
        $region1493: #{_clop_apply.1} parent=979 // pred_region
          %s2531 = sand.u32 1, 7
          %p2532 = scmp.eq.s32.totalorder %s2531, 0
          %p2533 = pneg %p2532
          // Predicated region
          $region1506: #{_clop_apply.1} parent=1493 // pred_check
            _
          $region1507: #{_clop_apply.1} parent=1493 // pred_check_branch
            %2535 = sbr.rel (%p2532) target = $region1509
          $region1508: #{_clop_apply.1} parent=1493 // pred_region
            %s2536 = sand.u32 1, 7
            %s2537 = ssub.s32 1, %s2536
            %s2538 = scalar_lea.vmem %s2509, %s2537
            %s2539 = ssub.s32 1, %s2536
            %s2540 = scalar_lea.vmem %s2510, %s2539 [#allocation2]
            %s2541 = sshllo.u32 0, %s2536
            loop: start=0, step=1, limit=1
            $region1510: #{_clop_apply.1} parent=1508 // loop_pre_header
              _
            $region1511: #{_clop_apply.1} parent=1508 // loop_header
              %s2543 = sphi 0, %s2547
              %p2544 = scmp.ge.s32.totalorder %s2543, 1
              %s2548 = sphi %s2538, %s2538
              %s2549 = sphi %s2540, %s2540
            $region1512: #{_clop_apply.1} parent=1508 // loop_header_branch
              %2546 = sbr.rel (%p2544) target = $region1516
            $region1513: #{_clop_apply.1} parent=1508 // loop_body
              %v2550 = vld [vmem:[%s2548] sm:%s2541]
              %2551 = vst [vmem:[%s2549] sm:%s2541] %v2550
            $region1514: #{_clop_apply.1} parent=1508 // loop_footer
              %s2547 = sadd.s32 1, %s2543
            $region1515: #{_clop_apply.1} parent=1508 // loop_footer_branch
              %2542 = sbr.rel target = $region1511
            $region1516: #{_clop_apply.1} parent=1508 // loop_exit
              _
          $region1509: #{_clop_apply.1} parent=1493 // pred_fallthru
            _
        $region1494: #{_clop_apply.1} parent=979 // pred_fallthru
          _
        // Predicated region
        $region1495: #{_clop_apply.1} parent=979 // pred_check
          %p2517 = pneg %p2513
        $region1496: #{_clop_apply.1} parent=979 // pred_check_branch
          %2519 = sbr.rel (%p2517) target = $region1498
        $region1497: #{_clop_apply.1} parent=979 // pred_region
          %s2520 = sshllo.u32 0, 1
          loop: start=0, step=1, limit=1
          $region1499: #{_clop_apply.1} parent=1497 // loop_pre_header
            _
          $region1500: #{_clop_apply.1} parent=1497 // loop_header
            %s2522 = sphi 0, %s2526
            %p2523 = scmp.ge.s32.totalorder %s2522, 1
            %s2527 = sphi %s2509, %s2509
            %s2528 = sphi %s2510, %s2510
          $region1501: #{_clop_apply.1} parent=1497 // loop_header_branch
            %2525 = sbr.rel (%p2523) target = $region1505
          $region1502: #{_clop_apply.1} parent=1497 // loop_body
            %v2529 = vld [vmem:[%s2527] sm:%s2520]
            %2530 = vst [vmem:[%s2528] sm:%s2520] %v2529
          $region1503: #{_clop_apply.1} parent=1497 // loop_footer
            %s2526 = sadd.s32 1, %s2522
          $region1504: #{_clop_apply.1} parent=1497 // loop_footer_branch
            %2521 = sbr.rel target = $region1500
          $region1505: #{_clop_apply.1} parent=1497 // loop_exit
            _
        $region1498: #{_clop_apply.1} parent=979 // pred_fallthru
          _
        // Predicated region
        $region1517: #{_clop_apply.1} parent=979 // pred_check
          _
        $region1518: #{_clop_apply.1} parent=979 // pred_check_branch
          %2554 = sbr.rel (0) target = $region1520
        $region1519: #{_clop_apply.1} parent=979 // pred_region
          %2555 = vsyncadd %s2511, 16
        $region1520: #{_clop_apply.1} parent=979 // pred_fallthru
          _
        %s2556 = sadd.s32 %s1657, 18
        %s2557 = sadd.s32 %s1656, 18
        %s2558 = sld [smem:[#allocation5 + %s2557]]
        %s2559 = scalar_lea.vmem %s1, %s2558
        %s2560 = scalar_lea.vmem [#allocation2], %s2556
        %s2561 = scalar_lea.sflag [#allocation3], %s2556
        %p2563 = scmp.lt.u32.totalorder 1, 8
        %p2564 = pneg %p2563
        // Predicated region
        $region1521: #{_clop_apply.1} parent=979 // pred_check
          _
        $region1522: #{_clop_apply.1} parent=979 // pred_check_branch
          %2566 = sbr.rel (%p2563) target = $region1524
        $region1523: #{_clop_apply.1} parent=979 // pred_region
          %s2581 = sand.u32 1, 7
          %p2582 = scmp.eq.s32.totalorder %s2581, 0
          %p2583 = pneg %p2582
          // Predicated region
          $region1536: #{_clop_apply.1} parent=1523 // pred_check
            _
          $region1537: #{_clop_apply.1} parent=1523 // pred_check_branch
            %2585 = sbr.rel (%p2582) target = $region1539
          $region1538: #{_clop_apply.1} parent=1523 // pred_region
            %s2586 = sand.u32 1, 7
            %s2587 = ssub.s32 1, %s2586
            %s2588 = scalar_lea.vmem %s2559, %s2587
            %s2589 = ssub.s32 1, %s2586
            %s2590 = scalar_lea.vmem %s2560, %s2589 [#allocation2]
            %s2591 = sshllo.u32 0, %s2586
            loop: start=0, step=1, limit=1
            $region1540: #{_clop_apply.1} parent=1538 // loop_pre_header
              _
            $region1541: #{_clop_apply.1} parent=1538 // loop_header
              %s2593 = sphi 0, %s2597
              %p2594 = scmp.ge.s32.totalorder %s2593, 1
              %s2598 = sphi %s2588, %s2588
              %s2599 = sphi %s2590, %s2590
            $region1542: #{_clop_apply.1} parent=1538 // loop_header_branch
              %2596 = sbr.rel (%p2594) target = $region1546
            $region1543: #{_clop_apply.1} parent=1538 // loop_body
              %v2600 = vld [vmem:[%s2598] sm:%s2591]
              %2601 = vst [vmem:[%s2599] sm:%s2591] %v2600
            $region1544: #{_clop_apply.1} parent=1538 // loop_footer
              %s2597 = sadd.s32 1, %s2593
            $region1545: #{_clop_apply.1} parent=1538 // loop_footer_branch
              %2592 = sbr.rel target = $region1541
            $region1546: #{_clop_apply.1} parent=1538 // loop_exit
              _
          $region1539: #{_clop_apply.1} parent=1523 // pred_fallthru
            _
        $region1524: #{_clop_apply.1} parent=979 // pred_fallthru
          _
        // Predicated region
        $region1525: #{_clop_apply.1} parent=979 // pred_check
          %p2567 = pneg %p2563
        $region1526: #{_clop_apply.1} parent=979 // pred_check_branch
          %2569 = sbr.rel (%p2567) target = $region1528
        $region1527: #{_clop_apply.1} parent=979 // pred_region
          %s2570 = sshllo.u32 0, 1
          loop: start=0, step=1, limit=1
          $region1529: #{_clop_apply.1} parent=1527 // loop_pre_header
            _
          $region1530: #{_clop_apply.1} parent=1527 // loop_header
            %s2572 = sphi 0, %s2576
            %p2573 = scmp.ge.s32.totalorder %s2572, 1
            %s2577 = sphi %s2559, %s2559
            %s2578 = sphi %s2560, %s2560
          $region1531: #{_clop_apply.1} parent=1527 // loop_header_branch
            %2575 = sbr.rel (%p2573) target = $region1535
          $region1532: #{_clop_apply.1} parent=1527 // loop_body
            %v2579 = vld [vmem:[%s2577] sm:%s2570]
            %2580 = vst [vmem:[%s2578] sm:%s2570] %v2579
          $region1533: #{_clop_apply.1} parent=1527 // loop_footer
            %s2576 = sadd.s32 1, %s2572
          $region1534: #{_clop_apply.1} parent=1527 // loop_footer_branch
            %2571 = sbr.rel target = $region1530
          $region1535: #{_clop_apply.1} parent=1527 // loop_exit
            _
        $region1528: #{_clop_apply.1} parent=979 // pred_fallthru
          _
        // Predicated region
        $region1547: #{_clop_apply.1} parent=979 // pred_check
          _
        $region1548: #{_clop_apply.1} parent=979 // pred_check_branch
          %2604 = sbr.rel (0) target = $region1550
        $region1549: #{_clop_apply.1} parent=979 // pred_region
          %2605 = vsyncadd %s2561, 16
        $region1550: #{_clop_apply.1} parent=979 // pred_fallthru
          _
        %s2606 = sadd.s32 %s1657, 19
        %s2607 = sadd.s32 %s1656, 19
        %s2608 = sld [smem:[#allocation5 + %s2607]]
        %s2609 = scalar_lea.vmem %s1, %s2608
        %s2610 = scalar_lea.vmem [#allocation2], %s2606
        %s2611 = scalar_lea.sflag [#allocation3], %s2606
        %p2613 = scmp.lt.u32.totalorder 1, 8
        %p2614 = pneg %p2613
        // Predicated region
        $region1551: #{_clop_apply.1} parent=979 // pred_check
          _
        $region1552: #{_clop_apply.1} parent=979 // pred_check_branch
          %2616 = sbr.rel (%p2613) target = $region1554
        $region1553: #{_clop_apply.1} parent=979 // pred_region
          %s2631 = sand.u32 1, 7
          %p2632 = scmp.eq.s32.totalorder %s2631, 0
          %p2633 = pneg %p2632
          // Predicated region
          $region1566: #{_clop_apply.1} parent=1553 // pred_check
            _
          $region1567: #{_clop_apply.1} parent=1553 // pred_check_branch
            %2635 = sbr.rel (%p2632) target = $region1569
          $region1568: #{_clop_apply.1} parent=1553 // pred_region
            %s2636 = sand.u32 1, 7
            %s2637 = ssub.s32 1, %s2636
            %s2638 = scalar_lea.vmem %s2609, %s2637
            %s2639 = ssub.s32 1, %s2636
            %s2640 = scalar_lea.vmem %s2610, %s2639 [#allocation2]
            %s2641 = sshllo.u32 0, %s2636
            loop: start=0, step=1, limit=1
            $region1570: #{_clop_apply.1} parent=1568 // loop_pre_header
              _
            $region1571: #{_clop_apply.1} parent=1568 // loop_header
              %s2643 = sphi 0, %s2647
              %p2644 = scmp.ge.s32.totalorder %s2643, 1
              %s2648 = sphi %s2638, %s2638
              %s2649 = sphi %s2640, %s2640
            $region1572: #{_clop_apply.1} parent=1568 // loop_header_branch
              %2646 = sbr.rel (%p2644) target = $region1576
            $region1573: #{_clop_apply.1} parent=1568 // loop_body
              %v2650 = vld [vmem:[%s2648] sm:%s2641]
              %2651 = vst [vmem:[%s2649] sm:%s2641] %v2650
            $region1574: #{_clop_apply.1} parent=1568 // loop_footer
              %s2647 = sadd.s32 1, %s2643
            $region1575: #{_clop_apply.1} parent=1568 // loop_footer_branch
              %2642 = sbr.rel target = $region1571
            $region1576: #{_clop_apply.1} parent=1568 // loop_exit
              _
          $region1569: #{_clop_apply.1} parent=1553 // pred_fallthru
            _
        $region1554: #{_clop_apply.1} parent=979 // pred_fallthru
          _
        // Predicated region
        $region1555: #{_clop_apply.1} parent=979 // pred_check
          %p2617 = pneg %p2613
        $region1556: #{_clop_apply.1} parent=979 // pred_check_branch
          %2619 = sbr.rel (%p2617) target = $region1558
        $region1557: #{_clop_apply.1} parent=979 // pred_region
          %s2620 = sshllo.u32 0, 1
          loop: start=0, step=1, limit=1
          $region1559: #{_clop_apply.1} parent=1557 // loop_pre_header
            _
          $region1560: #{_clop_apply.1} parent=1557 // loop_header
            %s2622 = sphi 0, %s2626
            %p2623 = scmp.ge.s32.totalorder %s2622, 1
            %s2627 = sphi %s2609, %s2609
            %s2628 = sphi %s2610, %s2610
          $region1561: #{_clop_apply.1} parent=1557 // loop_header_branch
            %2625 = sbr.rel (%p2623) target = $region1565
          $region1562: #{_clop_apply.1} parent=1557 // loop_body
            %v2629 = vld [vmem:[%s2627] sm:%s2620]
            %2630 = vst [vmem:[%s2628] sm:%s2620] %v2629
          $region1563: #{_clop_apply.1} parent=1557 // loop_footer
            %s2626 = sadd.s32 1, %s2622
          $region1564: #{_clop_apply.1} parent=1557 // loop_footer_branch
            %2621 = sbr.rel target = $region1560
          $region1565: #{_clop_apply.1} parent=1557 // loop_exit
            _
        $region1558: #{_clop_apply.1} parent=979 // pred_fallthru
          _
        // Predicated region
        $region1577: #{_clop_apply.1} parent=979 // pred_check
          _
        $region1578: #{_clop_apply.1} parent=979 // pred_check_branch
          %2654 = sbr.rel (0) target = $region1580
        $region1579: #{_clop_apply.1} parent=979 // pred_region
          %2655 = vsyncadd %s2611, 16
        $region1580: #{_clop_apply.1} parent=979 // pred_fallthru
          _
        %s2656 = sadd.s32 %s1657, 20
        %s2657 = sadd.s32 %s1656, 20
        %s2658 = sld [smem:[#allocation5 + %s2657]]
        %s2659 = scalar_lea.vmem %s1, %s2658
        %s2660 = scalar_lea.vmem [#allocation2], %s2656
        %s2661 = scalar_lea.sflag [#allocation3], %s2656
        %p2663 = scmp.lt.u32.totalorder 1, 8
        %p2664 = pneg %p2663
        // Predicated region
        $region1581: #{_clop_apply.1} parent=979 // pred_check
          _
        $region1582: #{_clop_apply.1} parent=979 // pred_check_branch
          %2666 = sbr.rel (%p2663) target = $region1584
        $region1583: #{_clop_apply.1} parent=979 // pred_region
          %s2681 = sand.u32 1, 7
          %p2682 = scmp.eq.s32.totalorder %s2681, 0
          %p2683 = pneg %p2682
          // Predicated region
          $region1596: #{_clop_apply.1} parent=1583 // pred_check
            _
          $region1597: #{_clop_apply.1} parent=1583 // pred_check_branch
            %2685 = sbr.rel (%p2682) target = $region1599
          $region1598: #{_clop_apply.1} parent=1583 // pred_region
            %s2686 = sand.u32 1, 7
            %s2687 = ssub.s32 1, %s2686
            %s2688 = scalar_lea.vmem %s2659, %s2687
            %s2689 = ssub.s32 1, %s2686
            %s2690 = scalar_lea.vmem %s2660, %s2689 [#allocation2]
            %s2691 = sshllo.u32 0, %s2686
            loop: start=0, step=1, limit=1
            $region1600: #{_clop_apply.1} parent=1598 // loop_pre_header
              _
            $region1601: #{_clop_apply.1} parent=1598 // loop_header
              %s2693 = sphi 0, %s2697
              %p2694 = scmp.ge.s32.totalorder %s2693, 1
              %s2698 = sphi %s2688, %s2688
              %s2699 = sphi %s2690, %s2690
            $region1602: #{_clop_apply.1} parent=1598 // loop_header_branch
              %2696 = sbr.rel (%p2694) target = $region1606
            $region1603: #{_clop_apply.1} parent=1598 // loop_body
              %v2700 = vld [vmem:[%s2698] sm:%s2691]
              %2701 = vst [vmem:[%s2699] sm:%s2691] %v2700
            $region1604: #{_clop_apply.1} parent=1598 // loop_footer
              %s2697 = sadd.s32 1, %s2693
            $region1605: #{_clop_apply.1} parent=1598 // loop_footer_branch
              %2692 = sbr.rel target = $region1601
            $region1606: #{_clop_apply.1} parent=1598 // loop_exit
              _
          $region1599: #{_clop_apply.1} parent=1583 // pred_fallthru
            _
        $region1584: #{_clop_apply.1} parent=979 // pred_fallthru
          _
        // Predicated region
        $region1585: #{_clop_apply.1} parent=979 // pred_check
          %p2667 = pneg %p2663
        $region1586: #{_clop_apply.1} parent=979 // pred_check_branch
          %2669 = sbr.rel (%p2667) target = $region1588
        $region1587: #{_clop_apply.1} parent=979 // pred_region
          %s2670 = sshllo.u32 0, 1
          loop: start=0, step=1, limit=1
          $region1589: #{_clop_apply.1} parent=1587 // loop_pre_header
            _
          $region1590: #{_clop_apply.1} parent=1587 // loop_header
            %s2672 = sphi 0, %s2676
            %p2673 = scmp.ge.s32.totalorder %s2672, 1
            %s2677 = sphi %s2659, %s2659
            %s2678 = sphi %s2660, %s2660
          $region1591: #{_clop_apply.1} parent=1587 // loop_header_branch
            %2675 = sbr.rel (%p2673) target = $region1595
          $region1592: #{_clop_apply.1} parent=1587 // loop_body
            %v2679 = vld [vmem:[%s2677] sm:%s2670]
            %2680 = vst [vmem:[%s2678] sm:%s2670] %v2679
          $region1593: #{_clop_apply.1} parent=1587 // loop_footer
            %s2676 = sadd.s32 1, %s2672
          $region1594: #{_clop_apply.1} parent=1587 // loop_footer_branch
            %2671 = sbr.rel target = $region1590
          $region1595: #{_clop_apply.1} parent=1587 // loop_exit
            _
        $region1588: #{_clop_apply.1} parent=979 // pred_fallthru
          _
        // Predicated region
        $region1607: #{_clop_apply.1} parent=979 // pred_check
          _
        $region1608: #{_clop_apply.1} parent=979 // pred_check_branch
          %2704 = sbr.rel (0) target = $region1610
        $region1609: #{_clop_apply.1} parent=979 // pred_region
          %2705 = vsyncadd %s2661, 16
        $region1610: #{_clop_apply.1} parent=979 // pred_fallthru
          _
        %s2706 = sadd.s32 %s1657, 21
        %s2707 = sadd.s32 %s1656, 21
        %s2708 = sld [smem:[#allocation5 + %s2707]]
        %s2709 = scalar_lea.vmem %s1, %s2708
        %s2710 = scalar_lea.vmem [#allocation2], %s2706
        %s2711 = scalar_lea.sflag [#allocation3], %s2706
        %p2713 = scmp.lt.u32.totalorder 1, 8
        %p2714 = pneg %p2713
        // Predicated region
        $region1611: #{_clop_apply.1} parent=979 // pred_check
          _
        $region1612: #{_clop_apply.1} parent=979 // pred_check_branch
          %2716 = sbr.rel (%p2713) target = $region1614
        $region1613: #{_clop_apply.1} parent=979 // pred_region
          %s2731 = sand.u32 1, 7
          %p2732 = scmp.eq.s32.totalorder %s2731, 0
          %p2733 = pneg %p2732
          // Predicated region
          $region1626: #{_clop_apply.1} parent=1613 // pred_check
            _
          $region1627: #{_clop_apply.1} parent=1613 // pred_check_branch
            %2735 = sbr.rel (%p2732) target = $region1629
          $region1628: #{_clop_apply.1} parent=1613 // pred_region
            %s2736 = sand.u32 1, 7
            %s2737 = ssub.s32 1, %s2736
            %s2738 = scalar_lea.vmem %s2709, %s2737
            %s2739 = ssub.s32 1, %s2736
            %s2740 = scalar_lea.vmem %s2710, %s2739 [#allocation2]
            %s2741 = sshllo.u32 0, %s2736
            loop: start=0, step=1, limit=1
            $region1630: #{_clop_apply.1} parent=1628 // loop_pre_header
              _
            $region1631: #{_clop_apply.1} parent=1628 // loop_header
              %s2743 = sphi 0, %s2747
              %p2744 = scmp.ge.s32.totalorder %s2743, 1
              %s2748 = sphi %s2738, %s2738
              %s2749 = sphi %s2740, %s2740
            $region1632: #{_clop_apply.1} parent=1628 // loop_header_branch
              %2746 = sbr.rel (%p2744) target = $region1636
            $region1633: #{_clop_apply.1} parent=1628 // loop_body
              %v2750 = vld [vmem:[%s2748] sm:%s2741]
              %2751 = vst [vmem:[%s2749] sm:%s2741] %v2750
            $region1634: #{_clop_apply.1} parent=1628 // loop_footer
              %s2747 = sadd.s32 1, %s2743
            $region1635: #{_clop_apply.1} parent=1628 // loop_footer_branch
              %2742 = sbr.rel target = $region1631
            $region1636: #{_clop_apply.1} parent=1628 // loop_exit
              _
          $region1629: #{_clop_apply.1} parent=1613 // pred_fallthru
            _
        $region1614: #{_clop_apply.1} parent=979 // pred_fallthru
          _
        // Predicated region
        $region1615: #{_clop_apply.1} parent=979 // pred_check
          %p2717 = pneg %p2713
        $region1616: #{_clop_apply.1} parent=979 // pred_check_branch
          %2719 = sbr.rel (%p2717) target = $region1618
        $region1617: #{_clop_apply.1} parent=979 // pred_region
          %s2720 = sshllo.u32 0, 1
          loop: start=0, step=1, limit=1
          $region1619: #{_clop_apply.1} parent=1617 // loop_pre_header
            _
          $region1620: #{_clop_apply.1} parent=1617 // loop_header
            %s2722 = sphi 0, %s2726
            %p2723 = scmp.ge.s32.totalorder %s2722, 1
            %s2727 = sphi %s2709, %s2709
            %s2728 = sphi %s2710, %s2710
          $region1621: #{_clop_apply.1} parent=1617 // loop_header_branch
            %2725 = sbr.rel (%p2723) target = $region1625
          $region1622: #{_clop_apply.1} parent=1617 // loop_body
            %v2729 = vld [vmem:[%s2727] sm:%s2720]
            %2730 = vst [vmem:[%s2728] sm:%s2720] %v2729
          $region1623: #{_clop_apply.1} parent=1617 // loop_footer
            %s2726 = sadd.s32 1, %s2722
          $region1624: #{_clop_apply.1} parent=1617 // loop_footer_branch
            %2721 = sbr.rel target = $region1620
          $region1625: #{_clop_apply.1} parent=1617 // loop_exit
            _
        $region1618: #{_clop_apply.1} parent=979 // pred_fallthru
          _
        // Predicated region
        $region1637: #{_clop_apply.1} parent=979 // pred_check
          _
        $region1638: #{_clop_apply.1} parent=979 // pred_check_branch
          %2754 = sbr.rel (0) target = $region1640
        $region1639: #{_clop_apply.1} parent=979 // pred_region
          %2755 = vsyncadd %s2711, 16
        $region1640: #{_clop_apply.1} parent=979 // pred_fallthru
          _
        %s2756 = sadd.s32 %s1657, 22
        %s2757 = sadd.s32 %s1656, 22
        %s2758 = sld [smem:[#allocation5 + %s2757]]
        %s2759 = scalar_lea.vmem %s1, %s2758
        %s2760 = scalar_lea.vmem [#allocation2], %s2756
        %s2761 = scalar_lea.sflag [#allocation3], %s2756
        %p2763 = scmp.lt.u32.totalorder 1, 8
        %p2764 = pneg %p2763
        // Predicated region
        $region1641: #{_clop_apply.1} parent=979 // pred_check
          _
        $region1642: #{_clop_apply.1} parent=979 // pred_check_branch
          %2766 = sbr.rel (%p2763) target = $region1644
        $region1643: #{_clop_apply.1} parent=979 // pred_region
          %s2781 = sand.u32 1, 7
          %p2782 = scmp.eq.s32.totalorder %s2781, 0
          %p2783 = pneg %p2782
          // Predicated region
          $region1656: #{_clop_apply.1} parent=1643 // pred_check
            _
          $region1657: #{_clop_apply.1} parent=1643 // pred_check_branch
            %2785 = sbr.rel (%p2782) target = $region1659
          $region1658: #{_clop_apply.1} parent=1643 // pred_region
            %s2786 = sand.u32 1, 7
            %s2787 = ssub.s32 1, %s2786
            %s2788 = scalar_lea.vmem %s2759, %s2787
            %s2789 = ssub.s32 1, %s2786
            %s2790 = scalar_lea.vmem %s2760, %s2789 [#allocation2]
            %s2791 = sshllo.u32 0, %s2786
            loop: start=0, step=1, limit=1
            $region1660: #{_clop_apply.1} parent=1658 // loop_pre_header
              _
            $region1661: #{_clop_apply.1} parent=1658 // loop_header
              %s2793 = sphi 0, %s2797
              %p2794 = scmp.ge.s32.totalorder %s2793, 1
              %s2798 = sphi %s2788, %s2788
              %s2799 = sphi %s2790, %s2790
            $region1662: #{_clop_apply.1} parent=1658 // loop_header_branch
              %2796 = sbr.rel (%p2794) target = $region1666
            $region1663: #{_clop_apply.1} parent=1658 // loop_body
              %v2800 = vld [vmem:[%s2798] sm:%s2791]
              %2801 = vst [vmem:[%s2799] sm:%s2791] %v2800
            $region1664: #{_clop_apply.1} parent=1658 // loop_footer
              %s2797 = sadd.s32 1, %s2793
            $region1665: #{_clop_apply.1} parent=1658 // loop_footer_branch
              %2792 = sbr.rel target = $region1661
            $region1666: #{_clop_apply.1} parent=1658 // loop_exit
              _
          $region1659: #{_clop_apply.1} parent=1643 // pred_fallthru
            _
        $region1644: #{_clop_apply.1} parent=979 // pred_fallthru
          _
        // Predicated region
        $region1645: #{_clop_apply.1} parent=979 // pred_check
          %p2767 = pneg %p2763
        $region1646: #{_clop_apply.1} parent=979 // pred_check_branch
          %2769 = sbr.rel (%p2767) target = $region1648
        $region1647: #{_clop_apply.1} parent=979 // pred_region
          %s2770 = sshllo.u32 0, 1
          loop: start=0, step=1, limit=1
          $region1649: #{_clop_apply.1} parent=1647 // loop_pre_header
            _
          $region1650: #{_clop_apply.1} parent=1647 // loop_header
            %s2772 = sphi 0, %s2776
            %p2773 = scmp.ge.s32.totalorder %s2772, 1
            %s2777 = sphi %s2759, %s2759
            %s2778 = sphi %s2760, %s2760
          $region1651: #{_clop_apply.1} parent=1647 // loop_header_branch
            %2775 = sbr.rel (%p2773) target = $region1655
          $region1652: #{_clop_apply.1} parent=1647 // loop_body
            %v2779 = vld [vmem:[%s2777] sm:%s2770]
            %2780 = vst [vmem:[%s2778] sm:%s2770] %v2779
          $region1653: #{_clop_apply.1} parent=1647 // loop_footer
            %s2776 = sadd.s32 1, %s2772
          $region1654: #{_clop_apply.1} parent=1647 // loop_footer_branch
            %2771 = sbr.rel target = $region1650
          $region1655: #{_clop_apply.1} parent=1647 // loop_exit
            _
        $region1648: #{_clop_apply.1} parent=979 // pred_fallthru
          _
        // Predicated region
        $region1667: #{_clop_apply.1} parent=979 // pred_check
          _
        $region1668: #{_clop_apply.1} parent=979 // pred_check_branch
          %2804 = sbr.rel (0) target = $region1670
        $region1669: #{_clop_apply.1} parent=979 // pred_region
          %2805 = vsyncadd %s2761, 16
        $region1670: #{_clop_apply.1} parent=979 // pred_fallthru
          _
        %s2806 = sadd.s32 %s1657, 23
        %s2807 = sadd.s32 %s1656, 23
        %s2808 = sld [smem:[#allocation5 + %s2807]]
        %s2809 = scalar_lea.vmem %s1, %s2808
        %s2810 = scalar_lea.vmem [#allocation2], %s2806
        %s2811 = scalar_lea.sflag [#allocation3], %s2806
        %p2813 = scmp.lt.u32.totalorder 1, 8
        %p2814 = pneg %p2813
        // Predicated region
        $region1671: #{_clop_apply.1} parent=979 // pred_check
          _
        $region1672: #{_clop_apply.1} parent=979 // pred_check_branch
          %2816 = sbr.rel (%p2813) target = $region1674
        $region1673: #{_clop_apply.1} parent=979 // pred_region
          %s2831 = sand.u32 1, 7
          %p2832 = scmp.eq.s32.totalorder %s2831, 0
          %p2833 = pneg %p2832
          // Predicated region
          $region1686: #{_clop_apply.1} parent=1673 // pred_check
            _
          $region1687: #{_clop_apply.1} parent=1673 // pred_check_branch
            %2835 = sbr.rel (%p2832) target = $region1689
          $region1688: #{_clop_apply.1} parent=1673 // pred_region
            %s2836 = sand.u32 1, 7
            %s2837 = ssub.s32 1, %s2836
            %s2838 = scalar_lea.vmem %s2809, %s2837
            %s2839 = ssub.s32 1, %s2836
            %s2840 = scalar_lea.vmem %s2810, %s2839 [#allocation2]
            %s2841 = sshllo.u32 0, %s2836
            loop: start=0, step=1, limit=1
            $region1690: #{_clop_apply.1} parent=1688 // loop_pre_header
              _
            $region1691: #{_clop_apply.1} parent=1688 // loop_header
              %s2843 = sphi 0, %s2847
              %p2844 = scmp.ge.s32.totalorder %s2843, 1
              %s2848 = sphi %s2838, %s2838
              %s2849 = sphi %s2840, %s2840
            $region1692: #{_clop_apply.1} parent=1688 // loop_header_branch
              %2846 = sbr.rel (%p2844) target = $region1696
            $region1693: #{_clop_apply.1} parent=1688 // loop_body
              %v2850 = vld [vmem:[%s2848] sm:%s2841]
              %2851 = vst [vmem:[%s2849] sm:%s2841] %v2850
            $region1694: #{_clop_apply.1} parent=1688 // loop_footer
              %s2847 = sadd.s32 1, %s2843
            $region1695: #{_clop_apply.1} parent=1688 // loop_footer_branch
              %2842 = sbr.rel target = $region1691
            $region1696: #{_clop_apply.1} parent=1688 // loop_exit
              _
          $region1689: #{_clop_apply.1} parent=1673 // pred_fallthru
            _
        $region1674: #{_clop_apply.1} parent=979 // pred_fallthru
          _
        // Predicated region
        $region1675: #{_clop_apply.1} parent=979 // pred_check
          %p2817 = pneg %p2813
        $region1676: #{_clop_apply.1} parent=979 // pred_check_branch
          %2819 = sbr.rel (%p2817) target = $region1678
        $region1677: #{_clop_apply.1} parent=979 // pred_region
          %s2820 = sshllo.u32 0, 1
          loop: start=0, step=1, limit=1
          $region1679: #{_clop_apply.1} parent=1677 // loop_pre_header
            _
          $region1680: #{_clop_apply.1} parent=1677 // loop_header
            %s2822 = sphi 0, %s2826
            %p2823 = scmp.ge.s32.totalorder %s2822, 1
            %s2827 = sphi %s2809, %s2809
            %s2828 = sphi %s2810, %s2810
          $region1681: #{_clop_apply.1} parent=1677 // loop_header_branch
            %2825 = sbr.rel (%p2823) target = $region1685
          $region1682: #{_clop_apply.1} parent=1677 // loop_body
            %v2829 = vld [vmem:[%s2827] sm:%s2820]
            %2830 = vst [vmem:[%s2828] sm:%s2820] %v2829
          $region1683: #{_clop_apply.1} parent=1677 // loop_footer
            %s2826 = sadd.s32 1, %s2822
          $region1684: #{_clop_apply.1} parent=1677 // loop_footer_branch
            %2821 = sbr.rel target = $region1680
          $region1685: #{_clop_apply.1} parent=1677 // loop_exit
            _
        $region1678: #{_clop_apply.1} parent=979 // pred_fallthru
          _
        // Predicated region
        $region1697: #{_clop_apply.1} parent=979 // pred_check
          _
        $region1698: #{_clop_apply.1} parent=979 // pred_check_branch
          %2854 = sbr.rel (0) target = $region1700
        $region1699: #{_clop_apply.1} parent=979 // pred_region
          %2855 = vsyncadd %s2811, 16
        $region1700: #{_clop_apply.1} parent=979 // pred_fallthru
          _
        %s2856 = sadd.s32 %s1657, 24
        %s2857 = sadd.s32 %s1656, 24
        %s2858 = sld [smem:[#allocation5 + %s2857]]
        %s2859 = scalar_lea.vmem %s1, %s2858
        %s2860 = scalar_lea.vmem [#allocation2], %s2856
        %s2861 = scalar_lea.sflag [#allocation3], %s2856
        %p2863 = scmp.lt.u32.totalorder 1, 8
        %p2864 = pneg %p2863
        // Predicated region
        $region1701: #{_clop_apply.1} parent=979 // pred_check
          _
        $region1702: #{_clop_apply.1} parent=979 // pred_check_branch
          %2866 = sbr.rel (%p2863) target = $region1704
        $region1703: #{_clop_apply.1} parent=979 // pred_region
          %s2881 = sand.u32 1, 7
          %p2882 = scmp.eq.s32.totalorder %s2881, 0
          %p2883 = pneg %p2882
          // Predicated region
          $region1716: #{_clop_apply.1} parent=1703 // pred_check
            _
          $region1717: #{_clop_apply.1} parent=1703 // pred_check_branch
            %2885 = sbr.rel (%p2882) target = $region1719
          $region1718: #{_clop_apply.1} parent=1703 // pred_region
            %s2886 = sand.u32 1, 7
            %s2887 = ssub.s32 1, %s2886
            %s2888 = scalar_lea.vmem %s2859, %s2887
            %s2889 = ssub.s32 1, %s2886
            %s2890 = scalar_lea.vmem %s2860, %s2889 [#allocation2]
            %s2891 = sshllo.u32 0, %s2886
            loop: start=0, step=1, limit=1
            $region1720: #{_clop_apply.1} parent=1718 // loop_pre_header
              _
            $region1721: #{_clop_apply.1} parent=1718 // loop_header
              %s2893 = sphi 0, %s2897
              %p2894 = scmp.ge.s32.totalorder %s2893, 1
              %s2898 = sphi %s2888, %s2888
              %s2899 = sphi %s2890, %s2890
            $region1722: #{_clop_apply.1} parent=1718 // loop_header_branch
              %2896 = sbr.rel (%p2894) target = $region1726
            $region1723: #{_clop_apply.1} parent=1718 // loop_body
              %v2900 = vld [vmem:[%s2898] sm:%s2891]
              %2901 = vst [vmem:[%s2899] sm:%s2891] %v2900
            $region1724: #{_clop_apply.1} parent=1718 // loop_footer
              %s2897 = sadd.s32 1, %s2893
            $region1725: #{_clop_apply.1} parent=1718 // loop_footer_branch
              %2892 = sbr.rel target = $region1721
            $region1726: #{_clop_apply.1} parent=1718 // loop_exit
              _
          $region1719: #{_clop_apply.1} parent=1703 // pred_fallthru
            _
        $region1704: #{_clop_apply.1} parent=979 // pred_fallthru
          _
        // Predicated region
        $region1705: #{_clop_apply.1} parent=979 // pred_check
          %p2867 = pneg %p2863
        $region1706: #{_clop_apply.1} parent=979 // pred_check_branch
          %2869 = sbr.rel (%p2867) target = $region1708
        $region1707: #{_clop_apply.1} parent=979 // pred_region
          %s2870 = sshllo.u32 0, 1
          loop: start=0, step=1, limit=1
          $region1709: #{_clop_apply.1} parent=1707 // loop_pre_header
            _
          $region1710: #{_clop_apply.1} parent=1707 // loop_header
            %s2872 = sphi 0, %s2876
            %p2873 = scmp.ge.s32.totalorder %s2872, 1
            %s2877 = sphi %s2859, %s2859
            %s2878 = sphi %s2860, %s2860
          $region1711: #{_clop_apply.1} parent=1707 // loop_header_branch
            %2875 = sbr.rel (%p2873) target = $region1715
          $region1712: #{_clop_apply.1} parent=1707 // loop_body
            %v2879 = vld [vmem:[%s2877] sm:%s2870]
            %2880 = vst [vmem:[%s2878] sm:%s2870] %v2879
          $region1713: #{_clop_apply.1} parent=1707 // loop_footer
            %s2876 = sadd.s32 1, %s2872
          $region1714: #{_clop_apply.1} parent=1707 // loop_footer_branch
            %2871 = sbr.rel target = $region1710
          $region1715: #{_clop_apply.1} parent=1707 // loop_exit
            _
        $region1708: #{_clop_apply.1} parent=979 // pred_fallthru
          _
        // Predicated region
        $region1727: #{_clop_apply.1} parent=979 // pred_check
          _
        $region1728: #{_clop_apply.1} parent=979 // pred_check_branch
          %2904 = sbr.rel (0) target = $region1730
        $region1729: #{_clop_apply.1} parent=979 // pred_region
          %2905 = vsyncadd %s2861, 16
        $region1730: #{_clop_apply.1} parent=979 // pred_fallthru
          _
        %s2906 = sadd.s32 %s1657, 25
        %s2907 = sadd.s32 %s1656, 25
        %s2908 = sld [smem:[#allocation5 + %s2907]]
        %s2909 = scalar_lea.vmem %s1, %s2908
        %s2910 = scalar_lea.vmem [#allocation2], %s2906
        %s2911 = scalar_lea.sflag [#allocation3], %s2906
        %p2913 = scmp.lt.u32.totalorder 1, 8
        %p2914 = pneg %p2913
        // Predicated region
        $region1731: #{_clop_apply.1} parent=979 // pred_check
          _
        $region1732: #{_clop_apply.1} parent=979 // pred_check_branch
          %2916 = sbr.rel (%p2913) target = $region1734
        $region1733: #{_clop_apply.1} parent=979 // pred_region
          %s2931 = sand.u32 1, 7
          %p2932 = scmp.eq.s32.totalorder %s2931, 0
          %p2933 = pneg %p2932
          // Predicated region
          $region1746: #{_clop_apply.1} parent=1733 // pred_check
            _
          $region1747: #{_clop_apply.1} parent=1733 // pred_check_branch
            %2935 = sbr.rel (%p2932) target = $region1749
          $region1748: #{_clop_apply.1} parent=1733 // pred_region
            %s2936 = sand.u32 1, 7
            %s2937 = ssub.s32 1, %s2936
            %s2938 = scalar_lea.vmem %s2909, %s2937
            %s2939 = ssub.s32 1, %s2936
            %s2940 = scalar_lea.vmem %s2910, %s2939 [#allocation2]
            %s2941 = sshllo.u32 0, %s2936
            loop: start=0, step=1, limit=1
            $region1750: #{_clop_apply.1} parent=1748 // loop_pre_header
              _
            $region1751: #{_clop_apply.1} parent=1748 // loop_header
              %s2943 = sphi 0, %s2947
              %p2944 = scmp.ge.s32.totalorder %s2943, 1
              %s2948 = sphi %s2938, %s2938
              %s2949 = sphi %s2940, %s2940
            $region1752: #{_clop_apply.1} parent=1748 // loop_header_branch
              %2946 = sbr.rel (%p2944) target = $region1756
            $region1753: #{_clop_apply.1} parent=1748 // loop_body
              %v2950 = vld [vmem:[%s2948] sm:%s2941]
              %2951 = vst [vmem:[%s2949] sm:%s2941] %v2950
            $region1754: #{_clop_apply.1} parent=1748 // loop_footer
              %s2947 = sadd.s32 1, %s2943
            $region1755: #{_clop_apply.1} parent=1748 // loop_footer_branch
              %2942 = sbr.rel target = $region1751
            $region1756: #{_clop_apply.1} parent=1748 // loop_exit
              _
          $region1749: #{_clop_apply.1} parent=1733 // pred_fallthru
            _
        $region1734: #{_clop_apply.1} parent=979 // pred_fallthru
          _
        // Predicated region
        $region1735: #{_clop_apply.1} parent=979 // pred_check
          %p2917 = pneg %p2913
        $region1736: #{_clop_apply.1} parent=979 // pred_check_branch
          %2919 = sbr.rel (%p2917) target = $region1738
        $region1737: #{_clop_apply.1} parent=979 // pred_region
          %s2920 = sshllo.u32 0, 1
          loop: start=0, step=1, limit=1
          $region1739: #{_clop_apply.1} parent=1737 // loop_pre_header
            _
          $region1740: #{_clop_apply.1} parent=1737 // loop_header
            %s2922 = sphi 0, %s2926
            %p2923 = scmp.ge.s32.totalorder %s2922, 1
            %s2927 = sphi %s2909, %s2909
            %s2928 = sphi %s2910, %s2910
          $region1741: #{_clop_apply.1} parent=1737 // loop_header_branch
            %2925 = sbr.rel (%p2923) target = $region1745
          $region1742: #{_clop_apply.1} parent=1737 // loop_body
            %v2929 = vld [vmem:[%s2927] sm:%s2920]
            %2930 = vst [vmem:[%s2928] sm:%s2920] %v2929
          $region1743: #{_clop_apply.1} parent=1737 // loop_footer
            %s2926 = sadd.s32 1, %s2922
          $region1744: #{_clop_apply.1} parent=1737 // loop_footer_branch
            %2921 = sbr.rel target = $region1740
          $region1745: #{_clop_apply.1} parent=1737 // loop_exit
            _
        $region1738: #{_clop_apply.1} parent=979 // pred_fallthru
          _
        // Predicated region
        $region1757: #{_clop_apply.1} parent=979 // pred_check
          _
        $region1758: #{_clop_apply.1} parent=979 // pred_check_branch
          %2954 = sbr.rel (0) target = $region1760
        $region1759: #{_clop_apply.1} parent=979 // pred_region
          %2955 = vsyncadd %s2911, 16
        $region1760: #{_clop_apply.1} parent=979 // pred_fallthru
          _
        %s2956 = sadd.s32 %s1657, 26
        %s2957 = sadd.s32 %s1656, 26
        %s2958 = sld [smem:[#allocation5 + %s2957]]
        %s2959 = scalar_lea.vmem %s1, %s2958
        %s2960 = scalar_lea.vmem [#allocation2], %s2956
        %s2961 = scalar_lea.sflag [#allocation3], %s2956
        %p2963 = scmp.lt.u32.totalorder 1, 8
        %p2964 = pneg %p2963
        // Predicated region
        $region1761: #{_clop_apply.1} parent=979 // pred_check
          _
        $region1762: #{_clop_apply.1} parent=979 // pred_check_branch
          %2966 = sbr.rel (%p2963) target = $region1764
        $region1763: #{_clop_apply.1} parent=979 // pred_region
          %s2981 = sand.u32 1, 7
          %p2982 = scmp.eq.s32.totalorder %s2981, 0
          %p2983 = pneg %p2982
          // Predicated region
          $region1776: #{_clop_apply.1} parent=1763 // pred_check
            _
          $region1777: #{_clop_apply.1} parent=1763 // pred_check_branch
            %2985 = sbr.rel (%p2982) target = $region1779
          $region1778: #{_clop_apply.1} parent=1763 // pred_region
            %s2986 = sand.u32 1, 7
            %s2987 = ssub.s32 1, %s2986
            %s2988 = scalar_lea.vmem %s2959, %s2987
            %s2989 = ssub.s32 1, %s2986
            %s2990 = scalar_lea.vmem %s2960, %s2989 [#allocation2]
            %s2991 = sshllo.u32 0, %s2986
            loop: start=0, step=1, limit=1
            $region1780: #{_clop_apply.1} parent=1778 // loop_pre_header
              _
            $region1781: #{_clop_apply.1} parent=1778 // loop_header
              %s2993 = sphi 0, %s2997
              %p2994 = scmp.ge.s32.totalorder %s2993, 1
              %s2998 = sphi %s2988, %s2988
              %s2999 = sphi %s2990, %s2990
            $region1782: #{_clop_apply.1} parent=1778 // loop_header_branch
              %2996 = sbr.rel (%p2994) target = $region1786
            $region1783: #{_clop_apply.1} parent=1778 // loop_body
              %v3000 = vld [vmem:[%s2998] sm:%s2991]
              %3001 = vst [vmem:[%s2999] sm:%s2991] %v3000
            $region1784: #{_clop_apply.1} parent=1778 // loop_footer
              %s2997 = sadd.s32 1, %s2993
            $region1785: #{_clop_apply.1} parent=1778 // loop_footer_branch
              %2992 = sbr.rel target = $region1781
            $region1786: #{_clop_apply.1} parent=1778 // loop_exit
              _
          $region1779: #{_clop_apply.1} parent=1763 // pred_fallthru
            _
        $region1764: #{_clop_apply.1} parent=979 // pred_fallthru
          _
        // Predicated region
        $region1765: #{_clop_apply.1} parent=979 // pred_check
          %p2967 = pneg %p2963
        $region1766: #{_clop_apply.1} parent=979 // pred_check_branch
          %2969 = sbr.rel (%p2967) target = $region1768
        $region1767: #{_clop_apply.1} parent=979 // pred_region
          %s2970 = sshllo.u32 0, 1
          loop: start=0, step=1, limit=1
          $region1769: #{_clop_apply.1} parent=1767 // loop_pre_header
            _
          $region1770: #{_clop_apply.1} parent=1767 // loop_header
            %s2972 = sphi 0, %s2976
            %p2973 = scmp.ge.s32.totalorder %s2972, 1
            %s2977 = sphi %s2959, %s2959
            %s2978 = sphi %s2960, %s2960
          $region1771: #{_clop_apply.1} parent=1767 // loop_header_branch
            %2975 = sbr.rel (%p2973) target = $region1775
          $region1772: #{_clop_apply.1} parent=1767 // loop_body
            %v2979 = vld [vmem:[%s2977] sm:%s2970]
            %2980 = vst [vmem:[%s2978] sm:%s2970] %v2979
          $region1773: #{_clop_apply.1} parent=1767 // loop_footer
            %s2976 = sadd.s32 1, %s2972
          $region1774: #{_clop_apply.1} parent=1767 // loop_footer_branch
            %2971 = sbr.rel target = $region1770
          $region1775: #{_clop_apply.1} parent=1767 // loop_exit
            _
        $region1768: #{_clop_apply.1} parent=979 // pred_fallthru
          _
        // Predicated region
        $region1787: #{_clop_apply.1} parent=979 // pred_check
          _
        $region1788: #{_clop_apply.1} parent=979 // pred_check_branch
          %3004 = sbr.rel (0) target = $region1790
        $region1789: #{_clop_apply.1} parent=979 // pred_region
          %3005 = vsyncadd %s2961, 16
        $region1790: #{_clop_apply.1} parent=979 // pred_fallthru
          _
        %s3006 = sadd.s32 %s1657, 27
        %s3007 = sadd.s32 %s1656, 27
        %s3008 = sld [smem:[#allocation5 + %s3007]]
        %s3009 = scalar_lea.vmem %s1, %s3008
        %s3010 = scalar_lea.vmem [#allocation2], %s3006
        %s3011 = scalar_lea.sflag [#allocation3], %s3006
        %p3013 = scmp.lt.u32.totalorder 1, 8
        %p3014 = pneg %p3013
        // Predicated region
        $region1791: #{_clop_apply.1} parent=979 // pred_check
          _
        $region1792: #{_clop_apply.1} parent=979 // pred_check_branch
          %3016 = sbr.rel (%p3013) target = $region1794
        $region1793: #{_clop_apply.1} parent=979 // pred_region
          %s3031 = sand.u32 1, 7
          %p3032 = scmp.eq.s32.totalorder %s3031, 0
          %p3033 = pneg %p3032
          // Predicated region
          $region1806: #{_clop_apply.1} parent=1793 // pred_check
            _
          $region1807: #{_clop_apply.1} parent=1793 // pred_check_branch
            %3035 = sbr.rel (%p3032) target = $region1809
          $region1808: #{_clop_apply.1} parent=1793 // pred_region
            %s3036 = sand.u32 1, 7
            %s3037 = ssub.s32 1, %s3036
            %s3038 = scalar_lea.vmem %s3009, %s3037
            %s3039 = ssub.s32 1, %s3036
            %s3040 = scalar_lea.vmem %s3010, %s3039 [#allocation2]
            %s3041 = sshllo.u32 0, %s3036
            loop: start=0, step=1, limit=1
            $region1810: #{_clop_apply.1} parent=1808 // loop_pre_header
              _
            $region1811: #{_clop_apply.1} parent=1808 // loop_header
              %s3043 = sphi 0, %s3047
              %p3044 = scmp.ge.s32.totalorder %s3043, 1
              %s3048 = sphi %s3038, %s3038
              %s3049 = sphi %s3040, %s3040
            $region1812: #{_clop_apply.1} parent=1808 // loop_header_branch
              %3046 = sbr.rel (%p3044) target = $region1816
            $region1813: #{_clop_apply.1} parent=1808 // loop_body
              %v3050 = vld [vmem:[%s3048] sm:%s3041]
              %3051 = vst [vmem:[%s3049] sm:%s3041] %v3050
            $region1814: #{_clop_apply.1} parent=1808 // loop_footer
              %s3047 = sadd.s32 1, %s3043
            $region1815: #{_clop_apply.1} parent=1808 // loop_footer_branch
              %3042 = sbr.rel target = $region1811
            $region1816: #{_clop_apply.1} parent=1808 // loop_exit
              _
          $region1809: #{_clop_apply.1} parent=1793 // pred_fallthru
            _
        $region1794: #{_clop_apply.1} parent=979 // pred_fallthru
          _
        // Predicated region
        $region1795: #{_clop_apply.1} parent=979 // pred_check
          %p3017 = pneg %p3013
        $region1796: #{_clop_apply.1} parent=979 // pred_check_branch
          %3019 = sbr.rel (%p3017) target = $region1798
        $region1797: #{_clop_apply.1} parent=979 // pred_region
          %s3020 = sshllo.u32 0, 1
          loop: start=0, step=1, limit=1
          $region1799: #{_clop_apply.1} parent=1797 // loop_pre_header
            _
          $region1800: #{_clop_apply.1} parent=1797 // loop_header
            %s3022 = sphi 0, %s3026
            %p3023 = scmp.ge.s32.totalorder %s3022, 1
            %s3027 = sphi %s3009, %s3009
            %s3028 = sphi %s3010, %s3010
          $region1801: #{_clop_apply.1} parent=1797 // loop_header_branch
            %3025 = sbr.rel (%p3023) target = $region1805
          $region1802: #{_clop_apply.1} parent=1797 // loop_body
            %v3029 = vld [vmem:[%s3027] sm:%s3020]
            %3030 = vst [vmem:[%s3028] sm:%s3020] %v3029
          $region1803: #{_clop_apply.1} parent=1797 // loop_footer
            %s3026 = sadd.s32 1, %s3022
          $region1804: #{_clop_apply.1} parent=1797 // loop_footer_branch
            %3021 = sbr.rel target = $region1800
          $region1805: #{_clop_apply.1} parent=1797 // loop_exit
            _
        $region1798: #{_clop_apply.1} parent=979 // pred_fallthru
          _
        // Predicated region
        $region1817: #{_clop_apply.1} parent=979 // pred_check
          _
        $region1818: #{_clop_apply.1} parent=979 // pred_check_branch
          %3054 = sbr.rel (0) target = $region1820
        $region1819: #{_clop_apply.1} parent=979 // pred_region
          %3055 = vsyncadd %s3011, 16
        $region1820: #{_clop_apply.1} parent=979 // pred_fallthru
          _
        %s3056 = sadd.s32 %s1657, 28
        %s3057 = sadd.s32 %s1656, 28
        %s3058 = sld [smem:[#allocation5 + %s3057]]
        %s3059 = scalar_lea.vmem %s1, %s3058
        %s3060 = scalar_lea.vmem [#allocation2], %s3056
        %s3061 = scalar_lea.sflag [#allocation3], %s3056
        %p3063 = scmp.lt.u32.totalorder 1, 8
        %p3064 = pneg %p3063
        // Predicated region
        $region1821: #{_clop_apply.1} parent=979 // pred_check
          _
        $region1822: #{_clop_apply.1} parent=979 // pred_check_branch
          %3066 = sbr.rel (%p3063) target = $region1824
        $region1823: #{_clop_apply.1} parent=979 // pred_region
          %s3081 = sand.u32 1, 7
          %p3082 = scmp.eq.s32.totalorder %s3081, 0
          %p3083 = pneg %p3082
          // Predicated region
          $region1836: #{_clop_apply.1} parent=1823 // pred_check
            _
          $region1837: #{_clop_apply.1} parent=1823 // pred_check_branch
            %3085 = sbr.rel (%p3082) target = $region1839
          $region1838: #{_clop_apply.1} parent=1823 // pred_region
            %s3086 = sand.u32 1, 7
            %s3087 = ssub.s32 1, %s3086
            %s3088 = scalar_lea.vmem %s3059, %s3087
            %s3089 = ssub.s32 1, %s3086
            %s3090 = scalar_lea.vmem %s3060, %s3089 [#allocation2]
            %s3091 = sshllo.u32 0, %s3086
            loop: start=0, step=1, limit=1
            $region1840: #{_clop_apply.1} parent=1838 // loop_pre_header
              _
            $region1841: #{_clop_apply.1} parent=1838 // loop_header
              %s3093 = sphi 0, %s3097
              %p3094 = scmp.ge.s32.totalorder %s3093, 1
              %s3098 = sphi %s3088, %s3088
              %s3099 = sphi %s3090, %s3090
            $region1842: #{_clop_apply.1} parent=1838 // loop_header_branch
              %3096 = sbr.rel (%p3094) target = $region1846
            $region1843: #{_clop_apply.1} parent=1838 // loop_body
              %v3100 = vld [vmem:[%s3098] sm:%s3091]
              %3101 = vst [vmem:[%s3099] sm:%s3091] %v3100
            $region1844: #{_clop_apply.1} parent=1838 // loop_footer
              %s3097 = sadd.s32 1, %s3093
            $region1845: #{_clop_apply.1} parent=1838 // loop_footer_branch
              %3092 = sbr.rel target = $region1841
            $region1846: #{_clop_apply.1} parent=1838 // loop_exit
              _
          $region1839: #{_clop_apply.1} parent=1823 // pred_fallthru
            _
        $region1824: #{_clop_apply.1} parent=979 // pred_fallthru
          _
        // Predicated region
        $region1825: #{_clop_apply.1} parent=979 // pred_check
          %p3067 = pneg %p3063
        $region1826: #{_clop_apply.1} parent=979 // pred_check_branch
          %3069 = sbr.rel (%p3067) target = $region1828
        $region1827: #{_clop_apply.1} parent=979 // pred_region
          %s3070 = sshllo.u32 0, 1
          loop: start=0, step=1, limit=1
          $region1829: #{_clop_apply.1} parent=1827 // loop_pre_header
            _
          $region1830: #{_clop_apply.1} parent=1827 // loop_header
            %s3072 = sphi 0, %s3076
            %p3073 = scmp.ge.s32.totalorder %s3072, 1
            %s3077 = sphi %s3059, %s3059
            %s3078 = sphi %s3060, %s3060
          $region1831: #{_clop_apply.1} parent=1827 // loop_header_branch
            %3075 = sbr.rel (%p3073) target = $region1835
          $region1832: #{_clop_apply.1} parent=1827 // loop_body
            %v3079 = vld [vmem:[%s3077] sm:%s3070]
            %3080 = vst [vmem:[%s3078] sm:%s3070] %v3079
          $region1833: #{_clop_apply.1} parent=1827 // loop_footer
            %s3076 = sadd.s32 1, %s3072
          $region1834: #{_clop_apply.1} parent=1827 // loop_footer_branch
            %3071 = sbr.rel target = $region1830
          $region1835: #{_clop_apply.1} parent=1827 // loop_exit
            _
        $region1828: #{_clop_apply.1} parent=979 // pred_fallthru
          _
        // Predicated region
        $region1847: #{_clop_apply.1} parent=979 // pred_check
          _
        $region1848: #{_clop_apply.1} parent=979 // pred_check_branch
          %3104 = sbr.rel (0) target = $region1850
        $region1849: #{_clop_apply.1} parent=979 // pred_region
          %3105 = vsyncadd %s3061, 16
        $region1850: #{_clop_apply.1} parent=979 // pred_fallthru
          _
        %s3106 = sadd.s32 %s1657, 29
        %s3107 = sadd.s32 %s1656, 29
        %s3108 = sld [smem:[#allocation5 + %s3107]]
        %s3109 = scalar_lea.vmem %s1, %s3108
        %s3110 = scalar_lea.vmem [#allocation2], %s3106
        %s3111 = scalar_lea.sflag [#allocation3], %s3106
        %p3113 = scmp.lt.u32.totalorder 1, 8
        %p3114 = pneg %p3113
        // Predicated region
        $region1851: #{_clop_apply.1} parent=979 // pred_check
          _
        $region1852: #{_clop_apply.1} parent=979 // pred_check_branch
          %3116 = sbr.rel (%p3113) target = $region1854
        $region1853: #{_clop_apply.1} parent=979 // pred_region
          %s3131 = sand.u32 1, 7
          %p3132 = scmp.eq.s32.totalorder %s3131, 0
          %p3133 = pneg %p3132
          // Predicated region
          $region1866: #{_clop_apply.1} parent=1853 // pred_check
            _
          $region1867: #{_clop_apply.1} parent=1853 // pred_check_branch
            %3135 = sbr.rel (%p3132) target = $region1869
          $region1868: #{_clop_apply.1} parent=1853 // pred_region
            %s3136 = sand.u32 1, 7
            %s3137 = ssub.s32 1, %s3136
            %s3138 = scalar_lea.vmem %s3109, %s3137
            %s3139 = ssub.s32 1, %s3136
            %s3140 = scalar_lea.vmem %s3110, %s3139 [#allocation2]
            %s3141 = sshllo.u32 0, %s3136
            loop: start=0, step=1, limit=1
            $region1870: #{_clop_apply.1} parent=1868 // loop_pre_header
              _
            $region1871: #{_clop_apply.1} parent=1868 // loop_header
              %s3143 = sphi 0, %s3147
              %p3144 = scmp.ge.s32.totalorder %s3143, 1
              %s3148 = sphi %s3138, %s3138
              %s3149 = sphi %s3140, %s3140
            $region1872: #{_clop_apply.1} parent=1868 // loop_header_branch
              %3146 = sbr.rel (%p3144) target = $region1876
            $region1873: #{_clop_apply.1} parent=1868 // loop_body
              %v3150 = vld [vmem:[%s3148] sm:%s3141]
              %3151 = vst [vmem:[%s3149] sm:%s3141] %v3150
            $region1874: #{_clop_apply.1} parent=1868 // loop_footer
              %s3147 = sadd.s32 1, %s3143
            $region1875: #{_clop_apply.1} parent=1868 // loop_footer_branch
              %3142 = sbr.rel target = $region1871
            $region1876: #{_clop_apply.1} parent=1868 // loop_exit
              _
          $region1869: #{_clop_apply.1} parent=1853 // pred_fallthru
            _
        $region1854: #{_clop_apply.1} parent=979 // pred_fallthru
          _
        // Predicated region
        $region1855: #{_clop_apply.1} parent=979 // pred_check
          %p3117 = pneg %p3113
        $region1856: #{_clop_apply.1} parent=979 // pred_check_branch
          %3119 = sbr.rel (%p3117) target = $region1858
        $region1857: #{_clop_apply.1} parent=979 // pred_region
          %s3120 = sshllo.u32 0, 1
          loop: start=0, step=1, limit=1
          $region1859: #{_clop_apply.1} parent=1857 // loop_pre_header
            _
          $region1860: #{_clop_apply.1} parent=1857 // loop_header
            %s3122 = sphi 0, %s3126
            %p3123 = scmp.ge.s32.totalorder %s3122, 1
            %s3127 = sphi %s3109, %s3109
            %s3128 = sphi %s3110, %s3110
          $region1861: #{_clop_apply.1} parent=1857 // loop_header_branch
            %3125 = sbr.rel (%p3123) target = $region1865
          $region1862: #{_clop_apply.1} parent=1857 // loop_body
            %v3129 = vld [vmem:[%s3127] sm:%s3120]
            %3130 = vst [vmem:[%s3128] sm:%s3120] %v3129
          $region1863: #{_clop_apply.1} parent=1857 // loop_footer
            %s3126 = sadd.s32 1, %s3122
          $region1864: #{_clop_apply.1} parent=1857 // loop_footer_branch
            %3121 = sbr.rel target = $region1860
          $region1865: #{_clop_apply.1} parent=1857 // loop_exit
            _
        $region1858: #{_clop_apply.1} parent=979 // pred_fallthru
          _
        // Predicated region
        $region1877: #{_clop_apply.1} parent=979 // pred_check
          _
        $region1878: #{_clop_apply.1} parent=979 // pred_check_branch
          %3154 = sbr.rel (0) target = $region1880
        $region1879: #{_clop_apply.1} parent=979 // pred_region
          %3155 = vsyncadd %s3111, 16
        $region1880: #{_clop_apply.1} parent=979 // pred_fallthru
          _
        %s3156 = sadd.s32 %s1657, 30
        %s3157 = sadd.s32 %s1656, 30
        %s3158 = sld [smem:[#allocation5 + %s3157]]
        %s3159 = scalar_lea.vmem %s1, %s3158
        %s3160 = scalar_lea.vmem [#allocation2], %s3156
        %s3161 = scalar_lea.sflag [#allocation3], %s3156
        %p3163 = scmp.lt.u32.totalorder 1, 8
        %p3164 = pneg %p3163
        // Predicated region
        $region1881: #{_clop_apply.1} parent=979 // pred_check
          _
        $region1882: #{_clop_apply.1} parent=979 // pred_check_branch
          %3166 = sbr.rel (%p3163) target = $region1884
        $region1883: #{_clop_apply.1} parent=979 // pred_region
          %s3181 = sand.u32 1, 7
          %p3182 = scmp.eq.s32.totalorder %s3181, 0
          %p3183 = pneg %p3182
          // Predicated region
          $region1896: #{_clop_apply.1} parent=1883 // pred_check
            _
          $region1897: #{_clop_apply.1} parent=1883 // pred_check_branch
            %3185 = sbr.rel (%p3182) target = $region1899
          $region1898: #{_clop_apply.1} parent=1883 // pred_region
            %s3186 = sand.u32 1, 7
            %s3187 = ssub.s32 1, %s3186
            %s3188 = scalar_lea.vmem %s3159, %s3187
            %s3189 = ssub.s32 1, %s3186
            %s3190 = scalar_lea.vmem %s3160, %s3189 [#allocation2]
            %s3191 = sshllo.u32 0, %s3186
            loop: start=0, step=1, limit=1
            $region1900: #{_clop_apply.1} parent=1898 // loop_pre_header
              _
            $region1901: #{_clop_apply.1} parent=1898 // loop_header
              %s3193 = sphi 0, %s3197
              %p3194 = scmp.ge.s32.totalorder %s3193, 1
              %s3198 = sphi %s3188, %s3188
              %s3199 = sphi %s3190, %s3190
            $region1902: #{_clop_apply.1} parent=1898 // loop_header_branch
              %3196 = sbr.rel (%p3194) target = $region1906
            $region1903: #{_clop_apply.1} parent=1898 // loop_body
              %v3200 = vld [vmem:[%s3198] sm:%s3191]
              %3201 = vst [vmem:[%s3199] sm:%s3191] %v3200
            $region1904: #{_clop_apply.1} parent=1898 // loop_footer
              %s3197 = sadd.s32 1, %s3193
            $region1905: #{_clop_apply.1} parent=1898 // loop_footer_branch
              %3192 = sbr.rel target = $region1901
            $region1906: #{_clop_apply.1} parent=1898 // loop_exit
              _
          $region1899: #{_clop_apply.1} parent=1883 // pred_fallthru
            _
        $region1884: #{_clop_apply.1} parent=979 // pred_fallthru
          _
        // Predicated region
        $region1885: #{_clop_apply.1} parent=979 // pred_check
          %p3167 = pneg %p3163
        $region1886: #{_clop_apply.1} parent=979 // pred_check_branch
          %3169 = sbr.rel (%p3167) target = $region1888
        $region1887: #{_clop_apply.1} parent=979 // pred_region
          %s3170 = sshllo.u32 0, 1
          loop: start=0, step=1, limit=1
          $region1889: #{_clop_apply.1} parent=1887 // loop_pre_header
            _
          $region1890: #{_clop_apply.1} parent=1887 // loop_header
            %s3172 = sphi 0, %s3176
            %p3173 = scmp.ge.s32.totalorder %s3172, 1
            %s3177 = sphi %s3159, %s3159
            %s3178 = sphi %s3160, %s3160
          $region1891: #{_clop_apply.1} parent=1887 // loop_header_branch
            %3175 = sbr.rel (%p3173) target = $region1895
          $region1892: #{_clop_apply.1} parent=1887 // loop_body
            %v3179 = vld [vmem:[%s3177] sm:%s3170]
            %3180 = vst [vmem:[%s3178] sm:%s3170] %v3179
          $region1893: #{_clop_apply.1} parent=1887 // loop_footer
            %s3176 = sadd.s32 1, %s3172
          $region1894: #{_clop_apply.1} parent=1887 // loop_footer_branch
            %3171 = sbr.rel target = $region1890
          $region1895: #{_clop_apply.1} parent=1887 // loop_exit
            _
        $region1888: #{_clop_apply.1} parent=979 // pred_fallthru
          _
        // Predicated region
        $region1907: #{_clop_apply.1} parent=979 // pred_check
          _
        $region1908: #{_clop_apply.1} parent=979 // pred_check_branch
          %3204 = sbr.rel (0) target = $region1910
        $region1909: #{_clop_apply.1} parent=979 // pred_region
          %3205 = vsyncadd %s3161, 16
        $region1910: #{_clop_apply.1} parent=979 // pred_fallthru
          _
        %s3206 = sadd.s32 %s1657, 31
        %s3207 = sadd.s32 %s1656, 31
        %s3208 = sld [smem:[#allocation5 + %s3207]]
        %s3209 = scalar_lea.vmem %s1, %s3208
        %s3210 = scalar_lea.vmem [#allocation2], %s3206
        %s3211 = scalar_lea.sflag [#allocation3], %s3206
        %p3213 = scmp.lt.u32.totalorder 1, 8
        %p3214 = pneg %p3213
        // Predicated region
        $region1911: #{_clop_apply.1} parent=979 // pred_check
          _
        $region1912: #{_clop_apply.1} parent=979 // pred_check_branch
          %3216 = sbr.rel (%p3213) target = $region1914
        $region1913: #{_clop_apply.1} parent=979 // pred_region
          %s3231 = sand.u32 1, 7
          %p3232 = scmp.eq.s32.totalorder %s3231, 0
          %p3233 = pneg %p3232
          // Predicated region
          $region1926: #{_clop_apply.1} parent=1913 // pred_check
            _
          $region1927: #{_clop_apply.1} parent=1913 // pred_check_branch
            %3235 = sbr.rel (%p3232) target = $region1929
          $region1928: #{_clop_apply.1} parent=1913 // pred_region
            %s3236 = sand.u32 1, 7
            %s3237 = ssub.s32 1, %s3236
            %s3238 = scalar_lea.vmem %s3209, %s3237
            %s3239 = ssub.s32 1, %s3236
            %s3240 = scalar_lea.vmem %s3210, %s3239 [#allocation2]
            %s3241 = sshllo.u32 0, %s3236
            loop: start=0, step=1, limit=1
            $region1930: #{_clop_apply.1} parent=1928 // loop_pre_header
              _
            $region1931: #{_clop_apply.1} parent=1928 // loop_header
              %s3243 = sphi 0, %s3247
              %p3244 = scmp.ge.s32.totalorder %s3243, 1
              %s3248 = sphi %s3238, %s3238
              %s3249 = sphi %s3240, %s3240
            $region1932: #{_clop_apply.1} parent=1928 // loop_header_branch
              %3246 = sbr.rel (%p3244) target = $region1936
            $region1933: #{_clop_apply.1} parent=1928 // loop_body
              %v3250 = vld [vmem:[%s3248] sm:%s3241]
              %3251 = vst [vmem:[%s3249] sm:%s3241] %v3250
            $region1934: #{_clop_apply.1} parent=1928 // loop_footer
              %s3247 = sadd.s32 1, %s3243
            $region1935: #{_clop_apply.1} parent=1928 // loop_footer_branch
              %3242 = sbr.rel target = $region1931
            $region1936: #{_clop_apply.1} parent=1928 // loop_exit
              _
          $region1929: #{_clop_apply.1} parent=1913 // pred_fallthru
            _
        $region1914: #{_clop_apply.1} parent=979 // pred_fallthru
          _
        // Predicated region
        $region1915: #{_clop_apply.1} parent=979 // pred_check
          %p3217 = pneg %p3213
        $region1916: #{_clop_apply.1} parent=979 // pred_check_branch
          %3219 = sbr.rel (%p3217) target = $region1918
        $region1917: #{_clop_apply.1} parent=979 // pred_region
          %s3220 = sshllo.u32 0, 1
          loop: start=0, step=1, limit=1
          $region1919: #{_clop_apply.1} parent=1917 // loop_pre_header
            _
          $region1920: #{_clop_apply.1} parent=1917 // loop_header
            %s3222 = sphi 0, %s3226
            %p3223 = scmp.ge.s32.totalorder %s3222, 1
            %s3227 = sphi %s3209, %s3209
            %s3228 = sphi %s3210, %s3210
          $region1921: #{_clop_apply.1} parent=1917 // loop_header_branch
            %3225 = sbr.rel (%p3223) target = $region1925
          $region1922: #{_clop_apply.1} parent=1917 // loop_body
            %v3229 = vld [vmem:[%s3227] sm:%s3220]
            %3230 = vst [vmem:[%s3228] sm:%s3220] %v3229
          $region1923: #{_clop_apply.1} parent=1917 // loop_footer
            %s3226 = sadd.s32 1, %s3222
          $region1924: #{_clop_apply.1} parent=1917 // loop_footer_branch
            %3221 = sbr.rel target = $region1920
          $region1925: #{_clop_apply.1} parent=1917 // loop_exit
            _
        $region1918: #{_clop_apply.1} parent=979 // pred_fallthru
          _
        // Predicated region
        $region1937: #{_clop_apply.1} parent=979 // pred_check
          _
        $region1938: #{_clop_apply.1} parent=979 // pred_check_branch
          %3254 = sbr.rel (0) target = $region1940
        $region1939: #{_clop_apply.1} parent=979 // pred_region
          %3255 = vsyncadd %s3211, 16
        $region1940: #{_clop_apply.1} parent=979 // pred_fallthru
          _
      $region980: #{_clop_apply.1} parent=11 // pred_fallthru
        _
      %s3256 = sand.u32 %s21, 1
      %s3257 = smul.u32 %s3256, 32
      %s3258 = scalar_lea.sflag [#allocation3], %s3257
      %s3259 = smul.u32 1, 1
      %s3260 = sshll.u32 %s3259, 4
      %3261 = dma.done %s3258, %s3260
      %s3262 = sadd.s32 %s3257, 1
      %s3263 = scalar_lea.sflag [#allocation3], %s3262
      %s3264 = sshll.u32 %s3259, 4
      %3265 = dma.done %s3263, %s3264
      %s3266 = sadd.s32 %s3257, 2
      %s3267 = scalar_lea.sflag [#allocation3], %s3266
      %s3268 = sshll.u32 %s3259, 4
      %3269 = dma.done %s3267, %s3268
      %s3270 = sadd.s32 %s3257, 3
      %s3271 = scalar_lea.sflag [#allocation3], %s3270
      %s3272 = sshll.u32 %s3259, 4
      %3273 = dma.done %s3271, %s3272
      %s3274 = sadd.s32 %s3257, 4
      %s3275 = scalar_lea.sflag [#allocation3], %s3274
      %s3276 = sshll.u32 %s3259, 4
      %3277 = dma.done %s3275, %s3276
      %s3278 = sadd.s32 %s3257, 5
      %s3279 = scalar_lea.sflag [#allocation3], %s3278
      %s3280 = sshll.u32 %s3259, 4
      %3281 = dma.done %s3279, %s3280
      %s3282 = sadd.s32 %s3257, 6
      %s3283 = scalar_lea.sflag [#allocation3], %s3282
      %s3284 = sshll.u32 %s3259, 4
      %3285 = dma.done %s3283, %s3284
      %s3286 = sadd.s32 %s3257, 7
      %s3287 = scalar_lea.sflag [#allocation3], %s3286
      %s3288 = sshll.u32 %s3259, 4
      %3289 = dma.done %s3287, %s3288
      %s3290 = sadd.s32 %s3257, 8
      %s3291 = scalar_lea.sflag [#allocation3], %s3290
      %s3292 = sshll.u32 %s3259, 4
      %3293 = dma.done %s3291, %s3292
      %s3294 = sadd.s32 %s3257, 9
      %s3295 = scalar_lea.sflag [#allocation3], %s3294
      %s3296 = sshll.u32 %s3259, 4
      %3297 = dma.done %s3295, %s3296
      %s3298 = sadd.s32 %s3257, 10
      %s3299 = scalar_lea.sflag [#allocation3], %s3298
      %s3300 = sshll.u32 %s3259, 4
      %3301 = dma.done %s3299, %s3300
      %s3302 = sadd.s32 %s3257, 11
      %s3303 = scalar_lea.sflag [#allocation3], %s3302
      %s3304 = sshll.u32 %s3259, 4
      %3305 = dma.done %s3303, %s3304
      %s3306 = sadd.s32 %s3257, 12
      %s3307 = scalar_lea.sflag [#allocation3], %s3306
      %s3308 = sshll.u32 %s3259, 4
      %3309 = dma.done %s3307, %s3308
      %s3310 = sadd.s32 %s3257, 13
      %s3311 = scalar_lea.sflag [#allocation3], %s3310
      %s3312 = sshll.u32 %s3259, 4
      %3313 = dma.done %s3311, %s3312
      %s3314 = sadd.s32 %s3257, 14
      %s3315 = scalar_lea.sflag [#allocation3], %s3314
      %s3316 = sshll.u32 %s3259, 4
      %3317 = dma.done %s3315, %s3316
      %s3318 = sadd.s32 %s3257, 15
      %s3319 = scalar_lea.sflag [#allocation3], %s3318
      %s3320 = sshll.u32 %s3259, 4
      %3321 = dma.done %s3319, %s3320
      %s3322 = sadd.s32 %s3257, 16
      %s3323 = scalar_lea.sflag [#allocation3], %s3322
      %s3324 = sshll.u32 %s3259, 4
      %3325 = dma.done %s3323, %s3324
      %s3326 = sadd.s32 %s3257, 17
      %s3327 = scalar_lea.sflag [#allocation3], %s3326
      %s3328 = sshll.u32 %s3259, 4
      %3329 = dma.done %s3327, %s3328
      %s3330 = sadd.s32 %s3257, 18
      %s3331 = scalar_lea.sflag [#allocation3], %s3330
      %s3332 = sshll.u32 %s3259, 4
      %3333 = dma.done %s3331, %s3332
      %s3334 = sadd.s32 %s3257, 19
      %s3335 = scalar_lea.sflag [#allocation3], %s3334
      %s3336 = sshll.u32 %s3259, 4
      %3337 = dma.done %s3335, %s3336
      %s3338 = sadd.s32 %s3257, 20
      %s3339 = scalar_lea.sflag [#allocation3], %s3338
      %s3340 = sshll.u32 %s3259, 4
      %3341 = dma.done %s3339, %s3340
      %s3342 = sadd.s32 %s3257, 21
      %s3343 = scalar_lea.sflag [#allocation3], %s3342
      %s3344 = sshll.u32 %s3259, 4
      %3345 = dma.done %s3343, %s3344
      %s3346 = sadd.s32 %s3257, 22
      %s3347 = scalar_lea.sflag [#allocation3], %s3346
      %s3348 = sshll.u32 %s3259, 4
      %3349 = dma.done %s3347, %s3348
      %s3350 = sadd.s32 %s3257, 23
      %s3351 = scalar_lea.sflag [#allocation3], %s3350
      %s3352 = sshll.u32 %s3259, 4
      %3353 = dma.done %s3351, %s3352
      %s3354 = sadd.s32 %s3257, 24
      %s3355 = scalar_lea.sflag [#allocation3], %s3354
      %s3356 = sshll.u32 %s3259, 4
      %3357 = dma.done %s3355, %s3356
      %s3358 = sadd.s32 %s3257, 25
      %s3359 = scalar_lea.sflag [#allocation3], %s3358
      %s3360 = sshll.u32 %s3259, 4
      %3361 = dma.done %s3359, %s3360
      %s3362 = sadd.s32 %s3257, 26
      %s3363 = scalar_lea.sflag [#allocation3], %s3362
      %s3364 = sshll.u32 %s3259, 4
      %3365 = dma.done %s3363, %s3364
      %s3366 = sadd.s32 %s3257, 27
      %s3367 = scalar_lea.sflag [#allocation3], %s3366
      %s3368 = sshll.u32 %s3259, 4
      %3369 = dma.done %s3367, %s3368
      %s3370 = sadd.s32 %s3257, 28
      %s3371 = scalar_lea.sflag [#allocation3], %s3370
      %s3372 = sshll.u32 %s3259, 4
      %3373 = dma.done %s3371, %s3372
      %s3374 = sadd.s32 %s3257, 29
      %s3375 = scalar_lea.sflag [#allocation3], %s3374
      %s3376 = sshll.u32 %s3259, 4
      %3377 = dma.done %s3375, %s3376
      %s3378 = sadd.s32 %s3257, 30
      %s3379 = scalar_lea.sflag [#allocation3], %s3378
      %s3380 = sshll.u32 %s3259, 4
      %3381 = dma.done %s3379, %s3380
      %s3382 = sadd.s32 %s3257, 31
      %s3383 = scalar_lea.sflag [#allocation3], %s3382
      %s3384 = sshll.u32 %s3259, 4
      %3385 = dma.done %s3383, %s3384
      %s3386 = scalar_lea.vmem [#allocation2], %s3257
      %v3387 = vld [vmem:[%s3386] sm:$0xff]
      %v3388 = vld [vmem:[%s3386 + $0x8] sm:$0xff]
      %v3389 = vld [vmem:[%s3386 + $0x10] sm:$0xff]
      %v3390 = vld [vmem:[%s3386 + $0x18] sm:$0xff]
      %vm3391 = vcmask 64512
      %3392 = vst.msk [vmem:[%s73] sm:$0xff] %vm3391, %v3387
      %3393 = vst.msk [vmem:[%s73 + $0x8] sm:$0xff] %vm3391, %v3388
      %3394 = vst.msk [vmem:[%s73 + $0x10] sm:$0xff] %vm3391, %v3389
      %3395 = vst.msk [vmem:[%s73 + $0x18] sm:$0xff] %vm3391, %v3390
      %s3396 = smul.u32 %s20, 4
      %s3397 = sadd.s32 %s3396, %s21
      %s3398 = smul.u32 4, %s3397
      %p3399 = scmp.lt.s32.totalorder %s3398, 31
      %s3400 = scalar_select %p3399, %s3398, 31
      %s3401 = smul.addr %s3400, 8
      %s3402 = scalar_lea.vmem %s2, %s3401
      // Predicated region
      $region1941: #{_clop_apply.1} parent=11 // pred_check
        %p3403 = pneg %p43
      $region1942: #{_clop_apply.1} parent=11 // pred_check_branch
        %3405 = sbr.rel (%p3403) target = $region1944
      $region1943: #{_clop_apply.1} parent=11 // pred_region
        %s3406 = smul.u32 %s20, 4
        %s3407 = sadd.s32 %s3406, %s21
        %s3408 = smul.u32 4, %s3407
      $region1944: #{_clop_apply.1} parent=11 // pred_fallthru
        _
    $region12: #{_clop_apply.1} parent=5 // pred_fallthru
      _
    %p3409 = scmp.le.s32.totalorder 1, %s14
    // Predicated region
    $region1945: #{_clop_apply.1} parent=5 // pred_check
      %p3410 = pneg %p3409
    $region1946: #{_clop_apply.1} parent=5 // pred_check_branch
      %3412 = sbr.rel (%p3410) target = $region1948
    $region1947: #{_clop_apply.1} parent=5 // pred_region
      %s3413 = ssub.s32 %s14, 1
      // Predicated region
      $region1949: #{_clop_apply.1} parent=1947 // pred_check
        %p3414 = pneg %p49
      $region1950: #{_clop_apply.1} parent=1947 // pred_check_branch
        %3416 = sbr.rel (%p3414) target = $region1952
      $region1951: #{_clop_apply.1} parent=1947 // pred_region
        %s3417 = smul.u32 %s22, 4
        %s3418 = sadd.s32 %s3417, %s23
        %s3419 = smul.u32 4, %s3418
        %p3420 = scmp.lt.s32.totalorder %s3419, 31
        %s3421 = scalar_select %p3420, %s3419, 31
        %s3422 = smul.addr %s3421, 8
        %s3423 = scalar_lea.vmem %s2, %s3422
      $region1952: #{_clop_apply.1} parent=1947 // pred_fallthru
        _
    $region1948: #{_clop_apply.1} parent=5 // pred_fallthru
      _
  $region6: #{_clop_apply.1} parent=0 // loop_footer
    %s18 = sadd.s32 1, %s14
  $region7: #{_clop_apply.1} parent=0 // loop_footer_branch
    %13 = sbr.rel target = $region3
  $region8: #{_clop_apply.1} parent=0 // loop_exit
    _
  %3424 = vsyncmov [#allocation3]
  %s3425 = vpop.sfrf %3424
  %p3426 = scmp.eq.s32.totalorder %s3425, 0
  %p3427 = pneg %p3426
  %3429 = shalt.err (%p3427)
  %s3430 = scalar_lea.sflag [#allocation3], 1
  %3431 = vsyncmov %s3430
  %s3432 = vpop.sfrf %3431
  %p3433 = scmp.eq.s32.totalorder %s3432, 0
  %p3434 = pneg %p3433
  %3436 = shalt.err (%p3434)
  %s3437 = scalar_lea.sflag [#allocation3], 2
  %3438 = vsyncmov %s3437
  %s3439 = vpop.sfrf %3438
  %p3440 = scmp.eq.s32.totalorder %s3439, 0
  %p3441 = pneg %p3440
  %3443 = shalt.err (%p3441)
  %s3444 = scalar_lea.sflag [#allocation3], 3
  %3445 = vsyncmov %s3444
  %s3446 = vpop.sfrf %3445
  %p3447 = scmp.eq.s32.totalorder %s3446, 0
  %p3448 = pneg %p3447
  %3450 = shalt.err (%p3448)
  %s3451 = scalar_lea.sflag [#allocation3], 4
  %3452 = vsyncmov %s3451
  %s3453 = vpop.sfrf %3452
  %p3454 = scmp.eq.s32.totalorder %s3453, 0
  %p3455 = pneg %p3454
  %3457 = shalt.err (%p3455)
  %s3458 = scalar_lea.sflag [#allocation3], 5
  %3459 = vsyncmov %s3458
  %s3460 = vpop.sfrf %3459
  %p3461 = scmp.eq.s32.totalorder %s3460, 0
  %p3462 = pneg %p3461
  %3464 = shalt.err (%p3462)
  %s3465 = scalar_lea.sflag [#allocation3], 6
  %3466 = vsyncmov %s3465
  %s3467 = vpop.sfrf %3466
  %p3468 = scmp.eq.s32.totalorder %s3467, 0
  %p3469 = pneg %p3468
  %3471 = shalt.err (%p3469)
  %s3472 = scalar_lea.sflag [#allocation3], 7
  %3473 = vsyncmov %s3472
  %s3474 = vpop.sfrf %3473
  %p3475 = scmp.eq.s32.totalorder %s3474, 0
  %p3476 = pneg %p3475
  %3478 = shalt.err (%p3476)
  %s3479 = scalar_lea.sflag [#allocation3], 8
  %3480 = vsyncmov %s3479
  %s3481 = vpop.sfrf %3480
  %p3482 = scmp.eq.s32.totalorder %s3481, 0
  %p3483 = pneg %p3482
  %3485 = shalt.err (%p3483)
  %s3486 = scalar_lea.sflag [#allocation3], 9
  %3487 = vsyncmov %s3486
  %s3488 = vpop.sfrf %3487
  %p3489 = scmp.eq.s32.totalorder %s3488, 0
  %p3490 = pneg %p3489
  %3492 = shalt.err (%p3490)
  %s3493 = scalar_lea.sflag [#allocation3], 10
  %3494 = vsyncmov %s3493
  %s3495 = vpop.sfrf %3494
  %p3496 = scmp.eq.s32.totalorder %s3495, 0
  %p3497 = pneg %p3496
  %3499 = shalt.err (%p3497)
  %s3500 = scalar_lea.sflag [#allocation3], 11
  %3501 = vsyncmov %s3500
  %s3502 = vpop.sfrf %3501
  %p3503 = scmp.eq.s32.totalorder %s3502, 0
  %p3504 = pneg %p3503
  %3506 = shalt.err (%p3504)
  %s3507 = scalar_lea.sflag [#allocation3], 12
  %3508 = vsyncmov %s3507
  %s3509 = vpop.sfrf %3508
  %p3510 = scmp.eq.s32.totalorder %s3509, 0
  %p3511 = pneg %p3510
  %3513 = shalt.err (%p3511)
  %s3514 = scalar_lea.sflag [#allocation3], 13
  %3515 = vsyncmov %s3514
  %s3516 = vpop.sfrf %3515
  %p3517 = scmp.eq.s32.totalorder %s3516, 0
  %p3518 = pneg %p3517
  %3520 = shalt.err (%p3518)
  %s3521 = scalar_lea.sflag [#allocation3], 14
  %3522 = vsyncmov %s3521
  %s3523 = vpop.sfrf %3522
  %p3524 = scmp.eq.s32.totalorder %s3523, 0
  %p3525 = pneg %p3524
  %3527 = shalt.err (%p3525)
  %s3528 = scalar_lea.sflag [#allocation3], 15
  %3529 = vsyncmov %s3528
  %s3530 = vpop.sfrf %3529
  %p3531 = scmp.eq.s32.totalorder %s3530, 0
  %p3532 = pneg %p3531
  %3534 = shalt.err (%p3532)
  %s3535 = scalar_lea.sflag [#allocation3], 16
  %3536 = vsyncmov %s3535
  %s3537 = vpop.sfrf %3536
  %p3538 = scmp.eq.s32.totalorder %s3537, 0
  %p3539 = pneg %p3538
  %3541 = shalt.err (%p3539)
  %s3542 = scalar_lea.sflag [#allocation3], 17
  %3543 = vsyncmov %s3542
  %s3544 = vpop.sfrf %3543
  %p3545 = scmp.eq.s32.totalorder %s3544, 0
  %p3546 = pneg %p3545
  %3548 = shalt.err (%p3546)
  %s3549 = scalar_lea.sflag [#allocation3], 18
  %3550 = vsyncmov %s3549
  %s3551 = vpop.sfrf %3550
  %p3552 = scmp.eq.s32.totalorder %s3551, 0
  %p3553 = pneg %p3552
  %3555 = shalt.err (%p3553)
  %s3556 = scalar_lea.sflag [#allocation3], 19
  %3557 = vsyncmov %s3556
  %s3558 = vpop.sfrf %3557
  %p3559 = scmp.eq.s32.totalorder %s3558, 0
  %p3560 = pneg %p3559
  %3562 = shalt.err (%p3560)
  %s3563 = scalar_lea.sflag [#allocation3], 20
  %3564 = vsyncmov %s3563
  %s3565 = vpop.sfrf %3564
  %p3566 = scmp.eq.s32.totalorder %s3565, 0
  %p3567 = pneg %p3566
  %3569 = shalt.err (%p3567)
  %s3570 = scalar_lea.sflag [#allocation3], 21
  %3571 = vsyncmov %s3570
  %s3572 = vpop.sfrf %3571
  %p3573 = scmp.eq.s32.totalorder %s3572, 0
  %p3574 = pneg %p3573
  %3576 = shalt.err (%p3574)
  %s3577 = scalar_lea.sflag [#allocation3], 22
  %3578 = vsyncmov %s3577
  %s3579 = vpop.sfrf %3578
  %p3580 = scmp.eq.s32.totalorder %s3579, 0
  %p3581 = pneg %p3580
  %3583 = shalt.err (%p3581)
  %s3584 = scalar_lea.sflag [#allocation3], 23
  %3585 = vsyncmov %s3584
  %s3586 = vpop.sfrf %3585
  %p3587 = scmp.eq.s32.totalorder %s3586, 0
  %p3588 = pneg %p3587
  %3590 = shalt.err (%p3588)
  %s3591 = scalar_lea.sflag [#allocation3], 24
  %3592 = vsyncmov %s3591
  %s3593 = vpop.sfrf %3592
  %p3594 = scmp.eq.s32.totalorder %s3593, 0
  %p3595 = pneg %p3594
  %3597 = shalt.err (%p3595)
  %s3598 = scalar_lea.sflag [#allocation3], 25
  %3599 = vsyncmov %s3598
  %s3600 = vpop.sfrf %3599
  %p3601 = scmp.eq.s32.totalorder %s3600, 0
  %p3602 = pneg %p3601
  %3604 = shalt.err (%p3602)
  %s3605 = scalar_lea.sflag [#allocation3], 26
  %3606 = vsyncmov %s3605
  %s3607 = vpop.sfrf %3606
  %p3608 = scmp.eq.s32.totalorder %s3607, 0
  %p3609 = pneg %p3608
  %3611 = shalt.err (%p3609)
  %s3612 = scalar_lea.sflag [#allocation3], 27
  %3613 = vsyncmov %s3612
  %s3614 = vpop.sfrf %3613
  %p3615 = scmp.eq.s32.totalorder %s3614, 0
  %p3616 = pneg %p3615
  %3618 = shalt.err (%p3616)
  %s3619 = scalar_lea.sflag [#allocation3], 28
  %3620 = vsyncmov %s3619
  %s3621 = vpop.sfrf %3620
  %p3622 = scmp.eq.s32.totalorder %s3621, 0
  %p3623 = pneg %p3622
  %3625 = shalt.err (%p3623)
  %s3626 = scalar_lea.sflag [#allocation3], 29
  %3627 = vsyncmov %s3626
  %s3628 = vpop.sfrf %3627
  %p3629 = scmp.eq.s32.totalorder %s3628, 0
  %p3630 = pneg %p3629
  %3632 = shalt.err (%p3630)
  %s3633 = scalar_lea.sflag [#allocation3], 30
  %3634 = vsyncmov %s3633
  %s3635 = vpop.sfrf %3634
  %p3636 = scmp.eq.s32.totalorder %s3635, 0
  %p3637 = pneg %p3636
  %3639 = shalt.err (%p3637)
  %s3640 = scalar_lea.sflag [#allocation3], 31
  %3641 = vsyncmov %s3640
  %s3642 = vpop.sfrf %3641
  %p3643 = scmp.eq.s32.totalorder %s3642, 0
  %p3644 = pneg %p3643
  %3646 = shalt.err (%p3644)
  %s3647 = scalar_lea.sflag [#allocation3], 32
  %3648 = vsyncmov %s3647
  %s3649 = vpop.sfrf %3648
  %p3650 = scmp.eq.s32.totalorder %s3649, 0
  %p3651 = pneg %p3650
  %3653 = shalt.err (%p3651)
  %s3654 = scalar_lea.sflag [#allocation3], 33
  %3655 = vsyncmov %s3654
  %s3656 = vpop.sfrf %3655
  %p3657 = scmp.eq.s32.totalorder %s3656, 0
  %p3658 = pneg %p3657
  %3660 = shalt.err (%p3658)
  %s3661 = scalar_lea.sflag [#allocation3], 34
  %3662 = vsyncmov %s3661
  %s3663 = vpop.sfrf %3662
  %p3664 = scmp.eq.s32.totalorder %s3663, 0
  %p3665 = pneg %p3664
  %3667 = shalt.err (%p3665)
  %s3668 = scalar_lea.sflag [#allocation3], 35
  %3669 = vsyncmov %s3668
  %s3670 = vpop.sfrf %3669
  %p3671 = scmp.eq.s32.totalorder %s3670, 0
  %p3672 = pneg %p3671
  %3674 = shalt.err (%p3672)
  %s3675 = scalar_lea.sflag [#allocation3], 36
  %3676 = vsyncmov %s3675
  %s3677 = vpop.sfrf %3676
  %p3678 = scmp.eq.s32.totalorder %s3677, 0
  %p3679 = pneg %p3678
  %3681 = shalt.err (%p3679)
  %s3682 = scalar_lea.sflag [#allocation3], 37
  %3683 = vsyncmov %s3682
  %s3684 = vpop.sfrf %3683
  %p3685 = scmp.eq.s32.totalorder %s3684, 0
  %p3686 = pneg %p3685
  %3688 = shalt.err (%p3686)
  %s3689 = scalar_lea.sflag [#allocation3], 38
  %3690 = vsyncmov %s3689
  %s3691 = vpop.sfrf %3690
  %p3692 = scmp.eq.s32.totalorder %s3691, 0
  %p3693 = pneg %p3692
  %3695 = shalt.err (%p3693)
  %s3696 = scalar_lea.sflag [#allocation3], 39
  %3697 = vsyncmov %s3696
  %s3698 = vpop.sfrf %3697
  %p3699 = scmp.eq.s32.totalorder %s3698, 0
  %p3700 = pneg %p3699
  %3702 = shalt.err (%p3700)
  %s3703 = scalar_lea.sflag [#allocation3], 40
  %3704 = vsyncmov %s3703
  %s3705 = vpop.sfrf %3704
  %p3706 = scmp.eq.s32.totalorder %s3705, 0
  %p3707 = pneg %p3706
  %3709 = shalt.err (%p3707)
  %s3710 = scalar_lea.sflag [#allocation3], 41
  %3711 = vsyncmov %s3710
  %s3712 = vpop.sfrf %3711
  %p3713 = scmp.eq.s32.totalorder %s3712, 0
  %p3714 = pneg %p3713
  %3716 = shalt.err (%p3714)
  %s3717 = scalar_lea.sflag [#allocation3], 42
  %3718 = vsyncmov %s3717
  %s3719 = vpop.sfrf %3718
  %p3720 = scmp.eq.s32.totalorder %s3719, 0
  %p3721 = pneg %p3720
  %3723 = shalt.err (%p3721)
  %s3724 = scalar_lea.sflag [#allocation3], 43
  %3725 = vsyncmov %s3724
  %s3726 = vpop.sfrf %3725
  %p3727 = scmp.eq.s32.totalorder %s3726, 0
  %p3728 = pneg %p3727
  %3730 = shalt.err (%p3728)
  %s3731 = scalar_lea.sflag [#allocation3], 44
  %3732 = vsyncmov %s3731
  %s3733 = vpop.sfrf %3732
  %p3734 = scmp.eq.s32.totalorder %s3733, 0
  %p3735 = pneg %p3734
  %3737 = shalt.err (%p3735)
  %s3738 = scalar_lea.sflag [#allocation3], 45
  %3739 = vsyncmov %s3738
  %s3740 = vpop.sfrf %3739
  %p3741 = scmp.eq.s32.totalorder %s3740, 0
  %p3742 = pneg %p3741
  %3744 = shalt.err (%p3742)
  %s3745 = scalar_lea.sflag [#allocation3], 46
  %3746 = vsyncmov %s3745
  %s3747 = vpop.sfrf %3746
  %p3748 = scmp.eq.s32.totalorder %s3747, 0
  %p3749 = pneg %p3748
  %3751 = shalt.err (%p3749)
  %s3752 = scalar_lea.sflag [#allocation3], 47
  %3753 = vsyncmov %s3752
  %s3754 = vpop.sfrf %3753
  %p3755 = scmp.eq.s32.totalorder %s3754, 0
  %p3756 = pneg %p3755
  %3758 = shalt.err (%p3756)
  %s3759 = scalar_lea.sflag [#allocation3], 48
  %3760 = vsyncmov %s3759
  %s3761 = vpop.sfrf %3760
  %p3762 = scmp.eq.s32.totalorder %s3761, 0
  %p3763 = pneg %p3762
  %3765 = shalt.err (%p3763)
  %s3766 = scalar_lea.sflag [#allocation3], 49
  %3767 = vsyncmov %s3766
  %s3768 = vpop.sfrf %3767
  %p3769 = scmp.eq.s32.totalorder %s3768, 0
  %p3770 = pneg %p3769
  %3772 = shalt.err (%p3770)
  %s3773 = scalar_lea.sflag [#allocation3], 50
  %3774 = vsyncmov %s3773
  %s3775 = vpop.sfrf %3774
  %p3776 = scmp.eq.s32.totalorder %s3775, 0
  %p3777 = pneg %p3776
  %3779 = shalt.err (%p3777)
  %s3780 = scalar_lea.sflag [#allocation3], 51
  %3781 = vsyncmov %s3780
  %s3782 = vpop.sfrf %3781
  %p3783 = scmp.eq.s32.totalorder %s3782, 0
  %p3784 = pneg %p3783
  %3786 = shalt.err (%p3784)
  %s3787 = scalar_lea.sflag [#allocation3], 52
  %3788 = vsyncmov %s3787
  %s3789 = vpop.sfrf %3788
  %p3790 = scmp.eq.s32.totalorder %s3789, 0
  %p3791 = pneg %p3790
  %3793 = shalt.err (%p3791)
  %s3794 = scalar_lea.sflag [#allocation3], 53
  %3795 = vsyncmov %s3794
  %s3796 = vpop.sfrf %3795
  %p3797 = scmp.eq.s32.totalorder %s3796, 0
  %p3798 = pneg %p3797
  %3800 = shalt.err (%p3798)
  %s3801 = scalar_lea.sflag [#allocation3], 54
  %3802 = vsyncmov %s3801
  %s3803 = vpop.sfrf %3802
  %p3804 = scmp.eq.s32.totalorder %s3803, 0
  %p3805 = pneg %p3804
  %3807 = shalt.err (%p3805)
  %s3808 = scalar_lea.sflag [#allocation3], 55
  %3809 = vsyncmov %s3808
  %s3810 = vpop.sfrf %3809
  %p3811 = scmp.eq.s32.totalorder %s3810, 0
  %p3812 = pneg %p3811
  %3814 = shalt.err (%p3812)
  %s3815 = scalar_lea.sflag [#allocation3], 56
  %3816 = vsyncmov %s3815
  %s3817 = vpop.sfrf %3816
  %p3818 = scmp.eq.s32.totalorder %s3817, 0
  %p3819 = pneg %p3818
  %3821 = shalt.err (%p3819)
  %s3822 = scalar_lea.sflag [#allocation3], 57
  %3823 = vsyncmov %s3822
  %s3824 = vpop.sfrf %3823
  %p3825 = scmp.eq.s32.totalorder %s3824, 0
  %p3826 = pneg %p3825
  %3828 = shalt.err (%p3826)
  %s3829 = scalar_lea.sflag [#allocation3], 58
  %3830 = vsyncmov %s3829
  %s3831 = vpop.sfrf %3830
  %p3832 = scmp.eq.s32.totalorder %s3831, 0
  %p3833 = pneg %p3832
  %3835 = shalt.err (%p3833)
  %s3836 = scalar_lea.sflag [#allocation3], 59
  %3837 = vsyncmov %s3836
  %s3838 = vpop.sfrf %3837
  %p3839 = scmp.eq.s32.totalorder %s3838, 0
  %p3840 = pneg %p3839
  %3842 = shalt.err (%p3840)
  %s3843 = scalar_lea.sflag [#allocation3], 60
  %3844 = vsyncmov %s3843
  %s3845 = vpop.sfrf %3844
  %p3846 = scmp.eq.s32.totalorder %s3845, 0
  %p3847 = pneg %p3846
  %3849 = shalt.err (%p3847)
  %s3850 = scalar_lea.sflag [#allocation3], 61
  %3851 = vsyncmov %s3850
  %s3852 = vpop.sfrf %3851
  %p3853 = scmp.eq.s32.totalorder %s3852, 0
  %p3854 = pneg %p3853
  %3856 = shalt.err (%p3854)
  %s3857 = scalar_lea.sflag [#allocation3], 62
  %3858 = vsyncmov %s3857
  %s3859 = vpop.sfrf %3858
  %p3860 = scmp.eq.s32.totalorder %s3859, 0
  %p3861 = pneg %p3860
  %3863 = shalt.err (%p3861)
  %s3864 = scalar_lea.sflag [#allocation3], 63
  %3865 = vsyncmov %s3864
  %s3866 = vpop.sfrf %3865
  %p3867 = scmp.eq.s32.totalorder %s3866, 0
  %p3868 = pneg %p3867
  %3870 = shalt.err (%p3868)

</llo_original>
